<compile_context>
chip_gen: v6e
topology: v6e:2x2x1
jax: 0.10.0
libtpu: 0.0.40
codegen_flags: <defaults>
</compile_context>

<pallas_src>
import math

import jax
import jax.numpy as jnp
import numpy as np
from jax import lax
from jax.experimental import pallas as pl
from jax.experimental.pallas import tpu as pltpu

EPS = 1e-5
EXPANSION = 4


def _ds(start, size, stride):
    return pl.ds(start, size) if stride == 1 else pl.ds(start, size, stride)


def _make_kernel(N, H, W, Cin, P, stride, has_proj, fuse_im2col):
    Cout = EXPANSION * P
    Ho = (H - 1) // stride + 1
    Wo = (W - 1) // stride + 1
    M1 = N * H * W
    M2 = N * Ho * Wo

    def kernel(*refs):
        if has_proj:
            (x_ref, w1_ref, g1_ref, b1_ref, w2_ref, g2_ref, b2_ref,
             w3_ref, g3_ref, b3_ref, ws_ref, gs_ref, bs_ref,
             out_ref, pad_ref) = refs
        else:
            (x_ref, w1_ref, g1_ref, b1_ref, w2_ref, g2_ref, b2_ref,
             w3_ref, g3_ref, b3_ref, out_ref, pad_ref) = refs

        # Rows of 1/M: BN means / second moments computed as (1,M)@(M,C) dots
        # so the reductions ride the MXU (which has slack) instead of the XLU.
        # Accumulation is f32 on f32 conv accumulators -> stats stay accurate.
        inv_m1 = jnp.full((1, M1), 1.0 / M1, jnp.float32)
        inv_m2 = jnp.full((1, M2), 1.0 / M2, jnp.float32)

        def bn_scale_shift(y, inv_m, g_ref, b_ref):
            # Training-mode BatchNorm folded to a per-channel affine:
            #   scale = gamma * rsqrt(var + eps);  shift = beta - mu * scale
            mu = jnp.dot(inv_m, y, preferred_element_type=jnp.float32)
            ey2 = jnp.dot(inv_m, y * y, preferred_element_type=jnp.float32)
            var = jnp.maximum(ey2 - mu * mu, 0.0)   # guard cancellation
            scale = g_ref[...] * lax.rsqrt(var + EPS)
            shift = b_ref[...] - mu * scale
            return scale, shift

        x = x_ref[...]                                        # (N, H, W, Cin) f32
        x2d = x.reshape(M1, Cin)
        x2d_bf = x2d.astype(jnp.bfloat16)                     # bf16 only for MXU

        # ---- conv1 (1x1) + bn1 + relu (fused affine) -----------------------
        h1_raw = jnp.dot(x2d_bf, w1_ref[...], preferred_element_type=jnp.float32)
        s1, t1 = bn_scale_shift(h1_raw, inv_m1, g1_ref, b1_ref)
        h1 = jnp.maximum(h1_raw * s1 + t1, 0.0)               # (M1, P) f32
        h1_bf = h1.astype(jnp.bfloat16).reshape(N, H, W, P)

        # ---- conv2 (3x3, stride, pad=1) -------------------------------------
        # Build the 1-pixel halo in registers and store the padded activation
        # with a single dense whole-buffer store (no masked interior vst).
        zrow = jnp.zeros((N, 1, W, P), jnp.bfloat16)
        zcol = jnp.zeros((N, H + 2, 1, P), jnp.bfloat16)
        padded = jnp.concatenate([zrow, h1_bf, zrow], axis=1)   # (N, H+2, W,   P)
        padded = jnp.concatenate([zcol, padded, zcol], axis=2)  # (N, H+2, W+2, P)
        pad_ref[...] = padded

        taps = []
        for kh in range(3):
            for kw in range(3):
                win = pad_ref[:, _ds(kh, Ho, stride), _ds(kw, Wo, stride), :]
                taps.append(win.reshape(M2, P))                 # bf16

        if fuse_im2col:
            # w2 is pre-flattened to (9*P, P) in (kh, kw, cin)-major order by
            # the wrapper, matching the tap concatenation order above.
            im2col = jnp.concatenate(taps, axis=1)              # (M2, 9*P) bf16
            h2_raw = jnp.dot(im2col, w2_ref[...],
                             preferred_element_type=jnp.float32)
        else:
            # No (M2, 9P) slab: nine per-tap dots accumulating into one f32
            # accumulator (preferred on v7x / large shapes).
            h2_raw = jnp.zeros((M2, P), jnp.float32)
            for t in range(9):
                h2_raw = h2_raw + jnp.dot(
                    taps[t], w2_ref[t * P:(t + 1) * P, :],
                    preferred_element_type=jnp.float32)

        s2, t2 = bn_scale_shift(h2_raw, inv_m2, g2_ref, b2_ref)
        h2 = jnp.maximum(h2_raw * s2 + t2, 0.0)                 # (M2, P) f32

        # ---- conv3 (1x1) + bn3 (relu deferred past the residual add) --------
        h3_raw = jnp.dot(h2.astype(jnp.bfloat16), w3_ref[...],
                         preferred_element_type=jnp.float32)
        s3, t3 = bn_scale_shift(h3_raw, inv_m2, g3_ref, b3_ref)
        h3 = h3_raw * s3 + t3                                   # (M2, Cout) f32

        # ---- shortcut --------------------------------------------------------
        if has_proj:
            if stride == 1:
                xs_bf = x2d_bf
            else:
                xs_bf = x_ref[:, _ds(0, Ho, stride), _ds(0, Wo, stride), :
                              ].reshape(M2, Cin).astype(jnp.bfloat16)
            sc_raw = jnp.dot(xs_bf, ws_ref[...],
                             preferred_element_type=jnp.float32)
            ss, ts = bn_scale_shift(sc_raw, inv_m2, gs_ref, bs_ref)
            sc = sc_raw * ss + ts
        else:
            sc = x2d                                            # exact f32 identity

        out_ref[...] = jnp.maximum(h3 + sc, 0.0).reshape(N, Ho, Wo, Cout)

    return kernel


def bottleneck_forward_nhwc(x_nhwc, params, stride):
    """NHWC in / NHWC out (transpose-free path)."""
    N, H, W, Cin = x_nhwc.shape
    P = params["w1"].shape[1]
    Cout = EXPANSION * P
    has_proj = (stride != 1) or (Cin != Cout)
    Ho = (H - 1) // stride + 1
    Wo = (W - 1) // stride + 1
    M1, M2 = N * H * W, N * Ho * Wo
    bf = jnp.bfloat16

    # x stays f32 (exact identity residual + f32 BN stats); weights go to the
    # MXU only, so ship them as bf16 (halves their HBM traffic).
    args = [x_nhwc.astype(jnp.float32),
            params["w1"].astype(bf), params["g1"], params["b1"],
            params["w2"].reshape(9 * P, P).astype(bf),   # HWIO -> (kh*kw*cin, cout)
            params["g2"], params["b2"],
            params["w3"].astype(bf), params["g3"], params["b3"]]
    if has_proj:
        args += [params["ws"].astype(bf), params["gs"], params["bs"]]

    # ---- VMEM budget & conv2 strategy (generation-aware) --------------------
    try:
        vmem_cap = int(pltpu.get_tpu_info().vmem_capacity_bytes)
    except Exception:                                   # CPU / interpret fallback
        vmem_cap = 64 * 1024 * 1024

    in_bytes = sum(int(np.prod(a.shape)) * a.dtype.itemsize for a in args)
    out_bytes = N * Ho * Wo * Cout * 4
    pad_bytes = N * (H + 2) * (W + 2) * P * 2                      # bf16 scratch
    act_bytes = (4 * (2 * M1 * P + 2 * M2 * P + 3 * M2 * Cout)     # f32 live values
                 + 2 * (M1 * P + M2 * P))                          # bf16 casts
    slab_bytes = M2 * 9 * P * 2                                    # bf16 im2col

    base_bytes = in_bytes + out_bytes + pad_bytes + act_bytes
    # Fuse into one K=9P matmul only when the slab comfortably fits; otherwise
    # use nine accumulating per-tap dots (v7x: 64 MiB/TC, or large shapes).
    fuse_im2col = (base_bytes + slab_bytes) * 1.25 <= 0.5 * vmem_cap

    need = base_bytes + (slab_bytes if fuse_im2col else 0)
    vmem_limit = int(min(max(need * 1.25, 32 * 1024 * 1024), 0.85 * vmem_cap))

    # Advisory cost estimate so XLA can schedule neighbouring ops around us.
    flops = (2 * M1 * Cin * P                      # conv1
             + 2 * M2 * (9 * P) * P                # conv2
             + 2 * M2 * P * Cout                   # conv3
             + 4 * (M1 * P + M2 * P + M2 * Cout))  # BN moment dots
    n_bn_ch = P + P + Cout
    if has_proj:
        flops += 2 * M2 * Cin * Cout + 4 * M2 * Cout
        n_bn_ch += Cout
    cost = pl.CostEstimate(flops=int(flops), transcendentals=int(n_bn_ch),
                           bytes_accessed=int(in_bytes + out_bytes))

    return pl.pallas_call(
        _make_kernel(N, H, W, Cin, P, stride, has_proj, fuse_im2col),
        out_shape=jax.ShapeDtypeStruct((N, Ho, Wo, Cout), jnp.float32),
        in_specs=[pl.BlockSpec(memory_space=pltpu.MemorySpace.VMEM)] * len(args),
        out_specs=pl.BlockSpec(memory_space=pltpu.MemorySpace.VMEM),
        scratch_shapes=[pltpu.VMEM((N, H + 2, W + 2, P), jnp.bfloat16)],
        compiler_params=pltpu.CompilerParams(vmem_limit_bytes=vmem_limit),
        cost_estimate=cost,
    )(*args)


def bottleneck_forward(x_nchw, params, stride):
    """PyTorch-layout wrapper: NCHW in / NCHW out (transposes only here)."""
    x = jnp.transpose(x_nchw, (0, 2, 3, 1))
    out = bottleneck_forward_nhwc(x, params, stride)
    return jnp.transpose(out, (0, 3, 1, 2))


# ----------------------------- pure-JAX reference ---------------------------

def _bn_nhwc(x, gamma, beta):
    mu = jnp.mean(x, axis=(0, 1, 2), keepdims=True)
    var = jnp.mean((x - mu) ** 2, axis=(0, 1, 2), keepdims=True)
    return ((x - mu) * lax.rsqrt(var + EPS) * gamma.reshape(1, 1, 1, -1)
            + beta.reshape(1, 1, 1, -1))


def _q(x):
    """Quantize to bf16 and back: mirrors the kernel's bf16 MXU operands."""
    return x.astype(jnp.bfloat16).astype(jnp.float32)


def bottleneck_ref(x_nchw, params, stride):
    x = jnp.transpose(x_nchw, (0, 2, 3, 1)).astype(jnp.float32)
    Cin = x.shape[-1]
    P = params["w1"].shape[1]
    Cout = EXPANSION * P
    has_proj = (stride != 1) or (Cin != Cout)
    dn = ("NHWC", "HWIO", "NHWC")
    hp = lax.Precision.HIGHEST

    h = lax.conv_general_dilated(_q(x), _q(params["w1"])[None, None], (1, 1),
                                 "VALID", dimension_numbers=dn, precision=hp)
    h = jax.nn.relu(_bn_nhwc(h, params["g1"], params["b1"]))
    h = lax.conv_general_dilated(_q(h), _q(params["w2"]), (stride, stride),
                                 ((1, 1), (1, 1)), dimension_numbers=dn,
                                 precision=hp)
    h = jax.nn.relu(_bn_nhwc(h, params["g2"], params["b2"]))
    h = lax.conv_general_dilated(_q(h), _q(params["w3"])[None, None], (1, 1),
                                 "VALID", dimension_numbers=dn, precision=hp)
    h = _bn_nhwc(h, params["g3"], params["b3"])
    if has_proj:
        sc = lax.conv_general_dilated(_q(x), _q(params["ws"])[None, None],
                                      (stride, stride), "VALID",
                                      dimension_numbers=dn, precision=hp)
        sc = _bn_nhwc(sc, params["gs"], params["bs"])
    else:
        sc = x
    out = jax.nn.relu(h + sc)
    return jnp.transpose(out, (0, 3, 1, 2))


# ----------------------------- deterministic init ---------------------------

def init_params(key, in_planes, planes):
    cout = EXPANSION * planes
    ks = jax.random.split(key, 12)

    def conv_w(k, shape, fan_in):
        return jax.random.normal(k, shape, jnp.float32) / math.sqrt(fan_in)

    def bn_p(kg, kb, c):
        g = 1.0 + 0.1 * jax.random.normal(kg, (1, c), jnp.float32)
        b = 0.1 * jax.random.normal(kb, (1, c), jnp.float32)
        return g, b

    p = {}
    p["w1"] = conv_w(ks[0], (in_planes, planes), in_planes)          # 1x1: (Cin, P)
    p["g1"], p["b1"] = bn_p(ks[1], ks[2], planes)
    p["w2"] = conv_w(ks[3], (3, 3, planes, planes), 9 * planes)      # HWIO
    p["g2"], p["b2"] = bn_p(ks[4], ks[5], planes)
    p["w3"] = conv_w(ks[6], (planes, cout), planes)                  # 1x1: (P, Cout)
    p["g3"], p["b3"] = bn_p(ks[7], ks[8], cout)
    p["ws"] = conv_w(ks[9], (in_planes, cout), in_planes)            # shortcut 1x1
    p["gs"], p["bs"] = bn_p(ks[10], ks[11], cout)
    return p


if __name__ == "__main__":
    key = jax.random.PRNGKey(0)
    N, H, W = 2, 16, 16
    configs = [
        # (in_planes, planes, stride)
        (16, 8, 1),   # projection shortcut (channel change), stride 1
        (32, 8, 2),   # projection shortcut with spatial stride 2
        (32, 8, 1),   # identity shortcut (in_planes == 4 * planes, stride 1)
    ]
    for idx, (cin, planes, stride) in enumerate(configs):
        kp, kx = jax.random.split(jax.random.fold_in(key, idx))
        params = init_params(kp, cin, planes)
        x = jax.random.normal(kx, (N, cin, H, W), jnp.float32)       # NCHW like PyTorch
        out = jax.block_until_ready(bottleneck_forward(x, params, stride))
        ref = jax.block_until_ready(bottleneck_ref(x, params, stride))
        assert out.shape == ref.shape, (out.shape, ref.shape)
        err = float(jnp.max(jnp.abs(out - ref)))
        # bf16 MXU operands on both sides; residual mismatch is accumulation
        # order + occasional 1-ulp bf16 rounding flips of intermediates.
        assert np.isfinite(err) and err < 2e-2, f"config {idx}: max abs err {err}"
    print("KERNEL_OK")
</pallas_src>

<mosaic_0001>
module attributes {stable_mosaic.version = 11 : i64} {
  func.func @kernel(%arg0: memref<2x16x16x16xf32, #tpu.memory_space<vmem>>, %arg1: memref<16x8xbf16, #tpu.memory_space<vmem>>, %arg2: memref<1x8xf32, #tpu.memory_space<vmem>>, %arg3: memref<1x8xf32, #tpu.memory_space<vmem>>, %arg4: memref<72x8xbf16, #tpu.memory_space<vmem>>, %arg5: memref<1x8xf32, #tpu.memory_space<vmem>>, %arg6: memref<1x8xf32, #tpu.memory_space<vmem>>, %arg7: memref<8x32xbf16, #tpu.memory_space<vmem>>, %arg8: memref<1x32xf32, #tpu.memory_space<vmem>>, %arg9: memref<1x32xf32, #tpu.memory_space<vmem>>, %arg10: memref<16x32xbf16, #tpu.memory_space<vmem>>, %arg11: memref<1x32xf32, #tpu.memory_space<vmem>>, %arg12: memref<1x32xf32, #tpu.memory_space<vmem>>, %arg13: memref<2x16x16x32xf32, #tpu.memory_space<vmem>>, %arg14: memref<2x18x18x8xbf16, #tpu.memory_space<vmem>>) attributes {dimension_semantics = [], scalar_prefetch = 0 : i64, scratch_operands = 1 : i64, tpu.core_type = #tpu.core_type<tc>} {
    %cst = arith.constant 0.001953125 : f32
    %0 = vector.broadcast %cst : f32 to vector<1x512xf32>
    %cst_0 = arith.constant 0.001953125 : f32
    %1 = vector.broadcast %cst_0 : f32 to vector<1x512xf32>
    %c0 = arith.constant 0 : index
    %c0_1 = arith.constant 0 : index
    %c0_2 = arith.constant 0 : index
    %c0_3 = arith.constant 0 : index
    %2 = vector.load %arg0[%c0, %c0_1, %c0_2, %c0_3] : memref<2x16x16x16xf32, #tpu.memory_space<vmem>>, vector<2x16x16x16xf32>
    %3 = vector.shape_cast %2 : vector<2x16x16x16xf32> to vector<512x16xf32>
    %4 = arith.truncf %3 : vector<512x16xf32> to vector<512x16xbf16>
    %c0_4 = arith.constant 0 : index
    %c0_5 = arith.constant 0 : index
    %5 = vector.load %arg1[%c0_4, %c0_5] : memref<16x8xbf16, #tpu.memory_space<vmem>>, vector<16x8xbf16>
    %cst_6 = arith.constant dense<0.000000e+00> : vector<512x8xf32>
    %6 = tpu.matmul %4, %5, %cst_6 {dimension_numbers = #tpu.dot_dimension_numbers<[1], [0], [0], [1], [0, 0, 1, 1], [], []>} : vector<512x16xbf16>, vector<16x8xbf16>, vector<512x8xf32> -> vector<512x8xf32>
    %cst_7 = arith.constant dense<0.000000e+00> : vector<1x8xf32>
    %7 = tpu.matmul %0, %6, %cst_7 {dimension_numbers = #tpu.dot_dimension_numbers<[1], [0], [0], [1], [0, 0, 1, 1], [], []>} : vector<1x512xf32>, vector<512x8xf32>, vector<1x8xf32> -> vector<1x8xf32>
    %8 = arith.mulf %6, %6 : vector<512x8xf32>
    %cst_8 = arith.constant dense<0.000000e+00> : vector<1x8xf32>
    %9 = tpu.matmul %0, %8, %cst_8 {dimension_numbers = #tpu.dot_dimension_numbers<[1], [0], [0], [1], [0, 0, 1, 1], [], []>} : vector<1x512xf32>, vector<512x8xf32>, vector<1x8xf32> -> vector<1x8xf32>
    %10 = arith.mulf %7, %7 : vector<1x8xf32>
    %11 = arith.subf %9, %10 : vector<1x8xf32>
    %cst_9 = arith.constant 0.000000e+00 : f32
    %12 = vector.broadcast %cst_9 : f32 to vector<1x8xf32>
    %13 = arith.maximumf %11, %12 : vector<1x8xf32>
    %c0_10 = arith.constant 0 : index
    %c0_11 = arith.constant 0 : index
    %14 = vector.load %arg2[%c0_10, %c0_11] : memref<1x8xf32, #tpu.memory_space<vmem>>, vector<1x8xf32>
    %cst_12 = arith.constant 9.99999974E-6 : f32
    %15 = vector.broadcast %cst_12 : f32 to vector<1x8xf32>
    %16 = arith.addf %13, %15 : vector<1x8xf32>
    %17 = math.rsqrt %16 : vector<1x8xf32>
    %18 = arith.mulf %14, %17 : vector<1x8xf32>
    %c0_13 = arith.constant 0 : index
    %c0_14 = arith.constant 0 : index
    %19 = vector.load %arg3[%c0_13, %c0_14] : memref<1x8xf32, #tpu.memory_space<vmem>>, vector<1x8xf32>
    %20 = arith.mulf %7, %18 : vector<1x8xf32>
    %21 = arith.subf %19, %20 : vector<1x8xf32>
    %22 = vector.broadcast %18 : vector<1x8xf32> to vector<512x8xf32>
    %23 = arith.mulf %6, %22 : vector<512x8xf32>
    %24 = vector.broadcast %21 : vector<1x8xf32> to vector<512x8xf32>
    %25 = arith.addf %23, %24 : vector<512x8xf32>
    %cst_15 = arith.constant 0.000000e+00 : f32
    %26 = vector.broadcast %cst_15 : f32 to vector<512x8xf32>
    %27 = arith.maximumf %25, %26 : vector<512x8xf32>
    %28 = arith.truncf %27 : vector<512x8xf32> to vector<512x8xbf16>
    %29 = vector.shape_cast %28 : vector<512x8xbf16> to vector<2x16x16x8xbf16>
    %cst_16 = arith.constant 0.000000e+00 : bf16
    %30 = vector.broadcast %cst_16 : bf16 to vector<2x1x16x8xbf16>
    %cst_17 = arith.constant 0.000000e+00 : bf16
    %31 = vector.broadcast %cst_17 : bf16 to vector<2x18x1x8xbf16>
    %32 = tpu.concatenate %30, %29, %30 in 1 : vector<2x1x16x8xbf16>, vector<2x16x16x8xbf16>, vector<2x1x16x8xbf16> -> vector<2x18x16x8xbf16>
    %33 = tpu.concatenate %31, %32, %31 in 2 : vector<2x18x1x8xbf16>, vector<2x18x16x8xbf16>, vector<2x18x1x8xbf16> -> vector<2x18x18x8xbf16>
    %c0_18 = arith.constant 0 : index
    %c0_19 = arith.constant 0 : index
    %c0_20 = arith.constant 0 : index
    %c0_21 = arith.constant 0 : index
    %34 = vector.load %arg14[%c0_18, %c0_19, %c0_20, %c0_21] : memref<2x18x18x8xbf16, #tpu.memory_space<vmem>>, vector<2x18x18x8xbf16>
    tpu.vector_store %arg14[%c0_18, %c0_19, %c0_20, %c0_21], %33 {strides = array<i32>} : memref<2x18x18x8xbf16, #tpu.memory_space<vmem>>, vector<2x18x18x8xbf16>,
    %c0_22 = arith.constant 0 : index
    %c0_23 = arith.constant 0 : index
    %c0_24 = arith.constant 0 : index
    %c0_25 = arith.constant 0 : index
    %35 = vector.load %arg14[%c0_22, %c0_23, %c0_24, %c0_25] : memref<2x18x18x8xbf16, #tpu.memory_space<vmem>>, vector<2x16x16x8xbf16>
    %36 = vector.shape_cast %35 : vector<2x16x16x8xbf16> to vector<512x8xbf16>
    %c0_26 = arith.constant 0 : index
    %c0_27 = arith.constant 0 : index
    %c1 = arith.constant 1 : index
    %c0_28 = arith.constant 0 : index
    %37 = vector.load %arg14[%c0_26, %c0_27, %c1, %c0_28] : memref<2x18x18x8xbf16, #tpu.memory_space<vmem>>, vector<2x16x16x8xbf16>
    %38 = vector.shape_cast %37 : vector<2x16x16x8xbf16> to vector<512x8xbf16>
    %c0_29 = arith.constant 0 : index
    %c0_30 = arith.constant 0 : index
    %c2 = arith.constant 2 : index
    %c0_31 = arith.constant 0 : index
    %39 = vector.load %arg14[%c0_29, %c0_30, %c2, %c0_31] : memref<2x18x18x8xbf16, #tpu.memory_space<vmem>>, vector<2x16x16x8xbf16>
    %40 = vector.shape_cast %39 : vector<2x16x16x8xbf16> to vector<512x8xbf16>
    %c0_32 = arith.constant 0 : index
    %c1_33 = arith.constant 1 : index
    %c0_34 = arith.constant 0 : index
    %c0_35 = arith.constant 0 : index
    %41 = vector.load %arg14[%c0_32, %c1_33, %c0_34, %c0_35] : memref<2x18x18x8xbf16, #tpu.memory_space<vmem>>, vector<2x16x16x8xbf16>
    %42 = vector.shape_cast %41 : vector<2x16x16x8xbf16> to vector<512x8xbf16>
    %c0_36 = arith.constant 0 : index
    %c1_37 = arith.constant 1 : index
    %c1_38 = arith.constant 1 : index
    %c0_39 = arith.constant 0 : index
    %43 = vector.load %arg14[%c0_36, %c1_37, %c1_38, %c0_39] : memref<2x18x18x8xbf16, #tpu.memory_space<vmem>>, vector<2x16x16x8xbf16>
    %44 = vector.shape_cast %43 : vector<2x16x16x8xbf16> to vector<512x8xbf16>
    %c0_40 = arith.constant 0 : index
    %c1_41 = arith.constant 1 : index
    %c2_42 = arith.constant 2 : index
    %c0_43 = arith.constant 0 : index
    %45 = vector.load %arg14[%c0_40, %c1_41, %c2_42, %c0_43] : memref<2x18x18x8xbf16, #tpu.memory_space<vmem>>, vector<2x16x16x8xbf16>
    %46 = vector.shape_cast %45 : vector<2x16x16x8xbf16> to vector<512x8xbf16>
    %c0_44 = arith.constant 0 : index
    %c2_45 = arith.constant 2 : index
    %c0_46 = arith.constant 0 : index
    %c0_47 = arith.constant 0 : index
    %47 = vector.load %arg14[%c0_44, %c2_45, %c0_46, %c0_47] : memref<2x18x18x8xbf16, #tpu.memory_space<vmem>>, vector<2x16x16x8xbf16>
    %48 = vector.shape_cast %47 : vector<2x16x16x8xbf16> to vector<512x8xbf16>
    %c0_48 = arith.constant 0 : index
    %c2_49 = arith.constant 2 : index
    %c1_50 = arith.constant 1 : index
    %c0_51 = arith.constant 0 : index
    %49 = vector.load %arg14[%c0_48, %c2_49, %c1_50, %c0_51] : memref<2x18x18x8xbf16, #tpu.memory_space<vmem>>, vector<2x16x16x8xbf16>
    %50 = vector.shape_cast %49 : vector<2x16x16x8xbf16> to vector<512x8xbf16>
    %c0_52 = arith.constant 0 : index
    %c2_53 = arith.constant 2 : index
    %c2_54 = arith.constant 2 : index
    %c0_55 = arith.constant 0 : index
    %51 = vector.load %arg14[%c0_52, %c2_53, %c2_54, %c0_55] : memref<2x18x18x8xbf16, #tpu.memory_space<vmem>>, vector<2x16x16x8xbf16>
    %52 = vector.shape_cast %51 : vector<2x16x16x8xbf16> to vector<512x8xbf16>
    %53 = tpu.concatenate %36, %38, %40, %42, %44, %46, %48, %50, %52 in 1 : vector<512x8xbf16>, vector<512x8xbf16>, vector<512x8xbf16>, vector<512x8xbf16>, vector<512x8xbf16>, vector<512x8xbf16>, vector<512x8xbf16>, vector<512x8xbf16>, vector<512x8xbf16> -> vector<512x72xbf16>
    %c0_56 = arith.constant 0 : index
    %c0_57 = arith.constant 0 : index
    %54 = vector.load %arg4[%c0_56, %c0_57] : memref<72x8xbf16, #tpu.memory_space<vmem>>, vector<72x8xbf16>
    %cst_58 = arith.constant dense<0.000000e+00> : vector<512x8xf32>
    %55 = tpu.matmul %53, %54, %cst_58 {dimension_numbers = #tpu.dot_dimension_numbers<[1], [0], [0], [1], [0, 0, 1, 1], [], []>} : vector<512x72xbf16>, vector<72x8xbf16>, vector<512x8xf32> -> vector<512x8xf32>
    %cst_59 = arith.constant dense<0.000000e+00> : vector<1x8xf32>
    %56 = tpu.matmul %1, %55, %cst_59 {dimension_numbers = #tpu.dot_dimension_numbers<[1], [0], [0], [1], [0, 0, 1, 1], [], []>} : vector<1x512xf32>, vector<512x8xf32>, vector<1x8xf32> -> vector<1x8xf32>
    %57 = arith.mulf %55, %55 : vector<512x8xf32>
    %cst_60 = arith.constant dense<0.000000e+00> : vector<1x8xf32>
    %58 = tpu.matmul %1, %57, %cst_60 {dimension_numbers = #tpu.dot_dimension_numbers<[1], [0], [0], [1], [0, 0, 1, 1], [], []>} : vector<1x512xf32>, vector<512x8xf32>, vector<1x8xf32> -> vector<1x8xf32>
    %59 = arith.mulf %56, %56 : vector<1x8xf32>
    %60 = arith.subf %58, %59 : vector<1x8xf32>
    %cst_61 = arith.constant 0.000000e+00 : f32
    %61 = vector.broadcast %cst_61 : f32 to vector<1x8xf32>
    %62 = arith.maximumf %60, %61 : vector<1x8xf32>
    %c0_62 = arith.constant 0 : index
    %c0_63 = arith.constant 0 : index
    %63 = vector.load %arg5[%c0_62, %c0_63] : memref<1x8xf32, #tpu.memory_space<vmem>>, vector<1x8xf32>
    %cst_64 = arith.constant 9.99999974E-6 : f32
    %64 = vector.broadcast %cst_64 : f32 to vector<1x8xf32>
    %65 = arith.addf %62, %64 : vector<1x8xf32>
    %66 = math.rsqrt %65 : vector<1x8xf32>
    %67 = arith.mulf %63, %66 : vector<1x8xf32>
    %c0_65 = arith.constant 0 : index
    %c0_66 = arith.constant 0 : index
    %68 = vector.load %arg6[%c0_65, %c0_66] : memref<1x8xf32, #tpu.memory_space<vmem>>, vector<1x8xf32>
    %69 = arith.mulf %56, %67 : vector<1x8xf32>
    %70 = arith.subf %68, %69 : vector<1x8xf32>
    %71 = vector.broadcast %67 : vector<1x8xf32> to vector<512x8xf32>
    %72 = arith.mulf %55, %71 : vector<512x8xf32>
    %73 = vector.broadcast %70 : vector<1x8xf32> to vector<512x8xf32>
    %74 = arith.addf %72, %73 : vector<512x8xf32>
    %cst_67 = arith.constant 0.000000e+00 : f32
    %75 = vector.broadcast %cst_67 : f32 to vector<512x8xf32>
    %76 = arith.maximumf %74, %75 : vector<512x8xf32>
    %77 = arith.truncf %76 : vector<512x8xf32> to vector<512x8xbf16>
    %c0_68 = arith.constant 0 : index
    %c0_69 = arith.constant 0 : index
    %78 = vector.load %arg7[%c0_68, %c0_69] : memref<8x32xbf16, #tpu.memory_space<vmem>>, vector<8x32xbf16>
    %cst_70 = arith.constant dense<0.000000e+00> : vector<512x32xf32>
    %79 = tpu.matmul %77, %78, %cst_70 {dimension_numbers = #tpu.dot_dimension_numbers<[1], [0], [0], [1], [0, 0, 1, 1], [], []>} : vector<512x8xbf16>, vector<8x32xbf16>, vector<512x32xf32> -> vector<512x32xf32>
    %cst_71 = arith.constant dense<0.000000e+00> : vector<1x32xf32>
    %80 = tpu.matmul %1, %79, %cst_71 {dimension_numbers = #tpu.dot_dimension_numbers<[1], [0], [0], [1], [0, 0, 1, 1], [], []>} : vector<1x512xf32>, vector<512x32xf32>, vector<1x32xf32> -> vector<1x32xf32>
    %81 = arith.mulf %79, %79 : vector<512x32xf32>
    %cst_72 = arith.constant dense<0.000000e+00> : vector<1x32xf32>
    %82 = tpu.matmul %1, %81, %cst_72 {dimension_numbers = #tpu.dot_dimension_numbers<[1], [0], [0], [1], [0, 0, 1, 1], [], []>} : vector<1x512xf32>, vector<512x32xf32>, vector<1x32xf32> -> vector<1x32xf32>
    %83 = arith.mulf %80, %80 : vector<1x32xf32>
    %84 = arith.subf %82, %83 : vector<1x32xf32>
    %cst_73 = arith.constant 0.000000e+00 : f32
    %85 = vector.broadcast %cst_73 : f32 to vector<1x32xf32>
    %86 = arith.maximumf %84, %85 : vector<1x32xf32>
    %c0_74 = arith.constant 0 : index
    %c0_75 = arith.constant 0 : index
    %87 = vector.load %arg8[%c0_74, %c0_75] : memref<1x32xf32, #tpu.memory_space<vmem>>, vector<1x32xf32>
    %cst_76 = arith.constant 9.99999974E-6 : f32
    %88 = vector.broadcast %cst_76 : f32 to vector<1x32xf32>
    %89 = arith.addf %86, %88 : vector<1x32xf32>
    %90 = math.rsqrt %89 : vector<1x32xf32>
    %91 = arith.mulf %87, %90 : vector<1x32xf32>
    %c0_77 = arith.constant 0 : index
    %c0_78 = arith.constant 0 : index
    %92 = vector.load %arg9[%c0_77, %c0_78] : memref<1x32xf32, #tpu.memory_space<vmem>>, vector<1x32xf32>
    %93 = arith.mulf %80, %91 : vector<1x32xf32>
    %94 = arith.subf %92, %93 : vector<1x32xf32>
    %95 = vector.broadcast %91 : vector<1x32xf32> to vector<512x32xf32>
    %96 = arith.mulf %79, %95 : vector<512x32xf32>
    %97 = vector.broadcast %94 : vector<1x32xf32> to vector<512x32xf32>
    %98 = arith.addf %96, %97 : vector<512x32xf32>
    %c0_79 = arith.constant 0 : index
    %c0_80 = arith.constant 0 : index
    %99 = vector.load %arg10[%c0_79, %c0_80] : memref<16x32xbf16, #tpu.memory_space<vmem>>, vector<16x32xbf16>
    %cst_81 = arith.constant dense<0.000000e+00> : vector<512x32xf32>
    %100 = tpu.matmul %4, %99, %cst_81 {dimension_numbers = #tpu.dot_dimension_numbers<[1], [0], [0], [1], [0, 0, 1, 1], [], []>} : vector<512x16xbf16>, vector<16x32xbf16>, vector<512x32xf32> -> vector<512x32xf32>
    %cst_82 = arith.constant dense<0.000000e+00> : vector<1x32xf32>
    %101 = tpu.matmul %1, %100, %cst_82 {dimension_numbers = #tpu.dot_dimension_numbers<[1], [0], [0], [1], [0, 0, 1, 1], [], []>} : vector<1x512xf32>, vector<512x32xf32>, vector<1x32xf32> -> vector<1x32xf32>
    %102 = arith.mulf %100, %100 : vector<512x32xf32>
    %cst_83 = arith.constant dense<0.000000e+00> : vector<1x32xf32>
    %103 = tpu.matmul %1, %102, %cst_83 {dimension_numbers = #tpu.dot_dimension_numbers<[1], [0], [0], [1], [0, 0, 1, 1], [], []>} : vector<1x512xf32>, vector<512x32xf32>, vector<1x32xf32> -> vector<1x32xf32>
    %104 = arith.mulf %101, %101 : vector<1x32xf32>
    %105 = arith.subf %103, %104 : vector<1x32xf32>
    %cst_84 = arith.constant 0.000000e+00 : f32
    %106 = vector.broadcast %cst_84 : f32 to vector<1x32xf32>
    %107 = arith.maximumf %105, %106 : vector<1x32xf32>
    %c0_85 = arith.constant 0 : index
    %c0_86 = arith.constant 0 : index
    %108 = vector.load %arg11[%c0_85, %c0_86] : memref<1x32xf32, #tpu.memory_space<vmem>>, vector<1x32xf32>
    %cst_87 = arith.constant 9.99999974E-6 : f32
    %109 = vector.broadcast %cst_87 : f32 to vector<1x32xf32>
    %110 = arith.addf %107, %109 : vector<1x32xf32>
    %111 = math.rsqrt %110 : vector<1x32xf32>
    %112 = arith.mulf %108, %111 : vector<1x32xf32>
    %c0_88 = arith.constant 0 : index
    %c0_89 = arith.constant 0 : index
    %113 = vector.load %arg12[%c0_88, %c0_89] : memref<1x32xf32, #tpu.memory_space<vmem>>, vector<1x32xf32>
    %114 = arith.mulf %101, %112 : vector<1x32xf32>
    %115 = arith.subf %113, %114 : vector<1x32xf32>
    %116 = vector.broadcast %112 : vector<1x32xf32> to vector<512x32xf32>
    %117 = arith.mulf %100, %116 : vector<512x32xf32>
    %118 = vector.broadcast %115 : vector<1x32xf32> to vector<512x32xf32>
    %119 = arith.addf %117, %118 : vector<512x32xf32>
    %120 = arith.addf %98, %119 : vector<512x32xf32>
    %cst_90 = arith.constant 0.000000e+00 : f32
    %121 = vector.broadcast %cst_90 : f32 to vector<512x32xf32>
    %122 = arith.maximumf %120, %121 : vector<512x32xf32>
    %123 = vector.shape_cast %122 : vector<512x32xf32> to vector<2x16x16x32xf32>
    %c0_91 = arith.constant 0 : index
    %c0_92 = arith.constant 0 : index
    %c0_93 = arith.constant 0 : index
    %c0_94 = arith.constant 0 : index
    %124 = vector.load %arg13[%c0_91, %c0_92, %c0_93, %c0_94] : memref<2x16x16x32xf32, #tpu.memory_space<vmem>>, vector<2x16x16x32xf32>
    tpu.vector_store %arg13[%c0_91, %c0_92, %c0_93, %c0_94], %123 {strides = array<i32>} : memref<2x16x16x32xf32, #tpu.memory_space<vmem>>, vector<2x16x16x32xf32>,
    return
  }
}

</mosaic_0001>

<llo_original>
// kernel: tpu_custom_call.1
$region0: #{tpu_custom_call.1}
  #allocation0 [shape = 'u32[]', space=smem, size = 0x4, offset = 0x4, fixed_abs, tag = 'smem constant byte address 0x4 - core index']
  #allocation1 [shape = 'u32[144,128]{1,0:T(1,128)}', space=vmem, size = 0x12000, scoped, tag = 'internal scratch']
  #allocation2 [shape = 'bf16[2,18,18,8]{3,2,1,0:T(8,128)(2,1)}', space=vmem, size = 0x36000, scoped, tag = 'scratch operand']
  %s0 = inlined_call_operand.hbm [shape: f32[2,16,16,16], index: 0, kind: input, shape index: {}]
  %s1 = inlined_call_operand.vmem [shape: bf16[16,8], index: 1, kind: input, shape index: {}]
  %s2 = inlined_call_operand.vmem [shape: f32[1,8], index: 2, kind: input, shape index: {}]
  %s3 = inlined_call_operand.vmem [shape: f32[1,8], index: 3, kind: input, shape index: {}]
  %s4 = inlined_call_operand.vmem [shape: bf16[72,8], index: 4, kind: input, shape index: {}]
  %s5 = inlined_call_operand.vmem [shape: f32[1,8], index: 5, kind: input, shape index: {}]
  %s6 = inlined_call_operand.vmem [shape: f32[1,8], index: 6, kind: input, shape index: {}]
  %s7 = inlined_call_operand.vmem [shape: bf16[8,32], index: 7, kind: input, shape index: {}]
  %s8 = inlined_call_operand.vmem [shape: f32[1,32], index: 8, kind: input, shape index: {}]
  %s9 = inlined_call_operand.vmem [shape: f32[1,32], index: 9, kind: input, shape index: {}]
  %s10 = inlined_call_operand.vmem [shape: bf16[16,32], index: 10, kind: input, shape index: {}]
  %s11 = inlined_call_operand.vmem [shape: f32[1,32], index: 11, kind: input, shape index: {}]
  %s12 = inlined_call_operand.vmem [shape: f32[1,32], index: 12, kind: input, shape index: {}]
  %s13 = inlined_call_operand.hbm [shape: f32[2,16,16,32], index: 13, kind: output, shape index: {}]
  %s14 = sld [smem:[#allocation0]]
  $region66: #{tpu_custom_call.1} parent=0
    _
  %s16 = ssub.s32 1, %s14
  %s17 = scalar_select 0, %s16, %s14
  $region1: #{tpu_custom_call.1} parent=0
    #allocation3 [shape = 'u8[262144]{0}', space=vmem, size = 0x40000, scoped, tag = 'input window, operand 0, single buffered']
    #allocation4 [shape = 's32[1]{0}', space=sflag, size = 0x4, scoped, tag = 'scoped memory for tpu_custom_call.1']
    #allocation5 [shape = 's32[1]{0}', space=sflag, size = 0x4, scoped, tag = 'scoped memory for tpu_custom_call.1']
    #allocation6 [shape = 'u8[262144]{0}', space=vmem, size = 0x40000, scoped, tag = 'output window, operand 0, single buffered']
    %18 = vsyncpa [#allocation4], 0
    %19 = vsyncpa [#allocation5], 0
    // Predicated region
    $region2: #{tpu_custom_call.1} parent=1 // pred_check
      _
    $region3: #{tpu_custom_call.1} parent=1 // pred_check_branch
      %21 = sbr.rel (0) target = $region5
    $region4: #{tpu_custom_call.1} parent=1 // pred_region
      %s23 = ssub.s32 8192, 8192
      %24 = vsyncadd [#allocation4], %s23
      %s25 = sshll.u32 [#allocation3], 4
      %s26 = int_to_ptr.vmem [resolvable:$true] %s25
      %31 = dma.hbm_to_vmem [thread:$0]  %s0, 8192, %s26, [#allocation4], 128, 128, 8
    $region5: #{tpu_custom_call.1} parent=1 // pred_fallthru
      _
    // Predicated region
    $region6: #{tpu_custom_call.1} parent=1 // pred_check
      _
    $region7: #{tpu_custom_call.1} parent=1 // pred_check_branch
      %33 = sbr.rel (0) target = $region9
    $region8: #{tpu_custom_call.1} parent=1 // pred_region
      _
    $region9: #{tpu_custom_call.1} parent=1 // pred_fallthru
      _
    // Predicated region
    $region10: #{tpu_custom_call.1} parent=1 // pred_check
      _
    $region11: #{tpu_custom_call.1} parent=1 // pred_check_branch
      %35 = sbr.rel (0) target = $region13
    $region12: #{tpu_custom_call.1} parent=1 // pred_region
      _
    $region13: #{tpu_custom_call.1} parent=1 // pred_fallthru
      _
    // Predicated region
    $region14: #{tpu_custom_call.1} parent=1 // pred_check
      _
    $region15: #{tpu_custom_call.1} parent=1 // pred_check_branch
      %37 = sbr.rel (0) target = $region17
    $region16: #{tpu_custom_call.1} parent=1 // pred_region
      _
    $region17: #{tpu_custom_call.1} parent=1 // pred_fallthru
      _
    // Predicated region
    $region18: #{tpu_custom_call.1} parent=1 // pred_check
      _
    $region19: #{tpu_custom_call.1} parent=1 // pred_check_branch
      %39 = sbr.rel (0) target = $region21
    $region20: #{tpu_custom_call.1} parent=1 // pred_region
      _
    $region21: #{tpu_custom_call.1} parent=1 // pred_fallthru
      _
    // Predicated region
    $region22: #{tpu_custom_call.1} parent=1 // pred_check
      _
    $region23: #{tpu_custom_call.1} parent=1 // pred_check_branch
      %41 = sbr.rel (0) target = $region25
    $region24: #{tpu_custom_call.1} parent=1 // pred_region
      _
    $region25: #{tpu_custom_call.1} parent=1 // pred_fallthru
      _
    // Predicated region
    $region26: #{tpu_custom_call.1} parent=1 // pred_check
      _
    $region27: #{tpu_custom_call.1} parent=1 // pred_check_branch
      %43 = sbr.rel (0) target = $region29
    $region28: #{tpu_custom_call.1} parent=1 // pred_region
      _
    $region29: #{tpu_custom_call.1} parent=1 // pred_fallthru
      _
    // Predicated region
    $region30: #{tpu_custom_call.1} parent=1 // pred_check
      _
    $region31: #{tpu_custom_call.1} parent=1 // pred_check_branch
      %45 = sbr.rel (0) target = $region33
    $region32: #{tpu_custom_call.1} parent=1 // pred_region
      _
    $region33: #{tpu_custom_call.1} parent=1 // pred_fallthru
      _
    // Predicated region
    $region34: #{tpu_custom_call.1} parent=1 // pred_check
      _
    $region35: #{tpu_custom_call.1} parent=1 // pred_check_branch
      %47 = sbr.rel (0) target = $region37
    $region36: #{tpu_custom_call.1} parent=1 // pred_region
      _
    $region37: #{tpu_custom_call.1} parent=1 // pred_fallthru
      _
    // Predicated region
    $region38: #{tpu_custom_call.1} parent=1 // pred_check
      _
    $region39: #{tpu_custom_call.1} parent=1 // pred_check_branch
      %49 = sbr.rel (0) target = $region41
    $region40: #{tpu_custom_call.1} parent=1 // pred_region
      _
    $region41: #{tpu_custom_call.1} parent=1 // pred_fallthru
      _
    // Predicated region
    $region42: #{tpu_custom_call.1} parent=1 // pred_check
      _
    $region43: #{tpu_custom_call.1} parent=1 // pred_check_branch
      %51 = sbr.rel (0) target = $region45
    $region44: #{tpu_custom_call.1} parent=1 // pred_region
      _
    $region45: #{tpu_custom_call.1} parent=1 // pred_fallthru
      _
    // Predicated region
    $region46: #{tpu_custom_call.1} parent=1 // pred_check
      _
    $region47: #{tpu_custom_call.1} parent=1 // pred_check_branch
      %53 = sbr.rel (0) target = $region49
    $region48: #{tpu_custom_call.1} parent=1 // pred_region
      _
    $region49: #{tpu_custom_call.1} parent=1 // pred_fallthru
      _
    // Predicated region
    $region50: #{tpu_custom_call.1} parent=1 // pred_check
      _
    $region51: #{tpu_custom_call.1} parent=1 // pred_check_branch
      %55 = sbr.rel (0) target = $region53
    $region52: #{tpu_custom_call.1} parent=1 // pred_region
      _
    $region53: #{tpu_custom_call.1} parent=1 // pred_fallthru
      _
    // Predicated region
    $region54: #{tpu_custom_call.1} parent=1 // pred_check
      _
    $region55: #{tpu_custom_call.1} parent=1 // pred_check_branch
      %57 = sbr.rel (0) target = $region57
    $region56: #{tpu_custom_call.1} parent=1 // pred_region
      %58 = dma.done [#allocation4], 8192
    $region57: #{tpu_custom_call.1} parent=1 // pred_fallthru
      _
    %v60 = vld [vmem:[#allocation3] sm:$0xff]
    %v61 = vld [vmem:[#allocation3 + $0x8] sm:$0xff]
    %v62 = vld [vmem:[#allocation3 + $0x10] sm:$0xff]
    %v63 = vld [vmem:[#allocation3 + $0x18] sm:$0xff]
    %v64 = vld [vmem:[#allocation3 + $0x20] sm:$0xff]
    %v65 = vld [vmem:[#allocation3 + $0x28] sm:$0xff]
    %v66 = vld [vmem:[#allocation3 + $0x30] sm:$0xff]
    %v67 = vld [vmem:[#allocation3 + $0x38] sm:$0xff]
    %v68 = vld [vmem:[#allocation3 + $0x40] sm:$0xff]
    %v69 = vld [vmem:[#allocation3 + $0x48] sm:$0xff]
    %v70 = vld [vmem:[#allocation3 + $0x50] sm:$0xff]
    %v71 = vld [vmem:[#allocation3 + $0x58] sm:$0xff]
    %v72 = vld [vmem:[#allocation3 + $0x60] sm:$0xff]
    %v73 = vld [vmem:[#allocation3 + $0x68] sm:$0xff]
    %v74 = vld [vmem:[#allocation3 + $0x70] sm:$0xff]
    %v75 = vld [vmem:[#allocation3 + $0x78] sm:$0xff]
    %v76 = vld [vmem:[#allocation3 + $0x80] sm:$0xff]
    %v77 = vld [vmem:[#allocation3 + $0x88] sm:$0xff]
    %v78 = vld [vmem:[#allocation3 + $0x90] sm:$0xff]
    %v79 = vld [vmem:[#allocation3 + $0x98] sm:$0xff]
    %v80 = vld [vmem:[#allocation3 + $0xa0] sm:$0xff]
    %v81 = vld [vmem:[#allocation3 + $0xa8] sm:$0xff]
    %v82 = vld [vmem:[#allocation3 + $0xb0] sm:$0xff]
    %v83 = vld [vmem:[#allocation3 + $0xb8] sm:$0xff]
    %v84 = vld [vmem:[#allocation3 + $0xc0] sm:$0xff]
    %v85 = vld [vmem:[#allocation3 + $0xc8] sm:$0xff]
    %v86 = vld [vmem:[#allocation3 + $0xd0] sm:$0xff]
    %v87 = vld [vmem:[#allocation3 + $0xd8] sm:$0xff]
    %v88 = vld [vmem:[#allocation3 + $0xe0] sm:$0xff]
    %v89 = vld [vmem:[#allocation3 + $0xe8] sm:$0xff]
    %v90 = vld [vmem:[#allocation3 + $0xf0] sm:$0xff]
    %v91 = vld [vmem:[#allocation3 + $0xf8] sm:$0xff]
    %v92 = vld [vmem:[#allocation3 + $0x100] sm:$0xff]
    %v93 = vld [vmem:[#allocation3 + $0x108] sm:$0xff]
    %v94 = vld [vmem:[#allocation3 + $0x110] sm:$0xff]
    %v95 = vld [vmem:[#allocation3 + $0x118] sm:$0xff]
    %v96 = vld [vmem:[#allocation3 + $0x120] sm:$0xff]
    %v97 = vld [vmem:[#allocation3 + $0x128] sm:$0xff]
    %v98 = vld [vmem:[#allocation3 + $0x130] sm:$0xff]
    %v99 = vld [vmem:[#allocation3 + $0x138] sm:$0xff]
    %v100 = vld [vmem:[#allocation3 + $0x140] sm:$0xff]
    %v101 = vld [vmem:[#allocation3 + $0x148] sm:$0xff]
    %v102 = vld [vmem:[#allocation3 + $0x150] sm:$0xff]
    %v103 = vld [vmem:[#allocation3 + $0x158] sm:$0xff]
    %v104 = vld [vmem:[#allocation3 + $0x160] sm:$0xff]
    %v105 = vld [vmem:[#allocation3 + $0x168] sm:$0xff]
    %v106 = vld [vmem:[#allocation3 + $0x170] sm:$0xff]
    %v107 = vld [vmem:[#allocation3 + $0x178] sm:$0xff]
    %v108 = vld [vmem:[#allocation3 + $0x180] sm:$0xff]
    %v109 = vld [vmem:[#allocation3 + $0x188] sm:$0xff]
    %v110 = vld [vmem:[#allocation3 + $0x190] sm:$0xff]
    %v111 = vld [vmem:[#allocation3 + $0x198] sm:$0xff]
    %v112 = vld [vmem:[#allocation3 + $0x1a0] sm:$0xff]
    %v113 = vld [vmem:[#allocation3 + $0x1a8] sm:$0xff]
    %v114 = vld [vmem:[#allocation3 + $0x1b0] sm:$0xff]
    %v115 = vld [vmem:[#allocation3 + $0x1b8] sm:$0xff]
    %v116 = vld [vmem:[#allocation3 + $0x1c0] sm:$0xff]
    %v117 = vld [vmem:[#allocation3 + $0x1c8] sm:$0xff]
    %v118 = vld [vmem:[#allocation3 + $0x1d0] sm:$0xff]
    %v119 = vld [vmem:[#allocation3 + $0x1d8] sm:$0xff]
    %v120 = vld [vmem:[#allocation3 + $0x1e0] sm:$0xff]
    %v121 = vld [vmem:[#allocation3 + $0x1e8] sm:$0xff]
    %v122 = vld [vmem:[#allocation3 + $0x1f0] sm:$0xff]
    %v123 = vld [vmem:[#allocation3 + $0x1f8] sm:$0xff]
    %v124 = vpack.c.bf16 %v61, %v60
    %v125 = vpack.c.bf16 %v63, %v62
    %v126 = vpack.c.bf16 %v65, %v64
    %v127 = vpack.c.bf16 %v67, %v66
    %v128 = vpack.c.bf16 %v69, %v68
    %v129 = vpack.c.bf16 %v71, %v70
    %v130 = vpack.c.bf16 %v73, %v72
    %v131 = vpack.c.bf16 %v75, %v74
    %v132 = vpack.c.bf16 %v77, %v76
    %v133 = vpack.c.bf16 %v79, %v78
    %v134 = vpack.c.bf16 %v81, %v80
    %v135 = vpack.c.bf16 %v83, %v82
    %v136 = vpack.c.bf16 %v85, %v84
    %v137 = vpack.c.bf16 %v87, %v86
    %v138 = vpack.c.bf16 %v89, %v88
    %v139 = vpack.c.bf16 %v91, %v90
    %v140 = vpack.c.bf16 %v93, %v92
    %v141 = vpack.c.bf16 %v95, %v94
    %v142 = vpack.c.bf16 %v97, %v96
    %v143 = vpack.c.bf16 %v99, %v98
    %v144 = vpack.c.bf16 %v101, %v100
    %v145 = vpack.c.bf16 %v103, %v102
    %v146 = vpack.c.bf16 %v105, %v104
    %v147 = vpack.c.bf16 %v107, %v106
    %v148 = vpack.c.bf16 %v109, %v108
    %v149 = vpack.c.bf16 %v111, %v110
    %v150 = vpack.c.bf16 %v113, %v112
    %v151 = vpack.c.bf16 %v115, %v114
    %v152 = vpack.c.bf16 %v117, %v116
    %v153 = vpack.c.bf16 %v119, %v118
    %v154 = vpack.c.bf16 %v121, %v120
    %v155 = vpack.c.bf16 %v123, %v122
    %v156 = vld [vmem:[%s1] sm:$0xf]
    %v157 = vld [vmem:[%s1 + $0x4] sm:$0xf]
    %v160 = vunpack.c.l.b16 %v156
    %v161 = vunpack.c.l.b16 %v157
    %v162 = vpack.c.b16 %v161, %v160
    %vm164 = vcmask 130048
    %v166 = vsel %vm164, %v124, 0
    %v169 = vsel %vm164, %v125, 0
    %v172 = vsel %vm164, %v126, 0
    %v175 = vsel %vm164, %v127, 0
    %v178 = vsel %vm164, %v128, 0
    %v181 = vsel %vm164, %v129, 0
    %v184 = vsel %vm164, %v130, 0
    %v187 = vsel %vm164, %v131, 0
    %v190 = vsel %vm164, %v132, 0
    %v193 = vsel %vm164, %v133, 0
    %v196 = vsel %vm164, %v134, 0
    %v199 = vsel %vm164, %v135, 0
    %v202 = vsel %vm164, %v136, 0
    %v205 = vsel %vm164, %v137, 0
    %v208 = vsel %vm164, %v138, 0
    %v211 = vsel %vm164, %v139, 0
    %v214 = vsel %vm164, %v140, 0
    %v217 = vsel %vm164, %v141, 0
    %v220 = vsel %vm164, %v142, 0
    %v223 = vsel %vm164, %v143, 0
    %v226 = vsel %vm164, %v144, 0
    %v229 = vsel %vm164, %v145, 0
    %v232 = vsel %vm164, %v146, 0
    %v235 = vsel %vm164, %v147, 0
    %v238 = vsel %vm164, %v148, 0
    %v241 = vsel %vm164, %v149, 0
    %v244 = vsel %vm164, %v150, 0
    %v247 = vsel %vm164, %v151, 0
    %v250 = vsel %vm164, %v152, 0
    %v253 = vsel %vm164, %v153, 0
    %v256 = vsel %vm164, %v154, 0
    %v259 = vsel %vm164, %v155, 0
    %261 = vmatprep.subr.bf16.mxu0 0
    %262 = vmatpush1.bf16.msra.mxu0 0
    %263 = vmatprep.subr.bf16.mxu0 0
    %264 = vmatpush1.bf16.msra.mxu0 0
    %265 = vmatprep.subr.bf16.mxu0 0
    %266 = vmatpush1.bf16.msra.mxu0 0
    %267 = vmatprep.subr.bf16.mxu0 0
    %268 = vmatpush1.bf16.msra.mxu0 0
    %269 = vmatprep.subr.bf16.mxu0 0
    %270 = vmatpush1.bf16.msra.mxu0 0
    %271 = vmatprep.subr.bf16.mxu0 0
    %272 = vmatpush1.bf16.msra.mxu0 0
    %273 = vmatprep.subr.bf16.mxu0 0
    %274 = vmatpush1.bf16.msra.mxu0 0
    %275 = vmatprep.subr.bf16.mxu0 0
    %276 = vmatpush1.bf16.msra.mxu0 %v162
    %277 = vmatprep.subr.bf16.mxu0 0
    %278 = vmatpush2.bf16.msra.mxu0 0
    %279 = vmatprep.subr.bf16.mxu0 0
    %280 = vmatpush2.bf16.msra.mxu0 0
    %281 = vmatprep.subr.bf16.mxu0 0
    %282 = vmatpush2.bf16.msra.mxu0 0
    %283 = vmatprep.subr.bf16.mxu0 0
    %284 = vmatpush2.bf16.msra.mxu0 0
    %285 = vmatprep.subr.bf16.mxu0 0
    %286 = vmatpush2.bf16.msra.mxu0 0
    %287 = vmatprep.subr.bf16.mxu0 0
    %288 = vmatpush2.bf16.msra.mxu0 0
    %289 = vmatprep.subr.bf16.mxu0 0
    %290 = vmatpush2.bf16.msra.mxu0 0
    %291 = vmatprep.subr.bf16.mxu0 0
    %292 = vmatpush2.bf16.msra.mxu0 0
    %293 = vmatprep.mubr.bf16.mxu0 0
    %294 = vmatmul.mubr.bf16.gmra.mxu0 %v166
    %v295 = vpop.f32.mrf.mxu0
    %v296 = vadd.f32 0.0, %v295
    %v297 = vpop.f32.mrf.mxu0
    %v298 = vpop.f32.mrf.mxu0
    %v299 = vadd.f32 0.0, %v298
    %v300 = vpop.f32.mrf.mxu0
    %301 = vmatprep.mubr.bf16.mxu0 0
    %302 = vmatmul.mubr.bf16.gmra.mxu0 %v169
    %v303 = vpop.f32.mrf.mxu0
    %v304 = vadd.f32 0.0, %v303
    %v305 = vpop.f32.mrf.mxu0
    %v306 = vpop.f32.mrf.mxu0
    %v307 = vadd.f32 0.0, %v306
    %v308 = vpop.f32.mrf.mxu0
    %309 = vmatprep.mubr.bf16.mxu0 0
    %310 = vmatmul.mubr.bf16.gmra.mxu0 %v172
    %v311 = vpop.f32.mrf.mxu0
    %v312 = vadd.f32 0.0, %v311
    %v313 = vpop.f32.mrf.mxu0
    %v314 = vpop.f32.mrf.mxu0
    %v315 = vadd.f32 0.0, %v314
    %v316 = vpop.f32.mrf.mxu0
    %317 = vmatprep.mubr.bf16.mxu0 0
    %318 = vmatmul.mubr.bf16.gmra.mxu0 %v175
    %v319 = vpop.f32.mrf.mxu0
    %v320 = vadd.f32 0.0, %v319
    %v321 = vpop.f32.mrf.mxu0
    %v322 = vpop.f32.mrf.mxu0
    %v323 = vadd.f32 0.0, %v322
    %v324 = vpop.f32.mrf.mxu0
    %325 = vmatprep.mubr.bf16.mxu0 0
    %326 = vmatmul.mubr.bf16.gmra.mxu0 %v178
    %v327 = vpop.f32.mrf.mxu0
    %v328 = vadd.f32 0.0, %v327
    %v329 = vpop.f32.mrf.mxu0
    %v330 = vpop.f32.mrf.mxu0
    %v331 = vadd.f32 0.0, %v330
    %v332 = vpop.f32.mrf.mxu0
    %333 = vmatprep.mubr.bf16.mxu0 0
    %334 = vmatmul.mubr.bf16.gmra.mxu0 %v181
    %v335 = vpop.f32.mrf.mxu0
    %v336 = vadd.f32 0.0, %v335
    %v337 = vpop.f32.mrf.mxu0
    %v338 = vpop.f32.mrf.mxu0
    %v339 = vadd.f32 0.0, %v338
    %v340 = vpop.f32.mrf.mxu0
    %341 = vmatprep.mubr.bf16.mxu0 0
    %342 = vmatmul.mubr.bf16.gmra.mxu0 %v184
    %v343 = vpop.f32.mrf.mxu0
    %v344 = vadd.f32 0.0, %v343
    %v345 = vpop.f32.mrf.mxu0
    %v346 = vpop.f32.mrf.mxu0
    %v347 = vadd.f32 0.0, %v346
    %v348 = vpop.f32.mrf.mxu0
    %349 = vmatprep.mubr.bf16.mxu0 0
    %350 = vmatmul.mubr.bf16.gmra.mxu0 %v187
    %v351 = vpop.f32.mrf.mxu0
    %v352 = vadd.f32 0.0, %v351
    %v353 = vpop.f32.mrf.mxu0
    %v354 = vpop.f32.mrf.mxu0
    %v355 = vadd.f32 0.0, %v354
    %v356 = vpop.f32.mrf.mxu0
    %357 = vmatprep.mubr.bf16.mxu0 0
    %358 = vmatmul.mubr.bf16.gmra.mxu0 %v190
    %v359 = vpop.f32.mrf.mxu0
    %v360 = vadd.f32 0.0, %v359
    %v361 = vpop.f32.mrf.mxu0
    %v362 = vpop.f32.mrf.mxu0
    %v363 = vadd.f32 0.0, %v362
    %v364 = vpop.f32.mrf.mxu0
    %365 = vmatprep.mubr.bf16.mxu0 0
    %366 = vmatmul.mubr.bf16.gmra.mxu0 %v193
    %v367 = vpop.f32.mrf.mxu0
    %v368 = vadd.f32 0.0, %v367
    %v369 = vpop.f32.mrf.mxu0
    %v370 = vpop.f32.mrf.mxu0
    %v371 = vadd.f32 0.0, %v370
    %v372 = vpop.f32.mrf.mxu0
    %373 = vmatprep.mubr.bf16.mxu0 0
    %374 = vmatmul.mubr.bf16.gmra.mxu0 %v196
    %v375 = vpop.f32.mrf.mxu0
    %v376 = vadd.f32 0.0, %v375
    %v377 = vpop.f32.mrf.mxu0
    %v378 = vpop.f32.mrf.mxu0
    %v379 = vadd.f32 0.0, %v378
    %v380 = vpop.f32.mrf.mxu0
    %381 = vmatprep.mubr.bf16.mxu0 0
    %382 = vmatmul.mubr.bf16.gmra.mxu0 %v199
    %v383 = vpop.f32.mrf.mxu0
    %v384 = vadd.f32 0.0, %v383
    %v385 = vpop.f32.mrf.mxu0
    %v386 = vpop.f32.mrf.mxu0
    %v387 = vadd.f32 0.0, %v386
    %v388 = vpop.f32.mrf.mxu0
    %389 = vmatprep.mubr.bf16.mxu0 0
    %390 = vmatmul.mubr.bf16.gmra.mxu0 %v202
    %v391 = vpop.f32.mrf.mxu0
    %v392 = vadd.f32 0.0, %v391
    %v393 = vpop.f32.mrf.mxu0
    %v394 = vpop.f32.mrf.mxu0
    %v395 = vadd.f32 0.0, %v394
    %v396 = vpop.f32.mrf.mxu0
    %397 = vmatprep.mubr.bf16.mxu0 0
    %398 = vmatmul.mubr.bf16.gmra.mxu0 %v205
    %v399 = vpop.f32.mrf.mxu0
    %v400 = vadd.f32 0.0, %v399
    %v401 = vpop.f32.mrf.mxu0
    %v402 = vpop.f32.mrf.mxu0
    %v403 = vadd.f32 0.0, %v402
    %v404 = vpop.f32.mrf.mxu0
    %405 = vmatprep.mubr.bf16.mxu0 0
    %406 = vmatmul.mubr.bf16.gmra.mxu0 %v208
    %v407 = vpop.f32.mrf.mxu0
    %v408 = vadd.f32 0.0, %v407
    %v409 = vpop.f32.mrf.mxu0
    %v410 = vpop.f32.mrf.mxu0
    %v411 = vadd.f32 0.0, %v410
    %v412 = vpop.f32.mrf.mxu0
    %413 = vmatprep.mubr.bf16.mxu0 0
    %414 = vmatmul.mubr.bf16.gmra.mxu0 %v211
    %v415 = vpop.f32.mrf.mxu0
    %v416 = vadd.f32 0.0, %v415
    %v417 = vpop.f32.mrf.mxu0
    %v418 = vpop.f32.mrf.mxu0
    %v419 = vadd.f32 0.0, %v418
    %v420 = vpop.f32.mrf.mxu0
    %421 = vmatprep.mubr.bf16.mxu0 0
    %422 = vmatmul.mubr.bf16.gmra.mxu0 %v214
    %v423 = vpop.f32.mrf.mxu0
    %v424 = vadd.f32 0.0, %v423
    %v425 = vpop.f32.mrf.mxu0
    %v426 = vpop.f32.mrf.mxu0
    %v427 = vadd.f32 0.0, %v426
    %v428 = vpop.f32.mrf.mxu0
    %429 = vmatprep.mubr.bf16.mxu0 0
    %430 = vmatmul.mubr.bf16.gmra.mxu0 %v217
    %v431 = vpop.f32.mrf.mxu0
    %v432 = vadd.f32 0.0, %v431
    %v433 = vpop.f32.mrf.mxu0
    %v434 = vpop.f32.mrf.mxu0
    %v435 = vadd.f32 0.0, %v434
    %v436 = vpop.f32.mrf.mxu0
    %437 = vmatprep.mubr.bf16.mxu0 0
    %438 = vmatmul.mubr.bf16.gmra.mxu0 %v220
    %v439 = vpop.f32.mrf.mxu0
    %v440 = vadd.f32 0.0, %v439
    %v441 = vpop.f32.mrf.mxu0
    %v442 = vpop.f32.mrf.mxu0
    %v443 = vadd.f32 0.0, %v442
    %v444 = vpop.f32.mrf.mxu0
    %445 = vmatprep.mubr.bf16.mxu0 0
    %446 = vmatmul.mubr.bf16.gmra.mxu0 %v223
    %v447 = vpop.f32.mrf.mxu0
    %v448 = vadd.f32 0.0, %v447
    %v449 = vpop.f32.mrf.mxu0
    %v450 = vpop.f32.mrf.mxu0
    %v451 = vadd.f32 0.0, %v450
    %v452 = vpop.f32.mrf.mxu0
    %453 = vmatprep.mubr.bf16.mxu0 0
    %454 = vmatmul.mubr.bf16.gmra.mxu0 %v226
    %v455 = vpop.f32.mrf.mxu0
    %v456 = vadd.f32 0.0, %v455
    %v457 = vpop.f32.mrf.mxu0
    %v458 = vpop.f32.mrf.mxu0
    %v459 = vadd.f32 0.0, %v458
    %v460 = vpop.f32.mrf.mxu0
    %461 = vmatprep.mubr.bf16.mxu0 0
    %462 = vmatmul.mubr.bf16.gmra.mxu0 %v229
    %v463 = vpop.f32.mrf.mxu0
    %v464 = vadd.f32 0.0, %v463
    %v465 = vpop.f32.mrf.mxu0
    %v466 = vpop.f32.mrf.mxu0
    %v467 = vadd.f32 0.0, %v466
    %v468 = vpop.f32.mrf.mxu0
    %469 = vmatprep.mubr.bf16.mxu0 0
    %470 = vmatmul.mubr.bf16.gmra.mxu0 %v232
    %v471 = vpop.f32.mrf.mxu0
    %v472 = vadd.f32 0.0, %v471
    %v473 = vpop.f32.mrf.mxu0
    %v474 = vpop.f32.mrf.mxu0
    %v475 = vadd.f32 0.0, %v474
    %v476 = vpop.f32.mrf.mxu0
    %477 = vmatprep.mubr.bf16.mxu0 0
    %478 = vmatmul.mubr.bf16.gmra.mxu0 %v235
    %v479 = vpop.f32.mrf.mxu0
    %v480 = vadd.f32 0.0, %v479
    %v481 = vpop.f32.mrf.mxu0
    %v482 = vpop.f32.mrf.mxu0
    %v483 = vadd.f32 0.0, %v482
    %v484 = vpop.f32.mrf.mxu0
    %485 = vmatprep.mubr.bf16.mxu0 0
    %486 = vmatmul.mubr.bf16.gmra.mxu0 %v238
    %v487 = vpop.f32.mrf.mxu0
    %v488 = vadd.f32 0.0, %v487
    %v489 = vpop.f32.mrf.mxu0
    %v490 = vpop.f32.mrf.mxu0
    %v491 = vadd.f32 0.0, %v490
    %v492 = vpop.f32.mrf.mxu0
    %493 = vmatprep.mubr.bf16.mxu0 0
    %494 = vmatmul.mubr.bf16.gmra.mxu0 %v241
    %v495 = vpop.f32.mrf.mxu0
    %v496 = vadd.f32 0.0, %v495
    %v497 = vpop.f32.mrf.mxu0
    %v498 = vpop.f32.mrf.mxu0
    %v499 = vadd.f32 0.0, %v498
    %v500 = vpop.f32.mrf.mxu0
    %501 = vmatprep.mubr.bf16.mxu0 0
    %502 = vmatmul.mubr.bf16.gmra.mxu0 %v244
    %v503 = vpop.f32.mrf.mxu0
    %v504 = vadd.f32 0.0, %v503
    %v505 = vpop.f32.mrf.mxu0
    %v506 = vpop.f32.mrf.mxu0
    %v507 = vadd.f32 0.0, %v506
    %v508 = vpop.f32.mrf.mxu0
    %509 = vmatprep.mubr.bf16.mxu0 0
    %510 = vmatmul.mubr.bf16.gmra.mxu0 %v247
    %v511 = vpop.f32.mrf.mxu0
    %v512 = vadd.f32 0.0, %v511
    %v513 = vpop.f32.mrf.mxu0
    %v514 = vpop.f32.mrf.mxu0
    %v515 = vadd.f32 0.0, %v514
    %v516 = vpop.f32.mrf.mxu0
    %517 = vmatprep.mubr.bf16.mxu0 0
    %518 = vmatmul.mubr.bf16.gmra.mxu0 %v250
    %v519 = vpop.f32.mrf.mxu0
    %v520 = vadd.f32 0.0, %v519
    %v521 = vpop.f32.mrf.mxu0
    %v522 = vpop.f32.mrf.mxu0
    %v523 = vadd.f32 0.0, %v522
    %v524 = vpop.f32.mrf.mxu0
    %525 = vmatprep.mubr.bf16.mxu0 0
    %526 = vmatmul.mubr.bf16.gmra.mxu0 %v253
    %v527 = vpop.f32.mrf.mxu0
    %v528 = vadd.f32 0.0, %v527
    %v529 = vpop.f32.mrf.mxu0
    %v530 = vpop.f32.mrf.mxu0
    %v531 = vadd.f32 0.0, %v530
    %v532 = vpop.f32.mrf.mxu0
    %533 = vmatprep.mubr.bf16.mxu0 0
    %534 = vmatmul.mubr.bf16.gmra.mxu0 %v256
    %v535 = vpop.f32.mrf.mxu0
    %v536 = vadd.f32 0.0, %v535
    %v537 = vpop.f32.mrf.mxu0
    %v538 = vpop.f32.mrf.mxu0
    %v539 = vadd.f32 0.0, %v538
    %v540 = vpop.f32.mrf.mxu0
    %541 = vmatprep.mubr.bf16.mxu0 0
    %542 = vmatmul.mubr.bf16.gmra.mxu0 %v259
    %v543 = vpop.f32.mrf.mxu0
    %v544 = vadd.f32 0.0, %v543
    %v545 = vpop.f32.mrf.mxu0
    %v546 = vpop.f32.mrf.mxu0
    %v547 = vadd.f32 0.0, %v546
    %v548 = vpop.f32.mrf.mxu0
    %549 = vdwg.mxu0
    %550 = vmatprep.subr.mxu0 0.0
    %551 = vmatpush1.msra.mxu0 %v355
    %552 = vmatprep.subr.mxu0 0.0
    %553 = vmatpush1.msra.mxu0 %v352
    %554 = vmatprep.subr.mxu0 0.0
    %555 = vmatpush1.msra.mxu0 %v347
    %556 = vmatprep.subr.mxu0 0.0
    %557 = vmatpush1.msra.mxu0 %v344
    %558 = vmatprep.subr.mxu0 0.0
    %559 = vmatpush1.msra.mxu0 %v339
    %560 = vmatprep.subr.mxu0 0.0
    %561 = vmatpush1.msra.mxu0 %v336
    %562 = vmatprep.subr.mxu0 0.0
    %563 = vmatpush1.msra.mxu0 %v331
    %564 = vmatprep.subr.mxu0 0.0
    %565 = vmatpush1.msra.mxu0 %v328
    %566 = vmatprep.subr.mxu0 0.0
    %567 = vmatpush1.msra.mxu0 %v323
    %568 = vmatprep.subr.mxu0 0.0
    %569 = vmatpush1.msra.mxu0 %v320
    %570 = vmatprep.subr.mxu0 0.0
    %571 = vmatpush1.msra.mxu0 %v315
    %572 = vmatprep.subr.mxu0 0.0
    %573 = vmatpush1.msra.mxu0 %v312
    %574 = vmatprep.subr.mxu0 0.0
    %575 = vmatpush1.msra.mxu0 %v307
    %576 = vmatprep.subr.mxu0 0.0
    %577 = vmatpush1.msra.mxu0 %v304
    %578 = vmatprep.subr.mxu0 0.0
    %579 = vmatpush1.msra.mxu0 %v299
    %580 = vmatprep.subr.mxu0 0.0
    %581 = vmatpush1.msra.mxu0 %v296
    %582 = vmatprep.subr.mxu0 0.0
    %583 = vmatpush2.msra.mxu0 %v419
    %584 = vmatprep.subr.mxu0 0.0
    %585 = vmatpush2.msra.mxu0 %v416
    %586 = vmatprep.subr.mxu0 0.0
    %587 = vmatpush2.msra.mxu0 %v411
    %588 = vmatprep.subr.mxu0 0.0
    %589 = vmatpush2.msra.mxu0 %v408
    %590 = vmatprep.subr.mxu0 0.0
    %591 = vmatpush2.msra.mxu0 %v403
    %592 = vmatprep.subr.mxu0 0.0
    %593 = vmatpush2.msra.mxu0 %v400
    %594 = vmatprep.subr.mxu0 0.0
    %595 = vmatpush2.msra.mxu0 %v395
    %596 = vmatprep.subr.mxu0 0.0
    %597 = vmatpush2.msra.mxu0 %v392
    %598 = vmatprep.subr.mxu0 0.0
    %599 = vmatpush2.msra.mxu0 %v387
    %600 = vmatprep.subr.mxu0 0.0
    %601 = vmatpush2.msra.mxu0 %v384
    %602 = vmatprep.subr.mxu0 0.0
    %603 = vmatpush2.msra.mxu0 %v379
    %604 = vmatprep.subr.mxu0 0.0
    %605 = vmatpush2.msra.mxu0 %v376
    %606 = vmatprep.subr.mxu0 0.0
    %607 = vmatpush2.msra.mxu0 %v371
    %608 = vmatprep.subr.mxu0 0.0
    %609 = vmatpush2.msra.mxu0 %v368
    %610 = vmatprep.subr.mxu0 0.0
    %611 = vmatpush2.msra.mxu0 %v363
    %612 = vmatprep.subr.mxu0 0.0
    %613 = vmatpush2.msra.mxu0 %v360
    %614 = vmatprep.mubr.f32.mxu0 0.001953125
    %615 = vmatmul.mubr.f32.gmra.mxu0 0.001953125
    %v616 = vpop.f32.mrf.mxu0
    %v617 = vadd.f32 0.0, %v616
    %v618 = vpop.f32.mrf.mxu0
    %619 = vdwg.mxu0
    %620 = vmatprep.subr.mxu0 0.0
    %621 = vmatpush1.msra.mxu0 %v483
    %622 = vmatprep.subr.mxu0 0.0
    %623 = vmatpush1.msra.mxu0 %v480
    %624 = vmatprep.subr.mxu0 0.0
    %625 = vmatpush1.msra.mxu0 %v475
    %626 = vmatprep.subr.mxu0 0.0
    %627 = vmatpush1.msra.mxu0 %v472
    %628 = vmatprep.subr.mxu0 0.0
    %629 = vmatpush1.msra.mxu0 %v467
    %630 = vmatprep.subr.mxu0 0.0
    %631 = vmatpush1.msra.mxu0 %v464
    %632 = vmatprep.subr.mxu0 0.0
    %633 = vmatpush1.msra.mxu0 %v459
    %634 = vmatprep.subr.mxu0 0.0
    %635 = vmatpush1.msra.mxu0 %v456
    %636 = vmatprep.subr.mxu0 0.0
    %637 = vmatpush1.msra.mxu0 %v451
    %638 = vmatprep.subr.mxu0 0.0
    %639 = vmatpush1.msra.mxu0 %v448
    %640 = vmatprep.subr.mxu0 0.0
    %641 = vmatpush1.msra.mxu0 %v443
    %642 = vmatprep.subr.mxu0 0.0
    %643 = vmatpush1.msra.mxu0 %v440
    %644 = vmatprep.subr.mxu0 0.0
    %645 = vmatpush1.msra.mxu0 %v435
    %646 = vmatprep.subr.mxu0 0.0
    %647 = vmatpush1.msra.mxu0 %v432
    %648 = vmatprep.subr.mxu0 0.0
    %649 = vmatpush1.msra.mxu0 %v427
    %650 = vmatprep.subr.mxu0 0.0
    %651 = vmatpush1.msra.mxu0 %v424
    %652 = vmatprep.subr.mxu0 0.0
    %653 = vmatpush2.msra.mxu0 %v547
    %654 = vmatprep.subr.mxu0 0.0
    %655 = vmatpush2.msra.mxu0 %v544
    %656 = vmatprep.subr.mxu0 0.0
    %657 = vmatpush2.msra.mxu0 %v539
    %658 = vmatprep.subr.mxu0 0.0
    %659 = vmatpush2.msra.mxu0 %v536
    %660 = vmatprep.subr.mxu0 0.0
    %661 = vmatpush2.msra.mxu0 %v531
    %662 = vmatprep.subr.mxu0 0.0
    %663 = vmatpush2.msra.mxu0 %v528
    %664 = vmatprep.subr.mxu0 0.0
    %665 = vmatpush2.msra.mxu0 %v523
    %666 = vmatprep.subr.mxu0 0.0
    %667 = vmatpush2.msra.mxu0 %v520
    %668 = vmatprep.subr.mxu0 0.0
    %669 = vmatpush2.msra.mxu0 %v515
    %670 = vmatprep.subr.mxu0 0.0
    %671 = vmatpush2.msra.mxu0 %v512
    %672 = vmatprep.subr.mxu0 0.0
    %673 = vmatpush2.msra.mxu0 %v507
    %674 = vmatprep.subr.mxu0 0.0
    %675 = vmatpush2.msra.mxu0 %v504
    %676 = vmatprep.subr.mxu0 0.0
    %677 = vmatpush2.msra.mxu0 %v499
    %678 = vmatprep.subr.mxu0 0.0
    %679 = vmatpush2.msra.mxu0 %v496
    %680 = vmatprep.subr.mxu0 0.0
    %681 = vmatpush2.msra.mxu0 %v491
    %682 = vmatprep.subr.mxu0 0.0
    %683 = vmatpush2.msra.mxu0 %v488
    %684 = vmatprep.mubr.f32.mxu0 0.001953125
    %685 = vmatmul.mubr.f32.gmra.mxu0 0.001953125
    %v686 = vpop.f32.mrf.mxu0
    %v687 = vadd.f32 %v617, %v686
    %v688 = vpop.f32.mrf.mxu0
    %689 = vdwg.mxu0
    %v690 = vmul.f32 %v296, %v296
    %v691 = vmul.f32 %v299, %v299
    %v692 = vmul.f32 %v304, %v304
    %v693 = vmul.f32 %v307, %v307
    %v694 = vmul.f32 %v312, %v312
    %v695 = vmul.f32 %v315, %v315
    %v696 = vmul.f32 %v320, %v320
    %v697 = vmul.f32 %v323, %v323
    %v698 = vmul.f32 %v328, %v328
    %v699 = vmul.f32 %v331, %v331
    %v700 = vmul.f32 %v336, %v336
    %v701 = vmul.f32 %v339, %v339
    %v702 = vmul.f32 %v344, %v344
    %v703 = vmul.f32 %v347, %v347
    %v704 = vmul.f32 %v352, %v352
    %v705 = vmul.f32 %v355, %v355
    %v706 = vmul.f32 %v360, %v360
    %v707 = vmul.f32 %v363, %v363
    %v708 = vmul.f32 %v368, %v368
    %v709 = vmul.f32 %v371, %v371
    %v710 = vmul.f32 %v376, %v376
    %v711 = vmul.f32 %v379, %v379
    %v712 = vmul.f32 %v384, %v384
    %v713 = vmul.f32 %v387, %v387
    %v714 = vmul.f32 %v392, %v392
    %v715 = vmul.f32 %v395, %v395
    %v716 = vmul.f32 %v400, %v400
    %v717 = vmul.f32 %v403, %v403
    %v718 = vmul.f32 %v408, %v408
    %v719 = vmul.f32 %v411, %v411
    %v720 = vmul.f32 %v416, %v416
    %v721 = vmul.f32 %v419, %v419
    %v722 = vmul.f32 %v424, %v424
    %v723 = vmul.f32 %v427, %v427
    %v724 = vmul.f32 %v432, %v432
    %v725 = vmul.f32 %v435, %v435
    %v726 = vmul.f32 %v440, %v440
    %v727 = vmul.f32 %v443, %v443
    %v728 = vmul.f32 %v448, %v448
    %v729 = vmul.f32 %v451, %v451
    %v730 = vmul.f32 %v456, %v456
    %v731 = vmul.f32 %v459, %v459
    %v732 = vmul.f32 %v464, %v464
    %v733 = vmul.f32 %v467, %v467
    %v734 = vmul.f32 %v472, %v472
    %v735 = vmul.f32 %v475, %v475
    %v736 = vmul.f32 %v480, %v480
    %v737 = vmul.f32 %v483, %v483
    %v738 = vmul.f32 %v488, %v488
    %v739 = vmul.f32 %v491, %v491
    %v740 = vmul.f32 %v496, %v496
    %v741 = vmul.f32 %v499, %v499
    %v742 = vmul.f32 %v504, %v504
    %v743 = vmul.f32 %v507, %v507
    %v744 = vmul.f32 %v512, %v512
    %v745 = vmul.f32 %v515, %v515
    %v746 = vmul.f32 %v520, %v520
    %v747 = vmul.f32 %v523, %v523
    %v748 = vmul.f32 %v528, %v528
    %v749 = vmul.f32 %v531, %v531
    %v750 = vmul.f32 %v536, %v536
    %v751 = vmul.f32 %v539, %v539
    %v752 = vmul.f32 %v544, %v544
    %v753 = vmul.f32 %v547, %v547
    %754 = vmatprep.subr.mxu0 0.0
    %755 = vmatpush1.msra.mxu0 %v705
    %756 = vmatprep.subr.mxu0 0.0
    %757 = vmatpush1.msra.mxu0 %v704
    %758 = vmatprep.subr.mxu0 0.0
    %759 = vmatpush1.msra.mxu0 %v703
    %760 = vmatprep.subr.mxu0 0.0
    %761 = vmatpush1.msra.mxu0 %v702
    %762 = vmatprep.subr.mxu0 0.0
    %763 = vmatpush1.msra.mxu0 %v701
    %764 = vmatprep.subr.mxu0 0.0
    %765 = vmatpush1.msra.mxu0 %v700
    %766 = vmatprep.subr.mxu0 0.0
    %767 = vmatpush1.msra.mxu0 %v699
    %768 = vmatprep.subr.mxu0 0.0
    %769 = vmatpush1.msra.mxu0 %v698
    %770 = vmatprep.subr.mxu0 0.0
    %771 = vmatpush1.msra.mxu0 %v697
    %772 = vmatprep.subr.mxu0 0.0
    %773 = vmatpush1.msra.mxu0 %v696
    %774 = vmatprep.subr.mxu0 0.0
    %775 = vmatpush1.msra.mxu0 %v695
    %776 = vmatprep.subr.mxu0 0.0
    %777 = vmatpush1.msra.mxu0 %v694
    %778 = vmatprep.subr.mxu0 0.0
    %779 = vmatpush1.msra.mxu0 %v693
    %780 = vmatprep.subr.mxu0 0.0
    %781 = vmatpush1.msra.mxu0 %v692
    %782 = vmatprep.subr.mxu0 0.0
    %783 = vmatpush1.msra.mxu0 %v691
    %784 = vmatprep.subr.mxu0 0.0
    %785 = vmatpush1.msra.mxu0 %v690
    %786 = vmatprep.subr.mxu0 0.0
    %787 = vmatpush2.msra.mxu0 %v721
    %788 = vmatprep.subr.mxu0 0.0
    %789 = vmatpush2.msra.mxu0 %v720
    %790 = vmatprep.subr.mxu0 0.0
    %791 = vmatpush2.msra.mxu0 %v719
    %792 = vmatprep.subr.mxu0 0.0
    %793 = vmatpush2.msra.mxu0 %v718
    %794 = vmatprep.subr.mxu0 0.0
    %795 = vmatpush2.msra.mxu0 %v717
    %796 = vmatprep.subr.mxu0 0.0
    %797 = vmatpush2.msra.mxu0 %v716
    %798 = vmatprep.subr.mxu0 0.0
    %799 = vmatpush2.msra.mxu0 %v715
    %800 = vmatprep.subr.mxu0 0.0
    %801 = vmatpush2.msra.mxu0 %v714
    %802 = vmatprep.subr.mxu0 0.0
    %803 = vmatpush2.msra.mxu0 %v713
    %804 = vmatprep.subr.mxu0 0.0
    %805 = vmatpush2.msra.mxu0 %v712
    %806 = vmatprep.subr.mxu0 0.0
    %807 = vmatpush2.msra.mxu0 %v711
    %808 = vmatprep.subr.mxu0 0.0
    %809 = vmatpush2.msra.mxu0 %v710
    %810 = vmatprep.subr.mxu0 0.0
    %811 = vmatpush2.msra.mxu0 %v709
    %812 = vmatprep.subr.mxu0 0.0
    %813 = vmatpush2.msra.mxu0 %v708
    %814 = vmatprep.subr.mxu0 0.0
    %815 = vmatpush2.msra.mxu0 %v707
    %816 = vmatprep.subr.mxu0 0.0
    %817 = vmatpush2.msra.mxu0 %v706
    %818 = vmatprep.mubr.f32.mxu0 0.001953125
    %819 = vmatmul.mubr.f32.gmra.mxu0 0.001953125
    %v820 = vpop.f32.mrf.mxu0
    %v821 = vadd.f32 0.0, %v820
    %v822 = vpop.f32.mrf.mxu0
    %823 = vdwg.mxu0
    %824 = vmatprep.subr.mxu0 0.0
    %825 = vmatpush1.msra.mxu0 %v737
    %826 = vmatprep.subr.mxu0 0.0
    %827 = vmatpush1.msra.mxu0 %v736
    %828 = vmatprep.subr.mxu0 0.0
    %829 = vmatpush1.msra.mxu0 %v735
    %830 = vmatprep.subr.mxu0 0.0
    %831 = vmatpush1.msra.mxu0 %v734
    %832 = vmatprep.subr.mxu0 0.0
    %833 = vmatpush1.msra.mxu0 %v733
    %834 = vmatprep.subr.mxu0 0.0
    %835 = vmatpush1.msra.mxu0 %v732
    %836 = vmatprep.subr.mxu0 0.0
    %837 = vmatpush1.msra.mxu0 %v731
    %838 = vmatprep.subr.mxu0 0.0
    %839 = vmatpush1.msra.mxu0 %v730
    %840 = vmatprep.subr.mxu0 0.0
    %841 = vmatpush1.msra.mxu0 %v729
    %842 = vmatprep.subr.mxu0 0.0
    %843 = vmatpush1.msra.mxu0 %v728
    %844 = vmatprep.subr.mxu0 0.0
    %845 = vmatpush1.msra.mxu0 %v727
    %846 = vmatprep.subr.mxu0 0.0
    %847 = vmatpush1.msra.mxu0 %v726
    %848 = vmatprep.subr.mxu0 0.0
    %849 = vmatpush1.msra.mxu0 %v725
    %850 = vmatprep.subr.mxu0 0.0
    %851 = vmatpush1.msra.mxu0 %v724
    %852 = vmatprep.subr.mxu0 0.0
    %853 = vmatpush1.msra.mxu0 %v723
    %854 = vmatprep.subr.mxu0 0.0
    %855 = vmatpush1.msra.mxu0 %v722
    %856 = vmatprep.subr.mxu0 0.0
    %857 = vmatpush2.msra.mxu0 %v753
    %858 = vmatprep.subr.mxu0 0.0
    %859 = vmatpush2.msra.mxu0 %v752
    %860 = vmatprep.subr.mxu0 0.0
    %861 = vmatpush2.msra.mxu0 %v751
    %862 = vmatprep.subr.mxu0 0.0
    %863 = vmatpush2.msra.mxu0 %v750
    %864 = vmatprep.subr.mxu0 0.0
    %865 = vmatpush2.msra.mxu0 %v749
    %866 = vmatprep.subr.mxu0 0.0
    %867 = vmatpush2.msra.mxu0 %v748
    %868 = vmatprep.subr.mxu0 0.0
    %869 = vmatpush2.msra.mxu0 %v747
    %870 = vmatprep.subr.mxu0 0.0
    %871 = vmatpush2.msra.mxu0 %v746
    %872 = vmatprep.subr.mxu0 0.0
    %873 = vmatpush2.msra.mxu0 %v745
    %874 = vmatprep.subr.mxu0 0.0
    %875 = vmatpush2.msra.mxu0 %v744
    %876 = vmatprep.subr.mxu0 0.0
    %877 = vmatpush2.msra.mxu0 %v743
    %878 = vmatprep.subr.mxu0 0.0
    %879 = vmatpush2.msra.mxu0 %v742
    %880 = vmatprep.subr.mxu0 0.0
    %881 = vmatpush2.msra.mxu0 %v741
    %882 = vmatprep.subr.mxu0 0.0
    %883 = vmatpush2.msra.mxu0 %v740
    %884 = vmatprep.subr.mxu0 0.0
    %885 = vmatpush2.msra.mxu0 %v739
    %886 = vmatprep.subr.mxu0 0.0
    %887 = vmatpush2.msra.mxu0 %v738
    %888 = vmatprep.mubr.f32.mxu0 0.001953125
    %889 = vmatmul.mubr.f32.gmra.mxu0 0.001953125
    %v890 = vpop.f32.mrf.mxu0
    %v891 = vadd.f32 %v821, %v890
    %v892 = vpop.f32.mrf.mxu0
    %893 = vdwg.mxu0
    %v894 = vmul.f32 %v687, %v687
    %v895 = vsub.f32 %v891, %v894
    %v896 = vmax.f32 %v895, 0.0
    %v897 = vld [vmem:[%s2] sm:$0x1]
    %v898 = vadd.f32 %v896, 1e-05
    %v899 = vrsqrt.pop %v898
    %v900 = vmul.f32 %v897, %v899
    %v901 = vld [vmem:[%s3] sm:$0x1]
    %v902 = vmul.f32 %v687, %v900
    %v903 = vsub.f32 %v901, %v902
    %v905 = vlaneseq
    %v906 = vshrl.u32 %v905, 7
    %v907 = vsub.s32 0, %v906
    %v908 = vrot.slane %v900, %v907
    %v910 = vmul.f32 %v296, %v908
    %v911 = vmul.f32 %v299, %v908
    %v912 = vmul.f32 %v304, %v908
    %v913 = vmul.f32 %v307, %v908
    %v914 = vmul.f32 %v312, %v908
    %v915 = vmul.f32 %v315, %v908
    %v916 = vmul.f32 %v320, %v908
    %v917 = vmul.f32 %v323, %v908
    %v918 = vmul.f32 %v328, %v908
    %v919 = vmul.f32 %v331, %v908
    %v920 = vmul.f32 %v336, %v908
    %v921 = vmul.f32 %v339, %v908
    %v922 = vmul.f32 %v344, %v908
    %v923 = vmul.f32 %v347, %v908
    %v924 = vmul.f32 %v352, %v908
    %v925 = vmul.f32 %v355, %v908
    %v926 = vmul.f32 %v360, %v908
    %v927 = vmul.f32 %v363, %v908
    %v928 = vmul.f32 %v368, %v908
    %v929 = vmul.f32 %v371, %v908
    %v930 = vmul.f32 %v376, %v908
    %v931 = vmul.f32 %v379, %v908
    %v932 = vmul.f32 %v384, %v908
    %v933 = vmul.f32 %v387, %v908
    %v934 = vmul.f32 %v392, %v908
    %v935 = vmul.f32 %v395, %v908
    %v936 = vmul.f32 %v400, %v908
    %v937 = vmul.f32 %v403, %v908
    %v938 = vmul.f32 %v408, %v908
    %v939 = vmul.f32 %v411, %v908
    %v940 = vmul.f32 %v416, %v908
    %v941 = vmul.f32 %v419, %v908
    %v942 = vmul.f32 %v424, %v908
    %v943 = vmul.f32 %v427, %v908
    %v944 = vmul.f32 %v432, %v908
    %v945 = vmul.f32 %v435, %v908
    %v946 = vmul.f32 %v440, %v908
    %v947 = vmul.f32 %v443, %v908
    %v948 = vmul.f32 %v448, %v908
    %v949 = vmul.f32 %v451, %v908
    %v950 = vmul.f32 %v456, %v908
    %v951 = vmul.f32 %v459, %v908
    %v952 = vmul.f32 %v464, %v908
    %v953 = vmul.f32 %v467, %v908
    %v954 = vmul.f32 %v472, %v908
    %v955 = vmul.f32 %v475, %v908
    %v956 = vmul.f32 %v480, %v908
    %v957 = vmul.f32 %v483, %v908
    %v958 = vmul.f32 %v488, %v908
    %v959 = vmul.f32 %v491, %v908
    %v960 = vmul.f32 %v496, %v908
    %v961 = vmul.f32 %v499, %v908
    %v962 = vmul.f32 %v504, %v908
    %v963 = vmul.f32 %v507, %v908
    %v964 = vmul.f32 %v512, %v908
    %v965 = vmul.f32 %v515, %v908
    %v966 = vmul.f32 %v520, %v908
    %v967 = vmul.f32 %v523, %v908
    %v968 = vmul.f32 %v528, %v908
    %v969 = vmul.f32 %v531, %v908
    %v970 = vmul.f32 %v536, %v908
    %v971 = vmul.f32 %v539, %v908
    %v972 = vmul.f32 %v544, %v908
    %v973 = vmul.f32 %v547, %v908
    %v975 = vlaneseq
    %v976 = vshrl.u32 %v975, 7
    %v977 = vsub.s32 0, %v976
    %v978 = vrot.slane %v903, %v977
    %v980 = vadd.f32 %v910, %v978
    %v981 = vadd.f32 %v911, %v978
    %v982 = vadd.f32 %v912, %v978
    %v983 = vadd.f32 %v913, %v978
    %v984 = vadd.f32 %v914, %v978
    %v985 = vadd.f32 %v915, %v978
    %v986 = vadd.f32 %v916, %v978
    %v987 = vadd.f32 %v917, %v978
    %v988 = vadd.f32 %v918, %v978
    %v989 = vadd.f32 %v919, %v978
    %v990 = vadd.f32 %v920, %v978
    %v991 = vadd.f32 %v921, %v978
    %v992 = vadd.f32 %v922, %v978
    %v993 = vadd.f32 %v923, %v978
    %v994 = vadd.f32 %v924, %v978
    %v995 = vadd.f32 %v925, %v978
    %v996 = vadd.f32 %v926, %v978
    %v997 = vadd.f32 %v927, %v978
    %v998 = vadd.f32 %v928, %v978
    %v999 = vadd.f32 %v929, %v978
    %v1000 = vadd.f32 %v930, %v978
    %v1001 = vadd.f32 %v931, %v978
    %v1002 = vadd.f32 %v932, %v978
    %v1003 = vadd.f32 %v933, %v978
    %v1004 = vadd.f32 %v934, %v978
    %v1005 = vadd.f32 %v935, %v978
    %v1006 = vadd.f32 %v936, %v978
    %v1007 = vadd.f32 %v937, %v978
    %v1008 = vadd.f32 %v938, %v978
    %v1009 = vadd.f32 %v939, %v978
    %v1010 = vadd.f32 %v940, %v978
    %v1011 = vadd.f32 %v941, %v978
    %v1012 = vadd.f32 %v942, %v978
    %v1013 = vadd.f32 %v943, %v978
    %v1014 = vadd.f32 %v944, %v978
    %v1015 = vadd.f32 %v945, %v978
    %v1016 = vadd.f32 %v946, %v978
    %v1017 = vadd.f32 %v947, %v978
    %v1018 = vadd.f32 %v948, %v978
    %v1019 = vadd.f32 %v949, %v978
    %v1020 = vadd.f32 %v950, %v978
    %v1021 = vadd.f32 %v951, %v978
    %v1022 = vadd.f32 %v952, %v978
    %v1023 = vadd.f32 %v953, %v978
    %v1024 = vadd.f32 %v954, %v978
    %v1025 = vadd.f32 %v955, %v978
    %v1026 = vadd.f32 %v956, %v978
    %v1027 = vadd.f32 %v957, %v978
    %v1028 = vadd.f32 %v958, %v978
    %v1029 = vadd.f32 %v959, %v978
    %v1030 = vadd.f32 %v960, %v978
    %v1031 = vadd.f32 %v961, %v978
    %v1032 = vadd.f32 %v962, %v978
    %v1033 = vadd.f32 %v963, %v978
    %v1034 = vadd.f32 %v964, %v978
    %v1035 = vadd.f32 %v965, %v978
    %v1036 = vadd.f32 %v966, %v978
    %v1037 = vadd.f32 %v967, %v978
    %v1038 = vadd.f32 %v968, %v978
    %v1039 = vadd.f32 %v969, %v978
    %v1040 = vadd.f32 %v970, %v978
    %v1041 = vadd.f32 %v971, %v978
    %v1042 = vadd.f32 %v972, %v978
    %v1043 = vadd.f32 %v973, %v978
    %v1044 = vmax.f32 %v980, 0.0
    %v1045 = vmax.f32 %v981, 0.0
    %v1046 = vmax.f32 %v982, 0.0
    %v1047 = vmax.f32 %v983, 0.0
    %v1048 = vmax.f32 %v984, 0.0
    %v1049 = vmax.f32 %v985, 0.0
    %v1050 = vmax.f32 %v986, 0.0
    %v1051 = vmax.f32 %v987, 0.0
    %v1052 = vmax.f32 %v988, 0.0
    %v1053 = vmax.f32 %v989, 0.0
    %v1054 = vmax.f32 %v990, 0.0
    %v1055 = vmax.f32 %v991, 0.0
    %v1056 = vmax.f32 %v992, 0.0
    %v1057 = vmax.f32 %v993, 0.0
    %v1058 = vmax.f32 %v994, 0.0
    %v1059 = vmax.f32 %v995, 0.0
    %v1060 = vmax.f32 %v996, 0.0
    %v1061 = vmax.f32 %v997, 0.0
    %v1062 = vmax.f32 %v998, 0.0
    %v1063 = vmax.f32 %v999, 0.0
    %v1064 = vmax.f32 %v1000, 0.0
    %v1065 = vmax.f32 %v1001, 0.0
    %v1066 = vmax.f32 %v1002, 0.0
    %v1067 = vmax.f32 %v1003, 0.0
    %v1068 = vmax.f32 %v1004, 0.0
    %v1069 = vmax.f32 %v1005, 0.0
    %v1070 = vmax.f32 %v1006, 0.0
    %v1071 = vmax.f32 %v1007, 0.0
    %v1072 = vmax.f32 %v1008, 0.0
    %v1073 = vmax.f32 %v1009, 0.0
    %v1074 = vmax.f32 %v1010, 0.0
    %v1075 = vmax.f32 %v1011, 0.0
    %v1076 = vmax.f32 %v1012, 0.0
    %v1077 = vmax.f32 %v1013, 0.0
    %v1078 = vmax.f32 %v1014, 0.0
    %v1079 = vmax.f32 %v1015, 0.0
    %v1080 = vmax.f32 %v1016, 0.0
    %v1081 = vmax.f32 %v1017, 0.0
    %v1082 = vmax.f32 %v1018, 0.0
    %v1083 = vmax.f32 %v1019, 0.0
    %v1084 = vmax.f32 %v1020, 0.0
    %v1085 = vmax.f32 %v1021, 0.0
    %v1086 = vmax.f32 %v1022, 0.0
    %v1087 = vmax.f32 %v1023, 0.0
    %v1088 = vmax.f32 %v1024, 0.0
    %v1089 = vmax.f32 %v1025, 0.0
    %v1090 = vmax.f32 %v1026, 0.0
    %v1091 = vmax.f32 %v1027, 0.0
    %v1092 = vmax.f32 %v1028, 0.0
    %v1093 = vmax.f32 %v1029, 0.0
    %v1094 = vmax.f32 %v1030, 0.0
    %v1095 = vmax.f32 %v1031, 0.0
    %v1096 = vmax.f32 %v1032, 0.0
    %v1097 = vmax.f32 %v1033, 0.0
    %v1098 = vmax.f32 %v1034, 0.0
    %v1099 = vmax.f32 %v1035, 0.0
    %v1100 = vmax.f32 %v1036, 0.0
    %v1101 = vmax.f32 %v1037, 0.0
    %v1102 = vmax.f32 %v1038, 0.0
    %v1103 = vmax.f32 %v1039, 0.0
    %v1104 = vmax.f32 %v1040, 0.0
    %v1105 = vmax.f32 %v1041, 0.0
    %v1106 = vmax.f32 %v1042, 0.0
    %v1107 = vmax.f32 %v1043, 0.0
    %v1108 = vpack.c.bf16 %v1045, %v1044
    %v1109 = vpack.c.bf16 %v1047, %v1046
    %v1110 = vpack.c.bf16 %v1049, %v1048
    %v1111 = vpack.c.bf16 %v1051, %v1050
    %v1112 = vpack.c.bf16 %v1053, %v1052
    %v1113 = vpack.c.bf16 %v1055, %v1054
    %v1114 = vpack.c.bf16 %v1057, %v1056
    %v1115 = vpack.c.bf16 %v1059, %v1058
    %v1116 = vpack.c.bf16 %v1061, %v1060
    %v1117 = vpack.c.bf16 %v1063, %v1062
    %v1118 = vpack.c.bf16 %v1065, %v1064
    %v1119 = vpack.c.bf16 %v1067, %v1066
    %v1120 = vpack.c.bf16 %v1069, %v1068
    %v1121 = vpack.c.bf16 %v1071, %v1070
    %v1122 = vpack.c.bf16 %v1073, %v1072
    %v1123 = vpack.c.bf16 %v1075, %v1074
    %v1124 = vpack.c.bf16 %v1077, %v1076
    %v1125 = vpack.c.bf16 %v1079, %v1078
    %v1126 = vpack.c.bf16 %v1081, %v1080
    %v1127 = vpack.c.bf16 %v1083, %v1082
    %v1128 = vpack.c.bf16 %v1085, %v1084
    %v1129 = vpack.c.bf16 %v1087, %v1086
    %v1130 = vpack.c.bf16 %v1089, %v1088
    %v1131 = vpack.c.bf16 %v1091, %v1090
    %v1132 = vpack.c.bf16 %v1093, %v1092
    %v1133 = vpack.c.bf16 %v1095, %v1094
    %v1134 = vpack.c.bf16 %v1097, %v1096
    %v1135 = vpack.c.bf16 %v1099, %v1098
    %v1136 = vpack.c.bf16 %v1101, %v1100
    %v1137 = vpack.c.bf16 %v1103, %v1102
    %v1138 = vpack.c.bf16 %v1105, %v1104
    %v1139 = vpack.c.bf16 %v1107, %v1106
    %v1141 = vshrl.u32 0, 16
    %v1143 = vrot.slane %v1141, 7
    %v1144 = vshll.u32 0, 16
    %v1146 = vor.u32 %v1143, %v1144
    %v1148 = vshrl.u32 %v1108, 16
    %v1150 = vrot.slane %v1148, 7
    %v1151 = vshll.u32 %v1108, 16
    %v1153 = vor.u32 %v1150, %v1151
    %v1155 = vshrl.u32 %v1109, 16
    %v1157 = vrot.slane %v1155, 7
    %v1158 = vshll.u32 %v1109, 16
    %v1160 = vor.u32 %v1157, %v1158
    %v1162 = vshrl.u32 %v1110, 16
    %v1164 = vrot.slane %v1162, 7
    %v1165 = vshll.u32 %v1110, 16
    %v1167 = vor.u32 %v1164, %v1165
    %v1169 = vshrl.u32 %v1111, 16
    %v1171 = vrot.slane %v1169, 7
    %v1172 = vshll.u32 %v1111, 16
    %v1174 = vor.u32 %v1171, %v1172
    %v1176 = vshrl.u32 %v1112, 16
    %v1178 = vrot.slane %v1176, 7
    %v1179 = vshll.u32 %v1112, 16
    %v1181 = vor.u32 %v1178, %v1179
    %v1183 = vshrl.u32 %v1113, 16
    %v1185 = vrot.slane %v1183, 7
    %v1186 = vshll.u32 %v1113, 16
    %v1188 = vor.u32 %v1185, %v1186
    %v1190 = vshrl.u32 %v1114, 16
    %v1192 = vrot.slane %v1190, 7
    %v1193 = vshll.u32 %v1114, 16
    %v1195 = vor.u32 %v1192, %v1193
    %v1197 = vshrl.u32 %v1115, 16
    %v1199 = vrot.slane %v1197, 7
    %v1200 = vshll.u32 %v1115, 16
    %v1202 = vor.u32 %v1199, %v1200
    %v1204 = vshrl.u32 %v1116, 16
    %v1206 = vrot.slane %v1204, 7
    %v1207 = vshll.u32 %v1116, 16
    %v1209 = vor.u32 %v1206, %v1207
    %v1211 = vshrl.u32 %v1117, 16
    %v1213 = vrot.slane %v1211, 7
    %v1214 = vshll.u32 %v1117, 16
    %v1216 = vor.u32 %v1213, %v1214
    %v1218 = vshrl.u32 %v1118, 16
    %v1220 = vrot.slane %v1218, 7
    %v1221 = vshll.u32 %v1118, 16
    %v1223 = vor.u32 %v1220, %v1221
    %v1225 = vshrl.u32 %v1119, 16
    %v1227 = vrot.slane %v1225, 7
    %v1228 = vshll.u32 %v1119, 16
    %v1230 = vor.u32 %v1227, %v1228
    %v1232 = vshrl.u32 %v1120, 16
    %v1234 = vrot.slane %v1232, 7
    %v1235 = vshll.u32 %v1120, 16
    %v1237 = vor.u32 %v1234, %v1235
    %v1239 = vshrl.u32 %v1121, 16
    %v1241 = vrot.slane %v1239, 7
    %v1242 = vshll.u32 %v1121, 16
    %v1244 = vor.u32 %v1241, %v1242
    %v1246 = vshrl.u32 %v1122, 16
    %v1248 = vrot.slane %v1246, 7
    %v1249 = vshll.u32 %v1122, 16
    %v1251 = vor.u32 %v1248, %v1249
    %v1253 = vshrl.u32 %v1123, 16
    %v1255 = vrot.slane %v1253, 7
    %v1256 = vshll.u32 %v1123, 16
    %v1258 = vor.u32 %v1255, %v1256
    %v1260 = vshrl.u32 %v1124, 16
    %v1262 = vrot.slane %v1260, 7
    %v1263 = vshll.u32 %v1124, 16
    %v1265 = vor.u32 %v1262, %v1263
    %v1267 = vshrl.u32 %v1125, 16
    %v1269 = vrot.slane %v1267, 7
    %v1270 = vshll.u32 %v1125, 16
    %v1272 = vor.u32 %v1269, %v1270
    %v1274 = vshrl.u32 %v1126, 16
    %v1276 = vrot.slane %v1274, 7
    %v1277 = vshll.u32 %v1126, 16
    %v1279 = vor.u32 %v1276, %v1277
    %v1281 = vshrl.u32 %v1127, 16
    %v1283 = vrot.slane %v1281, 7
    %v1284 = vshll.u32 %v1127, 16
    %v1286 = vor.u32 %v1283, %v1284
    %v1288 = vshrl.u32 %v1128, 16
    %v1290 = vrot.slane %v1288, 7
    %v1291 = vshll.u32 %v1128, 16
    %v1293 = vor.u32 %v1290, %v1291
    %v1295 = vshrl.u32 %v1129, 16
    %v1297 = vrot.slane %v1295, 7
    %v1298 = vshll.u32 %v1129, 16
    %v1300 = vor.u32 %v1297, %v1298
    %v1302 = vshrl.u32 %v1130, 16
    %v1304 = vrot.slane %v1302, 7
    %v1305 = vshll.u32 %v1130, 16
    %v1307 = vor.u32 %v1304, %v1305
    %v1309 = vshrl.u32 %v1131, 16
    %v1311 = vrot.slane %v1309, 7
    %v1312 = vshll.u32 %v1131, 16
    %v1314 = vor.u32 %v1311, %v1312
    %v1316 = vshrl.u32 %v1132, 16
    %v1318 = vrot.slane %v1316, 7
    %v1319 = vshll.u32 %v1132, 16
    %v1321 = vor.u32 %v1318, %v1319
    %v1323 = vshrl.u32 %v1133, 16
    %v1325 = vrot.slane %v1323, 7
    %v1326 = vshll.u32 %v1133, 16
    %v1328 = vor.u32 %v1325, %v1326
    %v1330 = vshrl.u32 %v1134, 16
    %v1332 = vrot.slane %v1330, 7
    %v1333 = vshll.u32 %v1134, 16
    %v1335 = vor.u32 %v1332, %v1333
    %v1337 = vshrl.u32 %v1135, 16
    %v1339 = vrot.slane %v1337, 7
    %v1340 = vshll.u32 %v1135, 16
    %v1342 = vor.u32 %v1339, %v1340
    %v1344 = vshrl.u32 %v1136, 16
    %v1346 = vrot.slane %v1344, 7
    %v1347 = vshll.u32 %v1136, 16
    %v1349 = vor.u32 %v1346, %v1347
    %v1351 = vshrl.u32 %v1137, 16
    %v1353 = vrot.slane %v1351, 7
    %v1354 = vshll.u32 %v1137, 16
    %v1356 = vor.u32 %v1353, %v1354
    %v1358 = vshrl.u32 %v1138, 16
    %v1360 = vrot.slane %v1358, 7
    %v1361 = vshll.u32 %v1138, 16
    %v1363 = vor.u32 %v1360, %v1361
    %v1365 = vshrl.u32 %v1139, 16
    %v1367 = vrot.slane %v1365, 7
    %v1368 = vshll.u32 %v1139, 16
    %v1370 = vor.u32 %v1367, %v1368
    %vm1437 = vcmask 1040384
    %vm1438 = vsmask.f32 256
    %vm1439 = vmand %vm1437, %vm1438
    %v1440 = vsel %vm1439, 0, %v1146
    %v1441 = vsel %vm1439, 0, %v1153
    %v1442 = vsel %vm1439, 0, %v1160
    %v1443 = vsel %vm1439, 0, %v1167
    %v1444 = vsel %vm1439, 0, %v1174
    %v1445 = vsel %vm1439, 0, %v1181
    %v1446 = vsel %vm1439, 0, %v1188
    %v1447 = vsel %vm1439, 0, %v1195
    %v1448 = vsel %vm1439, 0, %v1202
    %v1449 = vsel %vm1439, 0, %v1209
    %v1450 = vsel %vm1439, 0, %v1216
    %v1451 = vsel %vm1439, 0, %v1223
    %v1452 = vsel %vm1439, 0, %v1230
    %v1453 = vsel %vm1439, 0, %v1237
    %v1454 = vsel %vm1439, 0, %v1244
    %v1455 = vsel %vm1439, 0, %v1251
    %v1456 = vsel %vm1439, 0, %v1258
    %v1457 = vsel %vm1439, 0, %v1265
    %v1458 = vsel %vm1439, 0, %v1272
    %v1459 = vsel %vm1439, 0, %v1279
    %v1460 = vsel %vm1439, 0, %v1286
    %v1461 = vsel %vm1439, 0, %v1293
    %v1462 = vsel %vm1439, 0, %v1300
    %v1463 = vsel %vm1439, 0, %v1307
    %v1464 = vsel %vm1439, 0, %v1314
    %v1465 = vsel %vm1439, 0, %v1321
    %v1466 = vsel %vm1439, 0, %v1328
    %v1467 = vsel %vm1439, 0, %v1335
    %v1468 = vsel %vm1439, 0, %v1342
    %v1469 = vsel %vm1439, 0, %v1349
    %v1470 = vsel %vm1439, 0, %v1356
    %v1471 = vsel %vm1439, 0, %v1363
    %v1472 = vsel %vm1439, 0, %v1370
    %v1473 = vsel %vm1439, %v1143, 0
    %v1474 = vsel %vm1439, %v1150, 0
    %v1475 = vsel %vm1439, %v1157, 0
    %v1476 = vsel %vm1439, %v1164, 0
    %v1477 = vsel %vm1439, %v1171, 0
    %v1478 = vsel %vm1439, %v1178, 0
    %v1479 = vsel %vm1439, %v1185, 0
    %v1480 = vsel %vm1439, %v1192, 0
    %v1481 = vsel %vm1439, %v1199, 0
    %v1482 = vsel %vm1439, %v1206, 0
    %v1483 = vsel %vm1439, %v1213, 0
    %v1484 = vsel %vm1439, %v1220, 0
    %v1485 = vsel %vm1439, %v1227, 0
    %v1486 = vsel %vm1439, %v1234, 0
    %v1487 = vsel %vm1439, %v1241, 0
    %v1488 = vsel %vm1439, %v1248, 0
    %v1489 = vsel %vm1439, %v1255, 0
    %v1490 = vsel %vm1439, %v1262, 0
    %v1491 = vsel %vm1439, %v1269, 0
    %v1492 = vsel %vm1439, %v1276, 0
    %v1493 = vsel %vm1439, %v1283, 0
    %v1494 = vsel %vm1439, %v1290, 0
    %v1495 = vsel %vm1439, %v1297, 0
    %v1496 = vsel %vm1439, %v1304, 0
    %v1497 = vsel %vm1439, %v1311, 0
    %v1498 = vsel %vm1439, %v1318, 0
    %v1499 = vsel %vm1439, %v1325, 0
    %v1500 = vsel %vm1439, %v1332, 0
    %v1501 = vsel %vm1439, %v1339, 0
    %v1502 = vsel %vm1439, %v1346, 0
    %v1503 = vsel %vm1439, %v1353, 0
    %v1504 = vsel %vm1439, %v1360, 0
    %v1505 = vsel %vm1439, %v1367, 0
    %v1572 = vunpack.c.l.b16 %v1440
    %v1573 = vunpack.c.h.b16 %v1440
    %v1574 = vunpack.c.l.b16 %v1473
    %v1575 = vunpack.c.l.b16 %v1441
    %v1576 = vunpack.c.h.b16 %v1441
    %v1577 = vunpack.c.l.b16 %v1474
    %v1578 = vunpack.c.l.b16 %v1442
    %v1579 = vunpack.c.h.b16 %v1442
    %v1580 = vunpack.c.l.b16 %v1475
    %v1581 = vunpack.c.l.b16 %v1443
    %v1582 = vunpack.c.h.b16 %v1443
    %v1583 = vunpack.c.l.b16 %v1476
    %v1584 = vunpack.c.l.b16 %v1444
    %v1585 = vunpack.c.h.b16 %v1444
    %v1586 = vunpack.c.l.b16 %v1477
    %v1587 = vunpack.c.l.b16 %v1445
    %v1588 = vunpack.c.h.b16 %v1445
    %v1589 = vunpack.c.l.b16 %v1478
    %v1590 = vunpack.c.l.b16 %v1446
    %v1591 = vunpack.c.h.b16 %v1446
    %v1592 = vunpack.c.l.b16 %v1479
    %v1593 = vunpack.c.l.b16 %v1447
    %v1594 = vunpack.c.h.b16 %v1447
    %v1595 = vunpack.c.l.b16 %v1480
    %v1596 = vunpack.c.l.b16 %v1448
    %v1597 = vunpack.c.h.b16 %v1448
    %v1598 = vunpack.c.l.b16 %v1481
    %v1599 = vunpack.c.l.b16 %v1449
    %v1600 = vunpack.c.h.b16 %v1449
    %v1601 = vunpack.c.l.b16 %v1482
    %v1602 = vunpack.c.l.b16 %v1450
    %v1603 = vunpack.c.h.b16 %v1450
    %v1604 = vunpack.c.l.b16 %v1483
    %v1605 = vunpack.c.l.b16 %v1451
    %v1606 = vunpack.c.h.b16 %v1451
    %v1607 = vunpack.c.l.b16 %v1484
    %v1608 = vunpack.c.l.b16 %v1452
    %v1609 = vunpack.c.h.b16 %v1452
    %v1610 = vunpack.c.l.b16 %v1485
    %v1611 = vunpack.c.l.b16 %v1453
    %v1612 = vunpack.c.h.b16 %v1453
    %v1613 = vunpack.c.l.b16 %v1486
    %v1614 = vunpack.c.l.b16 %v1454
    %v1615 = vunpack.c.h.b16 %v1454
    %v1616 = vunpack.c.l.b16 %v1487
    %v1617 = vunpack.c.l.b16 %v1455
    %v1618 = vunpack.c.h.b16 %v1455
    %v1619 = vunpack.c.l.b16 %v1488
    %v1620 = vunpack.c.l.b16 %v1456
    %v1621 = vunpack.c.h.b16 %v1456
    %v1622 = vunpack.c.l.b16 %v1489
    %v1623 = vunpack.c.l.b16 %v1457
    %v1624 = vunpack.c.h.b16 %v1457
    %v1625 = vunpack.c.l.b16 %v1490
    %v1626 = vunpack.c.l.b16 %v1458
    %v1627 = vunpack.c.h.b16 %v1458
    %v1628 = vunpack.c.l.b16 %v1491
    %v1629 = vunpack.c.l.b16 %v1459
    %v1630 = vunpack.c.h.b16 %v1459
    %v1631 = vunpack.c.l.b16 %v1492
    %v1632 = vunpack.c.l.b16 %v1460
    %v1633 = vunpack.c.h.b16 %v1460
    %v1634 = vunpack.c.l.b16 %v1493
    %v1635 = vunpack.c.l.b16 %v1461
    %v1636 = vunpack.c.h.b16 %v1461
    %v1637 = vunpack.c.l.b16 %v1494
    %v1638 = vunpack.c.l.b16 %v1462
    %v1639 = vunpack.c.h.b16 %v1462
    %v1640 = vunpack.c.l.b16 %v1495
    %v1641 = vunpack.c.l.b16 %v1463
    %v1642 = vunpack.c.h.b16 %v1463
    %v1643 = vunpack.c.l.b16 %v1496
    %v1644 = vunpack.c.l.b16 %v1464
    %v1645 = vunpack.c.h.b16 %v1464
    %v1646 = vunpack.c.l.b16 %v1497
    %v1647 = vunpack.c.l.b16 %v1465
    %v1648 = vunpack.c.h.b16 %v1465
    %v1649 = vunpack.c.l.b16 %v1498
    %v1650 = vunpack.c.l.b16 %v1466
    %v1651 = vunpack.c.h.b16 %v1466
    %v1652 = vunpack.c.l.b16 %v1499
    %v1653 = vunpack.c.l.b16 %v1467
    %v1654 = vunpack.c.h.b16 %v1467
    %v1655 = vunpack.c.l.b16 %v1500
    %v1656 = vunpack.c.l.b16 %v1468
    %v1657 = vunpack.c.h.b16 %v1468
    %v1658 = vunpack.c.l.b16 %v1501
    %v1659 = vunpack.c.l.b16 %v1469
    %v1660 = vunpack.c.h.b16 %v1469
    %v1661 = vunpack.c.l.b16 %v1502
    %v1662 = vunpack.c.l.b16 %v1470
    %v1663 = vunpack.c.h.b16 %v1470
    %v1664 = vunpack.c.l.b16 %v1503
    %v1665 = vunpack.c.l.b16 %v1471
    %v1666 = vunpack.c.h.b16 %v1471
    %v1667 = vunpack.c.l.b16 %v1504
    %v1668 = vunpack.c.l.b16 %v1472
    %v1669 = vunpack.c.h.b16 %v1472
    %v1670 = vunpack.c.l.b16 %v1505
    %v1671 = vpack.c.b16 %v1572, %v1572
    %v1672 = vpack.c.b16 %v1573, %v1573
    %v1673 = vpack.c.b16 %v1574, %v1574
    %v1674 = vpack.c.b16 %v1575, %v1575
    %v1675 = vpack.c.b16 %v1576, %v1576
    %v1676 = vpack.c.b16 %v1577, %v1577
    %v1677 = vpack.c.b16 %v1578, %v1578
    %v1678 = vpack.c.b16 %v1579, %v1579
    %v1679 = vpack.c.b16 %v1580, %v1580
    %v1680 = vpack.c.b16 %v1581, %v1581
    %v1681 = vpack.c.b16 %v1582, %v1582
    %v1682 = vpack.c.b16 %v1583, %v1583
    %v1683 = vpack.c.b16 %v1584, %v1584
    %v1684 = vpack.c.b16 %v1585, %v1585
    %v1685 = vpack.c.b16 %v1586, %v1586
    %v1686 = vpack.c.b16 %v1587, %v1587
    %v1687 = vpack.c.b16 %v1588, %v1588
    %v1688 = vpack.c.b16 %v1589, %v1589
    %v1689 = vpack.c.b16 %v1590, %v1590
    %v1690 = vpack.c.b16 %v1591, %v1591
    %v1691 = vpack.c.b16 %v1592, %v1592
    %v1692 = vpack.c.b16 %v1593, %v1593
    %v1693 = vpack.c.b16 %v1594, %v1594
    %v1694 = vpack.c.b16 %v1595, %v1595
    %v1695 = vpack.c.b16 %v1596, %v1596
    %v1696 = vpack.c.b16 %v1597, %v1597
    %v1697 = vpack.c.b16 %v1598, %v1598
    %v1698 = vpack.c.b16 %v1599, %v1599
    %v1699 = vpack.c.b16 %v1600, %v1600
    %v1700 = vpack.c.b16 %v1601, %v1601
    %v1701 = vpack.c.b16 %v1602, %v1602
    %v1702 = vpack.c.b16 %v1603, %v1603
    %v1703 = vpack.c.b16 %v1604, %v1604
    %v1704 = vpack.c.b16 %v1605, %v1605
    %v1705 = vpack.c.b16 %v1606, %v1606
    %v1706 = vpack.c.b16 %v1607, %v1607
    %v1707 = vpack.c.b16 %v1608, %v1608
    %v1708 = vpack.c.b16 %v1609, %v1609
    %v1709 = vpack.c.b16 %v1610, %v1610
    %v1710 = vpack.c.b16 %v1611, %v1611
    %v1711 = vpack.c.b16 %v1612, %v1612
    %v1712 = vpack.c.b16 %v1613, %v1613
    %v1713 = vpack.c.b16 %v1614, %v1614
    %v1714 = vpack.c.b16 %v1615, %v1615
    %v1715 = vpack.c.b16 %v1616, %v1616
    %v1716 = vpack.c.b16 %v1617, %v1617
    %v1717 = vpack.c.b16 %v1618, %v1618
    %v1718 = vpack.c.b16 %v1619, %v1619
    %v1719 = vpack.c.b16 %v1620, %v1620
    %v1720 = vpack.c.b16 %v1621, %v1621
    %v1721 = vpack.c.b16 %v1622, %v1622
    %v1722 = vpack.c.b16 %v1623, %v1623
    %v1723 = vpack.c.b16 %v1624, %v1624
    %v1724 = vpack.c.b16 %v1625, %v1625
    %v1725 = vpack.c.b16 %v1626, %v1626
    %v1726 = vpack.c.b16 %v1627, %v1627
    %v1727 = vpack.c.b16 %v1628, %v1628
    %v1728 = vpack.c.b16 %v1629, %v1629
    %v1729 = vpack.c.b16 %v1630, %v1630
    %v1730 = vpack.c.b16 %v1631, %v1631
    %v1731 = vpack.c.b16 %v1632, %v1632
    %v1732 = vpack.c.b16 %v1633, %v1633
    %v1733 = vpack.c.b16 %v1634, %v1634
    %v1734 = vpack.c.b16 %v1635, %v1635
    %v1735 = vpack.c.b16 %v1636, %v1636
    %v1736 = vpack.c.b16 %v1637, %v1637
    %v1737 = vpack.c.b16 %v1638, %v1638
    %v1738 = vpack.c.b16 %v1639, %v1639
    %v1739 = vpack.c.b16 %v1640, %v1640
    %v1740 = vpack.c.b16 %v1641, %v1641
    %v1741 = vpack.c.b16 %v1642, %v1642
    %v1742 = vpack.c.b16 %v1643, %v1643
    %v1743 = vpack.c.b16 %v1644, %v1644
    %v1744 = vpack.c.b16 %v1645, %v1645
    %v1745 = vpack.c.b16 %v1646, %v1646
    %v1746 = vpack.c.b16 %v1647, %v1647
    %v1747 = vpack.c.b16 %v1648, %v1648
    %v1748 = vpack.c.b16 %v1649, %v1649
    %v1749 = vpack.c.b16 %v1650, %v1650
    %v1750 = vpack.c.b16 %v1651, %v1651
    %v1751 = vpack.c.b16 %v1652, %v1652
    %v1752 = vpack.c.b16 %v1653, %v1653
    %v1753 = vpack.c.b16 %v1654, %v1654
    %v1754 = vpack.c.b16 %v1655, %v1655
    %v1755 = vpack.c.b16 %v1656, %v1656
    %v1756 = vpack.c.b16 %v1657, %v1657
    %v1757 = vpack.c.b16 %v1658, %v1658
    %v1758 = vpack.c.b16 %v1659, %v1659
    %v1759 = vpack.c.b16 %v1660, %v1660
    %v1760 = vpack.c.b16 %v1661, %v1661
    %v1761 = vpack.c.b16 %v1662, %v1662
    %v1762 = vpack.c.b16 %v1663, %v1663
    %v1763 = vpack.c.b16 %v1664, %v1664
    %v1764 = vpack.c.b16 %v1665, %v1665
    %v1765 = vpack.c.b16 %v1666, %v1666
    %v1766 = vpack.c.b16 %v1667, %v1667
    %v1767 = vpack.c.b16 %v1668, %v1668
    %v1768 = vpack.c.b16 %v1669, %v1669
    %v1769 = vpack.c.b16 %v1670, %v1670
    %vm1869 = vcmask 60416
    %1870 = vst.msk [vmem:[#allocation2] sm:$0xf] %vm1869, %v1671
    %1871 = vst.msk [vmem:[#allocation2 + $0x4] sm:$0xf] %vm1869, %v1672
    %vm1872 = vcmask 57344
    %1873 = vst.msk [vmem:[#allocation2 + $0x8] sm:$0x1] %vm1872, %v1673
    %1874 = vst.msk [vmem:[#allocation2 + $0xc] sm:$0xf] %vm1869, %v1674
    %1875 = vst.msk [vmem:[#allocation2 + $0x10] sm:$0xf] %vm1869, %v1675
    %1876 = vst.msk [vmem:[#allocation2 + $0x14] sm:$0x1] %vm1872, %v1676
    %1877 = vst.msk [vmem:[#allocation2 + $0x18] sm:$0xf] %vm1869, %v1677
    %1878 = vst.msk [vmem:[#allocation2 + $0x1c] sm:$0xf] %vm1869, %v1678
    %1879 = vst.msk [vmem:[#allocation2 + $0x20] sm:$0x1] %vm1872, %v1679
    %1880 = vst.msk [vmem:[#allocation2 + $0x24] sm:$0xf] %vm1869, %v1680
    %1881 = vst.msk [vmem:[#allocation2 + $0x28] sm:$0xf] %vm1869, %v1681
    %1882 = vst.msk [vmem:[#allocation2 + $0x2c] sm:$0x1] %vm1872, %v1682
    %1883 = vst.msk [vmem:[#allocation2 + $0x30] sm:$0xf] %vm1869, %v1683
    %1884 = vst.msk [vmem:[#allocation2 + $0x34] sm:$0xf] %vm1869, %v1684
    %1885 = vst.msk [vmem:[#allocation2 + $0x38] sm:$0x1] %vm1872, %v1685
    %1886 = vst.msk [vmem:[#allocation2 + $0x3c] sm:$0xf] %vm1869, %v1686
    %1887 = vst.msk [vmem:[#allocation2 + $0x40] sm:$0xf] %vm1869, %v1687
    %1888 = vst.msk [vmem:[#allocation2 + $0x44] sm:$0x1] %vm1872, %v1688
    %1889 = vst.msk [vmem:[#allocation2 + $0x48] sm:$0xf] %vm1869, %v1689
    %1890 = vst.msk [vmem:[#allocation2 + $0x4c] sm:$0xf] %vm1869, %v1690
    %1891 = vst.msk [vmem:[#allocation2 + $0x50] sm:$0x1] %vm1872, %v1691
    %1892 = vst.msk [vmem:[#allocation2 + $0x54] sm:$0xf] %vm1869, %v1692
    %1893 = vst.msk [vmem:[#allocation2 + $0x58] sm:$0xf] %vm1869, %v1693
    %1894 = vst.msk [vmem:[#allocation2 + $0x5c] sm:$0x1] %vm1872, %v1694
    %1895 = vst.msk [vmem:[#allocation2 + $0x60] sm:$0xf] %vm1869, %v1695
    %1896 = vst.msk [vmem:[#allocation2 + $0x64] sm:$0xf] %vm1869, %v1696
    %1897 = vst.msk [vmem:[#allocation2 + $0x68] sm:$0x1] %vm1872, %v1697
    %1898 = vst.msk [vmem:[#allocation2 + $0x6c] sm:$0xf] %vm1869, %v1698
    %1899 = vst.msk [vmem:[#allocation2 + $0x70] sm:$0xf] %vm1869, %v1699
    %1900 = vst.msk [vmem:[#allocation2 + $0x74] sm:$0x1] %vm1872, %v1700
    %1901 = vst.msk [vmem:[#allocation2 + $0x78] sm:$0xf] %vm1869, %v1701
    %1902 = vst.msk [vmem:[#allocation2 + $0x7c] sm:$0xf] %vm1869, %v1702
    %1903 = vst.msk [vmem:[#allocation2 + $0x80] sm:$0x1] %vm1872, %v1703
    %1904 = vst.msk [vmem:[#allocation2 + $0x84] sm:$0xf] %vm1869, %v1704
    %1905 = vst.msk [vmem:[#allocation2 + $0x88] sm:$0xf] %vm1869, %v1705
    %1906 = vst.msk [vmem:[#allocation2 + $0x8c] sm:$0x1] %vm1872, %v1706
    %1907 = vst.msk [vmem:[#allocation2 + $0x90] sm:$0xf] %vm1869, %v1707
    %1908 = vst.msk [vmem:[#allocation2 + $0x94] sm:$0xf] %vm1869, %v1708
    %1909 = vst.msk [vmem:[#allocation2 + $0x98] sm:$0x1] %vm1872, %v1709
    %1910 = vst.msk [vmem:[#allocation2 + $0x9c] sm:$0xf] %vm1869, %v1710
    %1911 = vst.msk [vmem:[#allocation2 + $0xa0] sm:$0xf] %vm1869, %v1711
    %1912 = vst.msk [vmem:[#allocation2 + $0xa4] sm:$0x1] %vm1872, %v1712
    %1913 = vst.msk [vmem:[#allocation2 + $0xa8] sm:$0xf] %vm1869, %v1713
    %1914 = vst.msk [vmem:[#allocation2 + $0xac] sm:$0xf] %vm1869, %v1714
    %1915 = vst.msk [vmem:[#allocation2 + $0xb0] sm:$0x1] %vm1872, %v1715
    %1916 = vst.msk [vmem:[#allocation2 + $0xb4] sm:$0xf] %vm1869, %v1716
    %1917 = vst.msk [vmem:[#allocation2 + $0xb8] sm:$0xf] %vm1869, %v1717
    %1918 = vst.msk [vmem:[#allocation2 + $0xbc] sm:$0x1] %vm1872, %v1718
    %1919 = vst.msk [vmem:[#allocation2 + $0xc0] sm:$0xf] %vm1869, %v1719
    %1920 = vst.msk [vmem:[#allocation2 + $0xc4] sm:$0xf] %vm1869, %v1720
    %1921 = vst.msk [vmem:[#allocation2 + $0xc8] sm:$0x1] %vm1872, %v1721
    %1922 = vst.msk [vmem:[#allocation2 + $0xcc] sm:$0xf] %vm1869, %v1671
    %1923 = vst.msk [vmem:[#allocation2 + $0xd0] sm:$0xf] %vm1869, %v1672
    %1924 = vst.msk [vmem:[#allocation2 + $0xd4] sm:$0x1] %vm1872, %v1673
    %1925 = vst.msk [vmem:[#allocation2 + $0xd8] sm:$0xf] %vm1869, %v1671
    %1926 = vst.msk [vmem:[#allocation2 + $0xdc] sm:$0xf] %vm1869, %v1672
    %1927 = vst.msk [vmem:[#allocation2 + $0xe0] sm:$0x1] %vm1872, %v1673
    %1928 = vst.msk [vmem:[#allocation2 + $0xe4] sm:$0xf] %vm1869, %v1722
    %1929 = vst.msk [vmem:[#allocation2 + $0xe8] sm:$0xf] %vm1869, %v1723
    %1930 = vst.msk [vmem:[#allocation2 + $0xec] sm:$0x1] %vm1872, %v1724
    %1931 = vst.msk [vmem:[#allocation2 + $0xf0] sm:$0xf] %vm1869, %v1725
    %1932 = vst.msk [vmem:[#allocation2 + $0xf4] sm:$0xf] %vm1869, %v1726
    %1933 = vst.msk [vmem:[#allocation2 + $0xf8] sm:$0x1] %vm1872, %v1727
    %1934 = vst.msk [vmem:[#allocation2 + $0xfc] sm:$0xf] %vm1869, %v1728
    %1935 = vst.msk [vmem:[#allocation2 + $0x100] sm:$0xf] %vm1869, %v1729
    %1936 = vst.msk [vmem:[#allocation2 + $0x104] sm:$0x1] %vm1872, %v1730
    %1937 = vst.msk [vmem:[#allocation2 + $0x108] sm:$0xf] %vm1869, %v1731
    %1938 = vst.msk [vmem:[#allocation2 + $0x10c] sm:$0xf] %vm1869, %v1732
    %1939 = vst.msk [vmem:[#allocation2 + $0x110] sm:$0x1] %vm1872, %v1733
    %1940 = vst.msk [vmem:[#allocation2 + $0x114] sm:$0xf] %vm1869, %v1734
    %1941 = vst.msk [vmem:[#allocation2 + $0x118] sm:$0xf] %vm1869, %v1735
    %1942 = vst.msk [vmem:[#allocation2 + $0x11c] sm:$0x1] %vm1872, %v1736
    %1943 = vst.msk [vmem:[#allocation2 + $0x120] sm:$0xf] %vm1869, %v1737
    %1944 = vst.msk [vmem:[#allocation2 + $0x124] sm:$0xf] %vm1869, %v1738
    %1945 = vst.msk [vmem:[#allocation2 + $0x128] sm:$0x1] %vm1872, %v1739
    %1946 = vst.msk [vmem:[#allocation2 + $0x12c] sm:$0xf] %vm1869, %v1740
    %1947 = vst.msk [vmem:[#allocation2 + $0x130] sm:$0xf] %vm1869, %v1741
    %1948 = vst.msk [vmem:[#allocation2 + $0x134] sm:$0x1] %vm1872, %v1742
    %1949 = vst.msk [vmem:[#allocation2 + $0x138] sm:$0xf] %vm1869, %v1743
    %1950 = vst.msk [vmem:[#allocation2 + $0x13c] sm:$0xf] %vm1869, %v1744
    %1951 = vst.msk [vmem:[#allocation2 + $0x140] sm:$0x1] %vm1872, %v1745
    %1952 = vst.msk [vmem:[#allocation2 + $0x144] sm:$0xf] %vm1869, %v1746
    %1953 = vst.msk [vmem:[#allocation2 + $0x148] sm:$0xf] %vm1869, %v1747
    %1954 = vst.msk [vmem:[#allocation2 + $0x14c] sm:$0x1] %vm1872, %v1748
    %1955 = vst.msk [vmem:[#allocation2 + $0x150] sm:$0xf] %vm1869, %v1749
    %1956 = vst.msk [vmem:[#allocation2 + $0x154] sm:$0xf] %vm1869, %v1750
    %1957 = vst.msk [vmem:[#allocation2 + $0x158] sm:$0x1] %vm1872, %v1751
    %1958 = vst.msk [vmem:[#allocation2 + $0x15c] sm:$0xf] %vm1869, %v1752
    %1959 = vst.msk [vmem:[#allocation2 + $0x160] sm:$0xf] %vm1869, %v1753
    %1960 = vst.msk [vmem:[#allocation2 + $0x164] sm:$0x1] %vm1872, %v1754
    %1961 = vst.msk [vmem:[#allocation2 + $0x168] sm:$0xf] %vm1869, %v1755
    %1962 = vst.msk [vmem:[#allocation2 + $0x16c] sm:$0xf] %vm1869, %v1756
    %1963 = vst.msk [vmem:[#allocation2 + $0x170] sm:$0x1] %vm1872, %v1757
    %1964 = vst.msk [vmem:[#allocation2 + $0x174] sm:$0xf] %vm1869, %v1758
    %1965 = vst.msk [vmem:[#allocation2 + $0x178] sm:$0xf] %vm1869, %v1759
    %1966 = vst.msk [vmem:[#allocation2 + $0x17c] sm:$0x1] %vm1872, %v1760
    %1967 = vst.msk [vmem:[#allocation2 + $0x180] sm:$0xf] %vm1869, %v1761
    %1968 = vst.msk [vmem:[#allocation2 + $0x184] sm:$0xf] %vm1869, %v1762
    %1969 = vst.msk [vmem:[#allocation2 + $0x188] sm:$0x1] %vm1872, %v1763
    %1970 = vst.msk [vmem:[#allocation2 + $0x18c] sm:$0xf] %vm1869, %v1764
    %1971 = vst.msk [vmem:[#allocation2 + $0x190] sm:$0xf] %vm1869, %v1765
    %1972 = vst.msk [vmem:[#allocation2 + $0x194] sm:$0x1] %vm1872, %v1766
    %1973 = vst.msk [vmem:[#allocation2 + $0x198] sm:$0xf] %vm1869, %v1767
    %1974 = vst.msk [vmem:[#allocation2 + $0x19c] sm:$0xf] %vm1869, %v1768
    %1975 = vst.msk [vmem:[#allocation2 + $0x1a0] sm:$0x1] %vm1872, %v1769
    %1976 = vst.msk [vmem:[#allocation2 + $0x1a4] sm:$0xf] %vm1869, %v1671
    %1977 = vst.msk [vmem:[#allocation2 + $0x1a8] sm:$0xf] %vm1869, %v1672
    %1978 = vst.msk [vmem:[#allocation2 + $0x1ac] sm:$0x1] %vm1872, %v1673
    %v1979 = vld [vmem:[#allocation2] sm:$0xf]
    %v1980 = vld [vmem:[#allocation2 + $0x4] sm:$0xf]
    %v1981 = vld [vmem:[#allocation2 + $0xc] sm:$0xf]
    %v1982 = vld [vmem:[#allocation2 + $0x10] sm:$0xf]
    %v1983 = vld [vmem:[#allocation2 + $0x18] sm:$0xf]
    %v1984 = vld [vmem:[#allocation2 + $0x1c] sm:$0xf]
    %v1985 = vld [vmem:[#allocation2 + $0x24] sm:$0xf]
    %v1986 = vld [vmem:[#allocation2 + $0x28] sm:$0xf]
    %v1987 = vld [vmem:[#allocation2 + $0x30] sm:$0xf]
    %v1988 = vld [vmem:[#allocation2 + $0x34] sm:$0xf]
    %v1989 = vld [vmem:[#allocation2 + $0x3c] sm:$0xf]
    %v1990 = vld [vmem:[#allocation2 + $0x40] sm:$0xf]
    %v1991 = vld [vmem:[#allocation2 + $0x48] sm:$0xf]
    %v1992 = vld [vmem:[#allocation2 + $0x4c] sm:$0xf]
    %v1993 = vld [vmem:[#allocation2 + $0x54] sm:$0xf]
    %v1994 = vld [vmem:[#allocation2 + $0x58] sm:$0xf]
    %v1995 = vld [vmem:[#allocation2 + $0x60] sm:$0xf]
    %v1996 = vld [vmem:[#allocation2 + $0x64] sm:$0xf]
    %v1997 = vld [vmem:[#allocation2 + $0x6c] sm:$0xf]
    %v1998 = vld [vmem:[#allocation2 + $0x70] sm:$0xf]
    %v1999 = vld [vmem:[#allocation2 + $0x78] sm:$0xf]
    %v2000 = vld [vmem:[#allocation2 + $0x7c] sm:$0xf]
    %v2001 = vld [vmem:[#allocation2 + $0x84] sm:$0xf]
    %v2002 = vld [vmem:[#allocation2 + $0x88] sm:$0xf]
    %v2003 = vld [vmem:[#allocation2 + $0x90] sm:$0xf]
    %v2004 = vld [vmem:[#allocation2 + $0x94] sm:$0xf]
    %v2005 = vld [vmem:[#allocation2 + $0x9c] sm:$0xf]
    %v2006 = vld [vmem:[#allocation2 + $0xa0] sm:$0xf]
    %v2007 = vld [vmem:[#allocation2 + $0xa8] sm:$0xf]
    %v2008 = vld [vmem:[#allocation2 + $0xac] sm:$0xf]
    %v2009 = vld [vmem:[#allocation2 + $0xb4] sm:$0xf]
    %v2010 = vld [vmem:[#allocation2 + $0xb8] sm:$0xf]
    %v2011 = vld [vmem:[#allocation2 + $0xd8] sm:$0xf]
    %v2012 = vld [vmem:[#allocation2 + $0xdc] sm:$0xf]
    %v2013 = vld [vmem:[#allocation2 + $0xe4] sm:$0xf]
    %v2014 = vld [vmem:[#allocation2 + $0xe8] sm:$0xf]
    %v2015 = vld [vmem:[#allocation2 + $0xf0] sm:$0xf]
    %v2016 = vld [vmem:[#allocation2 + $0xf4] sm:$0xf]
    %v2017 = vld [vmem:[#allocation2 + $0xfc] sm:$0xf]
    %v2018 = vld [vmem:[#allocation2 + $0x100] sm:$0xf]
    %v2019 = vld [vmem:[#allocation2 + $0x108] sm:$0xf]
    %v2020 = vld [vmem:[#allocation2 + $0x10c] sm:$0xf]
    %v2021 = vld [vmem:[#allocation2 + $0x114] sm:$0xf]
    %v2022 = vld [vmem:[#allocation2 + $0x118] sm:$0xf]
    %v2023 = vld [vmem:[#allocation2 + $0x120] sm:$0xf]
    %v2024 = vld [vmem:[#allocation2 + $0x124] sm:$0xf]
    %v2025 = vld [vmem:[#allocation2 + $0x12c] sm:$0xf]
    %v2026 = vld [vmem:[#allocation2 + $0x130] sm:$0xf]
    %v2027 = vld [vmem:[#allocation2 + $0x138] sm:$0xf]
    %v2028 = vld [vmem:[#allocation2 + $0x13c] sm:$0xf]
    %v2029 = vld [vmem:[#allocation2 + $0x144] sm:$0xf]
    %v2030 = vld [vmem:[#allocation2 + $0x148] sm:$0xf]
    %v2031 = vld [vmem:[#allocation2 + $0x150] sm:$0xf]
    %v2032 = vld [vmem:[#allocation2 + $0x154] sm:$0xf]
    %v2033 = vld [vmem:[#allocation2 + $0x15c] sm:$0xf]
    %v2034 = vld [vmem:[#allocation2 + $0x160] sm:$0xf]
    %v2035 = vld [vmem:[#allocation2 + $0x168] sm:$0xf]
    %v2036 = vld [vmem:[#allocation2 + $0x16c] sm:$0xf]
    %v2037 = vld [vmem:[#allocation2 + $0x174] sm:$0xf]
    %v2038 = vld [vmem:[#allocation2 + $0x178] sm:$0xf]
    %v2039 = vld [vmem:[#allocation2 + $0x180] sm:$0xf]
    %v2040 = vld [vmem:[#allocation2 + $0x184] sm:$0xf]
    %v2041 = vld [vmem:[#allocation2 + $0x18c] sm:$0xf]
    %v2042 = vld [vmem:[#allocation2 + $0x190] sm:$0xf]
    %v2043 = vld [vmem:[#allocation2 + $0x8] sm:$0x1]
    %v2044 = vld [vmem:[#allocation2 + $0x14] sm:$0x1]
    %v2045 = vld [vmem:[#allocation2 + $0x20] sm:$0x1]
    %v2046 = vld [vmem:[#allocation2 + $0x2c] sm:$0x1]
    %v2047 = vld [vmem:[#allocation2 + $0x38] sm:$0x1]
    %v2048 = vld [vmem:[#allocation2 + $0x44] sm:$0x1]
    %v2049 = vld [vmem:[#allocation2 + $0x50] sm:$0x1]
    %v2050 = vld [vmem:[#allocation2 + $0x5c] sm:$0x1]
    %v2051 = vld [vmem:[#allocation2 + $0x68] sm:$0x1]
    %v2052 = vld [vmem:[#allocation2 + $0x74] sm:$0x1]
    %v2053 = vld [vmem:[#allocation2 + $0x80] sm:$0x1]
    %v2054 = vld [vmem:[#allocation2 + $0x8c] sm:$0x1]
    %v2055 = vld [vmem:[#allocation2 + $0x98] sm:$0x1]
    %v2056 = vld [vmem:[#allocation2 + $0xa4] sm:$0x1]
    %v2057 = vld [vmem:[#allocation2 + $0xb0] sm:$0x1]
    %v2058 = vld [vmem:[#allocation2 + $0xbc] sm:$0x1]
    %v2059 = vld [vmem:[#allocation2 + $0xe0] sm:$0x1]
    %v2060 = vld [vmem:[#allocation2 + $0xec] sm:$0x1]
    %v2061 = vld [vmem:[#allocation2 + $0xf8] sm:$0x1]
    %v2062 = vld [vmem:[#allocation2 + $0x104] sm:$0x1]
    %v2063 = vld [vmem:[#allocation2 + $0x110] sm:$0x1]
    %v2064 = vld [vmem:[#allocation2 + $0x11c] sm:$0x1]
    %v2065 = vld [vmem:[#allocation2 + $0x128] sm:$0x1]
    %v2066 = vld [vmem:[#allocation2 + $0x134] sm:$0x1]
    %v2067 = vld [vmem:[#allocation2 + $0x140] sm:$0x1]
    %v2068 = vld [vmem:[#allocation2 + $0x14c] sm:$0x1]
    %v2069 = vld [vmem:[#allocation2 + $0x158] sm:$0x1]
    %v2070 = vld [vmem:[#allocation2 + $0x164] sm:$0x1]
    %v2071 = vld [vmem:[#allocation2 + $0x170] sm:$0x1]
    %v2072 = vld [vmem:[#allocation2 + $0x17c] sm:$0x1]
    %v2073 = vld [vmem:[#allocation2 + $0x188] sm:$0x1]
    %v2074 = vld [vmem:[#allocation2 + $0x194] sm:$0x1]
    %vm2075 = vsmask.f32 3328
    %vm2076 = vsmask.f32 7440
    %vm2077 = vmor %vm2075, %vm2076
    %v2079 = vshrl.u32 %v1979, 16
    %v2081 = vrot.slane %v2079, 4
    %v2082 = vshll.u32 %v1979, 16
    %v2084 = vrot.slane %v2082, 5
    %v2085 = vor.u32 %v2081, %v2084
    %v2086 = vrot.slane %v2085, 4
    %v2088 = vshll.u32 %v1980, 16
    %v2090 = vrot.slane %v2088, 5
    %v2091 = vsel %vm2077, %v2086, %v2090
    %v2092 = vshrl.u32 %v1980, 16
    %v2094 = vrot.slane %v2092, 4
    %v2095 = vor.u32 %v2094, %v2090
    %v2096 = vrot.slane %v2095, 4
    %v2098 = vshll.u32 %v2043, 16
    %v2100 = vrot.slane %v2098, 5
    %v2101 = vsel %vm2077, %v2096, %v2100
    %v2103 = vshrl.u32 %v1981, 16
    %v2105 = vrot.slane %v2103, 4
    %v2106 = vshll.u32 %v1981, 16
    %v2108 = vrot.slane %v2106, 5
    %v2109 = vor.u32 %v2105, %v2108
    %v2110 = vrot.slane %v2109, 4
    %v2112 = vshll.u32 %v1982, 16
    %v2114 = vrot.slane %v2112, 5
    %v2115 = vsel %vm2077, %v2110, %v2114
    %v2116 = vshrl.u32 %v1982, 16
    %v2118 = vrot.slane %v2116, 4
    %v2119 = vor.u32 %v2118, %v2114
    %v2120 = vrot.slane %v2119, 4
    %v2122 = vshll.u32 %v2044, 16
    %v2124 = vrot.slane %v2122, 5
    %v2125 = vsel %vm2077, %v2120, %v2124
    %v2127 = vshrl.u32 %v1983, 16
    %v2129 = vrot.slane %v2127, 4
    %v2130 = vshll.u32 %v1983, 16
    %v2132 = vrot.slane %v2130, 5
    %v2133 = vor.u32 %v2129, %v2132
    %v2134 = vrot.slane %v2133, 4
    %v2136 = vshll.u32 %v1984, 16
    %v2138 = vrot.slane %v2136, 5
    %v2139 = vsel %vm2077, %v2134, %v2138
    %v2140 = vshrl.u32 %v1984, 16
    %v2142 = vrot.slane %v2140, 4
    %v2143 = vor.u32 %v2142, %v2138
    %v2144 = vrot.slane %v2143, 4
    %v2146 = vshll.u32 %v2045, 16
    %v2148 = vrot.slane %v2146, 5
    %v2149 = vsel %vm2077, %v2144, %v2148
    %v2151 = vshrl.u32 %v1985, 16
    %v2153 = vrot.slane %v2151, 4
    %v2154 = vshll.u32 %v1985, 16
    %v2156 = vrot.slane %v2154, 5
    %v2157 = vor.u32 %v2153, %v2156
    %v2158 = vrot.slane %v2157, 4
    %v2160 = vshll.u32 %v1986, 16
    %v2162 = vrot.slane %v2160, 5
    %v2163 = vsel %vm2077, %v2158, %v2162
    %v2164 = vshrl.u32 %v1986, 16
    %v2166 = vrot.slane %v2164, 4
    %v2167 = vor.u32 %v2166, %v2162
    %v2168 = vrot.slane %v2167, 4
    %v2170 = vshll.u32 %v2046, 16
    %v2172 = vrot.slane %v2170, 5
    %v2173 = vsel %vm2077, %v2168, %v2172
    %v2175 = vshrl.u32 %v1987, 16
    %v2177 = vrot.slane %v2175, 4
    %v2178 = vshll.u32 %v1987, 16
    %v2180 = vrot.slane %v2178, 5
    %v2181 = vor.u32 %v2177, %v2180
    %v2182 = vrot.slane %v2181, 4
    %v2184 = vshll.u32 %v1988, 16
    %v2186 = vrot.slane %v2184, 5
    %v2187 = vsel %vm2077, %v2182, %v2186
    %v2188 = vshrl.u32 %v1988, 16
    %v2190 = vrot.slane %v2188, 4
    %v2191 = vor.u32 %v2190, %v2186
    %v2192 = vrot.slane %v2191, 4
    %v2194 = vshll.u32 %v2047, 16
    %v2196 = vrot.slane %v2194, 5
    %v2197 = vsel %vm2077, %v2192, %v2196
    %v2199 = vshrl.u32 %v1989, 16
    %v2201 = vrot.slane %v2199, 4
    %v2202 = vshll.u32 %v1989, 16
    %v2204 = vrot.slane %v2202, 5
    %v2205 = vor.u32 %v2201, %v2204
    %v2206 = vrot.slane %v2205, 4
    %v2208 = vshll.u32 %v1990, 16
    %v2210 = vrot.slane %v2208, 5
    %v2211 = vsel %vm2077, %v2206, %v2210
    %v2212 = vshrl.u32 %v1990, 16
    %v2214 = vrot.slane %v2212, 4
    %v2215 = vor.u32 %v2214, %v2210
    %v2216 = vrot.slane %v2215, 4
    %v2218 = vshll.u32 %v2048, 16
    %v2220 = vrot.slane %v2218, 5
    %v2221 = vsel %vm2077, %v2216, %v2220
    %v2223 = vshrl.u32 %v1991, 16
    %v2225 = vrot.slane %v2223, 4
    %v2226 = vshll.u32 %v1991, 16
    %v2228 = vrot.slane %v2226, 5
    %v2229 = vor.u32 %v2225, %v2228
    %v2230 = vrot.slane %v2229, 4
    %v2232 = vshll.u32 %v1992, 16
    %v2234 = vrot.slane %v2232, 5
    %v2235 = vsel %vm2077, %v2230, %v2234
    %v2236 = vshrl.u32 %v1992, 16
    %v2238 = vrot.slane %v2236, 4
    %v2239 = vor.u32 %v2238, %v2234
    %v2240 = vrot.slane %v2239, 4
    %v2242 = vshll.u32 %v2049, 16
    %v2244 = vrot.slane %v2242, 5
    %v2245 = vsel %vm2077, %v2240, %v2244
    %v2247 = vshrl.u32 %v1993, 16
    %v2249 = vrot.slane %v2247, 4
    %v2250 = vshll.u32 %v1993, 16
    %v2252 = vrot.slane %v2250, 5
    %v2253 = vor.u32 %v2249, %v2252
    %v2254 = vrot.slane %v2253, 4
    %v2256 = vshll.u32 %v1994, 16
    %v2258 = vrot.slane %v2256, 5
    %v2259 = vsel %vm2077, %v2254, %v2258
    %v2260 = vshrl.u32 %v1994, 16
    %v2262 = vrot.slane %v2260, 4
    %v2263 = vor.u32 %v2262, %v2258
    %v2264 = vrot.slane %v2263, 4
    %v2266 = vshll.u32 %v2050, 16
    %v2268 = vrot.slane %v2266, 5
    %v2269 = vsel %vm2077, %v2264, %v2268
    %v2271 = vshrl.u32 %v1995, 16
    %v2273 = vrot.slane %v2271, 4
    %v2274 = vshll.u32 %v1995, 16
    %v2276 = vrot.slane %v2274, 5
    %v2277 = vor.u32 %v2273, %v2276
    %v2278 = vrot.slane %v2277, 4
    %v2280 = vshll.u32 %v1996, 16
    %v2282 = vrot.slane %v2280, 5
    %v2283 = vsel %vm2077, %v2278, %v2282
    %v2284 = vshrl.u32 %v1996, 16
    %v2286 = vrot.slane %v2284, 4
    %v2287 = vor.u32 %v2286, %v2282
    %v2288 = vrot.slane %v2287, 4
    %v2290 = vshll.u32 %v2051, 16
    %v2292 = vrot.slane %v2290, 5
    %v2293 = vsel %vm2077, %v2288, %v2292
    %v2295 = vshrl.u32 %v1997, 16
    %v2297 = vrot.slane %v2295, 4
    %v2298 = vshll.u32 %v1997, 16
    %v2300 = vrot.slane %v2298, 5
    %v2301 = vor.u32 %v2297, %v2300
    %v2302 = vrot.slane %v2301, 4
    %v2304 = vshll.u32 %v1998, 16
    %v2306 = vrot.slane %v2304, 5
    %v2307 = vsel %vm2077, %v2302, %v2306
    %v2308 = vshrl.u32 %v1998, 16
    %v2310 = vrot.slane %v2308, 4
    %v2311 = vor.u32 %v2310, %v2306
    %v2312 = vrot.slane %v2311, 4
    %v2314 = vshll.u32 %v2052, 16
    %v2316 = vrot.slane %v2314, 5
    %v2317 = vsel %vm2077, %v2312, %v2316
    %v2319 = vshrl.u32 %v1999, 16
    %v2321 = vrot.slane %v2319, 4
    %v2322 = vshll.u32 %v1999, 16
    %v2324 = vrot.slane %v2322, 5
    %v2325 = vor.u32 %v2321, %v2324
    %v2326 = vrot.slane %v2325, 4
    %v2328 = vshll.u32 %v2000, 16
    %v2330 = vrot.slane %v2328, 5
    %v2331 = vsel %vm2077, %v2326, %v2330
    %v2332 = vshrl.u32 %v2000, 16
    %v2334 = vrot.slane %v2332, 4
    %v2335 = vor.u32 %v2334, %v2330
    %v2336 = vrot.slane %v2335, 4
    %v2338 = vshll.u32 %v2053, 16
    %v2340 = vrot.slane %v2338, 5
    %v2341 = vsel %vm2077, %v2336, %v2340
    %v2343 = vshrl.u32 %v2001, 16
    %v2345 = vrot.slane %v2343, 4
    %v2346 = vshll.u32 %v2001, 16
    %v2348 = vrot.slane %v2346, 5
    %v2349 = vor.u32 %v2345, %v2348
    %v2350 = vrot.slane %v2349, 4
    %v2352 = vshll.u32 %v2002, 16
    %v2354 = vrot.slane %v2352, 5
    %v2355 = vsel %vm2077, %v2350, %v2354
    %v2356 = vshrl.u32 %v2002, 16
    %v2358 = vrot.slane %v2356, 4
    %v2359 = vor.u32 %v2358, %v2354
    %v2360 = vrot.slane %v2359, 4
    %v2362 = vshll.u32 %v2054, 16
    %v2364 = vrot.slane %v2362, 5
    %v2365 = vsel %vm2077, %v2360, %v2364
    %v2367 = vshrl.u32 %v2003, 16
    %v2369 = vrot.slane %v2367, 4
    %v2370 = vshll.u32 %v2003, 16
    %v2372 = vrot.slane %v2370, 5
    %v2373 = vor.u32 %v2369, %v2372
    %v2374 = vrot.slane %v2373, 4
    %v2376 = vshll.u32 %v2004, 16
    %v2378 = vrot.slane %v2376, 5
    %v2379 = vsel %vm2077, %v2374, %v2378
    %v2380 = vshrl.u32 %v2004, 16
    %v2382 = vrot.slane %v2380, 4
    %v2383 = vor.u32 %v2382, %v2378
    %v2384 = vrot.slane %v2383, 4
    %v2386 = vshll.u32 %v2055, 16
    %v2388 = vrot.slane %v2386, 5
    %v2389 = vsel %vm2077, %v2384, %v2388
    %v2391 = vshrl.u32 %v2005, 16
    %v2393 = vrot.slane %v2391, 4
    %v2394 = vshll.u32 %v2005, 16
    %v2396 = vrot.slane %v2394, 5
    %v2397 = vor.u32 %v2393, %v2396
    %v2398 = vrot.slane %v2397, 4
    %v2400 = vshll.u32 %v2006, 16
    %v2402 = vrot.slane %v2400, 5
    %v2403 = vsel %vm2077, %v2398, %v2402
    %v2404 = vshrl.u32 %v2006, 16
    %v2406 = vrot.slane %v2404, 4
    %v2407 = vor.u32 %v2406, %v2402
    %v2408 = vrot.slane %v2407, 4
    %v2410 = vshll.u32 %v2056, 16
    %v2412 = vrot.slane %v2410, 5
    %v2413 = vsel %vm2077, %v2408, %v2412
    %v2415 = vshrl.u32 %v2007, 16
    %v2417 = vrot.slane %v2415, 4
    %v2418 = vshll.u32 %v2007, 16
    %v2420 = vrot.slane %v2418, 5
    %v2421 = vor.u32 %v2417, %v2420
    %v2422 = vrot.slane %v2421, 4
    %v2424 = vshll.u32 %v2008, 16
    %v2426 = vrot.slane %v2424, 5
    %v2427 = vsel %vm2077, %v2422, %v2426
    %v2428 = vshrl.u32 %v2008, 16
    %v2430 = vrot.slane %v2428, 4
    %v2431 = vor.u32 %v2430, %v2426
    %v2432 = vrot.slane %v2431, 4
    %v2434 = vshll.u32 %v2057, 16
    %v2436 = vrot.slane %v2434, 5
    %v2437 = vsel %vm2077, %v2432, %v2436
    %v2439 = vshrl.u32 %v2009, 16
    %v2441 = vrot.slane %v2439, 4
    %v2442 = vshll.u32 %v2009, 16
    %v2444 = vrot.slane %v2442, 5
    %v2445 = vor.u32 %v2441, %v2444
    %v2446 = vrot.slane %v2445, 4
    %v2448 = vshll.u32 %v2010, 16
    %v2450 = vrot.slane %v2448, 5
    %v2451 = vsel %vm2077, %v2446, %v2450
    %v2452 = vshrl.u32 %v2010, 16
    %v2454 = vrot.slane %v2452, 4
    %v2455 = vor.u32 %v2454, %v2450
    %v2456 = vrot.slane %v2455, 4
    %v2458 = vshll.u32 %v2058, 16
    %v2460 = vrot.slane %v2458, 5
    %v2461 = vsel %vm2077, %v2456, %v2460
    %v2463 = vshrl.u32 %v2011, 16
    %v2465 = vrot.slane %v2463, 4
    %v2466 = vshll.u32 %v2011, 16
    %v2468 = vrot.slane %v2466, 5
    %v2469 = vor.u32 %v2465, %v2468
    %v2470 = vrot.slane %v2469, 4
    %v2472 = vshll.u32 %v2012, 16
    %v2474 = vrot.slane %v2472, 5
    %v2475 = vsel %vm2077, %v2470, %v2474
    %v2476 = vshrl.u32 %v2012, 16
    %v2478 = vrot.slane %v2476, 4
    %v2479 = vor.u32 %v2478, %v2474
    %v2480 = vrot.slane %v2479, 4
    %v2482 = vshll.u32 %v2059, 16
    %v2484 = vrot.slane %v2482, 5
    %v2485 = vsel %vm2077, %v2480, %v2484
    %v2487 = vshrl.u32 %v2013, 16
    %v2489 = vrot.slane %v2487, 4
    %v2490 = vshll.u32 %v2013, 16
    %v2492 = vrot.slane %v2490, 5
    %v2493 = vor.u32 %v2489, %v2492
    %v2494 = vrot.slane %v2493, 4
    %v2496 = vshll.u32 %v2014, 16
    %v2498 = vrot.slane %v2496, 5
    %v2499 = vsel %vm2077, %v2494, %v2498
    %v2500 = vshrl.u32 %v2014, 16
    %v2502 = vrot.slane %v2500, 4
    %v2503 = vor.u32 %v2502, %v2498
    %v2504 = vrot.slane %v2503, 4
    %v2506 = vshll.u32 %v2060, 16
    %v2508 = vrot.slane %v2506, 5
    %v2509 = vsel %vm2077, %v2504, %v2508
    %v2511 = vshrl.u32 %v2015, 16
    %v2513 = vrot.slane %v2511, 4
    %v2514 = vshll.u32 %v2015, 16
    %v2516 = vrot.slane %v2514, 5
    %v2517 = vor.u32 %v2513, %v2516
    %v2518 = vrot.slane %v2517, 4
    %v2520 = vshll.u32 %v2016, 16
    %v2522 = vrot.slane %v2520, 5
    %v2523 = vsel %vm2077, %v2518, %v2522
    %v2524 = vshrl.u32 %v2016, 16
    %v2526 = vrot.slane %v2524, 4
    %v2527 = vor.u32 %v2526, %v2522
    %v2528 = vrot.slane %v2527, 4
    %v2530 = vshll.u32 %v2061, 16
    %v2532 = vrot.slane %v2530, 5
    %v2533 = vsel %vm2077, %v2528, %v2532
    %v2535 = vshrl.u32 %v2017, 16
    %v2537 = vrot.slane %v2535, 4
    %v2538 = vshll.u32 %v2017, 16
    %v2540 = vrot.slane %v2538, 5
    %v2541 = vor.u32 %v2537, %v2540
    %v2542 = vrot.slane %v2541, 4
    %v2544 = vshll.u32 %v2018, 16
    %v2546 = vrot.slane %v2544, 5
    %v2547 = vsel %vm2077, %v2542, %v2546
    %v2548 = vshrl.u32 %v2018, 16
    %v2550 = vrot.slane %v2548, 4
    %v2551 = vor.u32 %v2550, %v2546
    %v2552 = vrot.slane %v2551, 4
    %v2554 = vshll.u32 %v2062, 16
    %v2556 = vrot.slane %v2554, 5
    %v2557 = vsel %vm2077, %v2552, %v2556
    %v2559 = vshrl.u32 %v2019, 16
    %v2561 = vrot.slane %v2559, 4
    %v2562 = vshll.u32 %v2019, 16
    %v2564 = vrot.slane %v2562, 5
    %v2565 = vor.u32 %v2561, %v2564
    %v2566 = vrot.slane %v2565, 4
    %v2568 = vshll.u32 %v2020, 16
    %v2570 = vrot.slane %v2568, 5
    %v2571 = vsel %vm2077, %v2566, %v2570
    %v2572 = vshrl.u32 %v2020, 16
    %v2574 = vrot.slane %v2572, 4
    %v2575 = vor.u32 %v2574, %v2570
    %v2576 = vrot.slane %v2575, 4
    %v2578 = vshll.u32 %v2063, 16
    %v2580 = vrot.slane %v2578, 5
    %v2581 = vsel %vm2077, %v2576, %v2580
    %v2583 = vshrl.u32 %v2021, 16
    %v2585 = vrot.slane %v2583, 4
    %v2586 = vshll.u32 %v2021, 16
    %v2588 = vrot.slane %v2586, 5
    %v2589 = vor.u32 %v2585, %v2588
    %v2590 = vrot.slane %v2589, 4
    %v2592 = vshll.u32 %v2022, 16
    %v2594 = vrot.slane %v2592, 5
    %v2595 = vsel %vm2077, %v2590, %v2594
    %v2596 = vshrl.u32 %v2022, 16
    %v2598 = vrot.slane %v2596, 4
    %v2599 = vor.u32 %v2598, %v2594
    %v2600 = vrot.slane %v2599, 4
    %v2602 = vshll.u32 %v2064, 16
    %v2604 = vrot.slane %v2602, 5
    %v2605 = vsel %vm2077, %v2600, %v2604
    %v2607 = vshrl.u32 %v2023, 16
    %v2609 = vrot.slane %v2607, 4
    %v2610 = vshll.u32 %v2023, 16
    %v2612 = vrot.slane %v2610, 5
    %v2613 = vor.u32 %v2609, %v2612
    %v2614 = vrot.slane %v2613, 4
    %v2616 = vshll.u32 %v2024, 16
    %v2618 = vrot.slane %v2616, 5
    %v2619 = vsel %vm2077, %v2614, %v2618
    %v2620 = vshrl.u32 %v2024, 16
    %v2622 = vrot.slane %v2620, 4
    %v2623 = vor.u32 %v2622, %v2618
    %v2624 = vrot.slane %v2623, 4
    %v2626 = vshll.u32 %v2065, 16
    %v2628 = vrot.slane %v2626, 5
    %v2629 = vsel %vm2077, %v2624, %v2628
    %v2631 = vshrl.u32 %v2025, 16
    %v2633 = vrot.slane %v2631, 4
    %v2634 = vshll.u32 %v2025, 16
    %v2636 = vrot.slane %v2634, 5
    %v2637 = vor.u32 %v2633, %v2636
    %v2638 = vrot.slane %v2637, 4
    %v2640 = vshll.u32 %v2026, 16
    %v2642 = vrot.slane %v2640, 5
    %v2643 = vsel %vm2077, %v2638, %v2642
    %v2644 = vshrl.u32 %v2026, 16
    %v2646 = vrot.slane %v2644, 4
    %v2647 = vor.u32 %v2646, %v2642
    %v2648 = vrot.slane %v2647, 4
    %v2650 = vshll.u32 %v2066, 16
    %v2652 = vrot.slane %v2650, 5
    %v2653 = vsel %vm2077, %v2648, %v2652
    %v2655 = vshrl.u32 %v2027, 16
    %v2657 = vrot.slane %v2655, 4
    %v2658 = vshll.u32 %v2027, 16
    %v2660 = vrot.slane %v2658, 5
    %v2661 = vor.u32 %v2657, %v2660
    %v2662 = vrot.slane %v2661, 4
    %v2664 = vshll.u32 %v2028, 16
    %v2666 = vrot.slane %v2664, 5
    %v2667 = vsel %vm2077, %v2662, %v2666
    %v2668 = vshrl.u32 %v2028, 16
    %v2670 = vrot.slane %v2668, 4
    %v2671 = vor.u32 %v2670, %v2666
    %v2672 = vrot.slane %v2671, 4
    %v2674 = vshll.u32 %v2067, 16
    %v2676 = vrot.slane %v2674, 5
    %v2677 = vsel %vm2077, %v2672, %v2676
    %v2679 = vshrl.u32 %v2029, 16
    %v2681 = vrot.slane %v2679, 4
    %v2682 = vshll.u32 %v2029, 16
    %v2684 = vrot.slane %v2682, 5
    %v2685 = vor.u32 %v2681, %v2684
    %v2686 = vrot.slane %v2685, 4
    %v2688 = vshll.u32 %v2030, 16
    %v2690 = vrot.slane %v2688, 5
    %v2691 = vsel %vm2077, %v2686, %v2690
    %v2692 = vshrl.u32 %v2030, 16
    %v2694 = vrot.slane %v2692, 4
    %v2695 = vor.u32 %v2694, %v2690
    %v2696 = vrot.slane %v2695, 4
    %v2698 = vshll.u32 %v2068, 16
    %v2700 = vrot.slane %v2698, 5
    %v2701 = vsel %vm2077, %v2696, %v2700
    %v2703 = vshrl.u32 %v2031, 16
    %v2705 = vrot.slane %v2703, 4
    %v2706 = vshll.u32 %v2031, 16
    %v2708 = vrot.slane %v2706, 5
    %v2709 = vor.u32 %v2705, %v2708
    %v2710 = vrot.slane %v2709, 4
    %v2712 = vshll.u32 %v2032, 16
    %v2714 = vrot.slane %v2712, 5
    %v2715 = vsel %vm2077, %v2710, %v2714
    %v2716 = vshrl.u32 %v2032, 16
    %v2718 = vrot.slane %v2716, 4
    %v2719 = vor.u32 %v2718, %v2714
    %v2720 = vrot.slane %v2719, 4
    %v2722 = vshll.u32 %v2069, 16
    %v2724 = vrot.slane %v2722, 5
    %v2725 = vsel %vm2077, %v2720, %v2724
    %v2727 = vshrl.u32 %v2033, 16
    %v2729 = vrot.slane %v2727, 4
    %v2730 = vshll.u32 %v2033, 16
    %v2732 = vrot.slane %v2730, 5
    %v2733 = vor.u32 %v2729, %v2732
    %v2734 = vrot.slane %v2733, 4
    %v2736 = vshll.u32 %v2034, 16
    %v2738 = vrot.slane %v2736, 5
    %v2739 = vsel %vm2077, %v2734, %v2738
    %v2740 = vshrl.u32 %v2034, 16
    %v2742 = vrot.slane %v2740, 4
    %v2743 = vor.u32 %v2742, %v2738
    %v2744 = vrot.slane %v2743, 4
    %v2746 = vshll.u32 %v2070, 16
    %v2748 = vrot.slane %v2746, 5
    %v2749 = vsel %vm2077, %v2744, %v2748
    %v2751 = vshrl.u32 %v2035, 16
    %v2753 = vrot.slane %v2751, 4
    %v2754 = vshll.u32 %v2035, 16
    %v2756 = vrot.slane %v2754, 5
    %v2757 = vor.u32 %v2753, %v2756
    %v2758 = vrot.slane %v2757, 4
    %v2760 = vshll.u32 %v2036, 16
    %v2762 = vrot.slane %v2760, 5
    %v2763 = vsel %vm2077, %v2758, %v2762
    %v2764 = vshrl.u32 %v2036, 16
    %v2766 = vrot.slane %v2764, 4
    %v2767 = vor.u32 %v2766, %v2762
    %v2768 = vrot.slane %v2767, 4
    %v2770 = vshll.u32 %v2071, 16
    %v2772 = vrot.slane %v2770, 5
    %v2773 = vsel %vm2077, %v2768, %v2772
    %v2775 = vshrl.u32 %v2037, 16
    %v2777 = vrot.slane %v2775, 4
    %v2778 = vshll.u32 %v2037, 16
    %v2780 = vrot.slane %v2778, 5
    %v2781 = vor.u32 %v2777, %v2780
    %v2782 = vrot.slane %v2781, 4
    %v2784 = vshll.u32 %v2038, 16
    %v2786 = vrot.slane %v2784, 5
    %v2787 = vsel %vm2077, %v2782, %v2786
    %v2788 = vshrl.u32 %v2038, 16
    %v2790 = vrot.slane %v2788, 4
    %v2791 = vor.u32 %v2790, %v2786
    %v2792 = vrot.slane %v2791, 4
    %v2794 = vshll.u32 %v2072, 16
    %v2796 = vrot.slane %v2794, 5
    %v2797 = vsel %vm2077, %v2792, %v2796
    %v2799 = vshrl.u32 %v2039, 16
    %v2801 = vrot.slane %v2799, 4
    %v2802 = vshll.u32 %v2039, 16
    %v2804 = vrot.slane %v2802, 5
    %v2805 = vor.u32 %v2801, %v2804
    %v2806 = vrot.slane %v2805, 4
    %v2808 = vshll.u32 %v2040, 16
    %v2810 = vrot.slane %v2808, 5
    %v2811 = vsel %vm2077, %v2806, %v2810
    %v2812 = vshrl.u32 %v2040, 16
    %v2814 = vrot.slane %v2812, 4
    %v2815 = vor.u32 %v2814, %v2810
    %v2816 = vrot.slane %v2815, 4
    %v2818 = vshll.u32 %v2073, 16
    %v2820 = vrot.slane %v2818, 5
    %v2821 = vsel %vm2077, %v2816, %v2820
    %v2823 = vshrl.u32 %v2041, 16
    %v2825 = vrot.slane %v2823, 4
    %v2826 = vshll.u32 %v2041, 16
    %v2828 = vrot.slane %v2826, 5
    %v2829 = vor.u32 %v2825, %v2828
    %v2830 = vrot.slane %v2829, 4
    %v2832 = vshll.u32 %v2042, 16
    %v2834 = vrot.slane %v2832, 5
    %v2835 = vsel %vm2077, %v2830, %v2834
    %v2836 = vshrl.u32 %v2042, 16
    %v2838 = vrot.slane %v2836, 4
    %v2839 = vor.u32 %v2838, %v2834
    %v2840 = vrot.slane %v2839, 4
    %v2842 = vshll.u32 %v2074, 16
    %v2844 = vrot.slane %v2842, 5
    %v2845 = vsel %vm2077, %v2840, %v2844
    %v2846 = vld [vmem:[#allocation2] sm:$0xe]
    %v2847 = vld [vmem:[#allocation2 + $0xc] sm:$0xe]
    %v2848 = vld [vmem:[#allocation2 + $0x18] sm:$0xe]
    %v2849 = vld [vmem:[#allocation2 + $0x24] sm:$0xe]
    %v2850 = vld [vmem:[#allocation2 + $0x30] sm:$0xe]
    %v2851 = vld [vmem:[#allocation2 + $0x3c] sm:$0xe]
    %v2852 = vld [vmem:[#allocation2 + $0x48] sm:$0xe]
    %v2853 = vld [vmem:[#allocation2 + $0x54] sm:$0xe]
    %v2854 = vld [vmem:[#allocation2 + $0x60] sm:$0xe]
    %v2855 = vld [vmem:[#allocation2 + $0x6c] sm:$0xe]
    %v2856 = vld [vmem:[#allocation2 + $0x78] sm:$0xe]
    %v2857 = vld [vmem:[#allocation2 + $0x84] sm:$0xe]
    %v2858 = vld [vmem:[#allocation2 + $0x90] sm:$0xe]
    %v2859 = vld [vmem:[#allocation2 + $0x9c] sm:$0xe]
    %v2860 = vld [vmem:[#allocation2 + $0xa8] sm:$0xe]
    %v2861 = vld [vmem:[#allocation2 + $0xb4] sm:$0xe]
    %v2862 = vld [vmem:[#allocation2 + $0xd8] sm:$0xe]
    %v2863 = vld [vmem:[#allocation2 + $0xe4] sm:$0xe]
    %v2864 = vld [vmem:[#allocation2 + $0xf0] sm:$0xe]
    %v2865 = vld [vmem:[#allocation2 + $0xfc] sm:$0xe]
    %v2866 = vld [vmem:[#allocation2 + $0x108] sm:$0xe]
    %v2867 = vld [vmem:[#allocation2 + $0x114] sm:$0xe]
    %v2868 = vld [vmem:[#allocation2 + $0x120] sm:$0xe]
    %v2869 = vld [vmem:[#allocation2 + $0x12c] sm:$0xe]
    %v2870 = vld [vmem:[#allocation2 + $0x138] sm:$0xe]
    %v2871 = vld [vmem:[#allocation2 + $0x144] sm:$0xe]
    %v2872 = vld [vmem:[#allocation2 + $0x150] sm:$0xe]
    %v2873 = vld [vmem:[#allocation2 + $0x15c] sm:$0xe]
    %v2874 = vld [vmem:[#allocation2 + $0x168] sm:$0xe]
    %v2875 = vld [vmem:[#allocation2 + $0x174] sm:$0xe]
    %v2876 = vld [vmem:[#allocation2 + $0x180] sm:$0xe]
    %v2877 = vld [vmem:[#allocation2 + $0x18c] sm:$0xe]
    %vm2974 = vcmask 1042432
    %vm2975 = vcmask 1046532
    %vm2976 = vmor %vm2974, %vm2975
    %v2977 = vrot.slane %v2846, 5
    %v2978 = vrot.slane %v2977, 4
    %v2979 = vrot.slane %v1980, 5
    %v2980 = vsel %vm2976, %v2978, %v2979
    %v2981 = vrot.slane %v2979, 4
    %v2982 = vrot.slane %v2043, 5
    %v2983 = vsel %vm2976, %v2981, %v2982
    %v2984 = vrot.slane %v2847, 5
    %v2985 = vrot.slane %v2984, 4
    %v2986 = vrot.slane %v1982, 5
    %v2987 = vsel %vm2976, %v2985, %v2986
    %v2988 = vrot.slane %v2986, 4
    %v2989 = vrot.slane %v2044, 5
    %v2990 = vsel %vm2976, %v2988, %v2989
    %v2991 = vrot.slane %v2848, 5
    %v2992 = vrot.slane %v2991, 4
    %v2993 = vrot.slane %v1984, 5
    %v2994 = vsel %vm2976, %v2992, %v2993
    %v2995 = vrot.slane %v2993, 4
    %v2996 = vrot.slane %v2045, 5
    %v2997 = vsel %vm2976, %v2995, %v2996
    %v2998 = vrot.slane %v2849, 5
    %v2999 = vrot.slane %v2998, 4
    %v3000 = vrot.slane %v1986, 5
    %v3001 = vsel %vm2976, %v2999, %v3000
    %v3002 = vrot.slane %v3000, 4
    %v3003 = vrot.slane %v2046, 5
    %v3004 = vsel %vm2976, %v3002, %v3003
    %v3005 = vrot.slane %v2850, 5
    %v3006 = vrot.slane %v3005, 4
    %v3007 = vrot.slane %v1988, 5
    %v3008 = vsel %vm2976, %v3006, %v3007
    %v3009 = vrot.slane %v3007, 4
    %v3010 = vrot.slane %v2047, 5
    %v3011 = vsel %vm2976, %v3009, %v3010
    %v3012 = vrot.slane %v2851, 5
    %v3013 = vrot.slane %v3012, 4
    %v3014 = vrot.slane %v1990, 5
    %v3015 = vsel %vm2976, %v3013, %v3014
    %v3016 = vrot.slane %v3014, 4
    %v3017 = vrot.slane %v2048, 5
    %v3018 = vsel %vm2976, %v3016, %v3017
    %v3019 = vrot.slane %v2852, 5
    %v3020 = vrot.slane %v3019, 4
    %v3021 = vrot.slane %v1992, 5
    %v3022 = vsel %vm2976, %v3020, %v3021
    %v3023 = vrot.slane %v3021, 4
    %v3024 = vrot.slane %v2049, 5
    %v3025 = vsel %vm2976, %v3023, %v3024
    %v3026 = vrot.slane %v2853, 5
    %v3027 = vrot.slane %v3026, 4
    %v3028 = vrot.slane %v1994, 5
    %v3029 = vsel %vm2976, %v3027, %v3028
    %v3030 = vrot.slane %v3028, 4
    %v3031 = vrot.slane %v2050, 5
    %v3032 = vsel %vm2976, %v3030, %v3031
    %v3033 = vrot.slane %v2854, 5
    %v3034 = vrot.slane %v3033, 4
    %v3035 = vrot.slane %v1996, 5
    %v3036 = vsel %vm2976, %v3034, %v3035
    %v3037 = vrot.slane %v3035, 4
    %v3038 = vrot.slane %v2051, 5
    %v3039 = vsel %vm2976, %v3037, %v3038
    %v3040 = vrot.slane %v2855, 5
    %v3041 = vrot.slane %v3040, 4
    %v3042 = vrot.slane %v1998, 5
    %v3043 = vsel %vm2976, %v3041, %v3042
    %v3044 = vrot.slane %v3042, 4
    %v3045 = vrot.slane %v2052, 5
    %v3046 = vsel %vm2976, %v3044, %v3045
    %v3047 = vrot.slane %v2856, 5
    %v3048 = vrot.slane %v3047, 4
    %v3049 = vrot.slane %v2000, 5
    %v3050 = vsel %vm2976, %v3048, %v3049
    %v3051 = vrot.slane %v3049, 4
    %v3052 = vrot.slane %v2053, 5
    %v3053 = vsel %vm2976, %v3051, %v3052
    %v3054 = vrot.slane %v2857, 5
    %v3055 = vrot.slane %v3054, 4
    %v3056 = vrot.slane %v2002, 5
    %v3057 = vsel %vm2976, %v3055, %v3056
    %v3058 = vrot.slane %v3056, 4
    %v3059 = vrot.slane %v2054, 5
    %v3060 = vsel %vm2976, %v3058, %v3059
    %v3061 = vrot.slane %v2858, 5
    %v3062 = vrot.slane %v3061, 4
    %v3063 = vrot.slane %v2004, 5
    %v3064 = vsel %vm2976, %v3062, %v3063
    %v3065 = vrot.slane %v3063, 4
    %v3066 = vrot.slane %v2055, 5
    %v3067 = vsel %vm2976, %v3065, %v3066
    %v3068 = vrot.slane %v2859, 5
    %v3069 = vrot.slane %v3068, 4
    %v3070 = vrot.slane %v2006, 5
    %v3071 = vsel %vm2976, %v3069, %v3070
    %v3072 = vrot.slane %v3070, 4
    %v3073 = vrot.slane %v2056, 5
    %v3074 = vsel %vm2976, %v3072, %v3073
    %v3075 = vrot.slane %v2860, 5
    %v3076 = vrot.slane %v3075, 4
    %v3077 = vrot.slane %v2008, 5
    %v3078 = vsel %vm2976, %v3076, %v3077
    %v3079 = vrot.slane %v3077, 4
    %v3080 = vrot.slane %v2057, 5
    %v3081 = vsel %vm2976, %v3079, %v3080
    %v3082 = vrot.slane %v2861, 5
    %v3083 = vrot.slane %v3082, 4
    %v3084 = vrot.slane %v2010, 5
    %v3085 = vsel %vm2976, %v3083, %v3084
    %v3086 = vrot.slane %v3084, 4
    %v3087 = vrot.slane %v2058, 5
    %v3088 = vsel %vm2976, %v3086, %v3087
    %v3089 = vrot.slane %v2862, 5
    %v3090 = vrot.slane %v3089, 4
    %v3091 = vrot.slane %v2012, 5
    %v3092 = vsel %vm2976, %v3090, %v3091
    %v3093 = vrot.slane %v3091, 4
    %v3094 = vrot.slane %v2059, 5
    %v3095 = vsel %vm2976, %v3093, %v3094
    %v3096 = vrot.slane %v2863, 5
    %v3097 = vrot.slane %v3096, 4
    %v3098 = vrot.slane %v2014, 5
    %v3099 = vsel %vm2976, %v3097, %v3098
    %v3100 = vrot.slane %v3098, 4
    %v3101 = vrot.slane %v2060, 5
    %v3102 = vsel %vm2976, %v3100, %v3101
    %v3103 = vrot.slane %v2864, 5
    %v3104 = vrot.slane %v3103, 4
    %v3105 = vrot.slane %v2016, 5
    %v3106 = vsel %vm2976, %v3104, %v3105
    %v3107 = vrot.slane %v3105, 4
    %v3108 = vrot.slane %v2061, 5
    %v3109 = vsel %vm2976, %v3107, %v3108
    %v3110 = vrot.slane %v2865, 5
    %v3111 = vrot.slane %v3110, 4
    %v3112 = vrot.slane %v2018, 5
    %v3113 = vsel %vm2976, %v3111, %v3112
    %v3114 = vrot.slane %v3112, 4
    %v3115 = vrot.slane %v2062, 5
    %v3116 = vsel %vm2976, %v3114, %v3115
    %v3117 = vrot.slane %v2866, 5
    %v3118 = vrot.slane %v3117, 4
    %v3119 = vrot.slane %v2020, 5
    %v3120 = vsel %vm2976, %v3118, %v3119
    %v3121 = vrot.slane %v3119, 4
    %v3122 = vrot.slane %v2063, 5
    %v3123 = vsel %vm2976, %v3121, %v3122
    %v3124 = vrot.slane %v2867, 5
    %v3125 = vrot.slane %v3124, 4
    %v3126 = vrot.slane %v2022, 5
    %v3127 = vsel %vm2976, %v3125, %v3126
    %v3128 = vrot.slane %v3126, 4
    %v3129 = vrot.slane %v2064, 5
    %v3130 = vsel %vm2976, %v3128, %v3129
    %v3131 = vrot.slane %v2868, 5
    %v3132 = vrot.slane %v3131, 4
    %v3133 = vrot.slane %v2024, 5
    %v3134 = vsel %vm2976, %v3132, %v3133
    %v3135 = vrot.slane %v3133, 4
    %v3136 = vrot.slane %v2065, 5
    %v3137 = vsel %vm2976, %v3135, %v3136
    %v3138 = vrot.slane %v2869, 5
    %v3139 = vrot.slane %v3138, 4
    %v3140 = vrot.slane %v2026, 5
    %v3141 = vsel %vm2976, %v3139, %v3140
    %v3142 = vrot.slane %v3140, 4
    %v3143 = vrot.slane %v2066, 5
    %v3144 = vsel %vm2976, %v3142, %v3143
    %v3145 = vrot.slane %v2870, 5
    %v3146 = vrot.slane %v3145, 4
    %v3147 = vrot.slane %v2028, 5
    %v3148 = vsel %vm2976, %v3146, %v3147
    %v3149 = vrot.slane %v3147, 4
    %v3150 = vrot.slane %v2067, 5
    %v3151 = vsel %vm2976, %v3149, %v3150
    %v3152 = vrot.slane %v2871, 5
    %v3153 = vrot.slane %v3152, 4
    %v3154 = vrot.slane %v2030, 5
    %v3155 = vsel %vm2976, %v3153, %v3154
    %v3156 = vrot.slane %v3154, 4
    %v3157 = vrot.slane %v2068, 5
    %v3158 = vsel %vm2976, %v3156, %v3157
    %v3159 = vrot.slane %v2872, 5
    %v3160 = vrot.slane %v3159, 4
    %v3161 = vrot.slane %v2032, 5
    %v3162 = vsel %vm2976, %v3160, %v3161
    %v3163 = vrot.slane %v3161, 4
    %v3164 = vrot.slane %v2069, 5
    %v3165 = vsel %vm2976, %v3163, %v3164
    %v3166 = vrot.slane %v2873, 5
    %v3167 = vrot.slane %v3166, 4
    %v3168 = vrot.slane %v2034, 5
    %v3169 = vsel %vm2976, %v3167, %v3168
    %v3170 = vrot.slane %v3168, 4
    %v3171 = vrot.slane %v2070, 5
    %v3172 = vsel %vm2976, %v3170, %v3171
    %v3173 = vrot.slane %v2874, 5
    %v3174 = vrot.slane %v3173, 4
    %v3175 = vrot.slane %v2036, 5
    %v3176 = vsel %vm2976, %v3174, %v3175
    %v3177 = vrot.slane %v3175, 4
    %v3178 = vrot.slane %v2071, 5
    %v3179 = vsel %vm2976, %v3177, %v3178
    %v3180 = vrot.slane %v2875, 5
    %v3181 = vrot.slane %v3180, 4
    %v3182 = vrot.slane %v2038, 5
    %v3183 = vsel %vm2976, %v3181, %v3182
    %v3184 = vrot.slane %v3182, 4
    %v3185 = vrot.slane %v2072, 5
    %v3186 = vsel %vm2976, %v3184, %v3185
    %v3187 = vrot.slane %v2876, 5
    %v3188 = vrot.slane %v3187, 4
    %v3189 = vrot.slane %v2040, 5
    %v3190 = vsel %vm2976, %v3188, %v3189
    %v3191 = vrot.slane %v3189, 4
    %v3192 = vrot.slane %v2073, 5
    %v3193 = vsel %vm2976, %v3191, %v3192
    %v3194 = vrot.slane %v2877, 5
    %v3195 = vrot.slane %v3194, 4
    %v3196 = vrot.slane %v2042, 5
    %v3197 = vsel %vm2976, %v3195, %v3196
    %v3198 = vrot.slane %v3196, 4
    %v3199 = vrot.slane %v2074, 5
    %v3200 = vsel %vm2976, %v3198, %v3199
    %s3201 = scalar_lea.vmem [#allocation2], 12
    %v3202 = vld [vmem:[%s3201] sm:$0xf]
    %v3203 = vld [vmem:[%s3201 + $0x4] sm:$0xf]
    %v3204 = vld [vmem:[%s3201 + $0xc] sm:$0xf]
    %v3205 = vld [vmem:[%s3201 + $0x10] sm:$0xf]
    %v3206 = vld [vmem:[%s3201 + $0x18] sm:$0xf]
    %v3207 = vld [vmem:[%s3201 + $0x1c] sm:$0xf]
    %v3208 = vld [vmem:[%s3201 + $0x24] sm:$0xf]
    %v3209 = vld [vmem:[%s3201 + $0x28] sm:$0xf]
    %v3210 = vld [vmem:[%s3201 + $0x30] sm:$0xf]
    %v3211 = vld [vmem:[%s3201 + $0x34] sm:$0xf]
    %v3212 = vld [vmem:[%s3201 + $0x3c] sm:$0xf]
    %v3213 = vld [vmem:[%s3201 + $0x40] sm:$0xf]
    %v3214 = vld [vmem:[%s3201 + $0x48] sm:$0xf]
    %v3215 = vld [vmem:[%s3201 + $0x4c] sm:$0xf]
    %v3216 = vld [vmem:[%s3201 + $0x54] sm:$0xf]
    %v3217 = vld [vmem:[%s3201 + $0x58] sm:$0xf]
    %v3218 = vld [vmem:[%s3201 + $0x60] sm:$0xf]
    %v3219 = vld [vmem:[%s3201 + $0x64] sm:$0xf]
    %v3220 = vld [vmem:[%s3201 + $0x6c] sm:$0xf]
    %v3221 = vld [vmem:[%s3201 + $0x70] sm:$0xf]
    %v3222 = vld [vmem:[%s3201 + $0x78] sm:$0xf]
    %v3223 = vld [vmem:[%s3201 + $0x7c] sm:$0xf]
    %v3224 = vld [vmem:[%s3201 + $0x84] sm:$0xf]
    %v3225 = vld [vmem:[%s3201 + $0x88] sm:$0xf]
    %v3226 = vld [vmem:[%s3201 + $0x90] sm:$0xf]
    %v3227 = vld [vmem:[%s3201 + $0x94] sm:$0xf]
    %v3228 = vld [vmem:[%s3201 + $0x9c] sm:$0xf]
    %v3229 = vld [vmem:[%s3201 + $0xa0] sm:$0xf]
    %v3230 = vld [vmem:[%s3201 + $0xa8] sm:$0xf]
    %v3231 = vld [vmem:[%s3201 + $0xac] sm:$0xf]
    %v3232 = vld [vmem:[%s3201 + $0xb4] sm:$0xf]
    %v3233 = vld [vmem:[%s3201 + $0xb8] sm:$0xf]
    %v3234 = vld [vmem:[%s3201 + $0xd8] sm:$0xf]
    %v3235 = vld [vmem:[%s3201 + $0xdc] sm:$0xf]
    %v3236 = vld [vmem:[%s3201 + $0xe4] sm:$0xf]
    %v3237 = vld [vmem:[%s3201 + $0xe8] sm:$0xf]
    %v3238 = vld [vmem:[%s3201 + $0xf0] sm:$0xf]
    %v3239 = vld [vmem:[%s3201 + $0xf4] sm:$0xf]
    %v3240 = vld [vmem:[%s3201 + $0xfc] sm:$0xf]
    %v3241 = vld [vmem:[%s3201 + $0x100] sm:$0xf]
    %v3242 = vld [vmem:[%s3201 + $0x108] sm:$0xf]
    %v3243 = vld [vmem:[%s3201 + $0x10c] sm:$0xf]
    %v3244 = vld [vmem:[%s3201 + $0x114] sm:$0xf]
    %v3245 = vld [vmem:[%s3201 + $0x118] sm:$0xf]
    %v3246 = vld [vmem:[%s3201 + $0x120] sm:$0xf]
    %v3247 = vld [vmem:[%s3201 + $0x124] sm:$0xf]
    %v3248 = vld [vmem:[%s3201 + $0x12c] sm:$0xf]
    %v3249 = vld [vmem:[%s3201 + $0x130] sm:$0xf]
    %v3250 = vld [vmem:[%s3201 + $0x138] sm:$0xf]
    %v3251 = vld [vmem:[%s3201 + $0x13c] sm:$0xf]
    %v3252 = vld [vmem:[%s3201 + $0x144] sm:$0xf]
    %v3253 = vld [vmem:[%s3201 + $0x148] sm:$0xf]
    %v3254 = vld [vmem:[%s3201 + $0x150] sm:$0xf]
    %v3255 = vld [vmem:[%s3201 + $0x154] sm:$0xf]
    %v3256 = vld [vmem:[%s3201 + $0x15c] sm:$0xf]
    %v3257 = vld [vmem:[%s3201 + $0x160] sm:$0xf]
    %v3258 = vld [vmem:[%s3201 + $0x168] sm:$0xf]
    %v3259 = vld [vmem:[%s3201 + $0x16c] sm:$0xf]
    %v3260 = vld [vmem:[%s3201 + $0x174] sm:$0xf]
    %v3261 = vld [vmem:[%s3201 + $0x178] sm:$0xf]
    %v3262 = vld [vmem:[%s3201 + $0x180] sm:$0xf]
    %v3263 = vld [vmem:[%s3201 + $0x184] sm:$0xf]
    %v3264 = vld [vmem:[%s3201 + $0x18c] sm:$0xf]
    %v3265 = vld [vmem:[%s3201 + $0x190] sm:$0xf]
    %v3266 = vld [vmem:[%s3201 + $0x8] sm:$0x1]
    %v3267 = vld [vmem:[%s3201 + $0x14] sm:$0x1]
    %v3268 = vld [vmem:[%s3201 + $0x20] sm:$0x1]
    %v3269 = vld [vmem:[%s3201 + $0x2c] sm:$0x1]
    %v3270 = vld [vmem:[%s3201 + $0x38] sm:$0x1]
    %v3271 = vld [vmem:[%s3201 + $0x44] sm:$0x1]
    %v3272 = vld [vmem:[%s3201 + $0x50] sm:$0x1]
    %v3273 = vld [vmem:[%s3201 + $0x5c] sm:$0x1]
    %v3274 = vld [vmem:[%s3201 + $0x68] sm:$0x1]
    %v3275 = vld [vmem:[%s3201 + $0x74] sm:$0x1]
    %v3276 = vld [vmem:[%s3201 + $0x80] sm:$0x1]
    %v3277 = vld [vmem:[%s3201 + $0x8c] sm:$0x1]
    %v3278 = vld [vmem:[%s3201 + $0x98] sm:$0x1]
    %v3279 = vld [vmem:[%s3201 + $0xa4] sm:$0x1]
    %v3280 = vld [vmem:[%s3201 + $0xb0] sm:$0x1]
    %v3281 = vld [vmem:[%s3201 + $0xbc] sm:$0x1]
    %v3282 = vld [vmem:[%s3201 + $0xe0] sm:$0x1]
    %v3283 = vld [vmem:[%s3201 + $0xec] sm:$0x1]
    %v3284 = vld [vmem:[%s3201 + $0xf8] sm:$0x1]
    %v3285 = vld [vmem:[%s3201 + $0x104] sm:$0x1]
    %v3286 = vld [vmem:[%s3201 + $0x110] sm:$0x1]
    %v3287 = vld [vmem:[%s3201 + $0x11c] sm:$0x1]
    %v3288 = vld [vmem:[%s3201 + $0x128] sm:$0x1]
    %v3289 = vld [vmem:[%s3201 + $0x134] sm:$0x1]
    %v3290 = vld [vmem:[%s3201 + $0x140] sm:$0x1]
    %v3291 = vld [vmem:[%s3201 + $0x14c] sm:$0x1]
    %v3292 = vld [vmem:[%s3201 + $0x158] sm:$0x1]
    %v3293 = vld [vmem:[%s3201 + $0x164] sm:$0x1]
    %v3294 = vld [vmem:[%s3201 + $0x170] sm:$0x1]
    %v3295 = vld [vmem:[%s3201 + $0x17c] sm:$0x1]
    %v3296 = vld [vmem:[%s3201 + $0x188] sm:$0x1]
    %v3297 = vld [vmem:[%s3201 + $0x194] sm:$0x1]
    %v3299 = vshrl.u32 %v3202, 16
    %v3301 = vrot.slane %v3299, 4
    %v3302 = vshll.u32 %v3202, 16
    %v3304 = vrot.slane %v3302, 5
    %v3305 = vor.u32 %v3301, %v3304
    %v3306 = vrot.slane %v3305, 4
    %v3308 = vshll.u32 %v3203, 16
    %v3310 = vrot.slane %v3308, 5
    %v3311 = vsel %vm2077, %v3306, %v3310
    %v3312 = vshrl.u32 %v3203, 16
    %v3314 = vrot.slane %v3312, 4
    %v3315 = vor.u32 %v3314, %v3310
    %v3316 = vrot.slane %v3315, 4
    %v3318 = vshll.u32 %v3266, 16
    %v3320 = vrot.slane %v3318, 5
    %v3321 = vsel %vm2077, %v3316, %v3320
    %v3323 = vshrl.u32 %v3204, 16
    %v3325 = vrot.slane %v3323, 4
    %v3326 = vshll.u32 %v3204, 16
    %v3328 = vrot.slane %v3326, 5
    %v3329 = vor.u32 %v3325, %v3328
    %v3330 = vrot.slane %v3329, 4
    %v3332 = vshll.u32 %v3205, 16
    %v3334 = vrot.slane %v3332, 5
    %v3335 = vsel %vm2077, %v3330, %v3334
    %v3336 = vshrl.u32 %v3205, 16
    %v3338 = vrot.slane %v3336, 4
    %v3339 = vor.u32 %v3338, %v3334
    %v3340 = vrot.slane %v3339, 4
    %v3342 = vshll.u32 %v3267, 16
    %v3344 = vrot.slane %v3342, 5
    %v3345 = vsel %vm2077, %v3340, %v3344
    %v3347 = vshrl.u32 %v3206, 16
    %v3349 = vrot.slane %v3347, 4
    %v3350 = vshll.u32 %v3206, 16
    %v3352 = vrot.slane %v3350, 5
    %v3353 = vor.u32 %v3349, %v3352
    %v3354 = vrot.slane %v3353, 4
    %v3356 = vshll.u32 %v3207, 16
    %v3358 = vrot.slane %v3356, 5
    %v3359 = vsel %vm2077, %v3354, %v3358
    %v3360 = vshrl.u32 %v3207, 16
    %v3362 = vrot.slane %v3360, 4
    %v3363 = vor.u32 %v3362, %v3358
    %v3364 = vrot.slane %v3363, 4
    %v3366 = vshll.u32 %v3268, 16
    %v3368 = vrot.slane %v3366, 5
    %v3369 = vsel %vm2077, %v3364, %v3368
    %v3371 = vshrl.u32 %v3208, 16
    %v3373 = vrot.slane %v3371, 4
    %v3374 = vshll.u32 %v3208, 16
    %v3376 = vrot.slane %v3374, 5
    %v3377 = vor.u32 %v3373, %v3376
    %v3378 = vrot.slane %v3377, 4
    %v3380 = vshll.u32 %v3209, 16
    %v3382 = vrot.slane %v3380, 5
    %v3383 = vsel %vm2077, %v3378, %v3382
    %v3384 = vshrl.u32 %v3209, 16
    %v3386 = vrot.slane %v3384, 4
    %v3387 = vor.u32 %v3386, %v3382
    %v3388 = vrot.slane %v3387, 4
    %v3390 = vshll.u32 %v3269, 16
    %v3392 = vrot.slane %v3390, 5
    %v3393 = vsel %vm2077, %v3388, %v3392
    %v3395 = vshrl.u32 %v3210, 16
    %v3397 = vrot.slane %v3395, 4
    %v3398 = vshll.u32 %v3210, 16
    %v3400 = vrot.slane %v3398, 5
    %v3401 = vor.u32 %v3397, %v3400
    %v3402 = vrot.slane %v3401, 4
    %v3404 = vshll.u32 %v3211, 16
    %v3406 = vrot.slane %v3404, 5
    %v3407 = vsel %vm2077, %v3402, %v3406
    %v3408 = vshrl.u32 %v3211, 16
    %v3410 = vrot.slane %v3408, 4
    %v3411 = vor.u32 %v3410, %v3406
    %v3412 = vrot.slane %v3411, 4
    %v3414 = vshll.u32 %v3270, 16
    %v3416 = vrot.slane %v3414, 5
    %v3417 = vsel %vm2077, %v3412, %v3416
    %v3419 = vshrl.u32 %v3212, 16
    %v3421 = vrot.slane %v3419, 4
    %v3422 = vshll.u32 %v3212, 16
    %v3424 = vrot.slane %v3422, 5
    %v3425 = vor.u32 %v3421, %v3424
    %v3426 = vrot.slane %v3425, 4
    %v3428 = vshll.u32 %v3213, 16
    %v3430 = vrot.slane %v3428, 5
    %v3431 = vsel %vm2077, %v3426, %v3430
    %v3432 = vshrl.u32 %v3213, 16
    %v3434 = vrot.slane %v3432, 4
    %v3435 = vor.u32 %v3434, %v3430
    %v3436 = vrot.slane %v3435, 4
    %v3438 = vshll.u32 %v3271, 16
    %v3440 = vrot.slane %v3438, 5
    %v3441 = vsel %vm2077, %v3436, %v3440
    %v3443 = vshrl.u32 %v3214, 16
    %v3445 = vrot.slane %v3443, 4
    %v3446 = vshll.u32 %v3214, 16
    %v3448 = vrot.slane %v3446, 5
    %v3449 = vor.u32 %v3445, %v3448
    %v3450 = vrot.slane %v3449, 4
    %v3452 = vshll.u32 %v3215, 16
    %v3454 = vrot.slane %v3452, 5
    %v3455 = vsel %vm2077, %v3450, %v3454
    %v3456 = vshrl.u32 %v3215, 16
    %v3458 = vrot.slane %v3456, 4
    %v3459 = vor.u32 %v3458, %v3454
    %v3460 = vrot.slane %v3459, 4
    %v3462 = vshll.u32 %v3272, 16
    %v3464 = vrot.slane %v3462, 5
    %v3465 = vsel %vm2077, %v3460, %v3464
    %v3467 = vshrl.u32 %v3216, 16
    %v3469 = vrot.slane %v3467, 4
    %v3470 = vshll.u32 %v3216, 16
    %v3472 = vrot.slane %v3470, 5
    %v3473 = vor.u32 %v3469, %v3472
    %v3474 = vrot.slane %v3473, 4
    %v3476 = vshll.u32 %v3217, 16
    %v3478 = vrot.slane %v3476, 5
    %v3479 = vsel %vm2077, %v3474, %v3478
    %v3480 = vshrl.u32 %v3217, 16
    %v3482 = vrot.slane %v3480, 4
    %v3483 = vor.u32 %v3482, %v3478
    %v3484 = vrot.slane %v3483, 4
    %v3486 = vshll.u32 %v3273, 16
    %v3488 = vrot.slane %v3486, 5
    %v3489 = vsel %vm2077, %v3484, %v3488
    %v3491 = vshrl.u32 %v3218, 16
    %v3493 = vrot.slane %v3491, 4
    %v3494 = vshll.u32 %v3218, 16
    %v3496 = vrot.slane %v3494, 5
    %v3497 = vor.u32 %v3493, %v3496
    %v3498 = vrot.slane %v3497, 4
    %v3500 = vshll.u32 %v3219, 16
    %v3502 = vrot.slane %v3500, 5
    %v3503 = vsel %vm2077, %v3498, %v3502
    %v3504 = vshrl.u32 %v3219, 16
    %v3506 = vrot.slane %v3504, 4
    %v3507 = vor.u32 %v3506, %v3502
    %v3508 = vrot.slane %v3507, 4
    %v3510 = vshll.u32 %v3274, 16
    %v3512 = vrot.slane %v3510, 5
    %v3513 = vsel %vm2077, %v3508, %v3512
    %v3515 = vshrl.u32 %v3220, 16
    %v3517 = vrot.slane %v3515, 4
    %v3518 = vshll.u32 %v3220, 16
    %v3520 = vrot.slane %v3518, 5
    %v3521 = vor.u32 %v3517, %v3520
    %v3522 = vrot.slane %v3521, 4
    %v3524 = vshll.u32 %v3221, 16
    %v3526 = vrot.slane %v3524, 5
    %v3527 = vsel %vm2077, %v3522, %v3526
    %v3528 = vshrl.u32 %v3221, 16
    %v3530 = vrot.slane %v3528, 4
    %v3531 = vor.u32 %v3530, %v3526
    %v3532 = vrot.slane %v3531, 4
    %v3534 = vshll.u32 %v3275, 16
    %v3536 = vrot.slane %v3534, 5
    %v3537 = vsel %vm2077, %v3532, %v3536
    %v3539 = vshrl.u32 %v3222, 16
    %v3541 = vrot.slane %v3539, 4
    %v3542 = vshll.u32 %v3222, 16
    %v3544 = vrot.slane %v3542, 5
    %v3545 = vor.u32 %v3541, %v3544
    %v3546 = vrot.slane %v3545, 4
    %v3548 = vshll.u32 %v3223, 16
    %v3550 = vrot.slane %v3548, 5
    %v3551 = vsel %vm2077, %v3546, %v3550
    %v3552 = vshrl.u32 %v3223, 16
    %v3554 = vrot.slane %v3552, 4
    %v3555 = vor.u32 %v3554, %v3550
    %v3556 = vrot.slane %v3555, 4
    %v3558 = vshll.u32 %v3276, 16
    %v3560 = vrot.slane %v3558, 5
    %v3561 = vsel %vm2077, %v3556, %v3560
    %v3563 = vshrl.u32 %v3224, 16
    %v3565 = vrot.slane %v3563, 4
    %v3566 = vshll.u32 %v3224, 16
    %v3568 = vrot.slane %v3566, 5
    %v3569 = vor.u32 %v3565, %v3568
    %v3570 = vrot.slane %v3569, 4
    %v3572 = vshll.u32 %v3225, 16
    %v3574 = vrot.slane %v3572, 5
    %v3575 = vsel %vm2077, %v3570, %v3574
    %v3576 = vshrl.u32 %v3225, 16
    %v3578 = vrot.slane %v3576, 4
    %v3579 = vor.u32 %v3578, %v3574
    %v3580 = vrot.slane %v3579, 4
    %v3582 = vshll.u32 %v3277, 16
    %v3584 = vrot.slane %v3582, 5
    %v3585 = vsel %vm2077, %v3580, %v3584
    %v3587 = vshrl.u32 %v3226, 16
    %v3589 = vrot.slane %v3587, 4
    %v3590 = vshll.u32 %v3226, 16
    %v3592 = vrot.slane %v3590, 5
    %v3593 = vor.u32 %v3589, %v3592
    %v3594 = vrot.slane %v3593, 4
    %v3596 = vshll.u32 %v3227, 16
    %v3598 = vrot.slane %v3596, 5
    %v3599 = vsel %vm2077, %v3594, %v3598
    %v3600 = vshrl.u32 %v3227, 16
    %v3602 = vrot.slane %v3600, 4
    %v3603 = vor.u32 %v3602, %v3598
    %v3604 = vrot.slane %v3603, 4
    %v3606 = vshll.u32 %v3278, 16
    %v3608 = vrot.slane %v3606, 5
    %v3609 = vsel %vm2077, %v3604, %v3608
    %v3611 = vshrl.u32 %v3228, 16
    %v3613 = vrot.slane %v3611, 4
    %v3614 = vshll.u32 %v3228, 16
    %v3616 = vrot.slane %v3614, 5
    %v3617 = vor.u32 %v3613, %v3616
    %v3618 = vrot.slane %v3617, 4
    %v3620 = vshll.u32 %v3229, 16
    %v3622 = vrot.slane %v3620, 5
    %v3623 = vsel %vm2077, %v3618, %v3622
    %v3624 = vshrl.u32 %v3229, 16
    %v3626 = vrot.slane %v3624, 4
    %v3627 = vor.u32 %v3626, %v3622
    %v3628 = vrot.slane %v3627, 4
    %v3630 = vshll.u32 %v3279, 16
    %v3632 = vrot.slane %v3630, 5
    %v3633 = vsel %vm2077, %v3628, %v3632
    %v3635 = vshrl.u32 %v3230, 16
    %v3637 = vrot.slane %v3635, 4
    %v3638 = vshll.u32 %v3230, 16
    %v3640 = vrot.slane %v3638, 5
    %v3641 = vor.u32 %v3637, %v3640
    %v3642 = vrot.slane %v3641, 4
    %v3644 = vshll.u32 %v3231, 16
    %v3646 = vrot.slane %v3644, 5
    %v3647 = vsel %vm2077, %v3642, %v3646
    %v3648 = vshrl.u32 %v3231, 16
    %v3650 = vrot.slane %v3648, 4
    %v3651 = vor.u32 %v3650, %v3646
    %v3652 = vrot.slane %v3651, 4
    %v3654 = vshll.u32 %v3280, 16
    %v3656 = vrot.slane %v3654, 5
    %v3657 = vsel %vm2077, %v3652, %v3656
    %v3659 = vshrl.u32 %v3232, 16
    %v3661 = vrot.slane %v3659, 4
    %v3662 = vshll.u32 %v3232, 16
    %v3664 = vrot.slane %v3662, 5
    %v3665 = vor.u32 %v3661, %v3664
    %v3666 = vrot.slane %v3665, 4
    %v3668 = vshll.u32 %v3233, 16
    %v3670 = vrot.slane %v3668, 5
    %v3671 = vsel %vm2077, %v3666, %v3670
    %v3672 = vshrl.u32 %v3233, 16
    %v3674 = vrot.slane %v3672, 4
    %v3675 = vor.u32 %v3674, %v3670
    %v3676 = vrot.slane %v3675, 4
    %v3678 = vshll.u32 %v3281, 16
    %v3680 = vrot.slane %v3678, 5
    %v3681 = vsel %vm2077, %v3676, %v3680
    %v3683 = vshrl.u32 %v3234, 16
    %v3685 = vrot.slane %v3683, 4
    %v3686 = vshll.u32 %v3234, 16
    %v3688 = vrot.slane %v3686, 5
    %v3689 = vor.u32 %v3685, %v3688
    %v3690 = vrot.slane %v3689, 4
    %v3692 = vshll.u32 %v3235, 16
    %v3694 = vrot.slane %v3692, 5
    %v3695 = vsel %vm2077, %v3690, %v3694
    %v3696 = vshrl.u32 %v3235, 16
    %v3698 = vrot.slane %v3696, 4
    %v3699 = vor.u32 %v3698, %v3694
    %v3700 = vrot.slane %v3699, 4
    %v3702 = vshll.u32 %v3282, 16
    %v3704 = vrot.slane %v3702, 5
    %v3705 = vsel %vm2077, %v3700, %v3704
    %v3707 = vshrl.u32 %v3236, 16
    %v3709 = vrot.slane %v3707, 4
    %v3710 = vshll.u32 %v3236, 16
    %v3712 = vrot.slane %v3710, 5
    %v3713 = vor.u32 %v3709, %v3712
    %v3714 = vrot.slane %v3713, 4
    %v3716 = vshll.u32 %v3237, 16
    %v3718 = vrot.slane %v3716, 5
    %v3719 = vsel %vm2077, %v3714, %v3718
    %v3720 = vshrl.u32 %v3237, 16
    %v3722 = vrot.slane %v3720, 4
    %v3723 = vor.u32 %v3722, %v3718
    %v3724 = vrot.slane %v3723, 4
    %v3726 = vshll.u32 %v3283, 16
    %v3728 = vrot.slane %v3726, 5
    %v3729 = vsel %vm2077, %v3724, %v3728
    %v3731 = vshrl.u32 %v3238, 16
    %v3733 = vrot.slane %v3731, 4
    %v3734 = vshll.u32 %v3238, 16
    %v3736 = vrot.slane %v3734, 5
    %v3737 = vor.u32 %v3733, %v3736
    %v3738 = vrot.slane %v3737, 4
    %v3740 = vshll.u32 %v3239, 16
    %v3742 = vrot.slane %v3740, 5
    %v3743 = vsel %vm2077, %v3738, %v3742
    %v3744 = vshrl.u32 %v3239, 16
    %v3746 = vrot.slane %v3744, 4
    %v3747 = vor.u32 %v3746, %v3742
    %v3748 = vrot.slane %v3747, 4
    %v3750 = vshll.u32 %v3284, 16
    %v3752 = vrot.slane %v3750, 5
    %v3753 = vsel %vm2077, %v3748, %v3752
    %v3755 = vshrl.u32 %v3240, 16
    %v3757 = vrot.slane %v3755, 4
    %v3758 = vshll.u32 %v3240, 16
    %v3760 = vrot.slane %v3758, 5
    %v3761 = vor.u32 %v3757, %v3760
    %v3762 = vrot.slane %v3761, 4
    %v3764 = vshll.u32 %v3241, 16
    %v3766 = vrot.slane %v3764, 5
    %v3767 = vsel %vm2077, %v3762, %v3766
    %v3768 = vshrl.u32 %v3241, 16
    %v3770 = vrot.slane %v3768, 4
    %v3771 = vor.u32 %v3770, %v3766
    %v3772 = vrot.slane %v3771, 4
    %v3774 = vshll.u32 %v3285, 16
    %v3776 = vrot.slane %v3774, 5
    %v3777 = vsel %vm2077, %v3772, %v3776
    %v3779 = vshrl.u32 %v3242, 16
    %v3781 = vrot.slane %v3779, 4
    %v3782 = vshll.u32 %v3242, 16
    %v3784 = vrot.slane %v3782, 5
    %v3785 = vor.u32 %v3781, %v3784
    %v3786 = vrot.slane %v3785, 4
    %v3788 = vshll.u32 %v3243, 16
    %v3790 = vrot.slane %v3788, 5
    %v3791 = vsel %vm2077, %v3786, %v3790
    %v3792 = vshrl.u32 %v3243, 16
    %v3794 = vrot.slane %v3792, 4
    %v3795 = vor.u32 %v3794, %v3790
    %v3796 = vrot.slane %v3795, 4
    %v3798 = vshll.u32 %v3286, 16
    %v3800 = vrot.slane %v3798, 5
    %v3801 = vsel %vm2077, %v3796, %v3800
    %v3803 = vshrl.u32 %v3244, 16
    %v3805 = vrot.slane %v3803, 4
    %v3806 = vshll.u32 %v3244, 16
    %v3808 = vrot.slane %v3806, 5
    %v3809 = vor.u32 %v3805, %v3808
    %v3810 = vrot.slane %v3809, 4
    %v3812 = vshll.u32 %v3245, 16
    %v3814 = vrot.slane %v3812, 5
    %v3815 = vsel %vm2077, %v3810, %v3814
    %v3816 = vshrl.u32 %v3245, 16
    %v3818 = vrot.slane %v3816, 4
    %v3819 = vor.u32 %v3818, %v3814
    %v3820 = vrot.slane %v3819, 4
    %v3822 = vshll.u32 %v3287, 16
    %v3824 = vrot.slane %v3822, 5
    %v3825 = vsel %vm2077, %v3820, %v3824
    %v3827 = vshrl.u32 %v3246, 16
    %v3829 = vrot.slane %v3827, 4
    %v3830 = vshll.u32 %v3246, 16
    %v3832 = vrot.slane %v3830, 5
    %v3833 = vor.u32 %v3829, %v3832
    %v3834 = vrot.slane %v3833, 4
    %v3836 = vshll.u32 %v3247, 16
    %v3838 = vrot.slane %v3836, 5
    %v3839 = vsel %vm2077, %v3834, %v3838
    %v3840 = vshrl.u32 %v3247, 16
    %v3842 = vrot.slane %v3840, 4
    %v3843 = vor.u32 %v3842, %v3838
    %v3844 = vrot.slane %v3843, 4
    %v3846 = vshll.u32 %v3288, 16
    %v3848 = vrot.slane %v3846, 5
    %v3849 = vsel %vm2077, %v3844, %v3848
    %v3851 = vshrl.u32 %v3248, 16
    %v3853 = vrot.slane %v3851, 4
    %v3854 = vshll.u32 %v3248, 16
    %v3856 = vrot.slane %v3854, 5
    %v3857 = vor.u32 %v3853, %v3856
    %v3858 = vrot.slane %v3857, 4
    %v3860 = vshll.u32 %v3249, 16
    %v3862 = vrot.slane %v3860, 5
    %v3863 = vsel %vm2077, %v3858, %v3862
    %v3864 = vshrl.u32 %v3249, 16
    %v3866 = vrot.slane %v3864, 4
    %v3867 = vor.u32 %v3866, %v3862
    %v3868 = vrot.slane %v3867, 4
    %v3870 = vshll.u32 %v3289, 16
    %v3872 = vrot.slane %v3870, 5
    %v3873 = vsel %vm2077, %v3868, %v3872
    %v3875 = vshrl.u32 %v3250, 16
    %v3877 = vrot.slane %v3875, 4
    %v3878 = vshll.u32 %v3250, 16
    %v3880 = vrot.slane %v3878, 5
    %v3881 = vor.u32 %v3877, %v3880
    %v3882 = vrot.slane %v3881, 4
    %v3884 = vshll.u32 %v3251, 16
    %v3886 = vrot.slane %v3884, 5
    %v3887 = vsel %vm2077, %v3882, %v3886
    %v3888 = vshrl.u32 %v3251, 16
    %v3890 = vrot.slane %v3888, 4
    %v3891 = vor.u32 %v3890, %v3886
    %v3892 = vrot.slane %v3891, 4
    %v3894 = vshll.u32 %v3290, 16
    %v3896 = vrot.slane %v3894, 5
    %v3897 = vsel %vm2077, %v3892, %v3896
    %v3899 = vshrl.u32 %v3252, 16
    %v3901 = vrot.slane %v3899, 4
    %v3902 = vshll.u32 %v3252, 16
    %v3904 = vrot.slane %v3902, 5
    %v3905 = vor.u32 %v3901, %v3904
    %v3906 = vrot.slane %v3905, 4
    %v3908 = vshll.u32 %v3253, 16
    %v3910 = vrot.slane %v3908, 5
    %v3911 = vsel %vm2077, %v3906, %v3910
    %v3912 = vshrl.u32 %v3253, 16
    %v3914 = vrot.slane %v3912, 4
    %v3915 = vor.u32 %v3914, %v3910
    %v3916 = vrot.slane %v3915, 4
    %v3918 = vshll.u32 %v3291, 16
    %v3920 = vrot.slane %v3918, 5
    %v3921 = vsel %vm2077, %v3916, %v3920
    %v3923 = vshrl.u32 %v3254, 16
    %v3925 = vrot.slane %v3923, 4
    %v3926 = vshll.u32 %v3254, 16
    %v3928 = vrot.slane %v3926, 5
    %v3929 = vor.u32 %v3925, %v3928
    %v3930 = vrot.slane %v3929, 4
    %v3932 = vshll.u32 %v3255, 16
    %v3934 = vrot.slane %v3932, 5
    %v3935 = vsel %vm2077, %v3930, %v3934
    %v3936 = vshrl.u32 %v3255, 16
    %v3938 = vrot.slane %v3936, 4
    %v3939 = vor.u32 %v3938, %v3934
    %v3940 = vrot.slane %v3939, 4
    %v3942 = vshll.u32 %v3292, 16
    %v3944 = vrot.slane %v3942, 5
    %v3945 = vsel %vm2077, %v3940, %v3944
    %v3947 = vshrl.u32 %v3256, 16
    %v3949 = vrot.slane %v3947, 4
    %v3950 = vshll.u32 %v3256, 16
    %v3952 = vrot.slane %v3950, 5
    %v3953 = vor.u32 %v3949, %v3952
    %v3954 = vrot.slane %v3953, 4
    %v3956 = vshll.u32 %v3257, 16
    %v3958 = vrot.slane %v3956, 5
    %v3959 = vsel %vm2077, %v3954, %v3958
    %v3960 = vshrl.u32 %v3257, 16
    %v3962 = vrot.slane %v3960, 4
    %v3963 = vor.u32 %v3962, %v3958
    %v3964 = vrot.slane %v3963, 4
    %v3966 = vshll.u32 %v3293, 16
    %v3968 = vrot.slane %v3966, 5
    %v3969 = vsel %vm2077, %v3964, %v3968
    %v3971 = vshrl.u32 %v3258, 16
    %v3973 = vrot.slane %v3971, 4
    %v3974 = vshll.u32 %v3258, 16
    %v3976 = vrot.slane %v3974, 5
    %v3977 = vor.u32 %v3973, %v3976
    %v3978 = vrot.slane %v3977, 4
    %v3980 = vshll.u32 %v3259, 16
    %v3982 = vrot.slane %v3980, 5
    %v3983 = vsel %vm2077, %v3978, %v3982
    %v3984 = vshrl.u32 %v3259, 16
    %v3986 = vrot.slane %v3984, 4
    %v3987 = vor.u32 %v3986, %v3982
    %v3988 = vrot.slane %v3987, 4
    %v3990 = vshll.u32 %v3294, 16
    %v3992 = vrot.slane %v3990, 5
    %v3993 = vsel %vm2077, %v3988, %v3992
    %v3995 = vshrl.u32 %v3260, 16
    %v3997 = vrot.slane %v3995, 4
    %v3998 = vshll.u32 %v3260, 16
    %v4000 = vrot.slane %v3998, 5
    %v4001 = vor.u32 %v3997, %v4000
    %v4002 = vrot.slane %v4001, 4
    %v4004 = vshll.u32 %v3261, 16
    %v4006 = vrot.slane %v4004, 5
    %v4007 = vsel %vm2077, %v4002, %v4006
    %v4008 = vshrl.u32 %v3261, 16
    %v4010 = vrot.slane %v4008, 4
    %v4011 = vor.u32 %v4010, %v4006
    %v4012 = vrot.slane %v4011, 4
    %v4014 = vshll.u32 %v3295, 16
    %v4016 = vrot.slane %v4014, 5
    %v4017 = vsel %vm2077, %v4012, %v4016
    %v4019 = vshrl.u32 %v3262, 16
    %v4021 = vrot.slane %v4019, 4
    %v4022 = vshll.u32 %v3262, 16
    %v4024 = vrot.slane %v4022, 5
    %v4025 = vor.u32 %v4021, %v4024
    %v4026 = vrot.slane %v4025, 4
    %v4028 = vshll.u32 %v3263, 16
    %v4030 = vrot.slane %v4028, 5
    %v4031 = vsel %vm2077, %v4026, %v4030
    %v4032 = vshrl.u32 %v3263, 16
    %v4034 = vrot.slane %v4032, 4
    %v4035 = vor.u32 %v4034, %v4030
    %v4036 = vrot.slane %v4035, 4
    %v4038 = vshll.u32 %v3296, 16
    %v4040 = vrot.slane %v4038, 5
    %v4041 = vsel %vm2077, %v4036, %v4040
    %v4043 = vshrl.u32 %v3264, 16
    %v4045 = vrot.slane %v4043, 4
    %v4046 = vshll.u32 %v3264, 16
    %v4048 = vrot.slane %v4046, 5
    %v4049 = vor.u32 %v4045, %v4048
    %v4050 = vrot.slane %v4049, 4
    %v4052 = vshll.u32 %v3265, 16
    %v4054 = vrot.slane %v4052, 5
    %v4055 = vsel %vm2077, %v4050, %v4054
    %v4056 = vshrl.u32 %v3265, 16
    %v4058 = vrot.slane %v4056, 4
    %v4059 = vor.u32 %v4058, %v4054
    %v4060 = vrot.slane %v4059, 4
    %v4062 = vshll.u32 %v3297, 16
    %v4064 = vrot.slane %v4062, 5
    %v4065 = vsel %vm2077, %v4060, %v4064
    %v4066 = vld [vmem:[%s3201] sm:$0xe]
    %v4067 = vld [vmem:[%s3201 + $0xc] sm:$0xe]
    %v4068 = vld [vmem:[%s3201 + $0x18] sm:$0xe]
    %v4069 = vld [vmem:[%s3201 + $0x24] sm:$0xe]
    %v4070 = vld [vmem:[%s3201 + $0x30] sm:$0xe]
    %v4071 = vld [vmem:[%s3201 + $0x3c] sm:$0xe]
    %v4072 = vld [vmem:[%s3201 + $0x48] sm:$0xe]
    %v4073 = vld [vmem:[%s3201 + $0x54] sm:$0xe]
    %v4074 = vld [vmem:[%s3201 + $0x60] sm:$0xe]
    %v4075 = vld [vmem:[%s3201 + $0x6c] sm:$0xe]
    %v4076 = vld [vmem:[%s3201 + $0x78] sm:$0xe]
    %v4077 = vld [vmem:[%s3201 + $0x84] sm:$0xe]
    %v4078 = vld [vmem:[%s3201 + $0x90] sm:$0xe]
    %v4079 = vld [vmem:[%s3201 + $0x9c] sm:$0xe]
    %v4080 = vld [vmem:[%s3201 + $0xa8] sm:$0xe]
    %v4081 = vld [vmem:[%s3201 + $0xb4] sm:$0xe]
    %v4082 = vld [vmem:[%s3201 + $0xd8] sm:$0xe]
    %v4083 = vld [vmem:[%s3201 + $0xe4] sm:$0xe]
    %v4084 = vld [vmem:[%s3201 + $0xf0] sm:$0xe]
    %v4085 = vld [vmem:[%s3201 + $0xfc] sm:$0xe]
    %v4086 = vld [vmem:[%s3201 + $0x108] sm:$0xe]
    %v4087 = vld [vmem:[%s3201 + $0x114] sm:$0xe]
    %v4088 = vld [vmem:[%s3201 + $0x120] sm:$0xe]
    %v4089 = vld [vmem:[%s3201 + $0x12c] sm:$0xe]
    %v4090 = vld [vmem:[%s3201 + $0x138] sm:$0xe]
    %v4091 = vld [vmem:[%s3201 + $0x144] sm:$0xe]
    %v4092 = vld [vmem:[%s3201 + $0x150] sm:$0xe]
    %v4093 = vld [vmem:[%s3201 + $0x15c] sm:$0xe]
    %v4094 = vld [vmem:[%s3201 + $0x168] sm:$0xe]
    %v4095 = vld [vmem:[%s3201 + $0x174] sm:$0xe]
    %v4096 = vld [vmem:[%s3201 + $0x180] sm:$0xe]
    %v4097 = vld [vmem:[%s3201 + $0x18c] sm:$0xe]
    %v4194 = vrot.slane %v4066, 5
    %v4195 = vrot.slane %v4194, 4
    %v4196 = vrot.slane %v3203, 5
    %v4197 = vsel %vm2976, %v4195, %v4196
    %v4198 = vrot.slane %v4196, 4
    %v4199 = vrot.slane %v3266, 5
    %v4200 = vsel %vm2976, %v4198, %v4199
    %v4201 = vrot.slane %v4067, 5
    %v4202 = vrot.slane %v4201, 4
    %v4203 = vrot.slane %v3205, 5
    %v4204 = vsel %vm2976, %v4202, %v4203
    %v4205 = vrot.slane %v4203, 4
    %v4206 = vrot.slane %v3267, 5
    %v4207 = vsel %vm2976, %v4205, %v4206
    %v4208 = vrot.slane %v4068, 5
    %v4209 = vrot.slane %v4208, 4
    %v4210 = vrot.slane %v3207, 5
    %v4211 = vsel %vm2976, %v4209, %v4210
    %v4212 = vrot.slane %v4210, 4
    %v4213 = vrot.slane %v3268, 5
    %v4214 = vsel %vm2976, %v4212, %v4213
    %v4215 = vrot.slane %v4069, 5
    %v4216 = vrot.slane %v4215, 4
    %v4217 = vrot.slane %v3209, 5
    %v4218 = vsel %vm2976, %v4216, %v4217
    %v4219 = vrot.slane %v4217, 4
    %v4220 = vrot.slane %v3269, 5
    %v4221 = vsel %vm2976, %v4219, %v4220
    %v4222 = vrot.slane %v4070, 5
    %v4223 = vrot.slane %v4222, 4
    %v4224 = vrot.slane %v3211, 5
    %v4225 = vsel %vm2976, %v4223, %v4224
    %v4226 = vrot.slane %v4224, 4
    %v4227 = vrot.slane %v3270, 5
    %v4228 = vsel %vm2976, %v4226, %v4227
    %v4229 = vrot.slane %v4071, 5
    %v4230 = vrot.slane %v4229, 4
    %v4231 = vrot.slane %v3213, 5
    %v4232 = vsel %vm2976, %v4230, %v4231
    %v4233 = vrot.slane %v4231, 4
    %v4234 = vrot.slane %v3271, 5
    %v4235 = vsel %vm2976, %v4233, %v4234
    %v4236 = vrot.slane %v4072, 5
    %v4237 = vrot.slane %v4236, 4
    %v4238 = vrot.slane %v3215, 5
    %v4239 = vsel %vm2976, %v4237, %v4238
    %v4240 = vrot.slane %v4238, 4
    %v4241 = vrot.slane %v3272, 5
    %v4242 = vsel %vm2976, %v4240, %v4241
    %v4243 = vrot.slane %v4073, 5
    %v4244 = vrot.slane %v4243, 4
    %v4245 = vrot.slane %v3217, 5
    %v4246 = vsel %vm2976, %v4244, %v4245
    %v4247 = vrot.slane %v4245, 4
    %v4248 = vrot.slane %v3273, 5
    %v4249 = vsel %vm2976, %v4247, %v4248
    %v4250 = vrot.slane %v4074, 5
    %v4251 = vrot.slane %v4250, 4
    %v4252 = vrot.slane %v3219, 5
    %v4253 = vsel %vm2976, %v4251, %v4252
    %v4254 = vrot.slane %v4252, 4
    %v4255 = vrot.slane %v3274, 5
    %v4256 = vsel %vm2976, %v4254, %v4255
    %v4257 = vrot.slane %v4075, 5
    %v4258 = vrot.slane %v4257, 4
    %v4259 = vrot.slane %v3221, 5
    %v4260 = vsel %vm2976, %v4258, %v4259
    %v4261 = vrot.slane %v4259, 4
    %v4262 = vrot.slane %v3275, 5
    %v4263 = vsel %vm2976, %v4261, %v4262
    %v4264 = vrot.slane %v4076, 5
    %v4265 = vrot.slane %v4264, 4
    %v4266 = vrot.slane %v3223, 5
    %v4267 = vsel %vm2976, %v4265, %v4266
    %v4268 = vrot.slane %v4266, 4
    %v4269 = vrot.slane %v3276, 5
    %v4270 = vsel %vm2976, %v4268, %v4269
    %v4271 = vrot.slane %v4077, 5
    %v4272 = vrot.slane %v4271, 4
    %v4273 = vrot.slane %v3225, 5
    %v4274 = vsel %vm2976, %v4272, %v4273
    %v4275 = vrot.slane %v4273, 4
    %v4276 = vrot.slane %v3277, 5
    %v4277 = vsel %vm2976, %v4275, %v4276
    %v4278 = vrot.slane %v4078, 5
    %v4279 = vrot.slane %v4278, 4
    %v4280 = vrot.slane %v3227, 5
    %v4281 = vsel %vm2976, %v4279, %v4280
    %v4282 = vrot.slane %v4280, 4
    %v4283 = vrot.slane %v3278, 5
    %v4284 = vsel %vm2976, %v4282, %v4283
    %v4285 = vrot.slane %v4079, 5
    %v4286 = vrot.slane %v4285, 4
    %v4287 = vrot.slane %v3229, 5
    %v4288 = vsel %vm2976, %v4286, %v4287
    %v4289 = vrot.slane %v4287, 4
    %v4290 = vrot.slane %v3279, 5
    %v4291 = vsel %vm2976, %v4289, %v4290
    %v4292 = vrot.slane %v4080, 5
    %v4293 = vrot.slane %v4292, 4
    %v4294 = vrot.slane %v3231, 5
    %v4295 = vsel %vm2976, %v4293, %v4294
    %v4296 = vrot.slane %v4294, 4
    %v4297 = vrot.slane %v3280, 5
    %v4298 = vsel %vm2976, %v4296, %v4297
    %v4299 = vrot.slane %v4081, 5
    %v4300 = vrot.slane %v4299, 4
    %v4301 = vrot.slane %v3233, 5
    %v4302 = vsel %vm2976, %v4300, %v4301
    %v4303 = vrot.slane %v4301, 4
    %v4304 = vrot.slane %v3281, 5
    %v4305 = vsel %vm2976, %v4303, %v4304
    %v4306 = vrot.slane %v4082, 5
    %v4307 = vrot.slane %v4306, 4
    %v4308 = vrot.slane %v3235, 5
    %v4309 = vsel %vm2976, %v4307, %v4308
    %v4310 = vrot.slane %v4308, 4
    %v4311 = vrot.slane %v3282, 5
    %v4312 = vsel %vm2976, %v4310, %v4311
    %v4313 = vrot.slane %v4083, 5
    %v4314 = vrot.slane %v4313, 4
    %v4315 = vrot.slane %v3237, 5
    %v4316 = vsel %vm2976, %v4314, %v4315
    %v4317 = vrot.slane %v4315, 4
    %v4318 = vrot.slane %v3283, 5
    %v4319 = vsel %vm2976, %v4317, %v4318
    %v4320 = vrot.slane %v4084, 5
    %v4321 = vrot.slane %v4320, 4
    %v4322 = vrot.slane %v3239, 5
    %v4323 = vsel %vm2976, %v4321, %v4322
    %v4324 = vrot.slane %v4322, 4
    %v4325 = vrot.slane %v3284, 5
    %v4326 = vsel %vm2976, %v4324, %v4325
    %v4327 = vrot.slane %v4085, 5
    %v4328 = vrot.slane %v4327, 4
    %v4329 = vrot.slane %v3241, 5
    %v4330 = vsel %vm2976, %v4328, %v4329
    %v4331 = vrot.slane %v4329, 4
    %v4332 = vrot.slane %v3285, 5
    %v4333 = vsel %vm2976, %v4331, %v4332
    %v4334 = vrot.slane %v4086, 5
    %v4335 = vrot.slane %v4334, 4
    %v4336 = vrot.slane %v3243, 5
    %v4337 = vsel %vm2976, %v4335, %v4336
    %v4338 = vrot.slane %v4336, 4
    %v4339 = vrot.slane %v3286, 5
    %v4340 = vsel %vm2976, %v4338, %v4339
    %v4341 = vrot.slane %v4087, 5
    %v4342 = vrot.slane %v4341, 4
    %v4343 = vrot.slane %v3245, 5
    %v4344 = vsel %vm2976, %v4342, %v4343
    %v4345 = vrot.slane %v4343, 4
    %v4346 = vrot.slane %v3287, 5
    %v4347 = vsel %vm2976, %v4345, %v4346
    %v4348 = vrot.slane %v4088, 5
    %v4349 = vrot.slane %v4348, 4
    %v4350 = vrot.slane %v3247, 5
    %v4351 = vsel %vm2976, %v4349, %v4350
    %v4352 = vrot.slane %v4350, 4
    %v4353 = vrot.slane %v3288, 5
    %v4354 = vsel %vm2976, %v4352, %v4353
    %v4355 = vrot.slane %v4089, 5
    %v4356 = vrot.slane %v4355, 4
    %v4357 = vrot.slane %v3249, 5
    %v4358 = vsel %vm2976, %v4356, %v4357
    %v4359 = vrot.slane %v4357, 4
    %v4360 = vrot.slane %v3289, 5
    %v4361 = vsel %vm2976, %v4359, %v4360
    %v4362 = vrot.slane %v4090, 5
    %v4363 = vrot.slane %v4362, 4
    %v4364 = vrot.slane %v3251, 5
    %v4365 = vsel %vm2976, %v4363, %v4364
    %v4366 = vrot.slane %v4364, 4
    %v4367 = vrot.slane %v3290, 5
    %v4368 = vsel %vm2976, %v4366, %v4367
    %v4369 = vrot.slane %v4091, 5
    %v4370 = vrot.slane %v4369, 4
    %v4371 = vrot.slane %v3253, 5
    %v4372 = vsel %vm2976, %v4370, %v4371
    %v4373 = vrot.slane %v4371, 4
    %v4374 = vrot.slane %v3291, 5
    %v4375 = vsel %vm2976, %v4373, %v4374
    %v4376 = vrot.slane %v4092, 5
    %v4377 = vrot.slane %v4376, 4
    %v4378 = vrot.slane %v3255, 5
    %v4379 = vsel %vm2976, %v4377, %v4378
    %v4380 = vrot.slane %v4378, 4
    %v4381 = vrot.slane %v3292, 5
    %v4382 = vsel %vm2976, %v4380, %v4381
    %v4383 = vrot.slane %v4093, 5
    %v4384 = vrot.slane %v4383, 4
    %v4385 = vrot.slane %v3257, 5
    %v4386 = vsel %vm2976, %v4384, %v4385
    %v4387 = vrot.slane %v4385, 4
    %v4388 = vrot.slane %v3293, 5
    %v4389 = vsel %vm2976, %v4387, %v4388
    %v4390 = vrot.slane %v4094, 5
    %v4391 = vrot.slane %v4390, 4
    %v4392 = vrot.slane %v3259, 5
    %v4393 = vsel %vm2976, %v4391, %v4392
    %v4394 = vrot.slane %v4392, 4
    %v4395 = vrot.slane %v3294, 5
    %v4396 = vsel %vm2976, %v4394, %v4395
    %v4397 = vrot.slane %v4095, 5
    %v4398 = vrot.slane %v4397, 4
    %v4399 = vrot.slane %v3261, 5
    %v4400 = vsel %vm2976, %v4398, %v4399
    %v4401 = vrot.slane %v4399, 4
    %v4402 = vrot.slane %v3295, 5
    %v4403 = vsel %vm2976, %v4401, %v4402
    %v4404 = vrot.slane %v4096, 5
    %v4405 = vrot.slane %v4404, 4
    %v4406 = vrot.slane %v3263, 5
    %v4407 = vsel %vm2976, %v4405, %v4406
    %v4408 = vrot.slane %v4406, 4
    %v4409 = vrot.slane %v3296, 5
    %v4410 = vsel %vm2976, %v4408, %v4409
    %v4411 = vrot.slane %v4097, 5
    %v4412 = vrot.slane %v4411, 4
    %v4413 = vrot.slane %v3265, 5
    %v4414 = vsel %vm2976, %v4412, %v4413
    %v4415 = vrot.slane %v4413, 4
    %v4416 = vrot.slane %v3297, 5
    %v4417 = vsel %vm2976, %v4415, %v4416
    %s4418 = scalar_lea.vmem [#allocation2], 24
    %v4419 = vld [vmem:[%s4418] sm:$0xf]
    %v4420 = vld [vmem:[%s4418 + $0x4] sm:$0xf]
    %v4421 = vld [vmem:[%s4418 + $0xc] sm:$0xf]
    %v4422 = vld [vmem:[%s4418 + $0x10] sm:$0xf]
    %v4423 = vld [vmem:[%s4418 + $0x18] sm:$0xf]
    %v4424 = vld [vmem:[%s4418 + $0x1c] sm:$0xf]
    %v4425 = vld [vmem:[%s4418 + $0x24] sm:$0xf]
    %v4426 = vld [vmem:[%s4418 + $0x28] sm:$0xf]
    %v4427 = vld [vmem:[%s4418 + $0x30] sm:$0xf]
    %v4428 = vld [vmem:[%s4418 + $0x34] sm:$0xf]
    %v4429 = vld [vmem:[%s4418 + $0x3c] sm:$0xf]
    %v4430 = vld [vmem:[%s4418 + $0x40] sm:$0xf]
    %v4431 = vld [vmem:[%s4418 + $0x48] sm:$0xf]
    %v4432 = vld [vmem:[%s4418 + $0x4c] sm:$0xf]
    %v4433 = vld [vmem:[%s4418 + $0x54] sm:$0xf]
    %v4434 = vld [vmem:[%s4418 + $0x58] sm:$0xf]
    %v4435 = vld [vmem:[%s4418 + $0x60] sm:$0xf]
    %v4436 = vld [vmem:[%s4418 + $0x64] sm:$0xf]
    %v4437 = vld [vmem:[%s4418 + $0x6c] sm:$0xf]
    %v4438 = vld [vmem:[%s4418 + $0x70] sm:$0xf]
    %v4439 = vld [vmem:[%s4418 + $0x78] sm:$0xf]
    %v4440 = vld [vmem:[%s4418 + $0x7c] sm:$0xf]
    %v4441 = vld [vmem:[%s4418 + $0x84] sm:$0xf]
    %v4442 = vld [vmem:[%s4418 + $0x88] sm:$0xf]
    %v4443 = vld [vmem:[%s4418 + $0x90] sm:$0xf]
    %v4444 = vld [vmem:[%s4418 + $0x94] sm:$0xf]
    %v4445 = vld [vmem:[%s4418 + $0x9c] sm:$0xf]
    %v4446 = vld [vmem:[%s4418 + $0xa0] sm:$0xf]
    %v4447 = vld [vmem:[%s4418 + $0xa8] sm:$0xf]
    %v4448 = vld [vmem:[%s4418 + $0xac] sm:$0xf]
    %v4449 = vld [vmem:[%s4418 + $0xb4] sm:$0xf]
    %v4450 = vld [vmem:[%s4418 + $0xb8] sm:$0xf]
    %v4451 = vld [vmem:[%s4418 + $0xd8] sm:$0xf]
    %v4452 = vld [vmem:[%s4418 + $0xdc] sm:$0xf]
    %v4453 = vld [vmem:[%s4418 + $0xe4] sm:$0xf]
    %v4454 = vld [vmem:[%s4418 + $0xe8] sm:$0xf]
    %v4455 = vld [vmem:[%s4418 + $0xf0] sm:$0xf]
    %v4456 = vld [vmem:[%s4418 + $0xf4] sm:$0xf]
    %v4457 = vld [vmem:[%s4418 + $0xfc] sm:$0xf]
    %v4458 = vld [vmem:[%s4418 + $0x100] sm:$0xf]
    %v4459 = vld [vmem:[%s4418 + $0x108] sm:$0xf]
    %v4460 = vld [vmem:[%s4418 + $0x10c] sm:$0xf]
    %v4461 = vld [vmem:[%s4418 + $0x114] sm:$0xf]
    %v4462 = vld [vmem:[%s4418 + $0x118] sm:$0xf]
    %v4463 = vld [vmem:[%s4418 + $0x120] sm:$0xf]
    %v4464 = vld [vmem:[%s4418 + $0x124] sm:$0xf]
    %v4465 = vld [vmem:[%s4418 + $0x12c] sm:$0xf]
    %v4466 = vld [vmem:[%s4418 + $0x130] sm:$0xf]
    %v4467 = vld [vmem:[%s4418 + $0x138] sm:$0xf]
    %v4468 = vld [vmem:[%s4418 + $0x13c] sm:$0xf]
    %v4469 = vld [vmem:[%s4418 + $0x144] sm:$0xf]
    %v4470 = vld [vmem:[%s4418 + $0x148] sm:$0xf]
    %v4471 = vld [vmem:[%s4418 + $0x150] sm:$0xf]
    %v4472 = vld [vmem:[%s4418 + $0x154] sm:$0xf]
    %v4473 = vld [vmem:[%s4418 + $0x15c] sm:$0xf]
    %v4474 = vld [vmem:[%s4418 + $0x160] sm:$0xf]
    %v4475 = vld [vmem:[%s4418 + $0x168] sm:$0xf]
    %v4476 = vld [vmem:[%s4418 + $0x16c] sm:$0xf]
    %v4477 = vld [vmem:[%s4418 + $0x174] sm:$0xf]
    %v4478 = vld [vmem:[%s4418 + $0x178] sm:$0xf]
    %v4479 = vld [vmem:[%s4418 + $0x180] sm:$0xf]
    %v4480 = vld [vmem:[%s4418 + $0x184] sm:$0xf]
    %v4481 = vld [vmem:[%s4418 + $0x18c] sm:$0xf]
    %v4482 = vld [vmem:[%s4418 + $0x190] sm:$0xf]
    %v4483 = vld [vmem:[%s4418 + $0x8] sm:$0x1]
    %v4484 = vld [vmem:[%s4418 + $0x14] sm:$0x1]
    %v4485 = vld [vmem:[%s4418 + $0x20] sm:$0x1]
    %v4486 = vld [vmem:[%s4418 + $0x2c] sm:$0x1]
    %v4487 = vld [vmem:[%s4418 + $0x38] sm:$0x1]
    %v4488 = vld [vmem:[%s4418 + $0x44] sm:$0x1]
    %v4489 = vld [vmem:[%s4418 + $0x50] sm:$0x1]
    %v4490 = vld [vmem:[%s4418 + $0x5c] sm:$0x1]
    %v4491 = vld [vmem:[%s4418 + $0x68] sm:$0x1]
    %v4492 = vld [vmem:[%s4418 + $0x74] sm:$0x1]
    %v4493 = vld [vmem:[%s4418 + $0x80] sm:$0x1]
    %v4494 = vld [vmem:[%s4418 + $0x8c] sm:$0x1]
    %v4495 = vld [vmem:[%s4418 + $0x98] sm:$0x1]
    %v4496 = vld [vmem:[%s4418 + $0xa4] sm:$0x1]
    %v4497 = vld [vmem:[%s4418 + $0xb0] sm:$0x1]
    %v4498 = vld [vmem:[%s4418 + $0xbc] sm:$0x1]
    %v4499 = vld [vmem:[%s4418 + $0xe0] sm:$0x1]
    %v4500 = vld [vmem:[%s4418 + $0xec] sm:$0x1]
    %v4501 = vld [vmem:[%s4418 + $0xf8] sm:$0x1]
    %v4502 = vld [vmem:[%s4418 + $0x104] sm:$0x1]
    %v4503 = vld [vmem:[%s4418 + $0x110] sm:$0x1]
    %v4504 = vld [vmem:[%s4418 + $0x11c] sm:$0x1]
    %v4505 = vld [vmem:[%s4418 + $0x128] sm:$0x1]
    %v4506 = vld [vmem:[%s4418 + $0x134] sm:$0x1]
    %v4507 = vld [vmem:[%s4418 + $0x140] sm:$0x1]
    %v4508 = vld [vmem:[%s4418 + $0x14c] sm:$0x1]
    %v4509 = vld [vmem:[%s4418 + $0x158] sm:$0x1]
    %v4510 = vld [vmem:[%s4418 + $0x164] sm:$0x1]
    %v4511 = vld [vmem:[%s4418 + $0x170] sm:$0x1]
    %v4512 = vld [vmem:[%s4418 + $0x17c] sm:$0x1]
    %v4513 = vld [vmem:[%s4418 + $0x188] sm:$0x1]
    %v4514 = vld [vmem:[%s4418 + $0x194] sm:$0x1]
    %v4516 = vshrl.u32 %v4419, 16
    %v4518 = vrot.slane %v4516, 4
    %v4519 = vshll.u32 %v4419, 16
    %v4521 = vrot.slane %v4519, 5
    %v4522 = vor.u32 %v4518, %v4521
    %v4523 = vrot.slane %v4522, 4
    %v4525 = vshll.u32 %v4420, 16
    %v4527 = vrot.slane %v4525, 5
    %v4528 = vsel %vm2077, %v4523, %v4527
    %v4529 = vshrl.u32 %v4420, 16
    %v4531 = vrot.slane %v4529, 4
    %v4532 = vor.u32 %v4531, %v4527
    %v4533 = vrot.slane %v4532, 4
    %v4535 = vshll.u32 %v4483, 16
    %v4537 = vrot.slane %v4535, 5
    %v4538 = vsel %vm2077, %v4533, %v4537
    %v4540 = vshrl.u32 %v4421, 16
    %v4542 = vrot.slane %v4540, 4
    %v4543 = vshll.u32 %v4421, 16
    %v4545 = vrot.slane %v4543, 5
    %v4546 = vor.u32 %v4542, %v4545
    %v4547 = vrot.slane %v4546, 4
    %v4549 = vshll.u32 %v4422, 16
    %v4551 = vrot.slane %v4549, 5
    %v4552 = vsel %vm2077, %v4547, %v4551
    %v4553 = vshrl.u32 %v4422, 16
    %v4555 = vrot.slane %v4553, 4
    %v4556 = vor.u32 %v4555, %v4551
    %v4557 = vrot.slane %v4556, 4
    %v4559 = vshll.u32 %v4484, 16
    %v4561 = vrot.slane %v4559, 5
    %v4562 = vsel %vm2077, %v4557, %v4561
    %v4564 = vshrl.u32 %v4423, 16
    %v4566 = vrot.slane %v4564, 4
    %v4567 = vshll.u32 %v4423, 16
    %v4569 = vrot.slane %v4567, 5
    %v4570 = vor.u32 %v4566, %v4569
    %v4571 = vrot.slane %v4570, 4
    %v4573 = vshll.u32 %v4424, 16
    %v4575 = vrot.slane %v4573, 5
    %v4576 = vsel %vm2077, %v4571, %v4575
    %v4577 = vshrl.u32 %v4424, 16
    %v4579 = vrot.slane %v4577, 4
    %v4580 = vor.u32 %v4579, %v4575
    %v4581 = vrot.slane %v4580, 4
    %v4583 = vshll.u32 %v4485, 16
    %v4585 = vrot.slane %v4583, 5
    %v4586 = vsel %vm2077, %v4581, %v4585
    %v4588 = vshrl.u32 %v4425, 16
    %v4590 = vrot.slane %v4588, 4
    %v4591 = vshll.u32 %v4425, 16
    %v4593 = vrot.slane %v4591, 5
    %v4594 = vor.u32 %v4590, %v4593
    %v4595 = vrot.slane %v4594, 4
    %v4597 = vshll.u32 %v4426, 16
    %v4599 = vrot.slane %v4597, 5
    %v4600 = vsel %vm2077, %v4595, %v4599
    %v4601 = vshrl.u32 %v4426, 16
    %v4603 = vrot.slane %v4601, 4
    %v4604 = vor.u32 %v4603, %v4599
    %v4605 = vrot.slane %v4604, 4
    %v4607 = vshll.u32 %v4486, 16
    %v4609 = vrot.slane %v4607, 5
    %v4610 = vsel %vm2077, %v4605, %v4609
    %v4612 = vshrl.u32 %v4427, 16
    %v4614 = vrot.slane %v4612, 4
    %v4615 = vshll.u32 %v4427, 16
    %v4617 = vrot.slane %v4615, 5
    %v4618 = vor.u32 %v4614, %v4617
    %v4619 = vrot.slane %v4618, 4
    %v4621 = vshll.u32 %v4428, 16
    %v4623 = vrot.slane %v4621, 5
    %v4624 = vsel %vm2077, %v4619, %v4623
    %v4625 = vshrl.u32 %v4428, 16
    %v4627 = vrot.slane %v4625, 4
    %v4628 = vor.u32 %v4627, %v4623
    %v4629 = vrot.slane %v4628, 4
    %v4631 = vshll.u32 %v4487, 16
    %v4633 = vrot.slane %v4631, 5
    %v4634 = vsel %vm2077, %v4629, %v4633
    %v4636 = vshrl.u32 %v4429, 16
    %v4638 = vrot.slane %v4636, 4
    %v4639 = vshll.u32 %v4429, 16
    %v4641 = vrot.slane %v4639, 5
    %v4642 = vor.u32 %v4638, %v4641
    %v4643 = vrot.slane %v4642, 4
    %v4645 = vshll.u32 %v4430, 16
    %v4647 = vrot.slane %v4645, 5
    %v4648 = vsel %vm2077, %v4643, %v4647
    %v4649 = vshrl.u32 %v4430, 16
    %v4651 = vrot.slane %v4649, 4
    %v4652 = vor.u32 %v4651, %v4647
    %v4653 = vrot.slane %v4652, 4
    %v4655 = vshll.u32 %v4488, 16
    %v4657 = vrot.slane %v4655, 5
    %v4658 = vsel %vm2077, %v4653, %v4657
    %v4660 = vshrl.u32 %v4431, 16
    %v4662 = vrot.slane %v4660, 4
    %v4663 = vshll.u32 %v4431, 16
    %v4665 = vrot.slane %v4663, 5
    %v4666 = vor.u32 %v4662, %v4665
    %v4667 = vrot.slane %v4666, 4
    %v4669 = vshll.u32 %v4432, 16
    %v4671 = vrot.slane %v4669, 5
    %v4672 = vsel %vm2077, %v4667, %v4671
    %v4673 = vshrl.u32 %v4432, 16
    %v4675 = vrot.slane %v4673, 4
    %v4676 = vor.u32 %v4675, %v4671
    %v4677 = vrot.slane %v4676, 4
    %v4679 = vshll.u32 %v4489, 16
    %v4681 = vrot.slane %v4679, 5
    %v4682 = vsel %vm2077, %v4677, %v4681
    %v4684 = vshrl.u32 %v4433, 16
    %v4686 = vrot.slane %v4684, 4
    %v4687 = vshll.u32 %v4433, 16
    %v4689 = vrot.slane %v4687, 5
    %v4690 = vor.u32 %v4686, %v4689
    %v4691 = vrot.slane %v4690, 4
    %v4693 = vshll.u32 %v4434, 16
    %v4695 = vrot.slane %v4693, 5
    %v4696 = vsel %vm2077, %v4691, %v4695
    %v4697 = vshrl.u32 %v4434, 16
    %v4699 = vrot.slane %v4697, 4
    %v4700 = vor.u32 %v4699, %v4695
    %v4701 = vrot.slane %v4700, 4
    %v4703 = vshll.u32 %v4490, 16
    %v4705 = vrot.slane %v4703, 5
    %v4706 = vsel %vm2077, %v4701, %v4705
    %v4708 = vshrl.u32 %v4435, 16
    %v4710 = vrot.slane %v4708, 4
    %v4711 = vshll.u32 %v4435, 16
    %v4713 = vrot.slane %v4711, 5
    %v4714 = vor.u32 %v4710, %v4713
    %v4715 = vrot.slane %v4714, 4
    %v4717 = vshll.u32 %v4436, 16
    %v4719 = vrot.slane %v4717, 5
    %v4720 = vsel %vm2077, %v4715, %v4719
    %v4721 = vshrl.u32 %v4436, 16
    %v4723 = vrot.slane %v4721, 4
    %v4724 = vor.u32 %v4723, %v4719
    %v4725 = vrot.slane %v4724, 4
    %v4727 = vshll.u32 %v4491, 16
    %v4729 = vrot.slane %v4727, 5
    %v4730 = vsel %vm2077, %v4725, %v4729
    %v4732 = vshrl.u32 %v4437, 16
    %v4734 = vrot.slane %v4732, 4
    %v4735 = vshll.u32 %v4437, 16
    %v4737 = vrot.slane %v4735, 5
    %v4738 = vor.u32 %v4734, %v4737
    %v4739 = vrot.slane %v4738, 4
    %v4741 = vshll.u32 %v4438, 16
    %v4743 = vrot.slane %v4741, 5
    %v4744 = vsel %vm2077, %v4739, %v4743
    %v4745 = vshrl.u32 %v4438, 16
    %v4747 = vrot.slane %v4745, 4
    %v4748 = vor.u32 %v4747, %v4743
    %v4749 = vrot.slane %v4748, 4
    %v4751 = vshll.u32 %v4492, 16
    %v4753 = vrot.slane %v4751, 5
    %v4754 = vsel %vm2077, %v4749, %v4753
    %v4756 = vshrl.u32 %v4439, 16
    %v4758 = vrot.slane %v4756, 4
    %v4759 = vshll.u32 %v4439, 16
    %v4761 = vrot.slane %v4759, 5
    %v4762 = vor.u32 %v4758, %v4761
    %v4763 = vrot.slane %v4762, 4
    %v4765 = vshll.u32 %v4440, 16
    %v4767 = vrot.slane %v4765, 5
    %v4768 = vsel %vm2077, %v4763, %v4767
    %v4769 = vshrl.u32 %v4440, 16
    %v4771 = vrot.slane %v4769, 4
    %v4772 = vor.u32 %v4771, %v4767
    %v4773 = vrot.slane %v4772, 4
    %v4775 = vshll.u32 %v4493, 16
    %v4777 = vrot.slane %v4775, 5
    %v4778 = vsel %vm2077, %v4773, %v4777
    %v4780 = vshrl.u32 %v4441, 16
    %v4782 = vrot.slane %v4780, 4
    %v4783 = vshll.u32 %v4441, 16
    %v4785 = vrot.slane %v4783, 5
    %v4786 = vor.u32 %v4782, %v4785
    %v4787 = vrot.slane %v4786, 4
    %v4789 = vshll.u32 %v4442, 16
    %v4791 = vrot.slane %v4789, 5
    %v4792 = vsel %vm2077, %v4787, %v4791
    %v4793 = vshrl.u32 %v4442, 16
    %v4795 = vrot.slane %v4793, 4
    %v4796 = vor.u32 %v4795, %v4791
    %v4797 = vrot.slane %v4796, 4
    %v4799 = vshll.u32 %v4494, 16
    %v4801 = vrot.slane %v4799, 5
    %v4802 = vsel %vm2077, %v4797, %v4801
    %v4804 = vshrl.u32 %v4443, 16
    %v4806 = vrot.slane %v4804, 4
    %v4807 = vshll.u32 %v4443, 16
    %v4809 = vrot.slane %v4807, 5
    %v4810 = vor.u32 %v4806, %v4809
    %v4811 = vrot.slane %v4810, 4
    %v4813 = vshll.u32 %v4444, 16
    %v4815 = vrot.slane %v4813, 5
    %v4816 = vsel %vm2077, %v4811, %v4815
    %v4817 = vshrl.u32 %v4444, 16
    %v4819 = vrot.slane %v4817, 4
    %v4820 = vor.u32 %v4819, %v4815
    %v4821 = vrot.slane %v4820, 4
    %v4823 = vshll.u32 %v4495, 16
    %v4825 = vrot.slane %v4823, 5
    %v4826 = vsel %vm2077, %v4821, %v4825
    %v4828 = vshrl.u32 %v4445, 16
    %v4830 = vrot.slane %v4828, 4
    %v4831 = vshll.u32 %v4445, 16
    %v4833 = vrot.slane %v4831, 5
    %v4834 = vor.u32 %v4830, %v4833
    %v4835 = vrot.slane %v4834, 4
    %v4837 = vshll.u32 %v4446, 16
    %v4839 = vrot.slane %v4837, 5
    %v4840 = vsel %vm2077, %v4835, %v4839
    %v4841 = vshrl.u32 %v4446, 16
    %v4843 = vrot.slane %v4841, 4
    %v4844 = vor.u32 %v4843, %v4839
    %v4845 = vrot.slane %v4844, 4
    %v4847 = vshll.u32 %v4496, 16
    %v4849 = vrot.slane %v4847, 5
    %v4850 = vsel %vm2077, %v4845, %v4849
    %v4852 = vshrl.u32 %v4447, 16
    %v4854 = vrot.slane %v4852, 4
    %v4855 = vshll.u32 %v4447, 16
    %v4857 = vrot.slane %v4855, 5
    %v4858 = vor.u32 %v4854, %v4857
    %v4859 = vrot.slane %v4858, 4
    %v4861 = vshll.u32 %v4448, 16
    %v4863 = vrot.slane %v4861, 5
    %v4864 = vsel %vm2077, %v4859, %v4863
    %v4865 = vshrl.u32 %v4448, 16
    %v4867 = vrot.slane %v4865, 4
    %v4868 = vor.u32 %v4867, %v4863
    %v4869 = vrot.slane %v4868, 4
    %v4871 = vshll.u32 %v4497, 16
    %v4873 = vrot.slane %v4871, 5
    %v4874 = vsel %vm2077, %v4869, %v4873
    %v4876 = vshrl.u32 %v4449, 16
    %v4878 = vrot.slane %v4876, 4
    %v4879 = vshll.u32 %v4449, 16
    %v4881 = vrot.slane %v4879, 5
    %v4882 = vor.u32 %v4878, %v4881
    %v4883 = vrot.slane %v4882, 4
    %v4885 = vshll.u32 %v4450, 16
    %v4887 = vrot.slane %v4885, 5
    %v4888 = vsel %vm2077, %v4883, %v4887
    %v4889 = vshrl.u32 %v4450, 16
    %v4891 = vrot.slane %v4889, 4
    %v4892 = vor.u32 %v4891, %v4887
    %v4893 = vrot.slane %v4892, 4
    %v4895 = vshll.u32 %v4498, 16
    %v4897 = vrot.slane %v4895, 5
    %v4898 = vsel %vm2077, %v4893, %v4897
    %v4900 = vshrl.u32 %v4451, 16
    %v4902 = vrot.slane %v4900, 4
    %v4903 = vshll.u32 %v4451, 16
    %v4905 = vrot.slane %v4903, 5
    %v4906 = vor.u32 %v4902, %v4905
    %v4907 = vrot.slane %v4906, 4
    %v4909 = vshll.u32 %v4452, 16
    %v4911 = vrot.slane %v4909, 5
    %v4912 = vsel %vm2077, %v4907, %v4911
    %v4913 = vshrl.u32 %v4452, 16
    %v4915 = vrot.slane %v4913, 4
    %v4916 = vor.u32 %v4915, %v4911
    %v4917 = vrot.slane %v4916, 4
    %v4919 = vshll.u32 %v4499, 16
    %v4921 = vrot.slane %v4919, 5
    %v4922 = vsel %vm2077, %v4917, %v4921
    %v4924 = vshrl.u32 %v4453, 16
    %v4926 = vrot.slane %v4924, 4
    %v4927 = vshll.u32 %v4453, 16
    %v4929 = vrot.slane %v4927, 5
    %v4930 = vor.u32 %v4926, %v4929
    %v4931 = vrot.slane %v4930, 4
    %v4933 = vshll.u32 %v4454, 16
    %v4935 = vrot.slane %v4933, 5
    %v4936 = vsel %vm2077, %v4931, %v4935
    %v4937 = vshrl.u32 %v4454, 16
    %v4939 = vrot.slane %v4937, 4
    %v4940 = vor.u32 %v4939, %v4935
    %v4941 = vrot.slane %v4940, 4
    %v4943 = vshll.u32 %v4500, 16
    %v4945 = vrot.slane %v4943, 5
    %v4946 = vsel %vm2077, %v4941, %v4945
    %v4948 = vshrl.u32 %v4455, 16
    %v4950 = vrot.slane %v4948, 4
    %v4951 = vshll.u32 %v4455, 16
    %v4953 = vrot.slane %v4951, 5
    %v4954 = vor.u32 %v4950, %v4953
    %v4955 = vrot.slane %v4954, 4
    %v4957 = vshll.u32 %v4456, 16
    %v4959 = vrot.slane %v4957, 5
    %v4960 = vsel %vm2077, %v4955, %v4959
    %v4961 = vshrl.u32 %v4456, 16
    %v4963 = vrot.slane %v4961, 4
    %v4964 = vor.u32 %v4963, %v4959
    %v4965 = vrot.slane %v4964, 4
    %v4967 = vshll.u32 %v4501, 16
    %v4969 = vrot.slane %v4967, 5
    %v4970 = vsel %vm2077, %v4965, %v4969
    %v4972 = vshrl.u32 %v4457, 16
    %v4974 = vrot.slane %v4972, 4
    %v4975 = vshll.u32 %v4457, 16
    %v4977 = vrot.slane %v4975, 5
    %v4978 = vor.u32 %v4974, %v4977
    %v4979 = vrot.slane %v4978, 4
    %v4981 = vshll.u32 %v4458, 16
    %v4983 = vrot.slane %v4981, 5
    %v4984 = vsel %vm2077, %v4979, %v4983
    %v4985 = vshrl.u32 %v4458, 16
    %v4987 = vrot.slane %v4985, 4
    %v4988 = vor.u32 %v4987, %v4983
    %v4989 = vrot.slane %v4988, 4
    %v4991 = vshll.u32 %v4502, 16
    %v4993 = vrot.slane %v4991, 5
    %v4994 = vsel %vm2077, %v4989, %v4993
    %v4996 = vshrl.u32 %v4459, 16
    %v4998 = vrot.slane %v4996, 4
    %v4999 = vshll.u32 %v4459, 16
    %v5001 = vrot.slane %v4999, 5
    %v5002 = vor.u32 %v4998, %v5001
    %v5003 = vrot.slane %v5002, 4
    %v5005 = vshll.u32 %v4460, 16
    %v5007 = vrot.slane %v5005, 5
    %v5008 = vsel %vm2077, %v5003, %v5007
    %v5009 = vshrl.u32 %v4460, 16
    %v5011 = vrot.slane %v5009, 4
    %v5012 = vor.u32 %v5011, %v5007
    %v5013 = vrot.slane %v5012, 4
    %v5015 = vshll.u32 %v4503, 16
    %v5017 = vrot.slane %v5015, 5
    %v5018 = vsel %vm2077, %v5013, %v5017
    %v5020 = vshrl.u32 %v4461, 16
    %v5022 = vrot.slane %v5020, 4
    %v5023 = vshll.u32 %v4461, 16
    %v5025 = vrot.slane %v5023, 5
    %v5026 = vor.u32 %v5022, %v5025
    %v5027 = vrot.slane %v5026, 4
    %v5029 = vshll.u32 %v4462, 16
    %v5031 = vrot.slane %v5029, 5
    %v5032 = vsel %vm2077, %v5027, %v5031
    %v5033 = vshrl.u32 %v4462, 16
    %v5035 = vrot.slane %v5033, 4
    %v5036 = vor.u32 %v5035, %v5031
    %v5037 = vrot.slane %v5036, 4
    %v5039 = vshll.u32 %v4504, 16
    %v5041 = vrot.slane %v5039, 5
    %v5042 = vsel %vm2077, %v5037, %v5041
    %v5044 = vshrl.u32 %v4463, 16
    %v5046 = vrot.slane %v5044, 4
    %v5047 = vshll.u32 %v4463, 16
    %v5049 = vrot.slane %v5047, 5
    %v5050 = vor.u32 %v5046, %v5049
    %v5051 = vrot.slane %v5050, 4
    %v5053 = vshll.u32 %v4464, 16
    %v5055 = vrot.slane %v5053, 5
    %v5056 = vsel %vm2077, %v5051, %v5055
    %v5057 = vshrl.u32 %v4464, 16
    %v5059 = vrot.slane %v5057, 4
    %v5060 = vor.u32 %v5059, %v5055
    %v5061 = vrot.slane %v5060, 4
    %v5063 = vshll.u32 %v4505, 16
    %v5065 = vrot.slane %v5063, 5
    %v5066 = vsel %vm2077, %v5061, %v5065
    %v5068 = vshrl.u32 %v4465, 16
    %v5070 = vrot.slane %v5068, 4
    %v5071 = vshll.u32 %v4465, 16
    %v5073 = vrot.slane %v5071, 5
    %v5074 = vor.u32 %v5070, %v5073
    %v5075 = vrot.slane %v5074, 4
    %v5077 = vshll.u32 %v4466, 16
    %v5079 = vrot.slane %v5077, 5
    %v5080 = vsel %vm2077, %v5075, %v5079
    %v5081 = vshrl.u32 %v4466, 16
    %v5083 = vrot.slane %v5081, 4
    %v5084 = vor.u32 %v5083, %v5079
    %v5085 = vrot.slane %v5084, 4
    %v5087 = vshll.u32 %v4506, 16
    %v5089 = vrot.slane %v5087, 5
    %v5090 = vsel %vm2077, %v5085, %v5089
    %v5092 = vshrl.u32 %v4467, 16
    %v5094 = vrot.slane %v5092, 4
    %v5095 = vshll.u32 %v4467, 16
    %v5097 = vrot.slane %v5095, 5
    %v5098 = vor.u32 %v5094, %v5097
    %v5099 = vrot.slane %v5098, 4
    %v5101 = vshll.u32 %v4468, 16
    %v5103 = vrot.slane %v5101, 5
    %v5104 = vsel %vm2077, %v5099, %v5103
    %v5105 = vshrl.u32 %v4468, 16
    %v5107 = vrot.slane %v5105, 4
    %v5108 = vor.u32 %v5107, %v5103
    %v5109 = vrot.slane %v5108, 4
    %v5111 = vshll.u32 %v4507, 16
    %v5113 = vrot.slane %v5111, 5
    %v5114 = vsel %vm2077, %v5109, %v5113
    %v5116 = vshrl.u32 %v4469, 16
    %v5118 = vrot.slane %v5116, 4
    %v5119 = vshll.u32 %v4469, 16
    %v5121 = vrot.slane %v5119, 5
    %v5122 = vor.u32 %v5118, %v5121
    %v5123 = vrot.slane %v5122, 4
    %v5125 = vshll.u32 %v4470, 16
    %v5127 = vrot.slane %v5125, 5
    %v5128 = vsel %vm2077, %v5123, %v5127
    %v5129 = vshrl.u32 %v4470, 16
    %v5131 = vrot.slane %v5129, 4
    %v5132 = vor.u32 %v5131, %v5127
    %v5133 = vrot.slane %v5132, 4
    %v5135 = vshll.u32 %v4508, 16
    %v5137 = vrot.slane %v5135, 5
    %v5138 = vsel %vm2077, %v5133, %v5137
    %v5140 = vshrl.u32 %v4471, 16
    %v5142 = vrot.slane %v5140, 4
    %v5143 = vshll.u32 %v4471, 16
    %v5145 = vrot.slane %v5143, 5
    %v5146 = vor.u32 %v5142, %v5145
    %v5147 = vrot.slane %v5146, 4
    %v5149 = vshll.u32 %v4472, 16
    %v5151 = vrot.slane %v5149, 5
    %v5152 = vsel %vm2077, %v5147, %v5151
    %v5153 = vshrl.u32 %v4472, 16
    %v5155 = vrot.slane %v5153, 4
    %v5156 = vor.u32 %v5155, %v5151
    %v5157 = vrot.slane %v5156, 4
    %v5159 = vshll.u32 %v4509, 16
    %v5161 = vrot.slane %v5159, 5
    %v5162 = vsel %vm2077, %v5157, %v5161
    %v5164 = vshrl.u32 %v4473, 16
    %v5166 = vrot.slane %v5164, 4
    %v5167 = vshll.u32 %v4473, 16
    %v5169 = vrot.slane %v5167, 5
    %v5170 = vor.u32 %v5166, %v5169
    %v5171 = vrot.slane %v5170, 4
    %v5173 = vshll.u32 %v4474, 16
    %v5175 = vrot.slane %v5173, 5
    %v5176 = vsel %vm2077, %v5171, %v5175
    %v5177 = vshrl.u32 %v4474, 16
    %v5179 = vrot.slane %v5177, 4
    %v5180 = vor.u32 %v5179, %v5175
    %v5181 = vrot.slane %v5180, 4
    %v5183 = vshll.u32 %v4510, 16
    %v5185 = vrot.slane %v5183, 5
    %v5186 = vsel %vm2077, %v5181, %v5185
    %v5188 = vshrl.u32 %v4475, 16
    %v5190 = vrot.slane %v5188, 4
    %v5191 = vshll.u32 %v4475, 16
    %v5193 = vrot.slane %v5191, 5
    %v5194 = vor.u32 %v5190, %v5193
    %v5195 = vrot.slane %v5194, 4
    %v5197 = vshll.u32 %v4476, 16
    %v5199 = vrot.slane %v5197, 5
    %v5200 = vsel %vm2077, %v5195, %v5199
    %v5201 = vshrl.u32 %v4476, 16
    %v5203 = vrot.slane %v5201, 4
    %v5204 = vor.u32 %v5203, %v5199
    %v5205 = vrot.slane %v5204, 4
    %v5207 = vshll.u32 %v4511, 16
    %v5209 = vrot.slane %v5207, 5
    %v5210 = vsel %vm2077, %v5205, %v5209
    %v5212 = vshrl.u32 %v4477, 16
    %v5214 = vrot.slane %v5212, 4
    %v5215 = vshll.u32 %v4477, 16
    %v5217 = vrot.slane %v5215, 5
    %v5218 = vor.u32 %v5214, %v5217
    %v5219 = vrot.slane %v5218, 4
    %v5221 = vshll.u32 %v4478, 16
    %v5223 = vrot.slane %v5221, 5
    %v5224 = vsel %vm2077, %v5219, %v5223
    %v5225 = vshrl.u32 %v4478, 16
    %v5227 = vrot.slane %v5225, 4
    %v5228 = vor.u32 %v5227, %v5223
    %v5229 = vrot.slane %v5228, 4
    %v5231 = vshll.u32 %v4512, 16
    %v5233 = vrot.slane %v5231, 5
    %v5234 = vsel %vm2077, %v5229, %v5233
    %v5236 = vshrl.u32 %v4479, 16
    %v5238 = vrot.slane %v5236, 4
    %v5239 = vshll.u32 %v4479, 16
    %v5241 = vrot.slane %v5239, 5
    %v5242 = vor.u32 %v5238, %v5241
    %v5243 = vrot.slane %v5242, 4
    %v5245 = vshll.u32 %v4480, 16
    %v5247 = vrot.slane %v5245, 5
    %v5248 = vsel %vm2077, %v5243, %v5247
    %v5249 = vshrl.u32 %v4480, 16
    %v5251 = vrot.slane %v5249, 4
    %v5252 = vor.u32 %v5251, %v5247
    %v5253 = vrot.slane %v5252, 4
    %v5255 = vshll.u32 %v4513, 16
    %v5257 = vrot.slane %v5255, 5
    %v5258 = vsel %vm2077, %v5253, %v5257
    %v5260 = vshrl.u32 %v4481, 16
    %v5262 = vrot.slane %v5260, 4
    %v5263 = vshll.u32 %v4481, 16
    %v5265 = vrot.slane %v5263, 5
    %v5266 = vor.u32 %v5262, %v5265
    %v5267 = vrot.slane %v5266, 4
    %v5269 = vshll.u32 %v4482, 16
    %v5271 = vrot.slane %v5269, 5
    %v5272 = vsel %vm2077, %v5267, %v5271
    %v5273 = vshrl.u32 %v4482, 16
    %v5275 = vrot.slane %v5273, 4
    %v5276 = vor.u32 %v5275, %v5271
    %v5277 = vrot.slane %v5276, 4
    %v5279 = vshll.u32 %v4514, 16
    %v5281 = vrot.slane %v5279, 5
    %v5282 = vsel %vm2077, %v5277, %v5281
    %v5283 = vld [vmem:[%s4418] sm:$0xe]
    %v5284 = vld [vmem:[%s4418 + $0xc] sm:$0xe]
    %v5285 = vld [vmem:[%s4418 + $0x18] sm:$0xe]
    %v5286 = vld [vmem:[%s4418 + $0x24] sm:$0xe]
    %v5287 = vld [vmem:[%s4418 + $0x30] sm:$0xe]
    %v5288 = vld [vmem:[%s4418 + $0x3c] sm:$0xe]
    %v5289 = vld [vmem:[%s4418 + $0x48] sm:$0xe]
    %v5290 = vld [vmem:[%s4418 + $0x54] sm:$0xe]
    %v5291 = vld [vmem:[%s4418 + $0x60] sm:$0xe]
    %v5292 = vld [vmem:[%s4418 + $0x6c] sm:$0xe]
    %v5293 = vld [vmem:[%s4418 + $0x78] sm:$0xe]
    %v5294 = vld [vmem:[%s4418 + $0x84] sm:$0xe]
    %v5295 = vld [vmem:[%s4418 + $0x90] sm:$0xe]
    %v5296 = vld [vmem:[%s4418 + $0x9c] sm:$0xe]
    %v5297 = vld [vmem:[%s4418 + $0xa8] sm:$0xe]
    %v5298 = vld [vmem:[%s4418 + $0xb4] sm:$0xe]
    %v5299 = vld [vmem:[%s4418 + $0xd8] sm:$0xe]
    %v5300 = vld [vmem:[%s4418 + $0xe4] sm:$0xe]
    %v5301 = vld [vmem:[%s4418 + $0xf0] sm:$0xe]
    %v5302 = vld [vmem:[%s4418 + $0xfc] sm:$0xe]
    %v5303 = vld [vmem:[%s4418 + $0x108] sm:$0xe]
    %v5304 = vld [vmem:[%s4418 + $0x114] sm:$0xe]
    %v5305 = vld [vmem:[%s4418 + $0x120] sm:$0xe]
    %v5306 = vld [vmem:[%s4418 + $0x12c] sm:$0xe]
    %v5307 = vld [vmem:[%s4418 + $0x138] sm:$0xe]
    %v5308 = vld [vmem:[%s4418 + $0x144] sm:$0xe]
    %v5309 = vld [vmem:[%s4418 + $0x150] sm:$0xe]
    %v5310 = vld [vmem:[%s4418 + $0x15c] sm:$0xe]
    %v5311 = vld [vmem:[%s4418 + $0x168] sm:$0xe]
    %v5312 = vld [vmem:[%s4418 + $0x174] sm:$0xe]
    %v5313 = vld [vmem:[%s4418 + $0x180] sm:$0xe]
    %v5314 = vld [vmem:[%s4418 + $0x18c] sm:$0xe]
    %v5411 = vrot.slane %v5283, 5
    %v5412 = vrot.slane %v5411, 4
    %v5413 = vrot.slane %v4420, 5
    %v5414 = vsel %vm2976, %v5412, %v5413
    %v5415 = vrot.slane %v5413, 4
    %v5416 = vrot.slane %v4483, 5
    %v5417 = vsel %vm2976, %v5415, %v5416
    %v5418 = vrot.slane %v5284, 5
    %v5419 = vrot.slane %v5418, 4
    %v5420 = vrot.slane %v4422, 5
    %v5421 = vsel %vm2976, %v5419, %v5420
    %v5422 = vrot.slane %v5420, 4
    %v5423 = vrot.slane %v4484, 5
    %v5424 = vsel %vm2976, %v5422, %v5423
    %v5425 = vrot.slane %v5285, 5
    %v5426 = vrot.slane %v5425, 4
    %v5427 = vrot.slane %v4424, 5
    %v5428 = vsel %vm2976, %v5426, %v5427
    %v5429 = vrot.slane %v5427, 4
    %v5430 = vrot.slane %v4485, 5
    %v5431 = vsel %vm2976, %v5429, %v5430
    %v5432 = vrot.slane %v5286, 5
    %v5433 = vrot.slane %v5432, 4
    %v5434 = vrot.slane %v4426, 5
    %v5435 = vsel %vm2976, %v5433, %v5434
    %v5436 = vrot.slane %v5434, 4
    %v5437 = vrot.slane %v4486, 5
    %v5438 = vsel %vm2976, %v5436, %v5437
    %v5439 = vrot.slane %v5287, 5
    %v5440 = vrot.slane %v5439, 4
    %v5441 = vrot.slane %v4428, 5
    %v5442 = vsel %vm2976, %v5440, %v5441
    %v5443 = vrot.slane %v5441, 4
    %v5444 = vrot.slane %v4487, 5
    %v5445 = vsel %vm2976, %v5443, %v5444
    %v5446 = vrot.slane %v5288, 5
    %v5447 = vrot.slane %v5446, 4
    %v5448 = vrot.slane %v4430, 5
    %v5449 = vsel %vm2976, %v5447, %v5448
    %v5450 = vrot.slane %v5448, 4
    %v5451 = vrot.slane %v4488, 5
    %v5452 = vsel %vm2976, %v5450, %v5451
    %v5453 = vrot.slane %v5289, 5
    %v5454 = vrot.slane %v5453, 4
    %v5455 = vrot.slane %v4432, 5
    %v5456 = vsel %vm2976, %v5454, %v5455
    %v5457 = vrot.slane %v5455, 4
    %v5458 = vrot.slane %v4489, 5
    %v5459 = vsel %vm2976, %v5457, %v5458
    %v5460 = vrot.slane %v5290, 5
    %v5461 = vrot.slane %v5460, 4
    %v5462 = vrot.slane %v4434, 5
    %v5463 = vsel %vm2976, %v5461, %v5462
    %v5464 = vrot.slane %v5462, 4
    %v5465 = vrot.slane %v4490, 5
    %v5466 = vsel %vm2976, %v5464, %v5465
    %v5467 = vrot.slane %v5291, 5
    %v5468 = vrot.slane %v5467, 4
    %v5469 = vrot.slane %v4436, 5
    %v5470 = vsel %vm2976, %v5468, %v5469
    %v5471 = vrot.slane %v5469, 4
    %v5472 = vrot.slane %v4491, 5
    %v5473 = vsel %vm2976, %v5471, %v5472
    %v5474 = vrot.slane %v5292, 5
    %v5475 = vrot.slane %v5474, 4
    %v5476 = vrot.slane %v4438, 5
    %v5477 = vsel %vm2976, %v5475, %v5476
    %v5478 = vrot.slane %v5476, 4
    %v5479 = vrot.slane %v4492, 5
    %v5480 = vsel %vm2976, %v5478, %v5479
    %v5481 = vrot.slane %v5293, 5
    %v5482 = vrot.slane %v5481, 4
    %v5483 = vrot.slane %v4440, 5
    %v5484 = vsel %vm2976, %v5482, %v5483
    %v5485 = vrot.slane %v5483, 4
    %v5486 = vrot.slane %v4493, 5
    %v5487 = vsel %vm2976, %v5485, %v5486
    %v5488 = vrot.slane %v5294, 5
    %v5489 = vrot.slane %v5488, 4
    %v5490 = vrot.slane %v4442, 5
    %v5491 = vsel %vm2976, %v5489, %v5490
    %v5492 = vrot.slane %v5490, 4
    %v5493 = vrot.slane %v4494, 5
    %v5494 = vsel %vm2976, %v5492, %v5493
    %v5495 = vrot.slane %v5295, 5
    %v5496 = vrot.slane %v5495, 4
    %v5497 = vrot.slane %v4444, 5
    %v5498 = vsel %vm2976, %v5496, %v5497
    %v5499 = vrot.slane %v5497, 4
    %v5500 = vrot.slane %v4495, 5
    %v5501 = vsel %vm2976, %v5499, %v5500
    %v5502 = vrot.slane %v5296, 5
    %v5503 = vrot.slane %v5502, 4
    %v5504 = vrot.slane %v4446, 5
    %v5505 = vsel %vm2976, %v5503, %v5504
    %v5506 = vrot.slane %v5504, 4
    %v5507 = vrot.slane %v4496, 5
    %v5508 = vsel %vm2976, %v5506, %v5507
    %v5509 = vrot.slane %v5297, 5
    %v5510 = vrot.slane %v5509, 4
    %v5511 = vrot.slane %v4448, 5
    %v5512 = vsel %vm2976, %v5510, %v5511
    %v5513 = vrot.slane %v5511, 4
    %v5514 = vrot.slane %v4497, 5
    %v5515 = vsel %vm2976, %v5513, %v5514
    %v5516 = vrot.slane %v5298, 5
    %v5517 = vrot.slane %v5516, 4
    %v5518 = vrot.slane %v4450, 5
    %v5519 = vsel %vm2976, %v5517, %v5518
    %v5520 = vrot.slane %v5518, 4
    %v5521 = vrot.slane %v4498, 5
    %v5522 = vsel %vm2976, %v5520, %v5521
    %v5523 = vrot.slane %v5299, 5
    %v5524 = vrot.slane %v5523, 4
    %v5525 = vrot.slane %v4452, 5
    %v5526 = vsel %vm2976, %v5524, %v5525
    %v5527 = vrot.slane %v5525, 4
    %v5528 = vrot.slane %v4499, 5
    %v5529 = vsel %vm2976, %v5527, %v5528
    %v5530 = vrot.slane %v5300, 5
    %v5531 = vrot.slane %v5530, 4
    %v5532 = vrot.slane %v4454, 5
    %v5533 = vsel %vm2976, %v5531, %v5532
    %v5534 = vrot.slane %v5532, 4
    %v5535 = vrot.slane %v4500, 5
    %v5536 = vsel %vm2976, %v5534, %v5535
    %v5537 = vrot.slane %v5301, 5
    %v5538 = vrot.slane %v5537, 4
    %v5539 = vrot.slane %v4456, 5
    %v5540 = vsel %vm2976, %v5538, %v5539
    %v5541 = vrot.slane %v5539, 4
    %v5542 = vrot.slane %v4501, 5
    %v5543 = vsel %vm2976, %v5541, %v5542
    %v5544 = vrot.slane %v5302, 5
    %v5545 = vrot.slane %v5544, 4
    %v5546 = vrot.slane %v4458, 5
    %v5547 = vsel %vm2976, %v5545, %v5546
    %v5548 = vrot.slane %v5546, 4
    %v5549 = vrot.slane %v4502, 5
    %v5550 = vsel %vm2976, %v5548, %v5549
    %v5551 = vrot.slane %v5303, 5
    %v5552 = vrot.slane %v5551, 4
    %v5553 = vrot.slane %v4460, 5
    %v5554 = vsel %vm2976, %v5552, %v5553
    %v5555 = vrot.slane %v5553, 4
    %v5556 = vrot.slane %v4503, 5
    %v5557 = vsel %vm2976, %v5555, %v5556
    %v5558 = vrot.slane %v5304, 5
    %v5559 = vrot.slane %v5558, 4
    %v5560 = vrot.slane %v4462, 5
    %v5561 = vsel %vm2976, %v5559, %v5560
    %v5562 = vrot.slane %v5560, 4
    %v5563 = vrot.slane %v4504, 5
    %v5564 = vsel %vm2976, %v5562, %v5563
    %v5565 = vrot.slane %v5305, 5
    %v5566 = vrot.slane %v5565, 4
    %v5567 = vrot.slane %v4464, 5
    %v5568 = vsel %vm2976, %v5566, %v5567
    %v5569 = vrot.slane %v5567, 4
    %v5570 = vrot.slane %v4505, 5
    %v5571 = vsel %vm2976, %v5569, %v5570
    %v5572 = vrot.slane %v5306, 5
    %v5573 = vrot.slane %v5572, 4
    %v5574 = vrot.slane %v4466, 5
    %v5575 = vsel %vm2976, %v5573, %v5574
    %v5576 = vrot.slane %v5574, 4
    %v5577 = vrot.slane %v4506, 5
    %v5578 = vsel %vm2976, %v5576, %v5577
    %v5579 = vrot.slane %v5307, 5
    %v5580 = vrot.slane %v5579, 4
    %v5581 = vrot.slane %v4468, 5
    %v5582 = vsel %vm2976, %v5580, %v5581
    %v5583 = vrot.slane %v5581, 4
    %v5584 = vrot.slane %v4507, 5
    %v5585 = vsel %vm2976, %v5583, %v5584
    %v5586 = vrot.slane %v5308, 5
    %v5587 = vrot.slane %v5586, 4
    %v5588 = vrot.slane %v4470, 5
    %v5589 = vsel %vm2976, %v5587, %v5588
    %v5590 = vrot.slane %v5588, 4
    %v5591 = vrot.slane %v4508, 5
    %v5592 = vsel %vm2976, %v5590, %v5591
    %v5593 = vrot.slane %v5309, 5
    %v5594 = vrot.slane %v5593, 4
    %v5595 = vrot.slane %v4472, 5
    %v5596 = vsel %vm2976, %v5594, %v5595
    %v5597 = vrot.slane %v5595, 4
    %v5598 = vrot.slane %v4509, 5
    %v5599 = vsel %vm2976, %v5597, %v5598
    %v5600 = vrot.slane %v5310, 5
    %v5601 = vrot.slane %v5600, 4
    %v5602 = vrot.slane %v4474, 5
    %v5603 = vsel %vm2976, %v5601, %v5602
    %v5604 = vrot.slane %v5602, 4
    %v5605 = vrot.slane %v4510, 5
    %v5606 = vsel %vm2976, %v5604, %v5605
    %v5607 = vrot.slane %v5311, 5
    %v5608 = vrot.slane %v5607, 4
    %v5609 = vrot.slane %v4476, 5
    %v5610 = vsel %vm2976, %v5608, %v5609
    %v5611 = vrot.slane %v5609, 4
    %v5612 = vrot.slane %v4511, 5
    %v5613 = vsel %vm2976, %v5611, %v5612
    %v5614 = vrot.slane %v5312, 5
    %v5615 = vrot.slane %v5614, 4
    %v5616 = vrot.slane %v4478, 5
    %v5617 = vsel %vm2976, %v5615, %v5616
    %v5618 = vrot.slane %v5616, 4
    %v5619 = vrot.slane %v4512, 5
    %v5620 = vsel %vm2976, %v5618, %v5619
    %v5621 = vrot.slane %v5313, 5
    %v5622 = vrot.slane %v5621, 4
    %v5623 = vrot.slane %v4480, 5
    %v5624 = vsel %vm2976, %v5622, %v5623
    %v5625 = vrot.slane %v5623, 4
    %v5626 = vrot.slane %v4513, 5
    %v5627 = vsel %vm2976, %v5625, %v5626
    %v5628 = vrot.slane %v5314, 5
    %v5629 = vrot.slane %v5628, 4
    %v5630 = vrot.slane %v4482, 5
    %v5631 = vsel %vm2976, %v5629, %v5630
    %v5632 = vrot.slane %v5630, 4
    %v5633 = vrot.slane %v4514, 5
    %v5634 = vsel %vm2976, %v5632, %v5633
    %v5667 = vunpack.c.l.b16 %v1979
    %v5668 = vunpack.c.l.b16 %v1980
    %v5669 = vunpack.c.l.b16 %v1981
    %v5670 = vunpack.c.l.b16 %v1982
    %v5671 = vunpack.c.l.b16 %v1983
    %v5672 = vunpack.c.l.b16 %v1984
    %v5673 = vunpack.c.l.b16 %v1985
    %v5674 = vunpack.c.l.b16 %v1986
    %v5675 = vunpack.c.l.b16 %v1987
    %v5676 = vunpack.c.l.b16 %v1988
    %v5677 = vunpack.c.l.b16 %v1989
    %v5678 = vunpack.c.l.b16 %v1990
    %v5679 = vunpack.c.l.b16 %v1991
    %v5680 = vunpack.c.l.b16 %v1992
    %v5681 = vunpack.c.l.b16 %v1993
    %v5682 = vunpack.c.l.b16 %v1994
    %v5683 = vunpack.c.l.b16 %v1995
    %v5684 = vunpack.c.l.b16 %v1996
    %v5685 = vunpack.c.l.b16 %v1997
    %v5686 = vunpack.c.l.b16 %v1998
    %v5687 = vunpack.c.l.b16 %v1999
    %v5688 = vunpack.c.l.b16 %v2000
    %v5689 = vunpack.c.l.b16 %v2001
    %v5690 = vunpack.c.l.b16 %v2002
    %v5691 = vunpack.c.l.b16 %v2003
    %v5692 = vunpack.c.l.b16 %v2004
    %v5693 = vunpack.c.l.b16 %v2005
    %v5694 = vunpack.c.l.b16 %v2006
    %v5695 = vunpack.c.l.b16 %v2007
    %v5696 = vunpack.c.l.b16 %v2008
    %v5697 = vunpack.c.l.b16 %v2009
    %v5698 = vunpack.c.l.b16 %v2010
    %v5699 = vunpack.c.l.b16 %v2011
    %v5700 = vunpack.c.l.b16 %v2012
    %v5701 = vunpack.c.l.b16 %v2013
    %v5702 = vunpack.c.l.b16 %v2014
    %v5703 = vunpack.c.l.b16 %v2015
    %v5704 = vunpack.c.l.b16 %v2016
    %v5705 = vunpack.c.l.b16 %v2017
    %v5706 = vunpack.c.l.b16 %v2018
    %v5707 = vunpack.c.l.b16 %v2019
    %v5708 = vunpack.c.l.b16 %v2020
    %v5709 = vunpack.c.l.b16 %v2021
    %v5710 = vunpack.c.l.b16 %v2022
    %v5711 = vunpack.c.l.b16 %v2023
    %v5712 = vunpack.c.l.b16 %v2024
    %v5713 = vunpack.c.l.b16 %v2025
    %v5714 = vunpack.c.l.b16 %v2026
    %v5715 = vunpack.c.l.b16 %v2027
    %v5716 = vunpack.c.l.b16 %v2028
    %v5717 = vunpack.c.l.b16 %v2029
    %v5718 = vunpack.c.l.b16 %v2030
    %v5719 = vunpack.c.l.b16 %v2031
    %v5720 = vunpack.c.l.b16 %v2032
    %v5721 = vunpack.c.l.b16 %v2033
    %v5722 = vunpack.c.l.b16 %v2034
    %v5723 = vunpack.c.l.b16 %v2035
    %v5724 = vunpack.c.l.b16 %v2036
    %v5725 = vunpack.c.l.b16 %v2037
    %v5726 = vunpack.c.l.b16 %v2038
    %v5727 = vunpack.c.l.b16 %v2039
    %v5728 = vunpack.c.l.b16 %v2040
    %v5729 = vunpack.c.l.b16 %v2041
    %v5730 = vunpack.c.l.b16 %v2042
    %v5731 = vpack.c.b16 %v5668, %v5667
    %v5732 = vpack.c.b16 %v5670, %v5669
    %v5733 = vpack.c.b16 %v5672, %v5671
    %v5734 = vpack.c.b16 %v5674, %v5673
    %v5735 = vpack.c.b16 %v5676, %v5675
    %v5736 = vpack.c.b16 %v5678, %v5677
    %v5737 = vpack.c.b16 %v5680, %v5679
    %v5738 = vpack.c.b16 %v5682, %v5681
    %v5739 = vpack.c.b16 %v5684, %v5683
    %v5740 = vpack.c.b16 %v5686, %v5685
    %v5741 = vpack.c.b16 %v5688, %v5687
    %v5742 = vpack.c.b16 %v5690, %v5689
    %v5743 = vpack.c.b16 %v5692, %v5691
    %v5744 = vpack.c.b16 %v5694, %v5693
    %v5745 = vpack.c.b16 %v5696, %v5695
    %v5746 = vpack.c.b16 %v5698, %v5697
    %v5747 = vpack.c.b16 %v5700, %v5699
    %v5748 = vpack.c.b16 %v5702, %v5701
    %v5749 = vpack.c.b16 %v5704, %v5703
    %v5750 = vpack.c.b16 %v5706, %v5705
    %v5751 = vpack.c.b16 %v5708, %v5707
    %v5752 = vpack.c.b16 %v5710, %v5709
    %v5753 = vpack.c.b16 %v5712, %v5711
    %v5754 = vpack.c.b16 %v5714, %v5713
    %v5755 = vpack.c.b16 %v5716, %v5715
    %v5756 = vpack.c.b16 %v5718, %v5717
    %v5757 = vpack.c.b16 %v5720, %v5719
    %v5758 = vpack.c.b16 %v5722, %v5721
    %v5759 = vpack.c.b16 %v5724, %v5723
    %v5760 = vpack.c.b16 %v5726, %v5725
    %v5761 = vpack.c.b16 %v5728, %v5727
    %v5762 = vpack.c.b16 %v5730, %v5729
    %v5763 = vunpack.c.l.b16 %v2091
    %v5764 = vunpack.c.l.b16 %v2101
    %v5765 = vunpack.c.l.b16 %v2115
    %v5766 = vunpack.c.l.b16 %v2125
    %v5767 = vunpack.c.l.b16 %v2139
    %v5768 = vunpack.c.l.b16 %v2149
    %v5769 = vunpack.c.l.b16 %v2163
    %v5770 = vunpack.c.l.b16 %v2173
    %v5771 = vunpack.c.l.b16 %v2187
    %v5772 = vunpack.c.l.b16 %v2197
    %v5773 = vunpack.c.l.b16 %v2211
    %v5774 = vunpack.c.l.b16 %v2221
    %v5775 = vunpack.c.l.b16 %v2235
    %v5776 = vunpack.c.l.b16 %v2245
    %v5777 = vunpack.c.l.b16 %v2259
    %v5778 = vunpack.c.l.b16 %v2269
    %v5779 = vunpack.c.l.b16 %v2283
    %v5780 = vunpack.c.l.b16 %v2293
    %v5781 = vunpack.c.l.b16 %v2307
    %v5782 = vunpack.c.l.b16 %v2317
    %v5783 = vunpack.c.l.b16 %v2331
    %v5784 = vunpack.c.l.b16 %v2341
    %v5785 = vunpack.c.l.b16 %v2355
    %v5786 = vunpack.c.l.b16 %v2365
    %v5787 = vunpack.c.l.b16 %v2379
    %v5788 = vunpack.c.l.b16 %v2389
    %v5789 = vunpack.c.l.b16 %v2403
    %v5790 = vunpack.c.l.b16 %v2413
    %v5791 = vunpack.c.l.b16 %v2427
    %v5792 = vunpack.c.l.b16 %v2437
    %v5793 = vunpack.c.l.b16 %v2451
    %v5794 = vunpack.c.l.b16 %v2461
    %v5795 = vunpack.c.l.b16 %v2475
    %v5796 = vunpack.c.l.b16 %v2485
    %v5797 = vunpack.c.l.b16 %v2499
    %v5798 = vunpack.c.l.b16 %v2509
    %v5799 = vunpack.c.l.b16 %v2523
    %v5800 = vunpack.c.l.b16 %v2533
    %v5801 = vunpack.c.l.b16 %v2547
    %v5802 = vunpack.c.l.b16 %v2557
    %v5803 = vunpack.c.l.b16 %v2571
    %v5804 = vunpack.c.l.b16 %v2581
    %v5805 = vunpack.c.l.b16 %v2595
    %v5806 = vunpack.c.l.b16 %v2605
    %v5807 = vunpack.c.l.b16 %v2619
    %v5808 = vunpack.c.l.b16 %v2629
    %v5809 = vunpack.c.l.b16 %v2643
    %v5810 = vunpack.c.l.b16 %v2653
    %v5811 = vunpack.c.l.b16 %v2667
    %v5812 = vunpack.c.l.b16 %v2677
    %v5813 = vunpack.c.l.b16 %v2691
    %v5814 = vunpack.c.l.b16 %v2701
    %v5815 = vunpack.c.l.b16 %v2715
    %v5816 = vunpack.c.l.b16 %v2725
    %v5817 = vunpack.c.l.b16 %v2739
    %v5818 = vunpack.c.l.b16 %v2749
    %v5819 = vunpack.c.l.b16 %v2763
    %v5820 = vunpack.c.l.b16 %v2773
    %v5821 = vunpack.c.l.b16 %v2787
    %v5822 = vunpack.c.l.b16 %v2797
    %v5823 = vunpack.c.l.b16 %v2811
    %v5824 = vunpack.c.l.b16 %v2821
    %v5825 = vunpack.c.l.b16 %v2835
    %v5826 = vunpack.c.l.b16 %v2845
    %v5827 = vpack.c.b16 %v5764, %v5763
    %v5828 = vpack.c.b16 %v5766, %v5765
    %v5829 = vpack.c.b16 %v5768, %v5767
    %v5830 = vpack.c.b16 %v5770, %v5769
    %v5831 = vpack.c.b16 %v5772, %v5771
    %v5832 = vpack.c.b16 %v5774, %v5773
    %v5833 = vpack.c.b16 %v5776, %v5775
    %v5834 = vpack.c.b16 %v5778, %v5777
    %v5835 = vpack.c.b16 %v5780, %v5779
    %v5836 = vpack.c.b16 %v5782, %v5781
    %v5837 = vpack.c.b16 %v5784, %v5783
    %v5838 = vpack.c.b16 %v5786, %v5785
    %v5839 = vpack.c.b16 %v5788, %v5787
    %v5840 = vpack.c.b16 %v5790, %v5789
    %v5841 = vpack.c.b16 %v5792, %v5791
    %v5842 = vpack.c.b16 %v5794, %v5793
    %v5843 = vpack.c.b16 %v5796, %v5795
    %v5844 = vpack.c.b16 %v5798, %v5797
    %v5845 = vpack.c.b16 %v5800, %v5799
    %v5846 = vpack.c.b16 %v5802, %v5801
    %v5847 = vpack.c.b16 %v5804, %v5803
    %v5848 = vpack.c.b16 %v5806, %v5805
    %v5849 = vpack.c.b16 %v5808, %v5807
    %v5850 = vpack.c.b16 %v5810, %v5809
    %v5851 = vpack.c.b16 %v5812, %v5811
    %v5852 = vpack.c.b16 %v5814, %v5813
    %v5853 = vpack.c.b16 %v5816, %v5815
    %v5854 = vpack.c.b16 %v5818, %v5817
    %v5855 = vpack.c.b16 %v5820, %v5819
    %v5856 = vpack.c.b16 %v5822, %v5821
    %v5857 = vpack.c.b16 %v5824, %v5823
    %v5858 = vpack.c.b16 %v5826, %v5825
    %5859 = vrot.lane.b32.xlu0 %v5827, 8
    %v5860 = vpop.permute.xlu0 %5859
    %5861 = vrot.lane.b32.xlu0 %v5828, 8
    %v5862 = vpop.permute.xlu0 %5861
    %5863 = vrot.lane.b32.xlu0 %v5829, 8
    %v5864 = vpop.permute.xlu0 %5863
    %5865 = vrot.lane.b32.xlu0 %v5830, 8
    %v5866 = vpop.permute.xlu0 %5865
    %5867 = vrot.lane.b32.xlu0 %v5831, 8
    %v5868 = vpop.permute.xlu0 %5867
    %5869 = vrot.lane.b32.xlu0 %v5832, 8
    %v5870 = vpop.permute.xlu0 %5869
    %5871 = vrot.lane.b32.xlu0 %v5833, 8
    %v5872 = vpop.permute.xlu0 %5871
    %5873 = vrot.lane.b32.xlu0 %v5834, 8
    %v5874 = vpop.permute.xlu0 %5873
    %5875 = vrot.lane.b32.xlu0 %v5835, 8
    %v5876 = vpop.permute.xlu0 %5875
    %5877 = vrot.lane.b32.xlu0 %v5836, 8
    %v5878 = vpop.permute.xlu0 %5877
    %5879 = vrot.lane.b32.xlu0 %v5837, 8
    %v5880 = vpop.permute.xlu0 %5879
    %5881 = vrot.lane.b32.xlu0 %v5838, 8
    %v5882 = vpop.permute.xlu0 %5881
    %5883 = vrot.lane.b32.xlu0 %v5839, 8
    %v5884 = vpop.permute.xlu0 %5883
    %5885 = vrot.lane.b32.xlu0 %v5840, 8
    %v5886 = vpop.permute.xlu0 %5885
    %5887 = vrot.lane.b32.xlu0 %v5841, 8
    %v5888 = vpop.permute.xlu0 %5887
    %5889 = vrot.lane.b32.xlu0 %v5842, 8
    %v5890 = vpop.permute.xlu0 %5889
    %5891 = vrot.lane.b32.xlu0 %v5843, 8
    %v5892 = vpop.permute.xlu0 %5891
    %5893 = vrot.lane.b32.xlu0 %v5844, 8
    %v5894 = vpop.permute.xlu0 %5893
    %5895 = vrot.lane.b32.xlu0 %v5845, 8
    %v5896 = vpop.permute.xlu0 %5895
    %5897 = vrot.lane.b32.xlu0 %v5846, 8
    %v5898 = vpop.permute.xlu0 %5897
    %5899 = vrot.lane.b32.xlu0 %v5847, 8
    %v5900 = vpop.permute.xlu0 %5899
    %5901 = vrot.lane.b32.xlu0 %v5848, 8
    %v5902 = vpop.permute.xlu0 %5901
    %5903 = vrot.lane.b32.xlu0 %v5849, 8
    %v5904 = vpop.permute.xlu0 %5903
    %5905 = vrot.lane.b32.xlu0 %v5850, 8
    %v5906 = vpop.permute.xlu0 %5905
    %5907 = vrot.lane.b32.xlu0 %v5851, 8
    %v5908 = vpop.permute.xlu0 %5907
    %5909 = vrot.lane.b32.xlu0 %v5852, 8
    %v5910 = vpop.permute.xlu0 %5909
    %5911 = vrot.lane.b32.xlu0 %v5853, 8
    %v5912 = vpop.permute.xlu0 %5911
    %5913 = vrot.lane.b32.xlu0 %v5854, 8
    %v5914 = vpop.permute.xlu0 %5913
    %5915 = vrot.lane.b32.xlu0 %v5855, 8
    %v5916 = vpop.permute.xlu0 %5915
    %5917 = vrot.lane.b32.xlu0 %v5856, 8
    %v5918 = vpop.permute.xlu0 %5917
    %5919 = vrot.lane.b32.xlu0 %v5857, 8
    %v5920 = vpop.permute.xlu0 %5919
    %5921 = vrot.lane.b32.xlu0 %v5858, 8
    %v5922 = vpop.permute.xlu0 %5921
    %v5923 = vunpack.c.l.b16 %v2980
    %v5924 = vunpack.c.l.b16 %v2983
    %v5925 = vunpack.c.l.b16 %v2987
    %v5926 = vunpack.c.l.b16 %v2990
    %v5927 = vunpack.c.l.b16 %v2994
    %v5928 = vunpack.c.l.b16 %v2997
    %v5929 = vunpack.c.l.b16 %v3001
    %v5930 = vunpack.c.l.b16 %v3004
    %v5931 = vunpack.c.l.b16 %v3008
    %v5932 = vunpack.c.l.b16 %v3011
    %v5933 = vunpack.c.l.b16 %v3015
    %v5934 = vunpack.c.l.b16 %v3018
    %v5935 = vunpack.c.l.b16 %v3022
    %v5936 = vunpack.c.l.b16 %v3025
    %v5937 = vunpack.c.l.b16 %v3029
    %v5938 = vunpack.c.l.b16 %v3032
    %v5939 = vunpack.c.l.b16 %v3036
    %v5940 = vunpack.c.l.b16 %v3039
    %v5941 = vunpack.c.l.b16 %v3043
    %v5942 = vunpack.c.l.b16 %v3046
    %v5943 = vunpack.c.l.b16 %v3050
    %v5944 = vunpack.c.l.b16 %v3053
    %v5945 = vunpack.c.l.b16 %v3057
    %v5946 = vunpack.c.l.b16 %v3060
    %v5947 = vunpack.c.l.b16 %v3064
    %v5948 = vunpack.c.l.b16 %v3067
    %v5949 = vunpack.c.l.b16 %v3071
    %v5950 = vunpack.c.l.b16 %v3074
    %v5951 = vunpack.c.l.b16 %v3078
    %v5952 = vunpack.c.l.b16 %v3081
    %v5953 = vunpack.c.l.b16 %v3085
    %v5954 = vunpack.c.l.b16 %v3088
    %v5955 = vunpack.c.l.b16 %v3092
    %v5956 = vunpack.c.l.b16 %v3095
    %v5957 = vunpack.c.l.b16 %v3099
    %v5958 = vunpack.c.l.b16 %v3102
    %v5959 = vunpack.c.l.b16 %v3106
    %v5960 = vunpack.c.l.b16 %v3109
    %v5961 = vunpack.c.l.b16 %v3113
    %v5962 = vunpack.c.l.b16 %v3116
    %v5963 = vunpack.c.l.b16 %v3120
    %v5964 = vunpack.c.l.b16 %v3123
    %v5965 = vunpack.c.l.b16 %v3127
    %v5966 = vunpack.c.l.b16 %v3130
    %v5967 = vunpack.c.l.b16 %v3134
    %v5968 = vunpack.c.l.b16 %v3137
    %v5969 = vunpack.c.l.b16 %v3141
    %v5970 = vunpack.c.l.b16 %v3144
    %v5971 = vunpack.c.l.b16 %v3148
    %v5972 = vunpack.c.l.b16 %v3151
    %v5973 = vunpack.c.l.b16 %v3155
    %v5974 = vunpack.c.l.b16 %v3158
    %v5975 = vunpack.c.l.b16 %v3162
    %v5976 = vunpack.c.l.b16 %v3165
    %v5977 = vunpack.c.l.b16 %v3169
    %v5978 = vunpack.c.l.b16 %v3172
    %v5979 = vunpack.c.l.b16 %v3176
    %v5980 = vunpack.c.l.b16 %v3179
    %v5981 = vunpack.c.l.b16 %v3183
    %v5982 = vunpack.c.l.b16 %v3186
    %v5983 = vunpack.c.l.b16 %v3190
    %v5984 = vunpack.c.l.b16 %v3193
    %v5985 = vunpack.c.l.b16 %v3197
    %v5986 = vunpack.c.l.b16 %v3200
    %v5987 = vpack.c.b16 %v5924, %v5923
    %v5988 = vpack.c.b16 %v5926, %v5925
    %v5989 = vpack.c.b16 %v5928, %v5927
    %v5990 = vpack.c.b16 %v5930, %v5929
    %v5991 = vpack.c.b16 %v5932, %v5931
    %v5992 = vpack.c.b16 %v5934, %v5933
    %v5993 = vpack.c.b16 %v5936, %v5935
    %v5994 = vpack.c.b16 %v5938, %v5937
    %v5995 = vpack.c.b16 %v5940, %v5939
    %v5996 = vpack.c.b16 %v5942, %v5941
    %v5997 = vpack.c.b16 %v5944, %v5943
    %v5998 = vpack.c.b16 %v5946, %v5945
    %v5999 = vpack.c.b16 %v5948, %v5947
    %v6000 = vpack.c.b16 %v5950, %v5949
    %v6001 = vpack.c.b16 %v5952, %v5951
    %v6002 = vpack.c.b16 %v5954, %v5953
    %v6003 = vpack.c.b16 %v5956, %v5955
    %v6004 = vpack.c.b16 %v5958, %v5957
    %v6005 = vpack.c.b16 %v5960, %v5959
    %v6006 = vpack.c.b16 %v5962, %v5961
    %v6007 = vpack.c.b16 %v5964, %v5963
    %v6008 = vpack.c.b16 %v5966, %v5965
    %v6009 = vpack.c.b16 %v5968, %v5967
    %v6010 = vpack.c.b16 %v5970, %v5969
    %v6011 = vpack.c.b16 %v5972, %v5971
    %v6012 = vpack.c.b16 %v5974, %v5973
    %v6013 = vpack.c.b16 %v5976, %v5975
    %v6014 = vpack.c.b16 %v5978, %v5977
    %v6015 = vpack.c.b16 %v5980, %v5979
    %v6016 = vpack.c.b16 %v5982, %v5981
    %v6017 = vpack.c.b16 %v5984, %v5983
    %v6018 = vpack.c.b16 %v5986, %v5985
    %6019 = vrot.lane.b32.xlu0 %v5987, 16
    %v6020 = vpop.permute.xlu0 %6019
    %6021 = vrot.lane.b32.xlu0 %v5988, 16
    %v6022 = vpop.permute.xlu0 %6021
    %6023 = vrot.lane.b32.xlu0 %v5989, 16
    %v6024 = vpop.permute.xlu0 %6023
    %6025 = vrot.lane.b32.xlu0 %v5990, 16
    %v6026 = vpop.permute.xlu0 %6025
    %6027 = vrot.lane.b32.xlu0 %v5991, 16
    %v6028 = vpop.permute.xlu0 %6027
    %6029 = vrot.lane.b32.xlu0 %v5992, 16
    %v6030 = vpop.permute.xlu0 %6029
    %6031 = vrot.lane.b32.xlu0 %v5993, 16
    %v6032 = vpop.permute.xlu0 %6031
    %6033 = vrot.lane.b32.xlu0 %v5994, 16
    %v6034 = vpop.permute.xlu0 %6033
    %6035 = vrot.lane.b32.xlu0 %v5995, 16
    %v6036 = vpop.permute.xlu0 %6035
    %6037 = vrot.lane.b32.xlu0 %v5996, 16
    %v6038 = vpop.permute.xlu0 %6037
    %6039 = vrot.lane.b32.xlu0 %v5997, 16
    %v6040 = vpop.permute.xlu0 %6039
    %6041 = vrot.lane.b32.xlu0 %v5998, 16
    %v6042 = vpop.permute.xlu0 %6041
    %6043 = vrot.lane.b32.xlu0 %v5999, 16
    %v6044 = vpop.permute.xlu0 %6043
    %6045 = vrot.lane.b32.xlu0 %v6000, 16
    %v6046 = vpop.permute.xlu0 %6045
    %6047 = vrot.lane.b32.xlu0 %v6001, 16
    %v6048 = vpop.permute.xlu0 %6047
    %6049 = vrot.lane.b32.xlu0 %v6002, 16
    %v6050 = vpop.permute.xlu0 %6049
    %6051 = vrot.lane.b32.xlu0 %v6003, 16
    %v6052 = vpop.permute.xlu0 %6051
    %6053 = vrot.lane.b32.xlu0 %v6004, 16
    %v6054 = vpop.permute.xlu0 %6053
    %6055 = vrot.lane.b32.xlu0 %v6005, 16
    %v6056 = vpop.permute.xlu0 %6055
    %6057 = vrot.lane.b32.xlu0 %v6006, 16
    %v6058 = vpop.permute.xlu0 %6057
    %6059 = vrot.lane.b32.xlu0 %v6007, 16
    %v6060 = vpop.permute.xlu0 %6059
    %6061 = vrot.lane.b32.xlu0 %v6008, 16
    %v6062 = vpop.permute.xlu0 %6061
    %6063 = vrot.lane.b32.xlu0 %v6009, 16
    %v6064 = vpop.permute.xlu0 %6063
    %6065 = vrot.lane.b32.xlu0 %v6010, 16
    %v6066 = vpop.permute.xlu0 %6065
    %6067 = vrot.lane.b32.xlu0 %v6011, 16
    %v6068 = vpop.permute.xlu0 %6067
    %6069 = vrot.lane.b32.xlu0 %v6012, 16
    %v6070 = vpop.permute.xlu0 %6069
    %6071 = vrot.lane.b32.xlu0 %v6013, 16
    %v6072 = vpop.permute.xlu0 %6071
    %6073 = vrot.lane.b32.xlu0 %v6014, 16
    %v6074 = vpop.permute.xlu0 %6073
    %6075 = vrot.lane.b32.xlu0 %v6015, 16
    %v6076 = vpop.permute.xlu0 %6075
    %6077 = vrot.lane.b32.xlu0 %v6016, 16
    %v6078 = vpop.permute.xlu0 %6077
    %6079 = vrot.lane.b32.xlu0 %v6017, 16
    %v6080 = vpop.permute.xlu0 %6079
    %6081 = vrot.lane.b32.xlu0 %v6018, 16
    %v6082 = vpop.permute.xlu0 %6081
    %v6115 = vunpack.c.l.b16 %v3202
    %v6116 = vunpack.c.l.b16 %v3203
    %v6117 = vunpack.c.l.b16 %v3204
    %v6118 = vunpack.c.l.b16 %v3205
    %v6119 = vunpack.c.l.b16 %v3206
    %v6120 = vunpack.c.l.b16 %v3207
    %v6121 = vunpack.c.l.b16 %v3208
    %v6122 = vunpack.c.l.b16 %v3209
    %v6123 = vunpack.c.l.b16 %v3210
    %v6124 = vunpack.c.l.b16 %v3211
    %v6125 = vunpack.c.l.b16 %v3212
    %v6126 = vunpack.c.l.b16 %v3213
    %v6127 = vunpack.c.l.b16 %v3214
    %v6128 = vunpack.c.l.b16 %v3215
    %v6129 = vunpack.c.l.b16 %v3216
    %v6130 = vunpack.c.l.b16 %v3217
    %v6131 = vunpack.c.l.b16 %v3218
    %v6132 = vunpack.c.l.b16 %v3219
    %v6133 = vunpack.c.l.b16 %v3220
    %v6134 = vunpack.c.l.b16 %v3221
    %v6135 = vunpack.c.l.b16 %v3222
    %v6136 = vunpack.c.l.b16 %v3223
    %v6137 = vunpack.c.l.b16 %v3224
    %v6138 = vunpack.c.l.b16 %v3225
    %v6139 = vunpack.c.l.b16 %v3226
    %v6140 = vunpack.c.l.b16 %v3227
    %v6141 = vunpack.c.l.b16 %v3228
    %v6142 = vunpack.c.l.b16 %v3229
    %v6143 = vunpack.c.l.b16 %v3230
    %v6144 = vunpack.c.l.b16 %v3231
    %v6145 = vunpack.c.l.b16 %v3232
    %v6146 = vunpack.c.l.b16 %v3233
    %v6147 = vunpack.c.l.b16 %v3234
    %v6148 = vunpack.c.l.b16 %v3235
    %v6149 = vunpack.c.l.b16 %v3236
    %v6150 = vunpack.c.l.b16 %v3237
    %v6151 = vunpack.c.l.b16 %v3238
    %v6152 = vunpack.c.l.b16 %v3239
    %v6153 = vunpack.c.l.b16 %v3240
    %v6154 = vunpack.c.l.b16 %v3241
    %v6155 = vunpack.c.l.b16 %v3242
    %v6156 = vunpack.c.l.b16 %v3243
    %v6157 = vunpack.c.l.b16 %v3244
    %v6158 = vunpack.c.l.b16 %v3245
    %v6159 = vunpack.c.l.b16 %v3246
    %v6160 = vunpack.c.l.b16 %v3247
    %v6161 = vunpack.c.l.b16 %v3248
    %v6162 = vunpack.c.l.b16 %v3249
    %v6163 = vunpack.c.l.b16 %v3250
    %v6164 = vunpack.c.l.b16 %v3251
    %v6165 = vunpack.c.l.b16 %v3252
    %v6166 = vunpack.c.l.b16 %v3253
    %v6167 = vunpack.c.l.b16 %v3254
    %v6168 = vunpack.c.l.b16 %v3255
    %v6169 = vunpack.c.l.b16 %v3256
    %v6170 = vunpack.c.l.b16 %v3257
    %v6171 = vunpack.c.l.b16 %v3258
    %v6172 = vunpack.c.l.b16 %v3259
    %v6173 = vunpack.c.l.b16 %v3260
    %v6174 = vunpack.c.l.b16 %v3261
    %v6175 = vunpack.c.l.b16 %v3262
    %v6176 = vunpack.c.l.b16 %v3263
    %v6177 = vunpack.c.l.b16 %v3264
    %v6178 = vunpack.c.l.b16 %v3265
    %v6179 = vpack.c.b16 %v6116, %v6115
    %v6180 = vpack.c.b16 %v6118, %v6117
    %v6181 = vpack.c.b16 %v6120, %v6119
    %v6182 = vpack.c.b16 %v6122, %v6121
    %v6183 = vpack.c.b16 %v6124, %v6123
    %v6184 = vpack.c.b16 %v6126, %v6125
    %v6185 = vpack.c.b16 %v6128, %v6127
    %v6186 = vpack.c.b16 %v6130, %v6129
    %v6187 = vpack.c.b16 %v6132, %v6131
    %v6188 = vpack.c.b16 %v6134, %v6133
    %v6189 = vpack.c.b16 %v6136, %v6135
    %v6190 = vpack.c.b16 %v6138, %v6137
    %v6191 = vpack.c.b16 %v6140, %v6139
    %v6192 = vpack.c.b16 %v6142, %v6141
    %v6193 = vpack.c.b16 %v6144, %v6143
    %v6194 = vpack.c.b16 %v6146, %v6145
    %v6195 = vpack.c.b16 %v6148, %v6147
    %v6196 = vpack.c.b16 %v6150, %v6149
    %v6197 = vpack.c.b16 %v6152, %v6151
    %v6198 = vpack.c.b16 %v6154, %v6153
    %v6199 = vpack.c.b16 %v6156, %v6155
    %v6200 = vpack.c.b16 %v6158, %v6157
    %v6201 = vpack.c.b16 %v6160, %v6159
    %v6202 = vpack.c.b16 %v6162, %v6161
    %v6203 = vpack.c.b16 %v6164, %v6163
    %v6204 = vpack.c.b16 %v6166, %v6165
    %v6205 = vpack.c.b16 %v6168, %v6167
    %v6206 = vpack.c.b16 %v6170, %v6169
    %v6207 = vpack.c.b16 %v6172, %v6171
    %v6208 = vpack.c.b16 %v6174, %v6173
    %v6209 = vpack.c.b16 %v6176, %v6175
    %v6210 = vpack.c.b16 %v6178, %v6177
    %6211 = vrot.lane.b32.xlu0 %v6179, 24
    %v6212 = vpop.permute.xlu0 %6211
    %6213 = vrot.lane.b32.xlu0 %v6180, 24
    %v6214 = vpop.permute.xlu0 %6213
    %6215 = vrot.lane.b32.xlu0 %v6181, 24
    %v6216 = vpop.permute.xlu0 %6215
    %6217 = vrot.lane.b32.xlu0 %v6182, 24
    %v6218 = vpop.permute.xlu0 %6217
    %6219 = vrot.lane.b32.xlu0 %v6183, 24
    %v6220 = vpop.permute.xlu0 %6219
    %6221 = vrot.lane.b32.xlu0 %v6184, 24
    %v6222 = vpop.permute.xlu0 %6221
    %6223 = vrot.lane.b32.xlu0 %v6185, 24
    %v6224 = vpop.permute.xlu0 %6223
    %6225 = vrot.lane.b32.xlu0 %v6186, 24
    %v6226 = vpop.permute.xlu0 %6225
    %6227 = vrot.lane.b32.xlu0 %v6187, 24
    %v6228 = vpop.permute.xlu0 %6227
    %6229 = vrot.lane.b32.xlu0 %v6188, 24
    %v6230 = vpop.permute.xlu0 %6229
    %6231 = vrot.lane.b32.xlu0 %v6189, 24
    %v6232 = vpop.permute.xlu0 %6231
    %6233 = vrot.lane.b32.xlu0 %v6190, 24
    %v6234 = vpop.permute.xlu0 %6233
    %6235 = vrot.lane.b32.xlu0 %v6191, 24
    %v6236 = vpop.permute.xlu0 %6235
    %6237 = vrot.lane.b32.xlu0 %v6192, 24
    %v6238 = vpop.permute.xlu0 %6237
    %6239 = vrot.lane.b32.xlu0 %v6193, 24
    %v6240 = vpop.permute.xlu0 %6239
    %6241 = vrot.lane.b32.xlu0 %v6194, 24
    %v6242 = vpop.permute.xlu0 %6241
    %6243 = vrot.lane.b32.xlu0 %v6195, 24
    %v6244 = vpop.permute.xlu0 %6243
    %6245 = vrot.lane.b32.xlu0 %v6196, 24
    %v6246 = vpop.permute.xlu0 %6245
    %6247 = vrot.lane.b32.xlu0 %v6197, 24
    %v6248 = vpop.permute.xlu0 %6247
    %6249 = vrot.lane.b32.xlu0 %v6198, 24
    %v6250 = vpop.permute.xlu0 %6249
    %6251 = vrot.lane.b32.xlu0 %v6199, 24
    %v6252 = vpop.permute.xlu0 %6251
    %6253 = vrot.lane.b32.xlu0 %v6200, 24
    %v6254 = vpop.permute.xlu0 %6253
    %6255 = vrot.lane.b32.xlu0 %v6201, 24
    %v6256 = vpop.permute.xlu0 %6255
    %6257 = vrot.lane.b32.xlu0 %v6202, 24
    %v6258 = vpop.permute.xlu0 %6257
    %6259 = vrot.lane.b32.xlu0 %v6203, 24
    %v6260 = vpop.permute.xlu0 %6259
    %6261 = vrot.lane.b32.xlu0 %v6204, 24
    %v6262 = vpop.permute.xlu0 %6261
    %6263 = vrot.lane.b32.xlu0 %v6205, 24
    %v6264 = vpop.permute.xlu0 %6263
    %6265 = vrot.lane.b32.xlu0 %v6206, 24
    %v6266 = vpop.permute.xlu0 %6265
    %6267 = vrot.lane.b32.xlu0 %v6207, 24
    %v6268 = vpop.permute.xlu0 %6267
    %6269 = vrot.lane.b32.xlu0 %v6208, 24
    %v6270 = vpop.permute.xlu0 %6269
    %6271 = vrot.lane.b32.xlu0 %v6209, 24
    %v6272 = vpop.permute.xlu0 %6271
    %6273 = vrot.lane.b32.xlu0 %v6210, 24
    %v6274 = vpop.permute.xlu0 %6273
    %v6275 = vunpack.c.l.b16 %v3311
    %v6276 = vunpack.c.l.b16 %v3321
    %v6277 = vunpack.c.l.b16 %v3335
    %v6278 = vunpack.c.l.b16 %v3345
    %v6279 = vunpack.c.l.b16 %v3359
    %v6280 = vunpack.c.l.b16 %v3369
    %v6281 = vunpack.c.l.b16 %v3383
    %v6282 = vunpack.c.l.b16 %v3393
    %v6283 = vunpack.c.l.b16 %v3407
    %v6284 = vunpack.c.l.b16 %v3417
    %v6285 = vunpack.c.l.b16 %v3431
    %v6286 = vunpack.c.l.b16 %v3441
    %v6287 = vunpack.c.l.b16 %v3455
    %v6288 = vunpack.c.l.b16 %v3465
    %v6289 = vunpack.c.l.b16 %v3479
    %v6290 = vunpack.c.l.b16 %v3489
    %v6291 = vunpack.c.l.b16 %v3503
    %v6292 = vunpack.c.l.b16 %v3513
    %v6293 = vunpack.c.l.b16 %v3527
    %v6294 = vunpack.c.l.b16 %v3537
    %v6295 = vunpack.c.l.b16 %v3551
    %v6296 = vunpack.c.l.b16 %v3561
    %v6297 = vunpack.c.l.b16 %v3575
    %v6298 = vunpack.c.l.b16 %v3585
    %v6299 = vunpack.c.l.b16 %v3599
    %v6300 = vunpack.c.l.b16 %v3609
    %v6301 = vunpack.c.l.b16 %v3623
    %v6302 = vunpack.c.l.b16 %v3633
    %v6303 = vunpack.c.l.b16 %v3647
    %v6304 = vunpack.c.l.b16 %v3657
    %v6305 = vunpack.c.l.b16 %v3671
    %v6306 = vunpack.c.l.b16 %v3681
    %v6307 = vunpack.c.l.b16 %v3695
    %v6308 = vunpack.c.l.b16 %v3705
    %v6309 = vunpack.c.l.b16 %v3719
    %v6310 = vunpack.c.l.b16 %v3729
    %v6311 = vunpack.c.l.b16 %v3743
    %v6312 = vunpack.c.l.b16 %v3753
    %v6313 = vunpack.c.l.b16 %v3767
    %v6314 = vunpack.c.l.b16 %v3777
    %v6315 = vunpack.c.l.b16 %v3791
    %v6316 = vunpack.c.l.b16 %v3801
    %v6317 = vunpack.c.l.b16 %v3815
    %v6318 = vunpack.c.l.b16 %v3825
    %v6319 = vunpack.c.l.b16 %v3839
    %v6320 = vunpack.c.l.b16 %v3849
    %v6321 = vunpack.c.l.b16 %v3863
    %v6322 = vunpack.c.l.b16 %v3873
    %v6323 = vunpack.c.l.b16 %v3887
    %v6324 = vunpack.c.l.b16 %v3897
    %v6325 = vunpack.c.l.b16 %v3911
    %v6326 = vunpack.c.l.b16 %v3921
    %v6327 = vunpack.c.l.b16 %v3935
    %v6328 = vunpack.c.l.b16 %v3945
    %v6329 = vunpack.c.l.b16 %v3959
    %v6330 = vunpack.c.l.b16 %v3969
    %v6331 = vunpack.c.l.b16 %v3983
    %v6332 = vunpack.c.l.b16 %v3993
    %v6333 = vunpack.c.l.b16 %v4007
    %v6334 = vunpack.c.l.b16 %v4017
    %v6335 = vunpack.c.l.b16 %v4031
    %v6336 = vunpack.c.l.b16 %v4041
    %v6337 = vunpack.c.l.b16 %v4055
    %v6338 = vunpack.c.l.b16 %v4065
    %v6339 = vpack.c.b16 %v6276, %v6275
    %v6340 = vpack.c.b16 %v6278, %v6277
    %v6341 = vpack.c.b16 %v6280, %v6279
    %v6342 = vpack.c.b16 %v6282, %v6281
    %v6343 = vpack.c.b16 %v6284, %v6283
    %v6344 = vpack.c.b16 %v6286, %v6285
    %v6345 = vpack.c.b16 %v6288, %v6287
    %v6346 = vpack.c.b16 %v6290, %v6289
    %v6347 = vpack.c.b16 %v6292, %v6291
    %v6348 = vpack.c.b16 %v6294, %v6293
    %v6349 = vpack.c.b16 %v6296, %v6295
    %v6350 = vpack.c.b16 %v6298, %v6297
    %v6351 = vpack.c.b16 %v6300, %v6299
    %v6352 = vpack.c.b16 %v6302, %v6301
    %v6353 = vpack.c.b16 %v6304, %v6303
    %v6354 = vpack.c.b16 %v6306, %v6305
    %v6355 = vpack.c.b16 %v6308, %v6307
    %v6356 = vpack.c.b16 %v6310, %v6309
    %v6357 = vpack.c.b16 %v6312, %v6311
    %v6358 = vpack.c.b16 %v6314, %v6313
    %v6359 = vpack.c.b16 %v6316, %v6315
    %v6360 = vpack.c.b16 %v6318, %v6317
    %v6361 = vpack.c.b16 %v6320, %v6319
    %v6362 = vpack.c.b16 %v6322, %v6321
    %v6363 = vpack.c.b16 %v6324, %v6323
    %v6364 = vpack.c.b16 %v6326, %v6325
    %v6365 = vpack.c.b16 %v6328, %v6327
    %v6366 = vpack.c.b16 %v6330, %v6329
    %v6367 = vpack.c.b16 %v6332, %v6331
    %v6368 = vpack.c.b16 %v6334, %v6333
    %v6369 = vpack.c.b16 %v6336, %v6335
    %v6370 = vpack.c.b16 %v6338, %v6337
    %6371 = vrot.lane.b32.xlu0 %v6339, 32
    %v6372 = vpop.permute.xlu0 %6371
    %6373 = vrot.lane.b32.xlu0 %v6340, 32
    %v6374 = vpop.permute.xlu0 %6373
    %6375 = vrot.lane.b32.xlu0 %v6341, 32
    %v6376 = vpop.permute.xlu0 %6375
    %6377 = vrot.lane.b32.xlu0 %v6342, 32
    %v6378 = vpop.permute.xlu0 %6377
    %6379 = vrot.lane.b32.xlu0 %v6343, 32
    %v6380 = vpop.permute.xlu0 %6379
    %6381 = vrot.lane.b32.xlu0 %v6344, 32
    %v6382 = vpop.permute.xlu0 %6381
    %6383 = vrot.lane.b32.xlu0 %v6345, 32
    %v6384 = vpop.permute.xlu0 %6383
    %6385 = vrot.lane.b32.xlu0 %v6346, 32
    %v6386 = vpop.permute.xlu0 %6385
    %6387 = vrot.lane.b32.xlu0 %v6347, 32
    %v6388 = vpop.permute.xlu0 %6387
    %6389 = vrot.lane.b32.xlu0 %v6348, 32
    %v6390 = vpop.permute.xlu0 %6389
    %6391 = vrot.lane.b32.xlu0 %v6349, 32
    %v6392 = vpop.permute.xlu0 %6391
    %6393 = vrot.lane.b32.xlu0 %v6350, 32
    %v6394 = vpop.permute.xlu0 %6393
    %6395 = vrot.lane.b32.xlu0 %v6351, 32
    %v6396 = vpop.permute.xlu0 %6395
    %6397 = vrot.lane.b32.xlu0 %v6352, 32
    %v6398 = vpop.permute.xlu0 %6397
    %6399 = vrot.lane.b32.xlu0 %v6353, 32
    %v6400 = vpop.permute.xlu0 %6399
    %6401 = vrot.lane.b32.xlu0 %v6354, 32
    %v6402 = vpop.permute.xlu0 %6401
    %6403 = vrot.lane.b32.xlu0 %v6355, 32
    %v6404 = vpop.permute.xlu0 %6403
    %6405 = vrot.lane.b32.xlu0 %v6356, 32
    %v6406 = vpop.permute.xlu0 %6405
    %6407 = vrot.lane.b32.xlu0 %v6357, 32
    %v6408 = vpop.permute.xlu0 %6407
    %6409 = vrot.lane.b32.xlu0 %v6358, 32
    %v6410 = vpop.permute.xlu0 %6409
    %6411 = vrot.lane.b32.xlu0 %v6359, 32
    %v6412 = vpop.permute.xlu0 %6411
    %6413 = vrot.lane.b32.xlu0 %v6360, 32
    %v6414 = vpop.permute.xlu0 %6413
    %6415 = vrot.lane.b32.xlu0 %v6361, 32
    %v6416 = vpop.permute.xlu0 %6415
    %6417 = vrot.lane.b32.xlu0 %v6362, 32
    %v6418 = vpop.permute.xlu0 %6417
    %6419 = vrot.lane.b32.xlu0 %v6363, 32
    %v6420 = vpop.permute.xlu0 %6419
    %6421 = vrot.lane.b32.xlu0 %v6364, 32
    %v6422 = vpop.permute.xlu0 %6421
    %6423 = vrot.lane.b32.xlu0 %v6365, 32
    %v6424 = vpop.permute.xlu0 %6423
    %6425 = vrot.lane.b32.xlu0 %v6366, 32
    %v6426 = vpop.permute.xlu0 %6425
    %6427 = vrot.lane.b32.xlu0 %v6367, 32
    %v6428 = vpop.permute.xlu0 %6427
    %6429 = vrot.lane.b32.xlu0 %v6368, 32
    %v6430 = vpop.permute.xlu0 %6429
    %6431 = vrot.lane.b32.xlu0 %v6369, 32
    %v6432 = vpop.permute.xlu0 %6431
    %6433 = vrot.lane.b32.xlu0 %v6370, 32
    %v6434 = vpop.permute.xlu0 %6433
    %v6435 = vunpack.c.l.b16 %v4197
    %v6436 = vunpack.c.l.b16 %v4200
    %v6437 = vunpack.c.l.b16 %v4204
    %v6438 = vunpack.c.l.b16 %v4207
    %v6439 = vunpack.c.l.b16 %v4211
    %v6440 = vunpack.c.l.b16 %v4214
    %v6441 = vunpack.c.l.b16 %v4218
    %v6442 = vunpack.c.l.b16 %v4221
    %v6443 = vunpack.c.l.b16 %v4225
    %v6444 = vunpack.c.l.b16 %v4228
    %v6445 = vunpack.c.l.b16 %v4232
    %v6446 = vunpack.c.l.b16 %v4235
    %v6447 = vunpack.c.l.b16 %v4239
    %v6448 = vunpack.c.l.b16 %v4242
    %v6449 = vunpack.c.l.b16 %v4246
    %v6450 = vunpack.c.l.b16 %v4249
    %v6451 = vunpack.c.l.b16 %v4253
    %v6452 = vunpack.c.l.b16 %v4256
    %v6453 = vunpack.c.l.b16 %v4260
    %v6454 = vunpack.c.l.b16 %v4263
    %v6455 = vunpack.c.l.b16 %v4267
    %v6456 = vunpack.c.l.b16 %v4270
    %v6457 = vunpack.c.l.b16 %v4274
    %v6458 = vunpack.c.l.b16 %v4277
    %v6459 = vunpack.c.l.b16 %v4281
    %v6460 = vunpack.c.l.b16 %v4284
    %v6461 = vunpack.c.l.b16 %v4288
    %v6462 = vunpack.c.l.b16 %v4291
    %v6463 = vunpack.c.l.b16 %v4295
    %v6464 = vunpack.c.l.b16 %v4298
    %v6465 = vunpack.c.l.b16 %v4302
    %v6466 = vunpack.c.l.b16 %v4305
    %v6467 = vunpack.c.l.b16 %v4309
    %v6468 = vunpack.c.l.b16 %v4312
    %v6469 = vunpack.c.l.b16 %v4316
    %v6470 = vunpack.c.l.b16 %v4319
    %v6471 = vunpack.c.l.b16 %v4323
    %v6472 = vunpack.c.l.b16 %v4326
    %v6473 = vunpack.c.l.b16 %v4330
    %v6474 = vunpack.c.l.b16 %v4333
    %v6475 = vunpack.c.l.b16 %v4337
    %v6476 = vunpack.c.l.b16 %v4340
    %v6477 = vunpack.c.l.b16 %v4344
    %v6478 = vunpack.c.l.b16 %v4347
    %v6479 = vunpack.c.l.b16 %v4351
    %v6480 = vunpack.c.l.b16 %v4354
    %v6481 = vunpack.c.l.b16 %v4358
    %v6482 = vunpack.c.l.b16 %v4361
    %v6483 = vunpack.c.l.b16 %v4365
    %v6484 = vunpack.c.l.b16 %v4368
    %v6485 = vunpack.c.l.b16 %v4372
    %v6486 = vunpack.c.l.b16 %v4375
    %v6487 = vunpack.c.l.b16 %v4379
    %v6488 = vunpack.c.l.b16 %v4382
    %v6489 = vunpack.c.l.b16 %v4386
    %v6490 = vunpack.c.l.b16 %v4389
    %v6491 = vunpack.c.l.b16 %v4393
    %v6492 = vunpack.c.l.b16 %v4396
    %v6493 = vunpack.c.l.b16 %v4400
    %v6494 = vunpack.c.l.b16 %v4403
    %v6495 = vunpack.c.l.b16 %v4407
    %v6496 = vunpack.c.l.b16 %v4410
    %v6497 = vunpack.c.l.b16 %v4414
    %v6498 = vunpack.c.l.b16 %v4417
    %v6499 = vpack.c.b16 %v6436, %v6435
    %v6500 = vpack.c.b16 %v6438, %v6437
    %v6501 = vpack.c.b16 %v6440, %v6439
    %v6502 = vpack.c.b16 %v6442, %v6441
    %v6503 = vpack.c.b16 %v6444, %v6443
    %v6504 = vpack.c.b16 %v6446, %v6445
    %v6505 = vpack.c.b16 %v6448, %v6447
    %v6506 = vpack.c.b16 %v6450, %v6449
    %v6507 = vpack.c.b16 %v6452, %v6451
    %v6508 = vpack.c.b16 %v6454, %v6453
    %v6509 = vpack.c.b16 %v6456, %v6455
    %v6510 = vpack.c.b16 %v6458, %v6457
    %v6511 = vpack.c.b16 %v6460, %v6459
    %v6512 = vpack.c.b16 %v6462, %v6461
    %v6513 = vpack.c.b16 %v6464, %v6463
    %v6514 = vpack.c.b16 %v6466, %v6465
    %v6515 = vpack.c.b16 %v6468, %v6467
    %v6516 = vpack.c.b16 %v6470, %v6469
    %v6517 = vpack.c.b16 %v6472, %v6471
    %v6518 = vpack.c.b16 %v6474, %v6473
    %v6519 = vpack.c.b16 %v6476, %v6475
    %v6520 = vpack.c.b16 %v6478, %v6477
    %v6521 = vpack.c.b16 %v6480, %v6479
    %v6522 = vpack.c.b16 %v6482, %v6481
    %v6523 = vpack.c.b16 %v6484, %v6483
    %v6524 = vpack.c.b16 %v6486, %v6485
    %v6525 = vpack.c.b16 %v6488, %v6487
    %v6526 = vpack.c.b16 %v6490, %v6489
    %v6527 = vpack.c.b16 %v6492, %v6491
    %v6528 = vpack.c.b16 %v6494, %v6493
    %v6529 = vpack.c.b16 %v6496, %v6495
    %v6530 = vpack.c.b16 %v6498, %v6497
    %6531 = vrot.lane.b32.xlu0 %v6499, 40
    %v6532 = vpop.permute.xlu0 %6531
    %6533 = vrot.lane.b32.xlu0 %v6500, 40
    %v6534 = vpop.permute.xlu0 %6533
    %6535 = vrot.lane.b32.xlu0 %v6501, 40
    %v6536 = vpop.permute.xlu0 %6535
    %6537 = vrot.lane.b32.xlu0 %v6502, 40
    %v6538 = vpop.permute.xlu0 %6537
    %6539 = vrot.lane.b32.xlu0 %v6503, 40
    %v6540 = vpop.permute.xlu0 %6539
    %6541 = vrot.lane.b32.xlu0 %v6504, 40
    %v6542 = vpop.permute.xlu0 %6541
    %6543 = vrot.lane.b32.xlu0 %v6505, 40
    %v6544 = vpop.permute.xlu0 %6543
    %6545 = vrot.lane.b32.xlu0 %v6506, 40
    %v6546 = vpop.permute.xlu0 %6545
    %6547 = vrot.lane.b32.xlu0 %v6507, 40
    %v6548 = vpop.permute.xlu0 %6547
    %6549 = vrot.lane.b32.xlu0 %v6508, 40
    %v6550 = vpop.permute.xlu0 %6549
    %6551 = vrot.lane.b32.xlu0 %v6509, 40
    %v6552 = vpop.permute.xlu0 %6551
    %6553 = vrot.lane.b32.xlu0 %v6510, 40
    %v6554 = vpop.permute.xlu0 %6553
    %6555 = vrot.lane.b32.xlu0 %v6511, 40
    %v6556 = vpop.permute.xlu0 %6555
    %6557 = vrot.lane.b32.xlu0 %v6512, 40
    %v6558 = vpop.permute.xlu0 %6557
    %6559 = vrot.lane.b32.xlu0 %v6513, 40
    %v6560 = vpop.permute.xlu0 %6559
    %6561 = vrot.lane.b32.xlu0 %v6514, 40
    %v6562 = vpop.permute.xlu0 %6561
    %6563 = vrot.lane.b32.xlu0 %v6515, 40
    %v6564 = vpop.permute.xlu0 %6563
    %6565 = vrot.lane.b32.xlu0 %v6516, 40
    %v6566 = vpop.permute.xlu0 %6565
    %6567 = vrot.lane.b32.xlu0 %v6517, 40
    %v6568 = vpop.permute.xlu0 %6567
    %6569 = vrot.lane.b32.xlu0 %v6518, 40
    %v6570 = vpop.permute.xlu0 %6569
    %6571 = vrot.lane.b32.xlu0 %v6519, 40
    %v6572 = vpop.permute.xlu0 %6571
    %6573 = vrot.lane.b32.xlu0 %v6520, 40
    %v6574 = vpop.permute.xlu0 %6573
    %6575 = vrot.lane.b32.xlu0 %v6521, 40
    %v6576 = vpop.permute.xlu0 %6575
    %6577 = vrot.lane.b32.xlu0 %v6522, 40
    %v6578 = vpop.permute.xlu0 %6577
    %6579 = vrot.lane.b32.xlu0 %v6523, 40
    %v6580 = vpop.permute.xlu0 %6579
    %6581 = vrot.lane.b32.xlu0 %v6524, 40
    %v6582 = vpop.permute.xlu0 %6581
    %6583 = vrot.lane.b32.xlu0 %v6525, 40
    %v6584 = vpop.permute.xlu0 %6583
    %6585 = vrot.lane.b32.xlu0 %v6526, 40
    %v6586 = vpop.permute.xlu0 %6585
    %6587 = vrot.lane.b32.xlu0 %v6527, 40
    %v6588 = vpop.permute.xlu0 %6587
    %6589 = vrot.lane.b32.xlu0 %v6528, 40
    %v6590 = vpop.permute.xlu0 %6589
    %6591 = vrot.lane.b32.xlu0 %v6529, 40
    %v6592 = vpop.permute.xlu0 %6591
    %6593 = vrot.lane.b32.xlu0 %v6530, 40
    %v6594 = vpop.permute.xlu0 %6593
    %v6627 = vunpack.c.l.b16 %v4419
    %v6628 = vunpack.c.l.b16 %v4420
    %v6629 = vunpack.c.l.b16 %v4421
    %v6630 = vunpack.c.l.b16 %v4422
    %v6631 = vunpack.c.l.b16 %v4423
    %v6632 = vunpack.c.l.b16 %v4424
    %v6633 = vunpack.c.l.b16 %v4425
    %v6634 = vunpack.c.l.b16 %v4426
    %v6635 = vunpack.c.l.b16 %v4427
    %v6636 = vunpack.c.l.b16 %v4428
    %v6637 = vunpack.c.l.b16 %v4429
    %v6638 = vunpack.c.l.b16 %v4430
    %v6639 = vunpack.c.l.b16 %v4431
    %v6640 = vunpack.c.l.b16 %v4432
    %v6641 = vunpack.c.l.b16 %v4433
    %v6642 = vunpack.c.l.b16 %v4434
    %v6643 = vunpack.c.l.b16 %v4435
    %v6644 = vunpack.c.l.b16 %v4436
    %v6645 = vunpack.c.l.b16 %v4437
    %v6646 = vunpack.c.l.b16 %v4438
    %v6647 = vunpack.c.l.b16 %v4439
    %v6648 = vunpack.c.l.b16 %v4440
    %v6649 = vunpack.c.l.b16 %v4441
    %v6650 = vunpack.c.l.b16 %v4442
    %v6651 = vunpack.c.l.b16 %v4443
    %v6652 = vunpack.c.l.b16 %v4444
    %v6653 = vunpack.c.l.b16 %v4445
    %v6654 = vunpack.c.l.b16 %v4446
    %v6655 = vunpack.c.l.b16 %v4447
    %v6656 = vunpack.c.l.b16 %v4448
    %v6657 = vunpack.c.l.b16 %v4449
    %v6658 = vunpack.c.l.b16 %v4450
    %v6659 = vunpack.c.l.b16 %v4451
    %v6660 = vunpack.c.l.b16 %v4452
    %v6661 = vunpack.c.l.b16 %v4453
    %v6662 = vunpack.c.l.b16 %v4454
    %v6663 = vunpack.c.l.b16 %v4455
    %v6664 = vunpack.c.l.b16 %v4456
    %v6665 = vunpack.c.l.b16 %v4457
    %v6666 = vunpack.c.l.b16 %v4458
    %v6667 = vunpack.c.l.b16 %v4459
    %v6668 = vunpack.c.l.b16 %v4460
    %v6669 = vunpack.c.l.b16 %v4461
    %v6670 = vunpack.c.l.b16 %v4462
    %v6671 = vunpack.c.l.b16 %v4463
    %v6672 = vunpack.c.l.b16 %v4464
    %v6673 = vunpack.c.l.b16 %v4465
    %v6674 = vunpack.c.l.b16 %v4466
    %v6675 = vunpack.c.l.b16 %v4467
    %v6676 = vunpack.c.l.b16 %v4468
    %v6677 = vunpack.c.l.b16 %v4469
    %v6678 = vunpack.c.l.b16 %v4470
    %v6679 = vunpack.c.l.b16 %v4471
    %v6680 = vunpack.c.l.b16 %v4472
    %v6681 = vunpack.c.l.b16 %v4473
    %v6682 = vunpack.c.l.b16 %v4474
    %v6683 = vunpack.c.l.b16 %v4475
    %v6684 = vunpack.c.l.b16 %v4476
    %v6685 = vunpack.c.l.b16 %v4477
    %v6686 = vunpack.c.l.b16 %v4478
    %v6687 = vunpack.c.l.b16 %v4479
    %v6688 = vunpack.c.l.b16 %v4480
    %v6689 = vunpack.c.l.b16 %v4481
    %v6690 = vunpack.c.l.b16 %v4482
    %v6691 = vpack.c.b16 %v6628, %v6627
    %v6692 = vpack.c.b16 %v6630, %v6629
    %v6693 = vpack.c.b16 %v6632, %v6631
    %v6694 = vpack.c.b16 %v6634, %v6633
    %v6695 = vpack.c.b16 %v6636, %v6635
    %v6696 = vpack.c.b16 %v6638, %v6637
    %v6697 = vpack.c.b16 %v6640, %v6639
    %v6698 = vpack.c.b16 %v6642, %v6641
    %v6699 = vpack.c.b16 %v6644, %v6643
    %v6700 = vpack.c.b16 %v6646, %v6645
    %v6701 = vpack.c.b16 %v6648, %v6647
    %v6702 = vpack.c.b16 %v6650, %v6649
    %v6703 = vpack.c.b16 %v6652, %v6651
    %v6704 = vpack.c.b16 %v6654, %v6653
    %v6705 = vpack.c.b16 %v6656, %v6655
    %v6706 = vpack.c.b16 %v6658, %v6657
    %v6707 = vpack.c.b16 %v6660, %v6659
    %v6708 = vpack.c.b16 %v6662, %v6661
    %v6709 = vpack.c.b16 %v6664, %v6663
    %v6710 = vpack.c.b16 %v6666, %v6665
    %v6711 = vpack.c.b16 %v6668, %v6667
    %v6712 = vpack.c.b16 %v6670, %v6669
    %v6713 = vpack.c.b16 %v6672, %v6671
    %v6714 = vpack.c.b16 %v6674, %v6673
    %v6715 = vpack.c.b16 %v6676, %v6675
    %v6716 = vpack.c.b16 %v6678, %v6677
    %v6717 = vpack.c.b16 %v6680, %v6679
    %v6718 = vpack.c.b16 %v6682, %v6681
    %v6719 = vpack.c.b16 %v6684, %v6683
    %v6720 = vpack.c.b16 %v6686, %v6685
    %v6721 = vpack.c.b16 %v6688, %v6687
    %v6722 = vpack.c.b16 %v6690, %v6689
    %6723 = vrot.lane.b32.xlu0 %v6691, 48
    %v6724 = vpop.permute.xlu0 %6723
    %6725 = vrot.lane.b32.xlu0 %v6692, 48
    %v6726 = vpop.permute.xlu0 %6725
    %6727 = vrot.lane.b32.xlu0 %v6693, 48
    %v6728 = vpop.permute.xlu0 %6727
    %6729 = vrot.lane.b32.xlu0 %v6694, 48
    %v6730 = vpop.permute.xlu0 %6729
    %6731 = vrot.lane.b32.xlu0 %v6695, 48
    %v6732 = vpop.permute.xlu0 %6731
    %6733 = vrot.lane.b32.xlu0 %v6696, 48
    %v6734 = vpop.permute.xlu0 %6733
    %6735 = vrot.lane.b32.xlu0 %v6697, 48
    %v6736 = vpop.permute.xlu0 %6735
    %6737 = vrot.lane.b32.xlu0 %v6698, 48
    %v6738 = vpop.permute.xlu0 %6737
    %6739 = vrot.lane.b32.xlu0 %v6699, 48
    %v6740 = vpop.permute.xlu0 %6739
    %6741 = vrot.lane.b32.xlu0 %v6700, 48
    %v6742 = vpop.permute.xlu0 %6741
    %6743 = vrot.lane.b32.xlu0 %v6701, 48
    %v6744 = vpop.permute.xlu0 %6743
    %6745 = vrot.lane.b32.xlu0 %v6702, 48
    %v6746 = vpop.permute.xlu0 %6745
    %6747 = vrot.lane.b32.xlu0 %v6703, 48
    %v6748 = vpop.permute.xlu0 %6747
    %6749 = vrot.lane.b32.xlu0 %v6704, 48
    %v6750 = vpop.permute.xlu0 %6749
    %6751 = vrot.lane.b32.xlu0 %v6705, 48
    %v6752 = vpop.permute.xlu0 %6751
    %6753 = vrot.lane.b32.xlu0 %v6706, 48
    %v6754 = vpop.permute.xlu0 %6753
    %6755 = vrot.lane.b32.xlu0 %v6707, 48
    %v6756 = vpop.permute.xlu0 %6755
    %6757 = vrot.lane.b32.xlu0 %v6708, 48
    %v6758 = vpop.permute.xlu0 %6757
    %6759 = vrot.lane.b32.xlu0 %v6709, 48
    %v6760 = vpop.permute.xlu0 %6759
    %6761 = vrot.lane.b32.xlu0 %v6710, 48
    %v6762 = vpop.permute.xlu0 %6761
    %6763 = vrot.lane.b32.xlu0 %v6711, 48
    %v6764 = vpop.permute.xlu0 %6763
    %6765 = vrot.lane.b32.xlu0 %v6712, 48
    %v6766 = vpop.permute.xlu0 %6765
    %6767 = vrot.lane.b32.xlu0 %v6713, 48
    %v6768 = vpop.permute.xlu0 %6767
    %6769 = vrot.lane.b32.xlu0 %v6714, 48
    %v6770 = vpop.permute.xlu0 %6769
    %6771 = vrot.lane.b32.xlu0 %v6715, 48
    %v6772 = vpop.permute.xlu0 %6771
    %6773 = vrot.lane.b32.xlu0 %v6716, 48
    %v6774 = vpop.permute.xlu0 %6773
    %6775 = vrot.lane.b32.xlu0 %v6717, 48
    %v6776 = vpop.permute.xlu0 %6775
    %6777 = vrot.lane.b32.xlu0 %v6718, 48
    %v6778 = vpop.permute.xlu0 %6777
    %6779 = vrot.lane.b32.xlu0 %v6719, 48
    %v6780 = vpop.permute.xlu0 %6779
    %6781 = vrot.lane.b32.xlu0 %v6720, 48
    %v6782 = vpop.permute.xlu0 %6781
    %6783 = vrot.lane.b32.xlu0 %v6721, 48
    %v6784 = vpop.permute.xlu0 %6783
    %6785 = vrot.lane.b32.xlu0 %v6722, 48
    %v6786 = vpop.permute.xlu0 %6785
    %v6787 = vunpack.c.l.b16 %v4528
    %v6788 = vunpack.c.l.b16 %v4538
    %v6789 = vunpack.c.l.b16 %v4552
    %v6790 = vunpack.c.l.b16 %v4562
    %v6791 = vunpack.c.l.b16 %v4576
    %v6792 = vunpack.c.l.b16 %v4586
    %v6793 = vunpack.c.l.b16 %v4600
    %v6794 = vunpack.c.l.b16 %v4610
    %v6795 = vunpack.c.l.b16 %v4624
    %v6796 = vunpack.c.l.b16 %v4634
    %v6797 = vunpack.c.l.b16 %v4648
    %v6798 = vunpack.c.l.b16 %v4658
    %v6799 = vunpack.c.l.b16 %v4672
    %v6800 = vunpack.c.l.b16 %v4682
    %v6801 = vunpack.c.l.b16 %v4696
    %v6802 = vunpack.c.l.b16 %v4706
    %v6803 = vunpack.c.l.b16 %v4720
    %v6804 = vunpack.c.l.b16 %v4730
    %v6805 = vunpack.c.l.b16 %v4744
    %v6806 = vunpack.c.l.b16 %v4754
    %v6807 = vunpack.c.l.b16 %v4768
    %v6808 = vunpack.c.l.b16 %v4778
    %v6809 = vunpack.c.l.b16 %v4792
    %v6810 = vunpack.c.l.b16 %v4802
    %v6811 = vunpack.c.l.b16 %v4816
    %v6812 = vunpack.c.l.b16 %v4826
    %v6813 = vunpack.c.l.b16 %v4840
    %v6814 = vunpack.c.l.b16 %v4850
    %v6815 = vunpack.c.l.b16 %v4864
    %v6816 = vunpack.c.l.b16 %v4874
    %v6817 = vunpack.c.l.b16 %v4888
    %v6818 = vunpack.c.l.b16 %v4898
    %v6819 = vunpack.c.l.b16 %v4912
    %v6820 = vunpack.c.l.b16 %v4922
    %v6821 = vunpack.c.l.b16 %v4936
    %v6822 = vunpack.c.l.b16 %v4946
    %v6823 = vunpack.c.l.b16 %v4960
    %v6824 = vunpack.c.l.b16 %v4970
    %v6825 = vunpack.c.l.b16 %v4984
    %v6826 = vunpack.c.l.b16 %v4994
    %v6827 = vunpack.c.l.b16 %v5008
    %v6828 = vunpack.c.l.b16 %v5018
    %v6829 = vunpack.c.l.b16 %v5032
    %v6830 = vunpack.c.l.b16 %v5042
    %v6831 = vunpack.c.l.b16 %v5056
    %v6832 = vunpack.c.l.b16 %v5066
    %v6833 = vunpack.c.l.b16 %v5080
    %v6834 = vunpack.c.l.b16 %v5090
    %v6835 = vunpack.c.l.b16 %v5104
    %v6836 = vunpack.c.l.b16 %v5114
    %v6837 = vunpack.c.l.b16 %v5128
    %v6838 = vunpack.c.l.b16 %v5138
    %v6839 = vunpack.c.l.b16 %v5152
    %v6840 = vunpack.c.l.b16 %v5162
    %v6841 = vunpack.c.l.b16 %v5176
    %v6842 = vunpack.c.l.b16 %v5186
    %v6843 = vunpack.c.l.b16 %v5200
    %v6844 = vunpack.c.l.b16 %v5210
    %v6845 = vunpack.c.l.b16 %v5224
    %v6846 = vunpack.c.l.b16 %v5234
    %v6847 = vunpack.c.l.b16 %v5248
    %v6848 = vunpack.c.l.b16 %v5258
    %v6849 = vunpack.c.l.b16 %v5272
    %v6850 = vunpack.c.l.b16 %v5282
    %v6851 = vpack.c.b16 %v6788, %v6787
    %v6852 = vpack.c.b16 %v6790, %v6789
    %v6853 = vpack.c.b16 %v6792, %v6791
    %v6854 = vpack.c.b16 %v6794, %v6793
    %v6855 = vpack.c.b16 %v6796, %v6795
    %v6856 = vpack.c.b16 %v6798, %v6797
    %v6857 = vpack.c.b16 %v6800, %v6799
    %v6858 = vpack.c.b16 %v6802, %v6801
    %v6859 = vpack.c.b16 %v6804, %v6803
    %v6860 = vpack.c.b16 %v6806, %v6805
    %v6861 = vpack.c.b16 %v6808, %v6807
    %v6862 = vpack.c.b16 %v6810, %v6809
    %v6863 = vpack.c.b16 %v6812, %v6811
    %v6864 = vpack.c.b16 %v6814, %v6813
    %v6865 = vpack.c.b16 %v6816, %v6815
    %v6866 = vpack.c.b16 %v6818, %v6817
    %v6867 = vpack.c.b16 %v6820, %v6819
    %v6868 = vpack.c.b16 %v6822, %v6821
    %v6869 = vpack.c.b16 %v6824, %v6823
    %v6870 = vpack.c.b16 %v6826, %v6825
    %v6871 = vpack.c.b16 %v6828, %v6827
    %v6872 = vpack.c.b16 %v6830, %v6829
    %v6873 = vpack.c.b16 %v6832, %v6831
    %v6874 = vpack.c.b16 %v6834, %v6833
    %v6875 = vpack.c.b16 %v6836, %v6835
    %v6876 = vpack.c.b16 %v6838, %v6837
    %v6877 = vpack.c.b16 %v6840, %v6839
    %v6878 = vpack.c.b16 %v6842, %v6841
    %v6879 = vpack.c.b16 %v6844, %v6843
    %v6880 = vpack.c.b16 %v6846, %v6845
    %v6881 = vpack.c.b16 %v6848, %v6847
    %v6882 = vpack.c.b16 %v6850, %v6849
    %6883 = vrot.lane.b32.xlu0 %v6851, 56
    %v6884 = vpop.permute.xlu0 %6883
    %6885 = vrot.lane.b32.xlu0 %v6852, 56
    %v6886 = vpop.permute.xlu0 %6885
    %6887 = vrot.lane.b32.xlu0 %v6853, 56
    %v6888 = vpop.permute.xlu0 %6887
    %6889 = vrot.lane.b32.xlu0 %v6854, 56
    %v6890 = vpop.permute.xlu0 %6889
    %6891 = vrot.lane.b32.xlu0 %v6855, 56
    %v6892 = vpop.permute.xlu0 %6891
    %6893 = vrot.lane.b32.xlu0 %v6856, 56
    %v6894 = vpop.permute.xlu0 %6893
    %6895 = vrot.lane.b32.xlu0 %v6857, 56
    %v6896 = vpop.permute.xlu0 %6895
    %6897 = vrot.lane.b32.xlu0 %v6858, 56
    %v6898 = vpop.permute.xlu0 %6897
    %6899 = vrot.lane.b32.xlu0 %v6859, 56
    %v6900 = vpop.permute.xlu0 %6899
    %6901 = vrot.lane.b32.xlu0 %v6860, 56
    %v6902 = vpop.permute.xlu0 %6901
    %6903 = vrot.lane.b32.xlu0 %v6861, 56
    %v6904 = vpop.permute.xlu0 %6903
    %6905 = vrot.lane.b32.xlu0 %v6862, 56
    %v6906 = vpop.permute.xlu0 %6905
    %6907 = vrot.lane.b32.xlu0 %v6863, 56
    %v6908 = vpop.permute.xlu0 %6907
    %6909 = vrot.lane.b32.xlu0 %v6864, 56
    %v6910 = vpop.permute.xlu0 %6909
    %6911 = vrot.lane.b32.xlu0 %v6865, 56
    %v6912 = vpop.permute.xlu0 %6911
    %6913 = vrot.lane.b32.xlu0 %v6866, 56
    %v6914 = vpop.permute.xlu0 %6913
    %6915 = vrot.lane.b32.xlu0 %v6867, 56
    %v6916 = vpop.permute.xlu0 %6915
    %6917 = vrot.lane.b32.xlu0 %v6868, 56
    %v6918 = vpop.permute.xlu0 %6917
    %6919 = vrot.lane.b32.xlu0 %v6869, 56
    %v6920 = vpop.permute.xlu0 %6919
    %6921 = vrot.lane.b32.xlu0 %v6870, 56
    %v6922 = vpop.permute.xlu0 %6921
    %6923 = vrot.lane.b32.xlu0 %v6871, 56
    %v6924 = vpop.permute.xlu0 %6923
    %6925 = vrot.lane.b32.xlu0 %v6872, 56
    %v6926 = vpop.permute.xlu0 %6925
    %6927 = vrot.lane.b32.xlu0 %v6873, 56
    %v6928 = vpop.permute.xlu0 %6927
    %6929 = vrot.lane.b32.xlu0 %v6874, 56
    %v6930 = vpop.permute.xlu0 %6929
    %6931 = vrot.lane.b32.xlu0 %v6875, 56
    %v6932 = vpop.permute.xlu0 %6931
    %6933 = vrot.lane.b32.xlu0 %v6876, 56
    %v6934 = vpop.permute.xlu0 %6933
    %6935 = vrot.lane.b32.xlu0 %v6877, 56
    %v6936 = vpop.permute.xlu0 %6935
    %6937 = vrot.lane.b32.xlu0 %v6878, 56
    %v6938 = vpop.permute.xlu0 %6937
    %6939 = vrot.lane.b32.xlu0 %v6879, 56
    %v6940 = vpop.permute.xlu0 %6939
    %6941 = vrot.lane.b32.xlu0 %v6880, 56
    %v6942 = vpop.permute.xlu0 %6941
    %6943 = vrot.lane.b32.xlu0 %v6881, 56
    %v6944 = vpop.permute.xlu0 %6943
    %6945 = vrot.lane.b32.xlu0 %v6882, 56
    %v6946 = vpop.permute.xlu0 %6945
    %v6947 = vunpack.c.l.b16 %v5414
    %v6948 = vunpack.c.l.b16 %v5417
    %v6949 = vunpack.c.l.b16 %v5421
    %v6950 = vunpack.c.l.b16 %v5424
    %v6951 = vunpack.c.l.b16 %v5428
    %v6952 = vunpack.c.l.b16 %v5431
    %v6953 = vunpack.c.l.b16 %v5435
    %v6954 = vunpack.c.l.b16 %v5438
    %v6955 = vunpack.c.l.b16 %v5442
    %v6956 = vunpack.c.l.b16 %v5445
    %v6957 = vunpack.c.l.b16 %v5449
    %v6958 = vunpack.c.l.b16 %v5452
    %v6959 = vunpack.c.l.b16 %v5456
    %v6960 = vunpack.c.l.b16 %v5459
    %v6961 = vunpack.c.l.b16 %v5463
    %v6962 = vunpack.c.l.b16 %v5466
    %v6963 = vunpack.c.l.b16 %v5470
    %v6964 = vunpack.c.l.b16 %v5473
    %v6965 = vunpack.c.l.b16 %v5477
    %v6966 = vunpack.c.l.b16 %v5480
    %v6967 = vunpack.c.l.b16 %v5484
    %v6968 = vunpack.c.l.b16 %v5487
    %v6969 = vunpack.c.l.b16 %v5491
    %v6970 = vunpack.c.l.b16 %v5494
    %v6971 = vunpack.c.l.b16 %v5498
    %v6972 = vunpack.c.l.b16 %v5501
    %v6973 = vunpack.c.l.b16 %v5505
    %v6974 = vunpack.c.l.b16 %v5508
    %v6975 = vunpack.c.l.b16 %v5512
    %v6976 = vunpack.c.l.b16 %v5515
    %v6977 = vunpack.c.l.b16 %v5519
    %v6978 = vunpack.c.l.b16 %v5522
    %v6979 = vunpack.c.l.b16 %v5526
    %v6980 = vunpack.c.l.b16 %v5529
    %v6981 = vunpack.c.l.b16 %v5533
    %v6982 = vunpack.c.l.b16 %v5536
    %v6983 = vunpack.c.l.b16 %v5540
    %v6984 = vunpack.c.l.b16 %v5543
    %v6985 = vunpack.c.l.b16 %v5547
    %v6986 = vunpack.c.l.b16 %v5550
    %v6987 = vunpack.c.l.b16 %v5554
    %v6988 = vunpack.c.l.b16 %v5557
    %v6989 = vunpack.c.l.b16 %v5561
    %v6990 = vunpack.c.l.b16 %v5564
    %v6991 = vunpack.c.l.b16 %v5568
    %v6992 = vunpack.c.l.b16 %v5571
    %v6993 = vunpack.c.l.b16 %v5575
    %v6994 = vunpack.c.l.b16 %v5578
    %v6995 = vunpack.c.l.b16 %v5582
    %v6996 = vunpack.c.l.b16 %v5585
    %v6997 = vunpack.c.l.b16 %v5589
    %v6998 = vunpack.c.l.b16 %v5592
    %v6999 = vunpack.c.l.b16 %v5596
    %v7000 = vunpack.c.l.b16 %v5599
    %v7001 = vunpack.c.l.b16 %v5603
    %v7002 = vunpack.c.l.b16 %v5606
    %v7003 = vunpack.c.l.b16 %v5610
    %v7004 = vunpack.c.l.b16 %v5613
    %v7005 = vunpack.c.l.b16 %v5617
    %v7006 = vunpack.c.l.b16 %v5620
    %v7007 = vunpack.c.l.b16 %v5624
    %v7008 = vunpack.c.l.b16 %v5627
    %v7009 = vunpack.c.l.b16 %v5631
    %v7010 = vunpack.c.l.b16 %v5634
    %v7011 = vpack.c.b16 %v6948, %v6947
    %v7012 = vpack.c.b16 %v6950, %v6949
    %v7013 = vpack.c.b16 %v6952, %v6951
    %v7014 = vpack.c.b16 %v6954, %v6953
    %v7015 = vpack.c.b16 %v6956, %v6955
    %v7016 = vpack.c.b16 %v6958, %v6957
    %v7017 = vpack.c.b16 %v6960, %v6959
    %v7018 = vpack.c.b16 %v6962, %v6961
    %v7019 = vpack.c.b16 %v6964, %v6963
    %v7020 = vpack.c.b16 %v6966, %v6965
    %v7021 = vpack.c.b16 %v6968, %v6967
    %v7022 = vpack.c.b16 %v6970, %v6969
    %v7023 = vpack.c.b16 %v6972, %v6971
    %v7024 = vpack.c.b16 %v6974, %v6973
    %v7025 = vpack.c.b16 %v6976, %v6975
    %v7026 = vpack.c.b16 %v6978, %v6977
    %v7027 = vpack.c.b16 %v6980, %v6979
    %v7028 = vpack.c.b16 %v6982, %v6981
    %v7029 = vpack.c.b16 %v6984, %v6983
    %v7030 = vpack.c.b16 %v6986, %v6985
    %v7031 = vpack.c.b16 %v6988, %v6987
    %v7032 = vpack.c.b16 %v6990, %v6989
    %v7033 = vpack.c.b16 %v6992, %v6991
    %v7034 = vpack.c.b16 %v6994, %v6993
    %v7035 = vpack.c.b16 %v6996, %v6995
    %v7036 = vpack.c.b16 %v6998, %v6997
    %v7037 = vpack.c.b16 %v7000, %v6999
    %v7038 = vpack.c.b16 %v7002, %v7001
    %v7039 = vpack.c.b16 %v7004, %v7003
    %v7040 = vpack.c.b16 %v7006, %v7005
    %v7041 = vpack.c.b16 %v7008, %v7007
    %v7042 = vpack.c.b16 %v7010, %v7009
    %7043 = vrot.lane.b32.xlu0 %v7011, 64
    %v7044 = vpop.permute.xlu0 %7043
    %7045 = vrot.lane.b32.xlu0 %v7012, 64
    %v7046 = vpop.permute.xlu0 %7045
    %7047 = vrot.lane.b32.xlu0 %v7013, 64
    %v7048 = vpop.permute.xlu0 %7047
    %7049 = vrot.lane.b32.xlu0 %v7014, 64
    %v7050 = vpop.permute.xlu0 %7049
    %7051 = vrot.lane.b32.xlu0 %v7015, 64
    %v7052 = vpop.permute.xlu0 %7051
    %7053 = vrot.lane.b32.xlu0 %v7016, 64
    %v7054 = vpop.permute.xlu0 %7053
    %7055 = vrot.lane.b32.xlu0 %v7017, 64
    %v7056 = vpop.permute.xlu0 %7055
    %7057 = vrot.lane.b32.xlu0 %v7018, 64
    %v7058 = vpop.permute.xlu0 %7057
    %7059 = vrot.lane.b32.xlu0 %v7019, 64
    %v7060 = vpop.permute.xlu0 %7059
    %7061 = vrot.lane.b32.xlu0 %v7020, 64
    %v7062 = vpop.permute.xlu0 %7061
    %7063 = vrot.lane.b32.xlu0 %v7021, 64
    %v7064 = vpop.permute.xlu0 %7063
    %7065 = vrot.lane.b32.xlu0 %v7022, 64
    %v7066 = vpop.permute.xlu0 %7065
    %7067 = vrot.lane.b32.xlu0 %v7023, 64
    %v7068 = vpop.permute.xlu0 %7067
    %7069 = vrot.lane.b32.xlu0 %v7024, 64
    %v7070 = vpop.permute.xlu0 %7069
    %7071 = vrot.lane.b32.xlu0 %v7025, 64
    %v7072 = vpop.permute.xlu0 %7071
    %7073 = vrot.lane.b32.xlu0 %v7026, 64
    %v7074 = vpop.permute.xlu0 %7073
    %7075 = vrot.lane.b32.xlu0 %v7027, 64
    %v7076 = vpop.permute.xlu0 %7075
    %7077 = vrot.lane.b32.xlu0 %v7028, 64
    %v7078 = vpop.permute.xlu0 %7077
    %7079 = vrot.lane.b32.xlu0 %v7029, 64
    %v7080 = vpop.permute.xlu0 %7079
    %7081 = vrot.lane.b32.xlu0 %v7030, 64
    %v7082 = vpop.permute.xlu0 %7081
    %7083 = vrot.lane.b32.xlu0 %v7031, 64
    %v7084 = vpop.permute.xlu0 %7083
    %7085 = vrot.lane.b32.xlu0 %v7032, 64
    %v7086 = vpop.permute.xlu0 %7085
    %7087 = vrot.lane.b32.xlu0 %v7033, 64
    %v7088 = vpop.permute.xlu0 %7087
    %7089 = vrot.lane.b32.xlu0 %v7034, 64
    %v7090 = vpop.permute.xlu0 %7089
    %7091 = vrot.lane.b32.xlu0 %v7035, 64
    %v7092 = vpop.permute.xlu0 %7091
    %7093 = vrot.lane.b32.xlu0 %v7036, 64
    %v7094 = vpop.permute.xlu0 %7093
    %7095 = vrot.lane.b32.xlu0 %v7037, 64
    %v7096 = vpop.permute.xlu0 %7095
    %7097 = vrot.lane.b32.xlu0 %v7038, 64
    %v7098 = vpop.permute.xlu0 %7097
    %7099 = vrot.lane.b32.xlu0 %v7039, 64
    %v7100 = vpop.permute.xlu0 %7099
    %7101 = vrot.lane.b32.xlu0 %v7040, 64
    %v7102 = vpop.permute.xlu0 %7101
    %7103 = vrot.lane.b32.xlu0 %v7041, 64
    %v7104 = vpop.permute.xlu0 %7103
    %7105 = vrot.lane.b32.xlu0 %v7042, 64
    %v7106 = vpop.permute.xlu0 %7105
    %vm7107 = vcmask 64512
    %v7110 = vsel %vm7107, %v5731, %v5860
    %v7113 = vsel %vm7107, %v5732, %v5862
    %v7116 = vsel %vm7107, %v5733, %v5864
    %v7119 = vsel %vm7107, %v5734, %v5866
    %v7122 = vsel %vm7107, %v5735, %v5868
    %v7125 = vsel %vm7107, %v5736, %v5870
    %v7128 = vsel %vm7107, %v5737, %v5872
    %v7131 = vsel %vm7107, %v5738, %v5874
    %v7134 = vsel %vm7107, %v5739, %v5876
    %v7137 = vsel %vm7107, %v5740, %v5878
    %v7140 = vsel %vm7107, %v5741, %v5880
    %v7143 = vsel %vm7107, %v5742, %v5882
    %v7146 = vsel %vm7107, %v5743, %v5884
    %v7149 = vsel %vm7107, %v5744, %v5886
    %v7152 = vsel %vm7107, %v5745, %v5888
    %v7155 = vsel %vm7107, %v5746, %v5890
    %v7158 = vsel %vm7107, %v5747, %v5892
    %v7161 = vsel %vm7107, %v5748, %v5894
    %v7164 = vsel %vm7107, %v5749, %v5896
    %v7167 = vsel %vm7107, %v5750, %v5898
    %v7170 = vsel %vm7107, %v5751, %v5900
    %v7173 = vsel %vm7107, %v5752, %v5902
    %v7176 = vsel %vm7107, %v5753, %v5904
    %v7179 = vsel %vm7107, %v5754, %v5906
    %v7182 = vsel %vm7107, %v5755, %v5908
    %v7185 = vsel %vm7107, %v5756, %v5910
    %v7188 = vsel %vm7107, %v5757, %v5912
    %v7191 = vsel %vm7107, %v5758, %v5914
    %v7194 = vsel %vm7107, %v5759, %v5916
    %v7197 = vsel %vm7107, %v5760, %v5918
    %v7200 = vsel %vm7107, %v5761, %v5920
    %v7203 = vsel %vm7107, %v5762, %v5922
    %v7205 = vsel %vm164, %v7110, %v6020
    %v7207 = vsel %vm164, %v7113, %v6022
    %v7209 = vsel %vm164, %v7116, %v6024
    %v7211 = vsel %vm164, %v7119, %v6026
    %v7213 = vsel %vm164, %v7122, %v6028
    %v7215 = vsel %vm164, %v7125, %v6030
    %v7217 = vsel %vm164, %v7128, %v6032
    %v7219 = vsel %vm164, %v7131, %v6034
    %v7221 = vsel %vm164, %v7134, %v6036
    %v7223 = vsel %vm164, %v7137, %v6038
    %v7225 = vsel %vm164, %v7140, %v6040
    %v7227 = vsel %vm164, %v7143, %v6042
    %v7229 = vsel %vm164, %v7146, %v6044
    %v7231 = vsel %vm164, %v7149, %v6046
    %v7233 = vsel %vm164, %v7152, %v6048
    %v7235 = vsel %vm164, %v7155, %v6050
    %v7237 = vsel %vm164, %v7158, %v6052
    %v7239 = vsel %vm164, %v7161, %v6054
    %v7241 = vsel %vm164, %v7164, %v6056
    %v7243 = vsel %vm164, %v7167, %v6058
    %v7245 = vsel %vm164, %v7170, %v6060
    %v7247 = vsel %vm164, %v7173, %v6062
    %v7249 = vsel %vm164, %v7176, %v6064
    %v7251 = vsel %vm164, %v7179, %v6066
    %v7253 = vsel %vm164, %v7182, %v6068
    %v7255 = vsel %vm164, %v7185, %v6070
    %v7257 = vsel %vm164, %v7188, %v6072
    %v7259 = vsel %vm164, %v7191, %v6074
    %v7261 = vsel %vm164, %v7194, %v6076
    %v7263 = vsel %vm164, %v7197, %v6078
    %v7265 = vsel %vm164, %v7200, %v6080
    %v7267 = vsel %vm164, %v7203, %v6082
    %vm7268 = vcmask 195584
    %v7270 = vsel %vm7268, %v7205, %v6212
    %v7272 = vsel %vm7268, %v7207, %v6214
    %v7274 = vsel %vm7268, %v7209, %v6216
    %v7276 = vsel %vm7268, %v7211, %v6218
    %v7278 = vsel %vm7268, %v7213, %v6220
    %v7280 = vsel %vm7268, %v7215, %v6222
    %v7282 = vsel %vm7268, %v7217, %v6224
    %v7284 = vsel %vm7268, %v7219, %v6226
    %v7286 = vsel %vm7268, %v7221, %v6228
    %v7288 = vsel %vm7268, %v7223, %v6230
    %v7290 = vsel %vm7268, %v7225, %v6232
    %v7292 = vsel %vm7268, %v7227, %v6234
    %v7294 = vsel %vm7268, %v7229, %v6236
    %v7296 = vsel %vm7268, %v7231, %v6238
    %v7298 = vsel %vm7268, %v7233, %v6240
    %v7300 = vsel %vm7268, %v7235, %v6242
    %v7302 = vsel %vm7268, %v7237, %v6244
    %v7304 = vsel %vm7268, %v7239, %v6246
    %v7306 = vsel %vm7268, %v7241, %v6248
    %v7308 = vsel %vm7268, %v7243, %v6250
    %v7310 = vsel %vm7268, %v7245, %v6252
    %v7312 = vsel %vm7268, %v7247, %v6254
    %v7314 = vsel %vm7268, %v7249, %v6256
    %v7316 = vsel %vm7268, %v7251, %v6258
    %v7318 = vsel %vm7268, %v7253, %v6260
    %v7320 = vsel %vm7268, %v7255, %v6262
    %v7322 = vsel %vm7268, %v7257, %v6264
    %v7324 = vsel %vm7268, %v7259, %v6266
    %v7326 = vsel %vm7268, %v7261, %v6268
    %v7328 = vsel %vm7268, %v7263, %v6270
    %v7330 = vsel %vm7268, %v7265, %v6272
    %v7332 = vsel %vm7268, %v7267, %v6274
    %vm7333 = vcmask 261120
    %v7335 = vsel %vm7333, %v7270, %v6372
    %v7337 = vsel %vm7333, %v7272, %v6374
    %v7339 = vsel %vm7333, %v7274, %v6376
    %v7341 = vsel %vm7333, %v7276, %v6378
    %v7343 = vsel %vm7333, %v7278, %v6380
    %v7345 = vsel %vm7333, %v7280, %v6382
    %v7347 = vsel %vm7333, %v7282, %v6384
    %v7349 = vsel %vm7333, %v7284, %v6386
    %v7351 = vsel %vm7333, %v7286, %v6388
    %v7353 = vsel %vm7333, %v7288, %v6390
    %v7355 = vsel %vm7333, %v7290, %v6392
    %v7357 = vsel %vm7333, %v7292, %v6394
    %v7359 = vsel %vm7333, %v7294, %v6396
    %v7361 = vsel %vm7333, %v7296, %v6398
    %v7363 = vsel %vm7333, %v7298, %v6400
    %v7365 = vsel %vm7333, %v7300, %v6402
    %v7367 = vsel %vm7333, %v7302, %v6404
    %v7369 = vsel %vm7333, %v7304, %v6406
    %v7371 = vsel %vm7333, %v7306, %v6408
    %v7373 = vsel %vm7333, %v7308, %v6410
    %v7375 = vsel %vm7333, %v7310, %v6412
    %v7377 = vsel %vm7333, %v7312, %v6414
    %v7379 = vsel %vm7333, %v7314, %v6416
    %v7381 = vsel %vm7333, %v7316, %v6418
    %v7383 = vsel %vm7333, %v7318, %v6420
    %v7385 = vsel %vm7333, %v7320, %v6422
    %v7387 = vsel %vm7333, %v7322, %v6424
    %v7389 = vsel %vm7333, %v7324, %v6426
    %v7391 = vsel %vm7333, %v7326, %v6428
    %v7393 = vsel %vm7333, %v7328, %v6430
    %v7395 = vsel %vm7333, %v7330, %v6432
    %v7397 = vsel %vm7333, %v7332, %v6434
    %vm7398 = vcmask 326656
    %v7400 = vsel %vm7398, %v7335, %v6532
    %v7402 = vsel %vm7398, %v7337, %v6534
    %v7404 = vsel %vm7398, %v7339, %v6536
    %v7406 = vsel %vm7398, %v7341, %v6538
    %v7408 = vsel %vm7398, %v7343, %v6540
    %v7410 = vsel %vm7398, %v7345, %v6542
    %v7412 = vsel %vm7398, %v7347, %v6544
    %v7414 = vsel %vm7398, %v7349, %v6546
    %v7416 = vsel %vm7398, %v7351, %v6548
    %v7418 = vsel %vm7398, %v7353, %v6550
    %v7420 = vsel %vm7398, %v7355, %v6552
    %v7422 = vsel %vm7398, %v7357, %v6554
    %v7424 = vsel %vm7398, %v7359, %v6556
    %v7426 = vsel %vm7398, %v7361, %v6558
    %v7428 = vsel %vm7398, %v7363, %v6560
    %v7430 = vsel %vm7398, %v7365, %v6562
    %v7432 = vsel %vm7398, %v7367, %v6564
    %v7434 = vsel %vm7398, %v7369, %v6566
    %v7436 = vsel %vm7398, %v7371, %v6568
    %v7438 = vsel %vm7398, %v7373, %v6570
    %v7440 = vsel %vm7398, %v7375, %v6572
    %v7442 = vsel %vm7398, %v7377, %v6574
    %v7444 = vsel %vm7398, %v7379, %v6576
    %v7446 = vsel %vm7398, %v7381, %v6578
    %v7448 = vsel %vm7398, %v7383, %v6580
    %v7450 = vsel %vm7398, %v7385, %v6582
    %v7452 = vsel %vm7398, %v7387, %v6584
    %v7454 = vsel %vm7398, %v7389, %v6586
    %v7456 = vsel %vm7398, %v7391, %v6588
    %v7458 = vsel %vm7398, %v7393, %v6590
    %v7460 = vsel %vm7398, %v7395, %v6592
    %v7462 = vsel %vm7398, %v7397, %v6594
    %vm7463 = vcmask 392192
    %v7465 = vsel %vm7463, %v7400, %v6724
    %v7467 = vsel %vm7463, %v7402, %v6726
    %v7469 = vsel %vm7463, %v7404, %v6728
    %v7471 = vsel %vm7463, %v7406, %v6730
    %v7473 = vsel %vm7463, %v7408, %v6732
    %v7475 = vsel %vm7463, %v7410, %v6734
    %v7477 = vsel %vm7463, %v7412, %v6736
    %v7479 = vsel %vm7463, %v7414, %v6738
    %v7481 = vsel %vm7463, %v7416, %v6740
    %v7483 = vsel %vm7463, %v7418, %v6742
    %v7485 = vsel %vm7463, %v7420, %v6744
    %v7487 = vsel %vm7463, %v7422, %v6746
    %v7489 = vsel %vm7463, %v7424, %v6748
    %v7491 = vsel %vm7463, %v7426, %v6750
    %v7493 = vsel %vm7463, %v7428, %v6752
    %v7495 = vsel %vm7463, %v7430, %v6754
    %v7497 = vsel %vm7463, %v7432, %v6756
    %v7499 = vsel %vm7463, %v7434, %v6758
    %v7501 = vsel %vm7463, %v7436, %v6760
    %v7503 = vsel %vm7463, %v7438, %v6762
    %v7505 = vsel %vm7463, %v7440, %v6764
    %v7507 = vsel %vm7463, %v7442, %v6766
    %v7509 = vsel %vm7463, %v7444, %v6768
    %v7511 = vsel %vm7463, %v7446, %v6770
    %v7513 = vsel %vm7463, %v7448, %v6772
    %v7515 = vsel %vm7463, %v7450, %v6774
    %v7517 = vsel %vm7463, %v7452, %v6776
    %v7519 = vsel %vm7463, %v7454, %v6778
    %v7521 = vsel %vm7463, %v7456, %v6780
    %v7523 = vsel %vm7463, %v7458, %v6782
    %v7525 = vsel %vm7463, %v7460, %v6784
    %v7527 = vsel %vm7463, %v7462, %v6786
    %vm7528 = vcmask 457728
    %v7530 = vsel %vm7528, %v7465, %v6884
    %v7532 = vsel %vm7528, %v7467, %v6886
    %v7534 = vsel %vm7528, %v7469, %v6888
    %v7536 = vsel %vm7528, %v7471, %v6890
    %v7538 = vsel %vm7528, %v7473, %v6892
    %v7540 = vsel %vm7528, %v7475, %v6894
    %v7542 = vsel %vm7528, %v7477, %v6896
    %v7544 = vsel %vm7528, %v7479, %v6898
    %v7546 = vsel %vm7528, %v7481, %v6900
    %v7548 = vsel %vm7528, %v7483, %v6902
    %v7550 = vsel %vm7528, %v7485, %v6904
    %v7552 = vsel %vm7528, %v7487, %v6906
    %v7554 = vsel %vm7528, %v7489, %v6908
    %v7556 = vsel %vm7528, %v7491, %v6910
    %v7558 = vsel %vm7528, %v7493, %v6912
    %v7560 = vsel %vm7528, %v7495, %v6914
    %v7562 = vsel %vm7528, %v7497, %v6916
    %v7564 = vsel %vm7528, %v7499, %v6918
    %v7566 = vsel %vm7528, %v7501, %v6920
    %v7568 = vsel %vm7528, %v7503, %v6922
    %v7570 = vsel %vm7528, %v7505, %v6924
    %v7572 = vsel %vm7528, %v7507, %v6926
    %v7574 = vsel %vm7528, %v7509, %v6928
    %v7576 = vsel %vm7528, %v7511, %v6930
    %v7578 = vsel %vm7528, %v7513, %v6932
    %v7580 = vsel %vm7528, %v7515, %v6934
    %v7582 = vsel %vm7528, %v7517, %v6936
    %v7584 = vsel %vm7528, %v7519, %v6938
    %v7586 = vsel %vm7528, %v7521, %v6940
    %v7588 = vsel %vm7528, %v7523, %v6942
    %v7590 = vsel %vm7528, %v7525, %v6944
    %v7592 = vsel %vm7528, %v7527, %v6946
    %vm7593 = vcmask 523264
    %v7595 = vsel %vm7593, %v7530, %v7044
    %v7597 = vsel %vm7593, %v7532, %v7046
    %v7599 = vsel %vm7593, %v7534, %v7048
    %v7601 = vsel %vm7593, %v7536, %v7050
    %v7603 = vsel %vm7593, %v7538, %v7052
    %v7605 = vsel %vm7593, %v7540, %v7054
    %v7607 = vsel %vm7593, %v7542, %v7056
    %v7609 = vsel %vm7593, %v7544, %v7058
    %v7611 = vsel %vm7593, %v7546, %v7060
    %v7613 = vsel %vm7593, %v7548, %v7062
    %v7615 = vsel %vm7593, %v7550, %v7064
    %v7617 = vsel %vm7593, %v7552, %v7066
    %v7619 = vsel %vm7593, %v7554, %v7068
    %v7621 = vsel %vm7593, %v7556, %v7070
    %v7623 = vsel %vm7593, %v7558, %v7072
    %v7625 = vsel %vm7593, %v7560, %v7074
    %v7627 = vsel %vm7593, %v7562, %v7076
    %v7629 = vsel %vm7593, %v7564, %v7078
    %v7631 = vsel %vm7593, %v7566, %v7080
    %v7633 = vsel %vm7593, %v7568, %v7082
    %v7635 = vsel %vm7593, %v7570, %v7084
    %v7637 = vsel %vm7593, %v7572, %v7086
    %v7639 = vsel %vm7593, %v7574, %v7088
    %v7641 = vsel %vm7593, %v7576, %v7090
    %v7643 = vsel %vm7593, %v7578, %v7092
    %v7645 = vsel %vm7593, %v7580, %v7094
    %v7647 = vsel %vm7593, %v7582, %v7096
    %v7649 = vsel %vm7593, %v7584, %v7098
    %v7651 = vsel %vm7593, %v7586, %v7100
    %v7653 = vsel %vm7593, %v7588, %v7102
    %v7655 = vsel %vm7593, %v7590, %v7104
    %v7657 = vsel %vm7593, %v7592, %v7106
    %v7658 = vld [vmem:[%s4] sm:$0xf]
    %v7659 = vld [vmem:[%s4 + $0x4] sm:$0xf]
    %v7660 = vld [vmem:[%s4 + $0x8] sm:$0xf]
    %v7661 = vld [vmem:[%s4 + $0xc] sm:$0xf]
    %v7662 = vld [vmem:[%s4 + $0x10] sm:$0xf]
    %v7663 = vld [vmem:[%s4 + $0x14] sm:$0xf]
    %v7664 = vld [vmem:[%s4 + $0x18] sm:$0xf]
    %v7665 = vld [vmem:[%s4 + $0x1c] sm:$0xf]
    %v7666 = vld [vmem:[%s4 + $0x20] sm:$0xf]
    %v7676 = vunpack.c.l.b16 %v7658
    %v7677 = vunpack.c.l.b16 %v7659
    %v7678 = vunpack.c.l.b16 %v7660
    %v7679 = vunpack.c.l.b16 %v7661
    %v7680 = vunpack.c.l.b16 %v7662
    %v7681 = vunpack.c.l.b16 %v7663
    %v7682 = vunpack.c.l.b16 %v7664
    %v7683 = vunpack.c.l.b16 %v7665
    %v7684 = vunpack.c.l.b16 %v7666
    %v7685 = vpack.c.b16 %v7677, %v7676
    %v7686 = vpack.c.b16 %v7679, %v7678
    %v7687 = vpack.c.b16 %v7681, %v7680
    %v7688 = vpack.c.b16 %v7683, %v7682
    %v7689 = vpack.c.b16 %v7684, %v7684
    %vm7694 = vcmask 588800
    %v7695 = vsel %vm7694, %v7595, 0
    %v7697 = vsel %vm7694, %v7597, 0
    %v7699 = vsel %vm7694, %v7599, 0
    %v7701 = vsel %vm7694, %v7601, 0
    %v7703 = vsel %vm7694, %v7603, 0
    %v7705 = vsel %vm7694, %v7605, 0
    %v7707 = vsel %vm7694, %v7607, 0
    %v7709 = vsel %vm7694, %v7609, 0
    %v7711 = vsel %vm7694, %v7611, 0
    %v7713 = vsel %vm7694, %v7613, 0
    %v7715 = vsel %vm7694, %v7615, 0
    %v7717 = vsel %vm7694, %v7617, 0
    %v7719 = vsel %vm7694, %v7619, 0
    %v7721 = vsel %vm7694, %v7621, 0
    %v7723 = vsel %vm7694, %v7623, 0
    %v7725 = vsel %vm7694, %v7625, 0
    %v7727 = vsel %vm7694, %v7627, 0
    %v7729 = vsel %vm7694, %v7629, 0
    %v7731 = vsel %vm7694, %v7631, 0
    %v7733 = vsel %vm7694, %v7633, 0
    %v7735 = vsel %vm7694, %v7635, 0
    %v7737 = vsel %vm7694, %v7637, 0
    %v7739 = vsel %vm7694, %v7639, 0
    %v7741 = vsel %vm7694, %v7641, 0
    %v7743 = vsel %vm7694, %v7643, 0
    %v7745 = vsel %vm7694, %v7645, 0
    %v7747 = vsel %vm7694, %v7647, 0
    %v7749 = vsel %vm7694, %v7649, 0
    %v7751 = vsel %vm7694, %v7651, 0
    %v7753 = vsel %vm7694, %v7653, 0
    %v7755 = vsel %vm7694, %v7655, 0
    %v7757 = vsel %vm7694, %v7657, 0
    %vm7759 = vcmask 1043456
    %v7761 = vsel %vm7759, %v7689, 0
    %7763 = vmatprep.subr.bf16.mxu0 0
    %7764 = vmatpush1.bf16.msra.mxu0 0
    %7765 = vmatprep.subr.bf16.mxu0 0
    %7766 = vmatpush1.bf16.msra.mxu0 0
    %7767 = vmatprep.subr.bf16.mxu0 0
    %7768 = vmatpush1.bf16.msra.mxu0 0
    %7769 = vmatprep.subr.bf16.mxu0 0
    %7770 = vmatpush1.bf16.msra.mxu0 %v7761
    %7771 = vmatprep.subr.bf16.mxu0 0
    %7772 = vmatpush1.bf16.msra.mxu0 %v7688
    %7773 = vmatprep.subr.bf16.mxu0 0
    %7774 = vmatpush1.bf16.msra.mxu0 %v7687
    %7775 = vmatprep.subr.bf16.mxu0 0
    %7776 = vmatpush1.bf16.msra.mxu0 %v7686
    %7777 = vmatprep.subr.bf16.mxu0 0
    %7778 = vmatpush1.bf16.msra.mxu0 %v7685
    %7779 = vmatprep.subr.bf16.mxu0 0
    %7780 = vmatpush2.bf16.msra.mxu0 0
    %7781 = vmatprep.subr.bf16.mxu0 0
    %7782 = vmatpush2.bf16.msra.mxu0 0
    %7783 = vmatprep.subr.bf16.mxu0 0
    %7784 = vmatpush2.bf16.msra.mxu0 0
    %7785 = vmatprep.subr.bf16.mxu0 0
    %7786 = vmatpush2.bf16.msra.mxu0 0
    %7787 = vmatprep.subr.bf16.mxu0 0
    %7788 = vmatpush2.bf16.msra.mxu0 0
    %7789 = vmatprep.subr.bf16.mxu0 0
    %7790 = vmatpush2.bf16.msra.mxu0 0
    %7791 = vmatprep.subr.bf16.mxu0 0
    %7792 = vmatpush2.bf16.msra.mxu0 0
    %7793 = vmatprep.subr.bf16.mxu0 0
    %7794 = vmatpush2.bf16.msra.mxu0 0
    %7795 = vmatprep.mubr.bf16.mxu0 0
    %7796 = vmatmul.mubr.bf16.gmra.mxu0 %v7695
    %v7797 = vpop.f32.mrf.mxu0
    %v7798 = vadd.f32 0.0, %v7797
    %v7799 = vpop.f32.mrf.mxu0
    %v7800 = vpop.f32.mrf.mxu0
    %v7801 = vadd.f32 0.0, %v7800
    %v7802 = vpop.f32.mrf.mxu0
    %7803 = vmatprep.mubr.bf16.mxu0 0
    %7804 = vmatmul.mubr.bf16.gmra.mxu0 %v7697
    %v7805 = vpop.f32.mrf.mxu0
    %v7806 = vadd.f32 0.0, %v7805
    %v7807 = vpop.f32.mrf.mxu0
    %v7808 = vpop.f32.mrf.mxu0
    %v7809 = vadd.f32 0.0, %v7808
    %v7810 = vpop.f32.mrf.mxu0
    %7811 = vmatprep.mubr.bf16.mxu0 0
    %7812 = vmatmul.mubr.bf16.gmra.mxu0 %v7699
    %v7813 = vpop.f32.mrf.mxu0
    %v7814 = vadd.f32 0.0, %v7813
    %v7815 = vpop.f32.mrf.mxu0
    %v7816 = vpop.f32.mrf.mxu0
    %v7817 = vadd.f32 0.0, %v7816
    %v7818 = vpop.f32.mrf.mxu0
    %7819 = vmatprep.mubr.bf16.mxu0 0
    %7820 = vmatmul.mubr.bf16.gmra.mxu0 %v7701
    %v7821 = vpop.f32.mrf.mxu0
    %v7822 = vadd.f32 0.0, %v7821
    %v7823 = vpop.f32.mrf.mxu0
    %v7824 = vpop.f32.mrf.mxu0
    %v7825 = vadd.f32 0.0, %v7824
    %v7826 = vpop.f32.mrf.mxu0
    %7827 = vmatprep.mubr.bf16.mxu0 0
    %7828 = vmatmul.mubr.bf16.gmra.mxu0 %v7703
    %v7829 = vpop.f32.mrf.mxu0
    %v7830 = vadd.f32 0.0, %v7829
    %v7831 = vpop.f32.mrf.mxu0
    %v7832 = vpop.f32.mrf.mxu0
    %v7833 = vadd.f32 0.0, %v7832
    %v7834 = vpop.f32.mrf.mxu0
    %7835 = vmatprep.mubr.bf16.mxu0 0
    %7836 = vmatmul.mubr.bf16.gmra.mxu0 %v7705
    %v7837 = vpop.f32.mrf.mxu0
    %v7838 = vadd.f32 0.0, %v7837
    %v7839 = vpop.f32.mrf.mxu0
    %v7840 = vpop.f32.mrf.mxu0
    %v7841 = vadd.f32 0.0, %v7840
    %v7842 = vpop.f32.mrf.mxu0
    %7843 = vmatprep.mubr.bf16.mxu0 0
    %7844 = vmatmul.mubr.bf16.gmra.mxu0 %v7707
    %v7845 = vpop.f32.mrf.mxu0
    %v7846 = vadd.f32 0.0, %v7845
    %v7847 = vpop.f32.mrf.mxu0
    %v7848 = vpop.f32.mrf.mxu0
    %v7849 = vadd.f32 0.0, %v7848
    %v7850 = vpop.f32.mrf.mxu0
    %7851 = vmatprep.mubr.bf16.mxu0 0
    %7852 = vmatmul.mubr.bf16.gmra.mxu0 %v7709
    %v7853 = vpop.f32.mrf.mxu0
    %v7854 = vadd.f32 0.0, %v7853
    %v7855 = vpop.f32.mrf.mxu0
    %v7856 = vpop.f32.mrf.mxu0
    %v7857 = vadd.f32 0.0, %v7856
    %v7858 = vpop.f32.mrf.mxu0
    %7859 = vmatprep.mubr.bf16.mxu0 0
    %7860 = vmatmul.mubr.bf16.gmra.mxu0 %v7711
    %v7861 = vpop.f32.mrf.mxu0
    %v7862 = vadd.f32 0.0, %v7861
    %v7863 = vpop.f32.mrf.mxu0
    %v7864 = vpop.f32.mrf.mxu0
    %v7865 = vadd.f32 0.0, %v7864
    %v7866 = vpop.f32.mrf.mxu0
    %7867 = vmatprep.mubr.bf16.mxu0 0
    %7868 = vmatmul.mubr.bf16.gmra.mxu0 %v7713
    %v7869 = vpop.f32.mrf.mxu0
    %v7870 = vadd.f32 0.0, %v7869
    %v7871 = vpop.f32.mrf.mxu0
    %v7872 = vpop.f32.mrf.mxu0
    %v7873 = vadd.f32 0.0, %v7872
    %v7874 = vpop.f32.mrf.mxu0
    %7875 = vmatprep.mubr.bf16.mxu0 0
    %7876 = vmatmul.mubr.bf16.gmra.mxu0 %v7715
    %v7877 = vpop.f32.mrf.mxu0
    %v7878 = vadd.f32 0.0, %v7877
    %v7879 = vpop.f32.mrf.mxu0
    %v7880 = vpop.f32.mrf.mxu0
    %v7881 = vadd.f32 0.0, %v7880
    %v7882 = vpop.f32.mrf.mxu0
    %7883 = vmatprep.mubr.bf16.mxu0 0
    %7884 = vmatmul.mubr.bf16.gmra.mxu0 %v7717
    %v7885 = vpop.f32.mrf.mxu0
    %v7886 = vadd.f32 0.0, %v7885
    %v7887 = vpop.f32.mrf.mxu0
    %v7888 = vpop.f32.mrf.mxu0
    %v7889 = vadd.f32 0.0, %v7888
    %v7890 = vpop.f32.mrf.mxu0
    %7891 = vmatprep.mubr.bf16.mxu0 0
    %7892 = vmatmul.mubr.bf16.gmra.mxu0 %v7719
    %v7893 = vpop.f32.mrf.mxu0
    %v7894 = vadd.f32 0.0, %v7893
    %v7895 = vpop.f32.mrf.mxu0
    %v7896 = vpop.f32.mrf.mxu0
    %v7897 = vadd.f32 0.0, %v7896
    %v7898 = vpop.f32.mrf.mxu0
    %7899 = vmatprep.mubr.bf16.mxu0 0
    %7900 = vmatmul.mubr.bf16.gmra.mxu0 %v7721
    %v7901 = vpop.f32.mrf.mxu0
    %v7902 = vadd.f32 0.0, %v7901
    %v7903 = vpop.f32.mrf.mxu0
    %v7904 = vpop.f32.mrf.mxu0
    %v7905 = vadd.f32 0.0, %v7904
    %v7906 = vpop.f32.mrf.mxu0
    %7907 = vmatprep.mubr.bf16.mxu0 0
    %7908 = vmatmul.mubr.bf16.gmra.mxu0 %v7723
    %v7909 = vpop.f32.mrf.mxu0
    %v7910 = vadd.f32 0.0, %v7909
    %v7911 = vpop.f32.mrf.mxu0
    %v7912 = vpop.f32.mrf.mxu0
    %v7913 = vadd.f32 0.0, %v7912
    %v7914 = vpop.f32.mrf.mxu0
    %7915 = vmatprep.mubr.bf16.mxu0 0
    %7916 = vmatmul.mubr.bf16.gmra.mxu0 %v7725
    %v7917 = vpop.f32.mrf.mxu0
    %v7918 = vadd.f32 0.0, %v7917
    %v7919 = vpop.f32.mrf.mxu0
    %v7920 = vpop.f32.mrf.mxu0
    %v7921 = vadd.f32 0.0, %v7920
    %v7922 = vpop.f32.mrf.mxu0
    %7923 = vmatprep.mubr.bf16.mxu0 0
    %7924 = vmatmul.mubr.bf16.gmra.mxu0 %v7727
    %v7925 = vpop.f32.mrf.mxu0
    %v7926 = vadd.f32 0.0, %v7925
    %v7927 = vpop.f32.mrf.mxu0
    %v7928 = vpop.f32.mrf.mxu0
    %v7929 = vadd.f32 0.0, %v7928
    %v7930 = vpop.f32.mrf.mxu0
    %7931 = vmatprep.mubr.bf16.mxu0 0
    %7932 = vmatmul.mubr.bf16.gmra.mxu0 %v7729
    %v7933 = vpop.f32.mrf.mxu0
    %v7934 = vadd.f32 0.0, %v7933
    %v7935 = vpop.f32.mrf.mxu0
    %v7936 = vpop.f32.mrf.mxu0
    %v7937 = vadd.f32 0.0, %v7936
    %v7938 = vpop.f32.mrf.mxu0
    %7939 = vmatprep.mubr.bf16.mxu0 0
    %7940 = vmatmul.mubr.bf16.gmra.mxu0 %v7731
    %v7941 = vpop.f32.mrf.mxu0
    %v7942 = vadd.f32 0.0, %v7941
    %v7943 = vpop.f32.mrf.mxu0
    %v7944 = vpop.f32.mrf.mxu0
    %v7945 = vadd.f32 0.0, %v7944
    %v7946 = vpop.f32.mrf.mxu0
    %7947 = vmatprep.mubr.bf16.mxu0 0
    %7948 = vmatmul.mubr.bf16.gmra.mxu0 %v7733
    %v7949 = vpop.f32.mrf.mxu0
    %v7950 = vadd.f32 0.0, %v7949
    %v7951 = vpop.f32.mrf.mxu0
    %v7952 = vpop.f32.mrf.mxu0
    %v7953 = vadd.f32 0.0, %v7952
    %v7954 = vpop.f32.mrf.mxu0
    %7955 = vmatprep.mubr.bf16.mxu0 0
    %7956 = vmatmul.mubr.bf16.gmra.mxu0 %v7735
    %v7957 = vpop.f32.mrf.mxu0
    %v7958 = vadd.f32 0.0, %v7957
    %v7959 = vpop.f32.mrf.mxu0
    %v7960 = vpop.f32.mrf.mxu0
    %v7961 = vadd.f32 0.0, %v7960
    %v7962 = vpop.f32.mrf.mxu0
    %7963 = vmatprep.mubr.bf16.mxu0 0
    %7964 = vmatmul.mubr.bf16.gmra.mxu0 %v7737
    %v7965 = vpop.f32.mrf.mxu0
    %v7966 = vadd.f32 0.0, %v7965
    %v7967 = vpop.f32.mrf.mxu0
    %v7968 = vpop.f32.mrf.mxu0
    %v7969 = vadd.f32 0.0, %v7968
    %v7970 = vpop.f32.mrf.mxu0
    %7971 = vmatprep.mubr.bf16.mxu0 0
    %7972 = vmatmul.mubr.bf16.gmra.mxu0 %v7739
    %v7973 = vpop.f32.mrf.mxu0
    %v7974 = vadd.f32 0.0, %v7973
    %v7975 = vpop.f32.mrf.mxu0
    %v7976 = vpop.f32.mrf.mxu0
    %v7977 = vadd.f32 0.0, %v7976
    %v7978 = vpop.f32.mrf.mxu0
    %7979 = vmatprep.mubr.bf16.mxu0 0
    %7980 = vmatmul.mubr.bf16.gmra.mxu0 %v7741
    %v7981 = vpop.f32.mrf.mxu0
    %v7982 = vadd.f32 0.0, %v7981
    %v7983 = vpop.f32.mrf.mxu0
    %v7984 = vpop.f32.mrf.mxu0
    %v7985 = vadd.f32 0.0, %v7984
    %v7986 = vpop.f32.mrf.mxu0
    %7987 = vmatprep.mubr.bf16.mxu0 0
    %7988 = vmatmul.mubr.bf16.gmra.mxu0 %v7743
    %v7989 = vpop.f32.mrf.mxu0
    %v7990 = vadd.f32 0.0, %v7989
    %v7991 = vpop.f32.mrf.mxu0
    %v7992 = vpop.f32.mrf.mxu0
    %v7993 = vadd.f32 0.0, %v7992
    %v7994 = vpop.f32.mrf.mxu0
    %7995 = vmatprep.mubr.bf16.mxu0 0
    %7996 = vmatmul.mubr.bf16.gmra.mxu0 %v7745
    %v7997 = vpop.f32.mrf.mxu0
    %v7998 = vadd.f32 0.0, %v7997
    %v7999 = vpop.f32.mrf.mxu0
    %v8000 = vpop.f32.mrf.mxu0
    %v8001 = vadd.f32 0.0, %v8000
    %v8002 = vpop.f32.mrf.mxu0
    %8003 = vmatprep.mubr.bf16.mxu0 0
    %8004 = vmatmul.mubr.bf16.gmra.mxu0 %v7747
    %v8005 = vpop.f32.mrf.mxu0
    %v8006 = vadd.f32 0.0, %v8005
    %v8007 = vpop.f32.mrf.mxu0
    %v8008 = vpop.f32.mrf.mxu0
    %v8009 = vadd.f32 0.0, %v8008
    %v8010 = vpop.f32.mrf.mxu0
    %8011 = vmatprep.mubr.bf16.mxu0 0
    %8012 = vmatmul.mubr.bf16.gmra.mxu0 %v7749
    %v8013 = vpop.f32.mrf.mxu0
    %v8014 = vadd.f32 0.0, %v8013
    %v8015 = vpop.f32.mrf.mxu0
    %v8016 = vpop.f32.mrf.mxu0
    %v8017 = vadd.f32 0.0, %v8016
    %v8018 = vpop.f32.mrf.mxu0
    %8019 = vmatprep.mubr.bf16.mxu0 0
    %8020 = vmatmul.mubr.bf16.gmra.mxu0 %v7751
    %v8021 = vpop.f32.mrf.mxu0
    %v8022 = vadd.f32 0.0, %v8021
    %v8023 = vpop.f32.mrf.mxu0
    %v8024 = vpop.f32.mrf.mxu0
    %v8025 = vadd.f32 0.0, %v8024
    %v8026 = vpop.f32.mrf.mxu0
    %8027 = vmatprep.mubr.bf16.mxu0 0
    %8028 = vmatmul.mubr.bf16.gmra.mxu0 %v7753
    %v8029 = vpop.f32.mrf.mxu0
    %v8030 = vadd.f32 0.0, %v8029
    %v8031 = vpop.f32.mrf.mxu0
    %v8032 = vpop.f32.mrf.mxu0
    %v8033 = vadd.f32 0.0, %v8032
    %v8034 = vpop.f32.mrf.mxu0
    %8035 = vmatprep.mubr.bf16.mxu0 0
    %8036 = vmatmul.mubr.bf16.gmra.mxu0 %v7755
    %v8037 = vpop.f32.mrf.mxu0
    %v8038 = vadd.f32 0.0, %v8037
    %v8039 = vpop.f32.mrf.mxu0
    %v8040 = vpop.f32.mrf.mxu0
    %v8041 = vadd.f32 0.0, %v8040
    %v8042 = vpop.f32.mrf.mxu0
    %8043 = vmatprep.mubr.bf16.mxu0 0
    %8044 = vmatmul.mubr.bf16.gmra.mxu0 %v7757
    %v8045 = vpop.f32.mrf.mxu0
    %v8046 = vadd.f32 0.0, %v8045
    %v8047 = vpop.f32.mrf.mxu0
    %v8048 = vpop.f32.mrf.mxu0
    %v8049 = vadd.f32 0.0, %v8048
    %v8050 = vpop.f32.mrf.mxu0
    %8051 = vdwg.mxu0
    %8052 = vmatprep.subr.mxu0 0.0
    %8053 = vmatpush1.msra.mxu0 %v7857
    %8054 = vmatprep.subr.mxu0 0.0
    %8055 = vmatpush1.msra.mxu0 %v7854
    %8056 = vmatprep.subr.mxu0 0.0
    %8057 = vmatpush1.msra.mxu0 %v7849
    %8058 = vmatprep.subr.mxu0 0.0
    %8059 = vmatpush1.msra.mxu0 %v7846
    %8060 = vmatprep.subr.mxu0 0.0
    %8061 = vmatpush1.msra.mxu0 %v7841
    %8062 = vmatprep.subr.mxu0 0.0
    %8063 = vmatpush1.msra.mxu0 %v7838
    %8064 = vmatprep.subr.mxu0 0.0
    %8065 = vmatpush1.msra.mxu0 %v7833
    %8066 = vmatprep.subr.mxu0 0.0
    %8067 = vmatpush1.msra.mxu0 %v7830
    %8068 = vmatprep.subr.mxu0 0.0
    %8069 = vmatpush1.msra.mxu0 %v7825
    %8070 = vmatprep.subr.mxu0 0.0
    %8071 = vmatpush1.msra.mxu0 %v7822
    %8072 = vmatprep.subr.mxu0 0.0
    %8073 = vmatpush1.msra.mxu0 %v7817
    %8074 = vmatprep.subr.mxu0 0.0
    %8075 = vmatpush1.msra.mxu0 %v7814
    %8076 = vmatprep.subr.mxu0 0.0
    %8077 = vmatpush1.msra.mxu0 %v7809
    %8078 = vmatprep.subr.mxu0 0.0
    %8079 = vmatpush1.msra.mxu0 %v7806
    %8080 = vmatprep.subr.mxu0 0.0
    %8081 = vmatpush1.msra.mxu0 %v7801
    %8082 = vmatprep.subr.mxu0 0.0
    %8083 = vmatpush1.msra.mxu0 %v7798
    %8084 = vmatprep.subr.mxu0 0.0
    %8085 = vmatpush2.msra.mxu0 %v7921
    %8086 = vmatprep.subr.mxu0 0.0
    %8087 = vmatpush2.msra.mxu0 %v7918
    %8088 = vmatprep.subr.mxu0 0.0
    %8089 = vmatpush2.msra.mxu0 %v7913
    %8090 = vmatprep.subr.mxu0 0.0
    %8091 = vmatpush2.msra.mxu0 %v7910
    %8092 = vmatprep.subr.mxu0 0.0
    %8093 = vmatpush2.msra.mxu0 %v7905
    %8094 = vmatprep.subr.mxu0 0.0
    %8095 = vmatpush2.msra.mxu0 %v7902
    %8096 = vmatprep.subr.mxu0 0.0
    %8097 = vmatpush2.msra.mxu0 %v7897
    %8098 = vmatprep.subr.mxu0 0.0
    %8099 = vmatpush2.msra.mxu0 %v7894
    %8100 = vmatprep.subr.mxu0 0.0
    %8101 = vmatpush2.msra.mxu0 %v7889
    %8102 = vmatprep.subr.mxu0 0.0
    %8103 = vmatpush2.msra.mxu0 %v7886
    %8104 = vmatprep.subr.mxu0 0.0
    %8105 = vmatpush2.msra.mxu0 %v7881
    %8106 = vmatprep.subr.mxu0 0.0
    %8107 = vmatpush2.msra.mxu0 %v7878
    %8108 = vmatprep.subr.mxu0 0.0
    %8109 = vmatpush2.msra.mxu0 %v7873
    %8110 = vmatprep.subr.mxu0 0.0
    %8111 = vmatpush2.msra.mxu0 %v7870
    %8112 = vmatprep.subr.mxu0 0.0
    %8113 = vmatpush2.msra.mxu0 %v7865
    %8114 = vmatprep.subr.mxu0 0.0
    %8115 = vmatpush2.msra.mxu0 %v7862
    %8116 = vmatprep.mubr.f32.mxu0 0.001953125
    %8117 = vmatmul.mubr.f32.gmra.mxu0 0.001953125
    %v8118 = vpop.f32.mrf.mxu0
    %v8119 = vadd.f32 0.0, %v8118
    %v8120 = vpop.f32.mrf.mxu0
    %8121 = vdwg.mxu0
    %8122 = vmatprep.subr.mxu0 0.0
    %8123 = vmatpush1.msra.mxu0 %v7985
    %8124 = vmatprep.subr.mxu0 0.0
    %8125 = vmatpush1.msra.mxu0 %v7982
    %8126 = vmatprep.subr.mxu0 0.0
    %8127 = vmatpush1.msra.mxu0 %v7977
    %8128 = vmatprep.subr.mxu0 0.0
    %8129 = vmatpush1.msra.mxu0 %v7974
    %8130 = vmatprep.subr.mxu0 0.0
    %8131 = vmatpush1.msra.mxu0 %v7969
    %8132 = vmatprep.subr.mxu0 0.0
    %8133 = vmatpush1.msra.mxu0 %v7966
    %8134 = vmatprep.subr.mxu0 0.0
    %8135 = vmatpush1.msra.mxu0 %v7961
    %8136 = vmatprep.subr.mxu0 0.0
    %8137 = vmatpush1.msra.mxu0 %v7958
    %8138 = vmatprep.subr.mxu0 0.0
    %8139 = vmatpush1.msra.mxu0 %v7953
    %8140 = vmatprep.subr.mxu0 0.0
    %8141 = vmatpush1.msra.mxu0 %v7950
    %8142 = vmatprep.subr.mxu0 0.0
    %8143 = vmatpush1.msra.mxu0 %v7945
    %8144 = vmatprep.subr.mxu0 0.0
    %8145 = vmatpush1.msra.mxu0 %v7942
    %8146 = vmatprep.subr.mxu0 0.0
    %8147 = vmatpush1.msra.mxu0 %v7937
    %8148 = vmatprep.subr.mxu0 0.0
    %8149 = vmatpush1.msra.mxu0 %v7934
    %8150 = vmatprep.subr.mxu0 0.0
    %8151 = vmatpush1.msra.mxu0 %v7929
    %8152 = vmatprep.subr.mxu0 0.0
    %8153 = vmatpush1.msra.mxu0 %v7926
    %8154 = vmatprep.subr.mxu0 0.0
    %8155 = vmatpush2.msra.mxu0 %v8049
    %8156 = vmatprep.subr.mxu0 0.0
    %8157 = vmatpush2.msra.mxu0 %v8046
    %8158 = vmatprep.subr.mxu0 0.0
    %8159 = vmatpush2.msra.mxu0 %v8041
    %8160 = vmatprep.subr.mxu0 0.0
    %8161 = vmatpush2.msra.mxu0 %v8038
    %8162 = vmatprep.subr.mxu0 0.0
    %8163 = vmatpush2.msra.mxu0 %v8033
    %8164 = vmatprep.subr.mxu0 0.0
    %8165 = vmatpush2.msra.mxu0 %v8030
    %8166 = vmatprep.subr.mxu0 0.0
    %8167 = vmatpush2.msra.mxu0 %v8025
    %8168 = vmatprep.subr.mxu0 0.0
    %8169 = vmatpush2.msra.mxu0 %v8022
    %8170 = vmatprep.subr.mxu0 0.0
    %8171 = vmatpush2.msra.mxu0 %v8017
    %8172 = vmatprep.subr.mxu0 0.0
    %8173 = vmatpush2.msra.mxu0 %v8014
    %8174 = vmatprep.subr.mxu0 0.0
    %8175 = vmatpush2.msra.mxu0 %v8009
    %8176 = vmatprep.subr.mxu0 0.0
    %8177 = vmatpush2.msra.mxu0 %v8006
    %8178 = vmatprep.subr.mxu0 0.0
    %8179 = vmatpush2.msra.mxu0 %v8001
    %8180 = vmatprep.subr.mxu0 0.0
    %8181 = vmatpush2.msra.mxu0 %v7998
    %8182 = vmatprep.subr.mxu0 0.0
    %8183 = vmatpush2.msra.mxu0 %v7993
    %8184 = vmatprep.subr.mxu0 0.0
    %8185 = vmatpush2.msra.mxu0 %v7990
    %8186 = vmatprep.mubr.f32.mxu0 0.001953125
    %8187 = vmatmul.mubr.f32.gmra.mxu0 0.001953125
    %v8188 = vpop.f32.mrf.mxu0
    %v8189 = vadd.f32 %v8119, %v8188
    %v8190 = vpop.f32.mrf.mxu0
    %8191 = vdwg.mxu0
    %v8192 = vmul.f32 %v7798, %v7798
    %v8193 = vmul.f32 %v7801, %v7801
    %v8194 = vmul.f32 %v7806, %v7806
    %v8195 = vmul.f32 %v7809, %v7809
    %v8196 = vmul.f32 %v7814, %v7814
    %v8197 = vmul.f32 %v7817, %v7817
    %v8198 = vmul.f32 %v7822, %v7822
    %v8199 = vmul.f32 %v7825, %v7825
    %v8200 = vmul.f32 %v7830, %v7830
    %v8201 = vmul.f32 %v7833, %v7833
    %v8202 = vmul.f32 %v7838, %v7838
    %v8203 = vmul.f32 %v7841, %v7841
    %v8204 = vmul.f32 %v7846, %v7846
    %v8205 = vmul.f32 %v7849, %v7849
    %v8206 = vmul.f32 %v7854, %v7854
    %v8207 = vmul.f32 %v7857, %v7857
    %v8208 = vmul.f32 %v7862, %v7862
    %v8209 = vmul.f32 %v7865, %v7865
    %v8210 = vmul.f32 %v7870, %v7870
    %v8211 = vmul.f32 %v7873, %v7873
    %v8212 = vmul.f32 %v7878, %v7878
    %v8213 = vmul.f32 %v7881, %v7881
    %v8214 = vmul.f32 %v7886, %v7886
    %v8215 = vmul.f32 %v7889, %v7889
    %v8216 = vmul.f32 %v7894, %v7894
    %v8217 = vmul.f32 %v7897, %v7897
    %v8218 = vmul.f32 %v7902, %v7902
    %v8219 = vmul.f32 %v7905, %v7905
    %v8220 = vmul.f32 %v7910, %v7910
    %v8221 = vmul.f32 %v7913, %v7913
    %v8222 = vmul.f32 %v7918, %v7918
    %v8223 = vmul.f32 %v7921, %v7921
    %v8224 = vmul.f32 %v7926, %v7926
    %v8225 = vmul.f32 %v7929, %v7929
    %v8226 = vmul.f32 %v7934, %v7934
    %v8227 = vmul.f32 %v7937, %v7937
    %v8228 = vmul.f32 %v7942, %v7942
    %v8229 = vmul.f32 %v7945, %v7945
    %v8230 = vmul.f32 %v7950, %v7950
    %v8231 = vmul.f32 %v7953, %v7953
    %v8232 = vmul.f32 %v7958, %v7958
    %v8233 = vmul.f32 %v7961, %v7961
    %v8234 = vmul.f32 %v7966, %v7966
    %v8235 = vmul.f32 %v7969, %v7969
    %v8236 = vmul.f32 %v7974, %v7974
    %v8237 = vmul.f32 %v7977, %v7977
    %v8238 = vmul.f32 %v7982, %v7982
    %v8239 = vmul.f32 %v7985, %v7985
    %v8240 = vmul.f32 %v7990, %v7990
    %v8241 = vmul.f32 %v7993, %v7993
    %v8242 = vmul.f32 %v7998, %v7998
    %v8243 = vmul.f32 %v8001, %v8001
    %v8244 = vmul.f32 %v8006, %v8006
    %v8245 = vmul.f32 %v8009, %v8009
    %v8246 = vmul.f32 %v8014, %v8014
    %v8247 = vmul.f32 %v8017, %v8017
    %v8248 = vmul.f32 %v8022, %v8022
    %v8249 = vmul.f32 %v8025, %v8025
    %v8250 = vmul.f32 %v8030, %v8030
    %v8251 = vmul.f32 %v8033, %v8033
    %v8252 = vmul.f32 %v8038, %v8038
    %v8253 = vmul.f32 %v8041, %v8041
    %v8254 = vmul.f32 %v8046, %v8046
    %v8255 = vmul.f32 %v8049, %v8049
    %8256 = vmatprep.subr.mxu0 0.0
    %8257 = vmatpush1.msra.mxu0 %v8207
    %8258 = vmatprep.subr.mxu0 0.0
    %8259 = vmatpush1.msra.mxu0 %v8206
    %8260 = vmatprep.subr.mxu0 0.0
    %8261 = vmatpush1.msra.mxu0 %v8205
    %8262 = vmatprep.subr.mxu0 0.0
    %8263 = vmatpush1.msra.mxu0 %v8204
    %8264 = vmatprep.subr.mxu0 0.0
    %8265 = vmatpush1.msra.mxu0 %v8203
    %8266 = vmatprep.subr.mxu0 0.0
    %8267 = vmatpush1.msra.mxu0 %v8202
    %8268 = vmatprep.subr.mxu0 0.0
    %8269 = vmatpush1.msra.mxu0 %v8201
    %8270 = vmatprep.subr.mxu0 0.0
    %8271 = vmatpush1.msra.mxu0 %v8200
    %8272 = vmatprep.subr.mxu0 0.0
    %8273 = vmatpush1.msra.mxu0 %v8199
    %8274 = vmatprep.subr.mxu0 0.0
    %8275 = vmatpush1.msra.mxu0 %v8198
    %8276 = vmatprep.subr.mxu0 0.0
    %8277 = vmatpush1.msra.mxu0 %v8197
    %8278 = vmatprep.subr.mxu0 0.0
    %8279 = vmatpush1.msra.mxu0 %v8196
    %8280 = vmatprep.subr.mxu0 0.0
    %8281 = vmatpush1.msra.mxu0 %v8195
    %8282 = vmatprep.subr.mxu0 0.0
    %8283 = vmatpush1.msra.mxu0 %v8194
    %8284 = vmatprep.subr.mxu0 0.0
    %8285 = vmatpush1.msra.mxu0 %v8193
    %8286 = vmatprep.subr.mxu0 0.0
    %8287 = vmatpush1.msra.mxu0 %v8192
    %8288 = vmatprep.subr.mxu0 0.0
    %8289 = vmatpush2.msra.mxu0 %v8223
    %8290 = vmatprep.subr.mxu0 0.0
    %8291 = vmatpush2.msra.mxu0 %v8222
    %8292 = vmatprep.subr.mxu0 0.0
    %8293 = vmatpush2.msra.mxu0 %v8221
    %8294 = vmatprep.subr.mxu0 0.0
    %8295 = vmatpush2.msra.mxu0 %v8220
    %8296 = vmatprep.subr.mxu0 0.0
    %8297 = vmatpush2.msra.mxu0 %v8219
    %8298 = vmatprep.subr.mxu0 0.0
    %8299 = vmatpush2.msra.mxu0 %v8218
    %8300 = vmatprep.subr.mxu0 0.0
    %8301 = vmatpush2.msra.mxu0 %v8217
    %8302 = vmatprep.subr.mxu0 0.0
    %8303 = vmatpush2.msra.mxu0 %v8216
    %8304 = vmatprep.subr.mxu0 0.0
    %8305 = vmatpush2.msra.mxu0 %v8215
    %8306 = vmatprep.subr.mxu0 0.0
    %8307 = vmatpush2.msra.mxu0 %v8214
    %8308 = vmatprep.subr.mxu0 0.0
    %8309 = vmatpush2.msra.mxu0 %v8213
    %8310 = vmatprep.subr.mxu0 0.0
    %8311 = vmatpush2.msra.mxu0 %v8212
    %8312 = vmatprep.subr.mxu0 0.0
    %8313 = vmatpush2.msra.mxu0 %v8211
    %8314 = vmatprep.subr.mxu0 0.0
    %8315 = vmatpush2.msra.mxu0 %v8210
    %8316 = vmatprep.subr.mxu0 0.0
    %8317 = vmatpush2.msra.mxu0 %v8209
    %8318 = vmatprep.subr.mxu0 0.0
    %8319 = vmatpush2.msra.mxu0 %v8208
    %8320 = vmatprep.mubr.f32.mxu0 0.001953125
    %8321 = vmatmul.mubr.f32.gmra.mxu0 0.001953125
    %v8322 = vpop.f32.mrf.mxu0
    %v8323 = vadd.f32 0.0, %v8322
    %v8324 = vpop.f32.mrf.mxu0
    %8325 = vdwg.mxu0
    %8326 = vmatprep.subr.mxu0 0.0
    %8327 = vmatpush1.msra.mxu0 %v8239
    %8328 = vmatprep.subr.mxu0 0.0
    %8329 = vmatpush1.msra.mxu0 %v8238
    %8330 = vmatprep.subr.mxu0 0.0
    %8331 = vmatpush1.msra.mxu0 %v8237
    %8332 = vmatprep.subr.mxu0 0.0
    %8333 = vmatpush1.msra.mxu0 %v8236
    %8334 = vmatprep.subr.mxu0 0.0
    %8335 = vmatpush1.msra.mxu0 %v8235
    %8336 = vmatprep.subr.mxu0 0.0
    %8337 = vmatpush1.msra.mxu0 %v8234
    %8338 = vmatprep.subr.mxu0 0.0
    %8339 = vmatpush1.msra.mxu0 %v8233
    %8340 = vmatprep.subr.mxu0 0.0
    %8341 = vmatpush1.msra.mxu0 %v8232
    %8342 = vmatprep.subr.mxu0 0.0
    %8343 = vmatpush1.msra.mxu0 %v8231
    %8344 = vmatprep.subr.mxu0 0.0
    %8345 = vmatpush1.msra.mxu0 %v8230
    %8346 = vmatprep.subr.mxu0 0.0
    %8347 = vmatpush1.msra.mxu0 %v8229
    %8348 = vmatprep.subr.mxu0 0.0
    %8349 = vmatpush1.msra.mxu0 %v8228
    %8350 = vmatprep.subr.mxu0 0.0
    %8351 = vmatpush1.msra.mxu0 %v8227
    %8352 = vmatprep.subr.mxu0 0.0
    %8353 = vmatpush1.msra.mxu0 %v8226
    %8354 = vmatprep.subr.mxu0 0.0
    %8355 = vmatpush1.msra.mxu0 %v8225
    %8356 = vmatprep.subr.mxu0 0.0
    %8357 = vmatpush1.msra.mxu0 %v8224
    %8358 = vmatprep.subr.mxu0 0.0
    %8359 = vmatpush2.msra.mxu0 %v8255
    %8360 = vmatprep.subr.mxu0 0.0
    %8361 = vmatpush2.msra.mxu0 %v8254
    %8362 = vmatprep.subr.mxu0 0.0
    %8363 = vmatpush2.msra.mxu0 %v8253
    %8364 = vmatprep.subr.mxu0 0.0
    %8365 = vmatpush2.msra.mxu0 %v8252
    %8366 = vmatprep.subr.mxu0 0.0
    %8367 = vmatpush2.msra.mxu0 %v8251
    %8368 = vmatprep.subr.mxu0 0.0
    %8369 = vmatpush2.msra.mxu0 %v8250
    %8370 = vmatprep.subr.mxu0 0.0
    %8371 = vmatpush2.msra.mxu0 %v8249
    %8372 = vmatprep.subr.mxu0 0.0
    %8373 = vmatpush2.msra.mxu0 %v8248
    %8374 = vmatprep.subr.mxu0 0.0
    %8375 = vmatpush2.msra.mxu0 %v8247
    %8376 = vmatprep.subr.mxu0 0.0
    %8377 = vmatpush2.msra.mxu0 %v8246
    %8378 = vmatprep.subr.mxu0 0.0
    %8379 = vmatpush2.msra.mxu0 %v8245
    %8380 = vmatprep.subr.mxu0 0.0
    %8381 = vmatpush2.msra.mxu0 %v8244
    %8382 = vmatprep.subr.mxu0 0.0
    %8383 = vmatpush2.msra.mxu0 %v8243
    %8384 = vmatprep.subr.mxu0 0.0
    %8385 = vmatpush2.msra.mxu0 %v8242
    %8386 = vmatprep.subr.mxu0 0.0
    %8387 = vmatpush2.msra.mxu0 %v8241
    %8388 = vmatprep.subr.mxu0 0.0
    %8389 = vmatpush2.msra.mxu0 %v8240
    %8390 = vmatprep.mubr.f32.mxu0 0.001953125
    %8391 = vmatmul.mubr.f32.gmra.mxu0 0.001953125
    %v8392 = vpop.f32.mrf.mxu0
    %v8393 = vadd.f32 %v8323, %v8392
    %v8394 = vpop.f32.mrf.mxu0
    %8395 = vdwg.mxu0
    %v8396 = vmul.f32 %v8189, %v8189
    %v8397 = vsub.f32 %v8393, %v8396
    %v8398 = vmax.f32 %v8397, 0.0
    %v8399 = vld [vmem:[%s5] sm:$0x1]
    %v8400 = vadd.f32 %v8398, 1e-05
    %v8401 = vrsqrt.pop %v8400
    %v8402 = vmul.f32 %v8399, %v8401
    %v8403 = vld [vmem:[%s6] sm:$0x1]
    %v8404 = vmul.f32 %v8189, %v8402
    %v8405 = vsub.f32 %v8403, %v8404
    %v8407 = vlaneseq
    %v8408 = vshrl.u32 %v8407, 7
    %v8409 = vsub.s32 0, %v8408
    %v8410 = vrot.slane %v8402, %v8409
    %v8412 = vmul.f32 %v7798, %v8410
    %v8413 = vmul.f32 %v7801, %v8410
    %v8414 = vmul.f32 %v7806, %v8410
    %v8415 = vmul.f32 %v7809, %v8410
    %v8416 = vmul.f32 %v7814, %v8410
    %v8417 = vmul.f32 %v7817, %v8410
    %v8418 = vmul.f32 %v7822, %v8410
    %v8419 = vmul.f32 %v7825, %v8410
    %v8420 = vmul.f32 %v7830, %v8410
    %v8421 = vmul.f32 %v7833, %v8410
    %v8422 = vmul.f32 %v7838, %v8410
    %v8423 = vmul.f32 %v7841, %v8410
    %v8424 = vmul.f32 %v7846, %v8410
    %v8425 = vmul.f32 %v7849, %v8410
    %v8426 = vmul.f32 %v7854, %v8410
    %v8427 = vmul.f32 %v7857, %v8410
    %v8428 = vmul.f32 %v7862, %v8410
    %v8429 = vmul.f32 %v7865, %v8410
    %v8430 = vmul.f32 %v7870, %v8410
    %v8431 = vmul.f32 %v7873, %v8410
    %v8432 = vmul.f32 %v7878, %v8410
    %v8433 = vmul.f32 %v7881, %v8410
    %v8434 = vmul.f32 %v7886, %v8410
    %v8435 = vmul.f32 %v7889, %v8410
    %v8436 = vmul.f32 %v7894, %v8410
    %v8437 = vmul.f32 %v7897, %v8410
    %v8438 = vmul.f32 %v7902, %v8410
    %v8439 = vmul.f32 %v7905, %v8410
    %v8440 = vmul.f32 %v7910, %v8410
    %v8441 = vmul.f32 %v7913, %v8410
    %v8442 = vmul.f32 %v7918, %v8410
    %v8443 = vmul.f32 %v7921, %v8410
    %v8444 = vmul.f32 %v7926, %v8410
    %v8445 = vmul.f32 %v7929, %v8410
    %v8446 = vmul.f32 %v7934, %v8410
    %v8447 = vmul.f32 %v7937, %v8410
    %v8448 = vmul.f32 %v7942, %v8410
    %v8449 = vmul.f32 %v7945, %v8410
    %v8450 = vmul.f32 %v7950, %v8410
    %v8451 = vmul.f32 %v7953, %v8410
    %v8452 = vmul.f32 %v7958, %v8410
    %v8453 = vmul.f32 %v7961, %v8410
    %v8454 = vmul.f32 %v7966, %v8410
    %v8455 = vmul.f32 %v7969, %v8410
    %v8456 = vmul.f32 %v7974, %v8410
    %v8457 = vmul.f32 %v7977, %v8410
    %v8458 = vmul.f32 %v7982, %v8410
    %v8459 = vmul.f32 %v7985, %v8410
    %v8460 = vmul.f32 %v7990, %v8410
    %v8461 = vmul.f32 %v7993, %v8410
    %v8462 = vmul.f32 %v7998, %v8410
    %v8463 = vmul.f32 %v8001, %v8410
    %v8464 = vmul.f32 %v8006, %v8410
    %v8465 = vmul.f32 %v8009, %v8410
    %v8466 = vmul.f32 %v8014, %v8410
    %v8467 = vmul.f32 %v8017, %v8410
    %v8468 = vmul.f32 %v8022, %v8410
    %v8469 = vmul.f32 %v8025, %v8410
    %v8470 = vmul.f32 %v8030, %v8410
    %v8471 = vmul.f32 %v8033, %v8410
    %v8472 = vmul.f32 %v8038, %v8410
    %v8473 = vmul.f32 %v8041, %v8410
    %v8474 = vmul.f32 %v8046, %v8410
    %v8475 = vmul.f32 %v8049, %v8410
    %v8477 = vlaneseq
    %v8478 = vshrl.u32 %v8477, 7
    %v8479 = vsub.s32 0, %v8478
    %v8480 = vrot.slane %v8405, %v8479
    %v8482 = vadd.f32 %v8412, %v8480
    %v8483 = vadd.f32 %v8413, %v8480
    %v8484 = vadd.f32 %v8414, %v8480
    %v8485 = vadd.f32 %v8415, %v8480
    %v8486 = vadd.f32 %v8416, %v8480
    %v8487 = vadd.f32 %v8417, %v8480
    %v8488 = vadd.f32 %v8418, %v8480
    %v8489 = vadd.f32 %v8419, %v8480
    %v8490 = vadd.f32 %v8420, %v8480
    %v8491 = vadd.f32 %v8421, %v8480
    %v8492 = vadd.f32 %v8422, %v8480
    %v8493 = vadd.f32 %v8423, %v8480
    %v8494 = vadd.f32 %v8424, %v8480
    %v8495 = vadd.f32 %v8425, %v8480
    %v8496 = vadd.f32 %v8426, %v8480
    %v8497 = vadd.f32 %v8427, %v8480
    %v8498 = vadd.f32 %v8428, %v8480
    %v8499 = vadd.f32 %v8429, %v8480
    %v8500 = vadd.f32 %v8430, %v8480
    %v8501 = vadd.f32 %v8431, %v8480
    %v8502 = vadd.f32 %v8432, %v8480
    %v8503 = vadd.f32 %v8433, %v8480
    %v8504 = vadd.f32 %v8434, %v8480
    %v8505 = vadd.f32 %v8435, %v8480
    %v8506 = vadd.f32 %v8436, %v8480
    %v8507 = vadd.f32 %v8437, %v8480
    %v8508 = vadd.f32 %v8438, %v8480
    %v8509 = vadd.f32 %v8439, %v8480
    %v8510 = vadd.f32 %v8440, %v8480
    %v8511 = vadd.f32 %v8441, %v8480
    %v8512 = vadd.f32 %v8442, %v8480
    %v8513 = vadd.f32 %v8443, %v8480
    %v8514 = vadd.f32 %v8444, %v8480
    %v8515 = vadd.f32 %v8445, %v8480
    %v8516 = vadd.f32 %v8446, %v8480
    %v8517 = vadd.f32 %v8447, %v8480
    %v8518 = vadd.f32 %v8448, %v8480
    %v8519 = vadd.f32 %v8449, %v8480
    %v8520 = vadd.f32 %v8450, %v8480
    %v8521 = vadd.f32 %v8451, %v8480
    %v8522 = vadd.f32 %v8452, %v8480
    %v8523 = vadd.f32 %v8453, %v8480
    %v8524 = vadd.f32 %v8454, %v8480
    %v8525 = vadd.f32 %v8455, %v8480
    %v8526 = vadd.f32 %v8456, %v8480
    %v8527 = vadd.f32 %v8457, %v8480
    %v8528 = vadd.f32 %v8458, %v8480
    %v8529 = vadd.f32 %v8459, %v8480
    %v8530 = vadd.f32 %v8460, %v8480
    %v8531 = vadd.f32 %v8461, %v8480
    %v8532 = vadd.f32 %v8462, %v8480
    %v8533 = vadd.f32 %v8463, %v8480
    %v8534 = vadd.f32 %v8464, %v8480
    %v8535 = vadd.f32 %v8465, %v8480
    %v8536 = vadd.f32 %v8466, %v8480
    %v8537 = vadd.f32 %v8467, %v8480
    %v8538 = vadd.f32 %v8468, %v8480
    %v8539 = vadd.f32 %v8469, %v8480
    %v8540 = vadd.f32 %v8470, %v8480
    %v8541 = vadd.f32 %v8471, %v8480
    %v8542 = vadd.f32 %v8472, %v8480
    %v8543 = vadd.f32 %v8473, %v8480
    %v8544 = vadd.f32 %v8474, %v8480
    %v8545 = vadd.f32 %v8475, %v8480
    %v8546 = vmax.f32 %v8482, 0.0
    %v8547 = vmax.f32 %v8483, 0.0
    %v8548 = vmax.f32 %v8484, 0.0
    %v8549 = vmax.f32 %v8485, 0.0
    %v8550 = vmax.f32 %v8486, 0.0
    %v8551 = vmax.f32 %v8487, 0.0
    %v8552 = vmax.f32 %v8488, 0.0
    %v8553 = vmax.f32 %v8489, 0.0
    %v8554 = vmax.f32 %v8490, 0.0
    %v8555 = vmax.f32 %v8491, 0.0
    %v8556 = vmax.f32 %v8492, 0.0
    %v8557 = vmax.f32 %v8493, 0.0
    %v8558 = vmax.f32 %v8494, 0.0
    %v8559 = vmax.f32 %v8495, 0.0
    %v8560 = vmax.f32 %v8496, 0.0
    %v8561 = vmax.f32 %v8497, 0.0
    %v8562 = vmax.f32 %v8498, 0.0
    %v8563 = vmax.f32 %v8499, 0.0
    %v8564 = vmax.f32 %v8500, 0.0
    %v8565 = vmax.f32 %v8501, 0.0
    %v8566 = vmax.f32 %v8502, 0.0
    %v8567 = vmax.f32 %v8503, 0.0
    %v8568 = vmax.f32 %v8504, 0.0
    %v8569 = vmax.f32 %v8505, 0.0
    %v8570 = vmax.f32 %v8506, 0.0
    %v8571 = vmax.f32 %v8507, 0.0
    %v8572 = vmax.f32 %v8508, 0.0
    %v8573 = vmax.f32 %v8509, 0.0
    %v8574 = vmax.f32 %v8510, 0.0
    %v8575 = vmax.f32 %v8511, 0.0
    %v8576 = vmax.f32 %v8512, 0.0
    %v8577 = vmax.f32 %v8513, 0.0
    %v8578 = vmax.f32 %v8514, 0.0
    %v8579 = vmax.f32 %v8515, 0.0
    %v8580 = vmax.f32 %v8516, 0.0
    %v8581 = vmax.f32 %v8517, 0.0
    %v8582 = vmax.f32 %v8518, 0.0
    %v8583 = vmax.f32 %v8519, 0.0
    %v8584 = vmax.f32 %v8520, 0.0
    %v8585 = vmax.f32 %v8521, 0.0
    %v8586 = vmax.f32 %v8522, 0.0
    %v8587 = vmax.f32 %v8523, 0.0
    %v8588 = vmax.f32 %v8524, 0.0
    %v8589 = vmax.f32 %v8525, 0.0
    %v8590 = vmax.f32 %v8526, 0.0
    %v8591 = vmax.f32 %v8527, 0.0
    %v8592 = vmax.f32 %v8528, 0.0
    %v8593 = vmax.f32 %v8529, 0.0
    %v8594 = vmax.f32 %v8530, 0.0
    %v8595 = vmax.f32 %v8531, 0.0
    %v8596 = vmax.f32 %v8532, 0.0
    %v8597 = vmax.f32 %v8533, 0.0
    %v8598 = vmax.f32 %v8534, 0.0
    %v8599 = vmax.f32 %v8535, 0.0
    %v8600 = vmax.f32 %v8536, 0.0
    %v8601 = vmax.f32 %v8537, 0.0
    %v8602 = vmax.f32 %v8538, 0.0
    %v8603 = vmax.f32 %v8539, 0.0
    %v8604 = vmax.f32 %v8540, 0.0
    %v8605 = vmax.f32 %v8541, 0.0
    %v8606 = vmax.f32 %v8542, 0.0
    %v8607 = vmax.f32 %v8543, 0.0
    %v8608 = vmax.f32 %v8544, 0.0
    %v8609 = vmax.f32 %v8545, 0.0
    %v8610 = vpack.c.bf16 %v8547, %v8546
    %v8611 = vpack.c.bf16 %v8549, %v8548
    %v8612 = vpack.c.bf16 %v8551, %v8550
    %v8613 = vpack.c.bf16 %v8553, %v8552
    %v8614 = vpack.c.bf16 %v8555, %v8554
    %v8615 = vpack.c.bf16 %v8557, %v8556
    %v8616 = vpack.c.bf16 %v8559, %v8558
    %v8617 = vpack.c.bf16 %v8561, %v8560
    %v8618 = vpack.c.bf16 %v8563, %v8562
    %v8619 = vpack.c.bf16 %v8565, %v8564
    %v8620 = vpack.c.bf16 %v8567, %v8566
    %v8621 = vpack.c.bf16 %v8569, %v8568
    %v8622 = vpack.c.bf16 %v8571, %v8570
    %v8623 = vpack.c.bf16 %v8573, %v8572
    %v8624 = vpack.c.bf16 %v8575, %v8574
    %v8625 = vpack.c.bf16 %v8577, %v8576
    %v8626 = vpack.c.bf16 %v8579, %v8578
    %v8627 = vpack.c.bf16 %v8581, %v8580
    %v8628 = vpack.c.bf16 %v8583, %v8582
    %v8629 = vpack.c.bf16 %v8585, %v8584
    %v8630 = vpack.c.bf16 %v8587, %v8586
    %v8631 = vpack.c.bf16 %v8589, %v8588
    %v8632 = vpack.c.bf16 %v8591, %v8590
    %v8633 = vpack.c.bf16 %v8593, %v8592
    %v8634 = vpack.c.bf16 %v8595, %v8594
    %v8635 = vpack.c.bf16 %v8597, %v8596
    %v8636 = vpack.c.bf16 %v8599, %v8598
    %v8637 = vpack.c.bf16 %v8601, %v8600
    %v8638 = vpack.c.bf16 %v8603, %v8602
    %v8639 = vpack.c.bf16 %v8605, %v8604
    %v8640 = vpack.c.bf16 %v8607, %v8606
    %v8641 = vpack.c.bf16 %v8609, %v8608
    %v8642 = vld [vmem:[%s7] sm:$0xf]
    %v8644 = vsel %vm7107, %v8610, 0
    %v8647 = vsel %vm7107, %v8611, 0
    %v8650 = vsel %vm7107, %v8612, 0
    %v8653 = vsel %vm7107, %v8613, 0
    %v8656 = vsel %vm7107, %v8614, 0
    %v8659 = vsel %vm7107, %v8615, 0
    %v8662 = vsel %vm7107, %v8616, 0
    %v8665 = vsel %vm7107, %v8617, 0
    %v8668 = vsel %vm7107, %v8618, 0
    %v8671 = vsel %vm7107, %v8619, 0
    %v8674 = vsel %vm7107, %v8620, 0
    %v8677 = vsel %vm7107, %v8621, 0
    %v8680 = vsel %vm7107, %v8622, 0
    %v8683 = vsel %vm7107, %v8623, 0
    %v8686 = vsel %vm7107, %v8624, 0
    %v8689 = vsel %vm7107, %v8625, 0
    %v8692 = vsel %vm7107, %v8626, 0
    %v8695 = vsel %vm7107, %v8627, 0
    %v8698 = vsel %vm7107, %v8628, 0
    %v8701 = vsel %vm7107, %v8629, 0
    %v8704 = vsel %vm7107, %v8630, 0
    %v8707 = vsel %vm7107, %v8631, 0
    %v8710 = vsel %vm7107, %v8632, 0
    %v8713 = vsel %vm7107, %v8633, 0
    %v8716 = vsel %vm7107, %v8634, 0
    %v8719 = vsel %vm7107, %v8635, 0
    %v8722 = vsel %vm7107, %v8636, 0
    %v8725 = vsel %vm7107, %v8637, 0
    %v8728 = vsel %vm7107, %v8638, 0
    %v8731 = vsel %vm7107, %v8639, 0
    %v8734 = vsel %vm7107, %v8640, 0
    %v8737 = vsel %vm7107, %v8641, 0
    %v8740 = vsel %vm7759, %v8642, 0
    %8742 = vmatprep.subr.bf16.mxu0 0
    %8743 = vmatpush1.bf16.msra.mxu0 0
    %8744 = vmatprep.subr.bf16.mxu0 0
    %8745 = vmatpush1.bf16.msra.mxu0 0
    %8746 = vmatprep.subr.bf16.mxu0 0
    %8747 = vmatpush1.bf16.msra.mxu0 0
    %8748 = vmatprep.subr.bf16.mxu0 0
    %8749 = vmatpush1.bf16.msra.mxu0 0
    %8750 = vmatprep.subr.bf16.mxu0 0
    %8751 = vmatpush1.bf16.msra.mxu0 0
    %8752 = vmatprep.subr.bf16.mxu0 0
    %8753 = vmatpush1.bf16.msra.mxu0 0
    %8754 = vmatprep.subr.bf16.mxu0 0
    %8755 = vmatpush1.bf16.msra.mxu0 0
    %8756 = vmatprep.subr.bf16.mxu0 0
    %8757 = vmatpush1.bf16.msra.mxu0 %v8740
    %8758 = vmatprep.subr.bf16.mxu0 0
    %8759 = vmatpush2.bf16.msra.mxu0 0
    %8760 = vmatprep.subr.bf16.mxu0 0
    %8761 = vmatpush2.bf16.msra.mxu0 0
    %8762 = vmatprep.subr.bf16.mxu0 0
    %8763 = vmatpush2.bf16.msra.mxu0 0
    %8764 = vmatprep.subr.bf16.mxu0 0
    %8765 = vmatpush2.bf16.msra.mxu0 0
    %8766 = vmatprep.subr.bf16.mxu0 0
    %8767 = vmatpush2.bf16.msra.mxu0 0
    %8768 = vmatprep.subr.bf16.mxu0 0
    %8769 = vmatpush2.bf16.msra.mxu0 0
    %8770 = vmatprep.subr.bf16.mxu0 0
    %8771 = vmatpush2.bf16.msra.mxu0 0
    %8772 = vmatprep.subr.bf16.mxu0 0
    %8773 = vmatpush2.bf16.msra.mxu0 0
    %8774 = vmatprep.mubr.bf16.mxu0 0
    %8775 = vmatmul.mubr.bf16.gmra.mxu0 %v8644
    %v8776 = vpop.f32.mrf.mxu0
    %v8777 = vadd.f32 0.0, %v8776
    %v8778 = vpop.f32.mrf.mxu0
    %v8779 = vpop.f32.mrf.mxu0
    %v8780 = vadd.f32 0.0, %v8779
    %v8781 = vpop.f32.mrf.mxu0
    %8782 = vmatprep.mubr.bf16.mxu0 0
    %8783 = vmatmul.mubr.bf16.gmra.mxu0 %v8647
    %v8784 = vpop.f32.mrf.mxu0
    %v8785 = vadd.f32 0.0, %v8784
    %v8786 = vpop.f32.mrf.mxu0
    %v8787 = vpop.f32.mrf.mxu0
    %v8788 = vadd.f32 0.0, %v8787
    %v8789 = vpop.f32.mrf.mxu0
    %8790 = vmatprep.mubr.bf16.mxu0 0
    %8791 = vmatmul.mubr.bf16.gmra.mxu0 %v8650
    %v8792 = vpop.f32.mrf.mxu0
    %v8793 = vadd.f32 0.0, %v8792
    %v8794 = vpop.f32.mrf.mxu0
    %v8795 = vpop.f32.mrf.mxu0
    %v8796 = vadd.f32 0.0, %v8795
    %v8797 = vpop.f32.mrf.mxu0
    %8798 = vmatprep.mubr.bf16.mxu0 0
    %8799 = vmatmul.mubr.bf16.gmra.mxu0 %v8653
    %v8800 = vpop.f32.mrf.mxu0
    %v8801 = vadd.f32 0.0, %v8800
    %v8802 = vpop.f32.mrf.mxu0
    %v8803 = vpop.f32.mrf.mxu0
    %v8804 = vadd.f32 0.0, %v8803
    %v8805 = vpop.f32.mrf.mxu0
    %8806 = vmatprep.mubr.bf16.mxu0 0
    %8807 = vmatmul.mubr.bf16.gmra.mxu0 %v8656
    %v8808 = vpop.f32.mrf.mxu0
    %v8809 = vadd.f32 0.0, %v8808
    %v8810 = vpop.f32.mrf.mxu0
    %v8811 = vpop.f32.mrf.mxu0
    %v8812 = vadd.f32 0.0, %v8811
    %v8813 = vpop.f32.mrf.mxu0
    %8814 = vmatprep.mubr.bf16.mxu0 0
    %8815 = vmatmul.mubr.bf16.gmra.mxu0 %v8659
    %v8816 = vpop.f32.mrf.mxu0
    %v8817 = vadd.f32 0.0, %v8816
    %v8818 = vpop.f32.mrf.mxu0
    %v8819 = vpop.f32.mrf.mxu0
    %v8820 = vadd.f32 0.0, %v8819
    %v8821 = vpop.f32.mrf.mxu0
    %8822 = vmatprep.mubr.bf16.mxu0 0
    %8823 = vmatmul.mubr.bf16.gmra.mxu0 %v8662
    %v8824 = vpop.f32.mrf.mxu0
    %v8825 = vadd.f32 0.0, %v8824
    %v8826 = vpop.f32.mrf.mxu0
    %v8827 = vpop.f32.mrf.mxu0
    %v8828 = vadd.f32 0.0, %v8827
    %v8829 = vpop.f32.mrf.mxu0
    %8830 = vmatprep.mubr.bf16.mxu0 0
    %8831 = vmatmul.mubr.bf16.gmra.mxu0 %v8665
    %v8832 = vpop.f32.mrf.mxu0
    %v8833 = vadd.f32 0.0, %v8832
    %v8834 = vpop.f32.mrf.mxu0
    %v8835 = vpop.f32.mrf.mxu0
    %v8836 = vadd.f32 0.0, %v8835
    %v8837 = vpop.f32.mrf.mxu0
    %8838 = vmatprep.mubr.bf16.mxu0 0
    %8839 = vmatmul.mubr.bf16.gmra.mxu0 %v8668
    %v8840 = vpop.f32.mrf.mxu0
    %v8841 = vadd.f32 0.0, %v8840
    %v8842 = vpop.f32.mrf.mxu0
    %v8843 = vpop.f32.mrf.mxu0
    %v8844 = vadd.f32 0.0, %v8843
    %v8845 = vpop.f32.mrf.mxu0
    %8846 = vmatprep.mubr.bf16.mxu0 0
    %8847 = vmatmul.mubr.bf16.gmra.mxu0 %v8671
    %v8848 = vpop.f32.mrf.mxu0
    %v8849 = vadd.f32 0.0, %v8848
    %v8850 = vpop.f32.mrf.mxu0
    %v8851 = vpop.f32.mrf.mxu0
    %v8852 = vadd.f32 0.0, %v8851
    %v8853 = vpop.f32.mrf.mxu0
    %8854 = vmatprep.mubr.bf16.mxu0 0
    %8855 = vmatmul.mubr.bf16.gmra.mxu0 %v8674
    %v8856 = vpop.f32.mrf.mxu0
    %v8857 = vadd.f32 0.0, %v8856
    %v8858 = vpop.f32.mrf.mxu0
    %v8859 = vpop.f32.mrf.mxu0
    %v8860 = vadd.f32 0.0, %v8859
    %v8861 = vpop.f32.mrf.mxu0
    %8862 = vmatprep.mubr.bf16.mxu0 0
    %8863 = vmatmul.mubr.bf16.gmra.mxu0 %v8677
    %v8864 = vpop.f32.mrf.mxu0
    %v8865 = vadd.f32 0.0, %v8864
    %v8866 = vpop.f32.mrf.mxu0
    %v8867 = vpop.f32.mrf.mxu0
    %v8868 = vadd.f32 0.0, %v8867
    %v8869 = vpop.f32.mrf.mxu0
    %8870 = vmatprep.mubr.bf16.mxu0 0
    %8871 = vmatmul.mubr.bf16.gmra.mxu0 %v8680
    %v8872 = vpop.f32.mrf.mxu0
    %v8873 = vadd.f32 0.0, %v8872
    %v8874 = vpop.f32.mrf.mxu0
    %v8875 = vpop.f32.mrf.mxu0
    %v8876 = vadd.f32 0.0, %v8875
    %v8877 = vpop.f32.mrf.mxu0
    %8878 = vmatprep.mubr.bf16.mxu0 0
    %8879 = vmatmul.mubr.bf16.gmra.mxu0 %v8683
    %v8880 = vpop.f32.mrf.mxu0
    %v8881 = vadd.f32 0.0, %v8880
    %v8882 = vpop.f32.mrf.mxu0
    %v8883 = vpop.f32.mrf.mxu0
    %v8884 = vadd.f32 0.0, %v8883
    %v8885 = vpop.f32.mrf.mxu0
    %8886 = vmatprep.mubr.bf16.mxu0 0
    %8887 = vmatmul.mubr.bf16.gmra.mxu0 %v8686
    %v8888 = vpop.f32.mrf.mxu0
    %v8889 = vadd.f32 0.0, %v8888
    %v8890 = vpop.f32.mrf.mxu0
    %v8891 = vpop.f32.mrf.mxu0
    %v8892 = vadd.f32 0.0, %v8891
    %v8893 = vpop.f32.mrf.mxu0
    %8894 = vmatprep.mubr.bf16.mxu0 0
    %8895 = vmatmul.mubr.bf16.gmra.mxu0 %v8689
    %v8896 = vpop.f32.mrf.mxu0
    %v8897 = vadd.f32 0.0, %v8896
    %v8898 = vpop.f32.mrf.mxu0
    %v8899 = vpop.f32.mrf.mxu0
    %v8900 = vadd.f32 0.0, %v8899
    %v8901 = vpop.f32.mrf.mxu0
    %8902 = vmatprep.mubr.bf16.mxu0 0
    %8903 = vmatmul.mubr.bf16.gmra.mxu0 %v8692
    %v8904 = vpop.f32.mrf.mxu0
    %v8905 = vadd.f32 0.0, %v8904
    %v8906 = vpop.f32.mrf.mxu0
    %v8907 = vpop.f32.mrf.mxu0
    %v8908 = vadd.f32 0.0, %v8907
    %v8909 = vpop.f32.mrf.mxu0
    %8910 = vmatprep.mubr.bf16.mxu0 0
    %8911 = vmatmul.mubr.bf16.gmra.mxu0 %v8695
    %v8912 = vpop.f32.mrf.mxu0
    %v8913 = vadd.f32 0.0, %v8912
    %v8914 = vpop.f32.mrf.mxu0
    %v8915 = vpop.f32.mrf.mxu0
    %v8916 = vadd.f32 0.0, %v8915
    %v8917 = vpop.f32.mrf.mxu0
    %8918 = vmatprep.mubr.bf16.mxu0 0
    %8919 = vmatmul.mubr.bf16.gmra.mxu0 %v8698
    %v8920 = vpop.f32.mrf.mxu0
    %v8921 = vadd.f32 0.0, %v8920
    %v8922 = vpop.f32.mrf.mxu0
    %v8923 = vpop.f32.mrf.mxu0
    %v8924 = vadd.f32 0.0, %v8923
    %v8925 = vpop.f32.mrf.mxu0
    %8926 = vmatprep.mubr.bf16.mxu0 0
    %8927 = vmatmul.mubr.bf16.gmra.mxu0 %v8701
    %v8928 = vpop.f32.mrf.mxu0
    %v8929 = vadd.f32 0.0, %v8928
    %v8930 = vpop.f32.mrf.mxu0
    %v8931 = vpop.f32.mrf.mxu0
    %v8932 = vadd.f32 0.0, %v8931
    %v8933 = vpop.f32.mrf.mxu0
    %8934 = vmatprep.mubr.bf16.mxu0 0
    %8935 = vmatmul.mubr.bf16.gmra.mxu0 %v8704
    %v8936 = vpop.f32.mrf.mxu0
    %v8937 = vadd.f32 0.0, %v8936
    %v8938 = vpop.f32.mrf.mxu0
    %v8939 = vpop.f32.mrf.mxu0
    %v8940 = vadd.f32 0.0, %v8939
    %v8941 = vpop.f32.mrf.mxu0
    %8942 = vmatprep.mubr.bf16.mxu0 0
    %8943 = vmatmul.mubr.bf16.gmra.mxu0 %v8707
    %v8944 = vpop.f32.mrf.mxu0
    %v8945 = vadd.f32 0.0, %v8944
    %v8946 = vpop.f32.mrf.mxu0
    %v8947 = vpop.f32.mrf.mxu0
    %v8948 = vadd.f32 0.0, %v8947
    %v8949 = vpop.f32.mrf.mxu0
    %8950 = vmatprep.mubr.bf16.mxu0 0
    %8951 = vmatmul.mubr.bf16.gmra.mxu0 %v8710
    %v8952 = vpop.f32.mrf.mxu0
    %v8953 = vadd.f32 0.0, %v8952
    %v8954 = vpop.f32.mrf.mxu0
    %v8955 = vpop.f32.mrf.mxu0
    %v8956 = vadd.f32 0.0, %v8955
    %v8957 = vpop.f32.mrf.mxu0
    %8958 = vmatprep.mubr.bf16.mxu0 0
    %8959 = vmatmul.mubr.bf16.gmra.mxu0 %v8713
    %v8960 = vpop.f32.mrf.mxu0
    %v8961 = vadd.f32 0.0, %v8960
    %v8962 = vpop.f32.mrf.mxu0
    %v8963 = vpop.f32.mrf.mxu0
    %v8964 = vadd.f32 0.0, %v8963
    %v8965 = vpop.f32.mrf.mxu0
    %8966 = vmatprep.mubr.bf16.mxu0 0
    %8967 = vmatmul.mubr.bf16.gmra.mxu0 %v8716
    %v8968 = vpop.f32.mrf.mxu0
    %v8969 = vadd.f32 0.0, %v8968
    %v8970 = vpop.f32.mrf.mxu0
    %v8971 = vpop.f32.mrf.mxu0
    %v8972 = vadd.f32 0.0, %v8971
    %v8973 = vpop.f32.mrf.mxu0
    %8974 = vmatprep.mubr.bf16.mxu0 0
    %8975 = vmatmul.mubr.bf16.gmra.mxu0 %v8719
    %v8976 = vpop.f32.mrf.mxu0
    %v8977 = vadd.f32 0.0, %v8976
    %v8978 = vpop.f32.mrf.mxu0
    %v8979 = vpop.f32.mrf.mxu0
    %v8980 = vadd.f32 0.0, %v8979
    %v8981 = vpop.f32.mrf.mxu0
    %8982 = vmatprep.mubr.bf16.mxu0 0
    %8983 = vmatmul.mubr.bf16.gmra.mxu0 %v8722
    %v8984 = vpop.f32.mrf.mxu0
    %v8985 = vadd.f32 0.0, %v8984
    %v8986 = vpop.f32.mrf.mxu0
    %v8987 = vpop.f32.mrf.mxu0
    %v8988 = vadd.f32 0.0, %v8987
    %v8989 = vpop.f32.mrf.mxu0
    %8990 = vmatprep.mubr.bf16.mxu0 0
    %8991 = vmatmul.mubr.bf16.gmra.mxu0 %v8725
    %v8992 = vpop.f32.mrf.mxu0
    %v8993 = vadd.f32 0.0, %v8992
    %v8994 = vpop.f32.mrf.mxu0
    %v8995 = vpop.f32.mrf.mxu0
    %v8996 = vadd.f32 0.0, %v8995
    %v8997 = vpop.f32.mrf.mxu0
    %8998 = vmatprep.mubr.bf16.mxu0 0
    %8999 = vmatmul.mubr.bf16.gmra.mxu0 %v8728
    %v9000 = vpop.f32.mrf.mxu0
    %v9001 = vadd.f32 0.0, %v9000
    %v9002 = vpop.f32.mrf.mxu0
    %v9003 = vpop.f32.mrf.mxu0
    %v9004 = vadd.f32 0.0, %v9003
    %v9005 = vpop.f32.mrf.mxu0
    %9006 = vmatprep.mubr.bf16.mxu0 0
    %9007 = vmatmul.mubr.bf16.gmra.mxu0 %v8731
    %v9008 = vpop.f32.mrf.mxu0
    %v9009 = vadd.f32 0.0, %v9008
    %v9010 = vpop.f32.mrf.mxu0
    %v9011 = vpop.f32.mrf.mxu0
    %v9012 = vadd.f32 0.0, %v9011
    %v9013 = vpop.f32.mrf.mxu0
    %9014 = vmatprep.mubr.bf16.mxu0 0
    %9015 = vmatmul.mubr.bf16.gmra.mxu0 %v8734
    %v9016 = vpop.f32.mrf.mxu0
    %v9017 = vadd.f32 0.0, %v9016
    %v9018 = vpop.f32.mrf.mxu0
    %v9019 = vpop.f32.mrf.mxu0
    %v9020 = vadd.f32 0.0, %v9019
    %v9021 = vpop.f32.mrf.mxu0
    %9022 = vmatprep.mubr.bf16.mxu0 0
    %9023 = vmatmul.mubr.bf16.gmra.mxu0 %v8737
    %v9024 = vpop.f32.mrf.mxu0
    %v9025 = vadd.f32 0.0, %v9024
    %v9026 = vpop.f32.mrf.mxu0
    %v9027 = vpop.f32.mrf.mxu0
    %v9028 = vadd.f32 0.0, %v9027
    %v9029 = vpop.f32.mrf.mxu0
    %9030 = vdwg.mxu0
    %9031 = vmatprep.subr.mxu0 0.0
    %9032 = vmatpush1.msra.mxu0 %v8836
    %9033 = vmatprep.subr.mxu0 0.0
    %9034 = vmatpush1.msra.mxu0 %v8833
    %9035 = vmatprep.subr.mxu0 0.0
    %9036 = vmatpush1.msra.mxu0 %v8828
    %9037 = vmatprep.subr.mxu0 0.0
    %9038 = vmatpush1.msra.mxu0 %v8825
    %9039 = vmatprep.subr.mxu0 0.0
    %9040 = vmatpush1.msra.mxu0 %v8820
    %9041 = vmatprep.subr.mxu0 0.0
    %9042 = vmatpush1.msra.mxu0 %v8817
    %9043 = vmatprep.subr.mxu0 0.0
    %9044 = vmatpush1.msra.mxu0 %v8812
    %9045 = vmatprep.subr.mxu0 0.0
    %9046 = vmatpush1.msra.mxu0 %v8809
    %9047 = vmatprep.subr.mxu0 0.0
    %9048 = vmatpush1.msra.mxu0 %v8804
    %9049 = vmatprep.subr.mxu0 0.0
    %9050 = vmatpush1.msra.mxu0 %v8801
    %9051 = vmatprep.subr.mxu0 0.0
    %9052 = vmatpush1.msra.mxu0 %v8796
    %9053 = vmatprep.subr.mxu0 0.0
    %9054 = vmatpush1.msra.mxu0 %v8793
    %9055 = vmatprep.subr.mxu0 0.0
    %9056 = vmatpush1.msra.mxu0 %v8788
    %9057 = vmatprep.subr.mxu0 0.0
    %9058 = vmatpush1.msra.mxu0 %v8785
    %9059 = vmatprep.subr.mxu0 0.0
    %9060 = vmatpush1.msra.mxu0 %v8780
    %9061 = vmatprep.subr.mxu0 0.0
    %9062 = vmatpush1.msra.mxu0 %v8777
    %9063 = vmatprep.subr.mxu0 0.0
    %9064 = vmatpush2.msra.mxu0 %v8900
    %9065 = vmatprep.subr.mxu0 0.0
    %9066 = vmatpush2.msra.mxu0 %v8897
    %9067 = vmatprep.subr.mxu0 0.0
    %9068 = vmatpush2.msra.mxu0 %v8892
    %9069 = vmatprep.subr.mxu0 0.0
    %9070 = vmatpush2.msra.mxu0 %v8889
    %9071 = vmatprep.subr.mxu0 0.0
    %9072 = vmatpush2.msra.mxu0 %v8884
    %9073 = vmatprep.subr.mxu0 0.0
    %9074 = vmatpush2.msra.mxu0 %v8881
    %9075 = vmatprep.subr.mxu0 0.0
    %9076 = vmatpush2.msra.mxu0 %v8876
    %9077 = vmatprep.subr.mxu0 0.0
    %9078 = vmatpush2.msra.mxu0 %v8873
    %9079 = vmatprep.subr.mxu0 0.0
    %9080 = vmatpush2.msra.mxu0 %v8868
    %9081 = vmatprep.subr.mxu0 0.0
    %9082 = vmatpush2.msra.mxu0 %v8865
    %9083 = vmatprep.subr.mxu0 0.0
    %9084 = vmatpush2.msra.mxu0 %v8860
    %9085 = vmatprep.subr.mxu0 0.0
    %9086 = vmatpush2.msra.mxu0 %v8857
    %9087 = vmatprep.subr.mxu0 0.0
    %9088 = vmatpush2.msra.mxu0 %v8852
    %9089 = vmatprep.subr.mxu0 0.0
    %9090 = vmatpush2.msra.mxu0 %v8849
    %9091 = vmatprep.subr.mxu0 0.0
    %9092 = vmatpush2.msra.mxu0 %v8844
    %9093 = vmatprep.subr.mxu0 0.0
    %9094 = vmatpush2.msra.mxu0 %v8841
    %9095 = vmatprep.mubr.f32.mxu0 0.001953125
    %9096 = vmatmul.mubr.f32.gmra.mxu0 0.001953125
    %v9097 = vpop.f32.mrf.mxu0
    %v9098 = vadd.f32 0.0, %v9097
    %v9099 = vpop.f32.mrf.mxu0
    %9100 = vdwg.mxu0
    %9101 = vmatprep.subr.mxu0 0.0
    %9102 = vmatpush1.msra.mxu0 %v8964
    %9103 = vmatprep.subr.mxu0 0.0
    %9104 = vmatpush1.msra.mxu0 %v8961
    %9105 = vmatprep.subr.mxu0 0.0
    %9106 = vmatpush1.msra.mxu0 %v8956
    %9107 = vmatprep.subr.mxu0 0.0
    %9108 = vmatpush1.msra.mxu0 %v8953
    %9109 = vmatprep.subr.mxu0 0.0
    %9110 = vmatpush1.msra.mxu0 %v8948
    %9111 = vmatprep.subr.mxu0 0.0
    %9112 = vmatpush1.msra.mxu0 %v8945
    %9113 = vmatprep.subr.mxu0 0.0
    %9114 = vmatpush1.msra.mxu0 %v8940
    %9115 = vmatprep.subr.mxu0 0.0
    %9116 = vmatpush1.msra.mxu0 %v8937
    %9117 = vmatprep.subr.mxu0 0.0
    %9118 = vmatpush1.msra.mxu0 %v8932
    %9119 = vmatprep.subr.mxu0 0.0
    %9120 = vmatpush1.msra.mxu0 %v8929
    %9121 = vmatprep.subr.mxu0 0.0
    %9122 = vmatpush1.msra.mxu0 %v8924
    %9123 = vmatprep.subr.mxu0 0.0
    %9124 = vmatpush1.msra.mxu0 %v8921
    %9125 = vmatprep.subr.mxu0 0.0
    %9126 = vmatpush1.msra.mxu0 %v8916
    %9127 = vmatprep.subr.mxu0 0.0
    %9128 = vmatpush1.msra.mxu0 %v8913
    %9129 = vmatprep.subr.mxu0 0.0
    %9130 = vmatpush1.msra.mxu0 %v8908
    %9131 = vmatprep.subr.mxu0 0.0
    %9132 = vmatpush1.msra.mxu0 %v8905
    %9133 = vmatprep.subr.mxu0 0.0
    %9134 = vmatpush2.msra.mxu0 %v9028
    %9135 = vmatprep.subr.mxu0 0.0
    %9136 = vmatpush2.msra.mxu0 %v9025
    %9137 = vmatprep.subr.mxu0 0.0
    %9138 = vmatpush2.msra.mxu0 %v9020
    %9139 = vmatprep.subr.mxu0 0.0
    %9140 = vmatpush2.msra.mxu0 %v9017
    %9141 = vmatprep.subr.mxu0 0.0
    %9142 = vmatpush2.msra.mxu0 %v9012
    %9143 = vmatprep.subr.mxu0 0.0
    %9144 = vmatpush2.msra.mxu0 %v9009
    %9145 = vmatprep.subr.mxu0 0.0
    %9146 = vmatpush2.msra.mxu0 %v9004
    %9147 = vmatprep.subr.mxu0 0.0
    %9148 = vmatpush2.msra.mxu0 %v9001
    %9149 = vmatprep.subr.mxu0 0.0
    %9150 = vmatpush2.msra.mxu0 %v8996
    %9151 = vmatprep.subr.mxu0 0.0
    %9152 = vmatpush2.msra.mxu0 %v8993
    %9153 = vmatprep.subr.mxu0 0.0
    %9154 = vmatpush2.msra.mxu0 %v8988
    %9155 = vmatprep.subr.mxu0 0.0
    %9156 = vmatpush2.msra.mxu0 %v8985
    %9157 = vmatprep.subr.mxu0 0.0
    %9158 = vmatpush2.msra.mxu0 %v8980
    %9159 = vmatprep.subr.mxu0 0.0
    %9160 = vmatpush2.msra.mxu0 %v8977
    %9161 = vmatprep.subr.mxu0 0.0
    %9162 = vmatpush2.msra.mxu0 %v8972
    %9163 = vmatprep.subr.mxu0 0.0
    %9164 = vmatpush2.msra.mxu0 %v8969
    %9165 = vmatprep.mubr.f32.mxu0 0.001953125
    %9166 = vmatmul.mubr.f32.gmra.mxu0 0.001953125
    %v9167 = vpop.f32.mrf.mxu0
    %v9168 = vadd.f32 %v9098, %v9167
    %v9169 = vpop.f32.mrf.mxu0
    %9170 = vdwg.mxu0
    %v9171 = vmul.f32 %v8777, %v8777
    %v9172 = vmul.f32 %v8780, %v8780
    %v9173 = vmul.f32 %v8785, %v8785
    %v9174 = vmul.f32 %v8788, %v8788
    %v9175 = vmul.f32 %v8793, %v8793
    %v9176 = vmul.f32 %v8796, %v8796
    %v9177 = vmul.f32 %v8801, %v8801
    %v9178 = vmul.f32 %v8804, %v8804
    %v9179 = vmul.f32 %v8809, %v8809
    %v9180 = vmul.f32 %v8812, %v8812
    %v9181 = vmul.f32 %v8817, %v8817
    %v9182 = vmul.f32 %v8820, %v8820
    %v9183 = vmul.f32 %v8825, %v8825
    %v9184 = vmul.f32 %v8828, %v8828
    %v9185 = vmul.f32 %v8833, %v8833
    %v9186 = vmul.f32 %v8836, %v8836
    %v9187 = vmul.f32 %v8841, %v8841
    %v9188 = vmul.f32 %v8844, %v8844
    %v9189 = vmul.f32 %v8849, %v8849
    %v9190 = vmul.f32 %v8852, %v8852
    %v9191 = vmul.f32 %v8857, %v8857
    %v9192 = vmul.f32 %v8860, %v8860
    %v9193 = vmul.f32 %v8865, %v8865
    %v9194 = vmul.f32 %v8868, %v8868
    %v9195 = vmul.f32 %v8873, %v8873
    %v9196 = vmul.f32 %v8876, %v8876
    %v9197 = vmul.f32 %v8881, %v8881
    %v9198 = vmul.f32 %v8884, %v8884
    %v9199 = vmul.f32 %v8889, %v8889
    %v9200 = vmul.f32 %v8892, %v8892
    %v9201 = vmul.f32 %v8897, %v8897
    %v9202 = vmul.f32 %v8900, %v8900
    %v9203 = vmul.f32 %v8905, %v8905
    %v9204 = vmul.f32 %v8908, %v8908
    %v9205 = vmul.f32 %v8913, %v8913
    %v9206 = vmul.f32 %v8916, %v8916
    %v9207 = vmul.f32 %v8921, %v8921
    %v9208 = vmul.f32 %v8924, %v8924
    %v9209 = vmul.f32 %v8929, %v8929
    %v9210 = vmul.f32 %v8932, %v8932
    %v9211 = vmul.f32 %v8937, %v8937
    %v9212 = vmul.f32 %v8940, %v8940
    %v9213 = vmul.f32 %v8945, %v8945
    %v9214 = vmul.f32 %v8948, %v8948
    %v9215 = vmul.f32 %v8953, %v8953
    %v9216 = vmul.f32 %v8956, %v8956
    %v9217 = vmul.f32 %v8961, %v8961
    %v9218 = vmul.f32 %v8964, %v8964
    %v9219 = vmul.f32 %v8969, %v8969
    %v9220 = vmul.f32 %v8972, %v8972
    %v9221 = vmul.f32 %v8977, %v8977
    %v9222 = vmul.f32 %v8980, %v8980
    %v9223 = vmul.f32 %v8985, %v8985
    %v9224 = vmul.f32 %v8988, %v8988
    %v9225 = vmul.f32 %v8993, %v8993
    %v9226 = vmul.f32 %v8996, %v8996
    %v9227 = vmul.f32 %v9001, %v9001
    %v9228 = vmul.f32 %v9004, %v9004
    %v9229 = vmul.f32 %v9009, %v9009
    %v9230 = vmul.f32 %v9012, %v9012
    %v9231 = vmul.f32 %v9017, %v9017
    %v9232 = vmul.f32 %v9020, %v9020
    %v9233 = vmul.f32 %v9025, %v9025
    %v9234 = vmul.f32 %v9028, %v9028
    %9235 = vmatprep.subr.mxu0 0.0
    %9236 = vmatpush1.msra.mxu0 %v9186
    %9237 = vmatprep.subr.mxu0 0.0
    %9238 = vmatpush1.msra.mxu0 %v9185
    %9239 = vmatprep.subr.mxu0 0.0
    %9240 = vmatpush1.msra.mxu0 %v9184
    %9241 = vmatprep.subr.mxu0 0.0
    %9242 = vmatpush1.msra.mxu0 %v9183
    %9243 = vmatprep.subr.mxu0 0.0
    %9244 = vmatpush1.msra.mxu0 %v9182
    %9245 = vmatprep.subr.mxu0 0.0
    %9246 = vmatpush1.msra.mxu0 %v9181
    %9247 = vmatprep.subr.mxu0 0.0
    %9248 = vmatpush1.msra.mxu0 %v9180
    %9249 = vmatprep.subr.mxu0 0.0
    %9250 = vmatpush1.msra.mxu0 %v9179
    %9251 = vmatprep.subr.mxu0 0.0
    %9252 = vmatpush1.msra.mxu0 %v9178
    %9253 = vmatprep.subr.mxu0 0.0
    %9254 = vmatpush1.msra.mxu0 %v9177
    %9255 = vmatprep.subr.mxu0 0.0
    %9256 = vmatpush1.msra.mxu0 %v9176
    %9257 = vmatprep.subr.mxu0 0.0
    %9258 = vmatpush1.msra.mxu0 %v9175
    %9259 = vmatprep.subr.mxu0 0.0
    %9260 = vmatpush1.msra.mxu0 %v9174
    %9261 = vmatprep.subr.mxu0 0.0
    %9262 = vmatpush1.msra.mxu0 %v9173
    %9263 = vmatprep.subr.mxu0 0.0
    %9264 = vmatpush1.msra.mxu0 %v9172
    %9265 = vmatprep.subr.mxu0 0.0
    %9266 = vmatpush1.msra.mxu0 %v9171
    %9267 = vmatprep.subr.mxu0 0.0
    %9268 = vmatpush2.msra.mxu0 %v9202
    %9269 = vmatprep.subr.mxu0 0.0
    %9270 = vmatpush2.msra.mxu0 %v9201
    %9271 = vmatprep.subr.mxu0 0.0
    %9272 = vmatpush2.msra.mxu0 %v9200
    %9273 = vmatprep.subr.mxu0 0.0
    %9274 = vmatpush2.msra.mxu0 %v9199
    %9275 = vmatprep.subr.mxu0 0.0
    %9276 = vmatpush2.msra.mxu0 %v9198
    %9277 = vmatprep.subr.mxu0 0.0
    %9278 = vmatpush2.msra.mxu0 %v9197
    %9279 = vmatprep.subr.mxu0 0.0
    %9280 = vmatpush2.msra.mxu0 %v9196
    %9281 = vmatprep.subr.mxu0 0.0
    %9282 = vmatpush2.msra.mxu0 %v9195
    %9283 = vmatprep.subr.mxu0 0.0
    %9284 = vmatpush2.msra.mxu0 %v9194
    %9285 = vmatprep.subr.mxu0 0.0
    %9286 = vmatpush2.msra.mxu0 %v9193
    %9287 = vmatprep.subr.mxu0 0.0
    %9288 = vmatpush2.msra.mxu0 %v9192
    %9289 = vmatprep.subr.mxu0 0.0
    %9290 = vmatpush2.msra.mxu0 %v9191
    %9291 = vmatprep.subr.mxu0 0.0
    %9292 = vmatpush2.msra.mxu0 %v9190
    %9293 = vmatprep.subr.mxu0 0.0
    %9294 = vmatpush2.msra.mxu0 %v9189
    %9295 = vmatprep.subr.mxu0 0.0
    %9296 = vmatpush2.msra.mxu0 %v9188
    %9297 = vmatprep.subr.mxu0 0.0
    %9298 = vmatpush2.msra.mxu0 %v9187
    %9299 = vmatprep.mubr.f32.mxu0 0.001953125
    %9300 = vmatmul.mubr.f32.gmra.mxu0 0.001953125
    %v9301 = vpop.f32.mrf.mxu0
    %v9302 = vadd.f32 0.0, %v9301
    %v9303 = vpop.f32.mrf.mxu0
    %9304 = vdwg.mxu0
    %9305 = vmatprep.subr.mxu0 0.0
    %9306 = vmatpush1.msra.mxu0 %v9218
    %9307 = vmatprep.subr.mxu0 0.0
    %9308 = vmatpush1.msra.mxu0 %v9217
    %9309 = vmatprep.subr.mxu0 0.0
    %9310 = vmatpush1.msra.mxu0 %v9216
    %9311 = vmatprep.subr.mxu0 0.0
    %9312 = vmatpush1.msra.mxu0 %v9215
    %9313 = vmatprep.subr.mxu0 0.0
    %9314 = vmatpush1.msra.mxu0 %v9214
    %9315 = vmatprep.subr.mxu0 0.0
    %9316 = vmatpush1.msra.mxu0 %v9213
    %9317 = vmatprep.subr.mxu0 0.0
    %9318 = vmatpush1.msra.mxu0 %v9212
    %9319 = vmatprep.subr.mxu0 0.0
    %9320 = vmatpush1.msra.mxu0 %v9211
    %9321 = vmatprep.subr.mxu0 0.0
    %9322 = vmatpush1.msra.mxu0 %v9210
    %9323 = vmatprep.subr.mxu0 0.0
    %9324 = vmatpush1.msra.mxu0 %v9209
    %9325 = vmatprep.subr.mxu0 0.0
    %9326 = vmatpush1.msra.mxu0 %v9208
    %9327 = vmatprep.subr.mxu0 0.0
    %9328 = vmatpush1.msra.mxu0 %v9207
    %9329 = vmatprep.subr.mxu0 0.0
    %9330 = vmatpush1.msra.mxu0 %v9206
    %9331 = vmatprep.subr.mxu0 0.0
    %9332 = vmatpush1.msra.mxu0 %v9205
    %9333 = vmatprep.subr.mxu0 0.0
    %9334 = vmatpush1.msra.mxu0 %v9204
    %9335 = vmatprep.subr.mxu0 0.0
    %9336 = vmatpush1.msra.mxu0 %v9203
    %9337 = vmatprep.subr.mxu0 0.0
    %9338 = vmatpush2.msra.mxu0 %v9234
    %9339 = vmatprep.subr.mxu0 0.0
    %9340 = vmatpush2.msra.mxu0 %v9233
    %9341 = vmatprep.subr.mxu0 0.0
    %9342 = vmatpush2.msra.mxu0 %v9232
    %9343 = vmatprep.subr.mxu0 0.0
    %9344 = vmatpush2.msra.mxu0 %v9231
    %9345 = vmatprep.subr.mxu0 0.0
    %9346 = vmatpush2.msra.mxu0 %v9230
    %9347 = vmatprep.subr.mxu0 0.0
    %9348 = vmatpush2.msra.mxu0 %v9229
    %9349 = vmatprep.subr.mxu0 0.0
    %9350 = vmatpush2.msra.mxu0 %v9228
    %9351 = vmatprep.subr.mxu0 0.0
    %9352 = vmatpush2.msra.mxu0 %v9227
    %9353 = vmatprep.subr.mxu0 0.0
    %9354 = vmatpush2.msra.mxu0 %v9226
    %9355 = vmatprep.subr.mxu0 0.0
    %9356 = vmatpush2.msra.mxu0 %v9225
    %9357 = vmatprep.subr.mxu0 0.0
    %9358 = vmatpush2.msra.mxu0 %v9224
    %9359 = vmatprep.subr.mxu0 0.0
    %9360 = vmatpush2.msra.mxu0 %v9223
    %9361 = vmatprep.subr.mxu0 0.0
    %9362 = vmatpush2.msra.mxu0 %v9222
    %9363 = vmatprep.subr.mxu0 0.0
    %9364 = vmatpush2.msra.mxu0 %v9221
    %9365 = vmatprep.subr.mxu0 0.0
    %9366 = vmatpush2.msra.mxu0 %v9220
    %9367 = vmatprep.subr.mxu0 0.0
    %9368 = vmatpush2.msra.mxu0 %v9219
    %9369 = vmatprep.mubr.f32.mxu0 0.001953125
    %9370 = vmatmul.mubr.f32.gmra.mxu0 0.001953125
    %v9371 = vpop.f32.mrf.mxu0
    %v9372 = vadd.f32 %v9302, %v9371
    %v9373 = vpop.f32.mrf.mxu0
    %9374 = vdwg.mxu0
    %v9375 = vmul.f32 %v9168, %v9168
    %v9376 = vsub.f32 %v9372, %v9375
    %v9377 = vmax.f32 %v9376, 0.0
    %v9378 = vld [vmem:[%s8] sm:$0x1]
    %v9379 = vadd.f32 %v9377, 1e-05
    %v9380 = vrsqrt.pop %v9379
    %v9381 = vmul.f32 %v9378, %v9380
    %v9382 = vld [vmem:[%s9] sm:$0x1]
    %v9383 = vmul.f32 %v9168, %v9381
    %v9384 = vsub.f32 %v9382, %v9383
    %v9386 = vlaneseq
    %v9387 = vshrl.u32 %v9386, 7
    %v9388 = vsub.s32 0, %v9387
    %v9389 = vrot.slane %v9381, %v9388
    %v9391 = vmul.f32 %v8777, %v9389
    %v9392 = vmul.f32 %v8780, %v9389
    %v9393 = vmul.f32 %v8785, %v9389
    %v9394 = vmul.f32 %v8788, %v9389
    %v9395 = vmul.f32 %v8793, %v9389
    %v9396 = vmul.f32 %v8796, %v9389
    %v9397 = vmul.f32 %v8801, %v9389
    %v9398 = vmul.f32 %v8804, %v9389
    %v9399 = vmul.f32 %v8809, %v9389
    %v9400 = vmul.f32 %v8812, %v9389
    %v9401 = vmul.f32 %v8817, %v9389
    %v9402 = vmul.f32 %v8820, %v9389
    %v9403 = vmul.f32 %v8825, %v9389
    %v9404 = vmul.f32 %v8828, %v9389
    %v9405 = vmul.f32 %v8833, %v9389
    %v9406 = vmul.f32 %v8836, %v9389
    %v9407 = vmul.f32 %v8841, %v9389
    %v9408 = vmul.f32 %v8844, %v9389
    %v9409 = vmul.f32 %v8849, %v9389
    %v9410 = vmul.f32 %v8852, %v9389
    %v9411 = vmul.f32 %v8857, %v9389
    %v9412 = vmul.f32 %v8860, %v9389
    %v9413 = vmul.f32 %v8865, %v9389
    %v9414 = vmul.f32 %v8868, %v9389
    %v9415 = vmul.f32 %v8873, %v9389
    %v9416 = vmul.f32 %v8876, %v9389
    %v9417 = vmul.f32 %v8881, %v9389
    %v9418 = vmul.f32 %v8884, %v9389
    %v9419 = vmul.f32 %v8889, %v9389
    %v9420 = vmul.f32 %v8892, %v9389
    %v9421 = vmul.f32 %v8897, %v9389
    %v9422 = vmul.f32 %v8900, %v9389
    %v9423 = vmul.f32 %v8905, %v9389
    %v9424 = vmul.f32 %v8908, %v9389
    %v9425 = vmul.f32 %v8913, %v9389
    %v9426 = vmul.f32 %v8916, %v9389
    %v9427 = vmul.f32 %v8921, %v9389
    %v9428 = vmul.f32 %v8924, %v9389
    %v9429 = vmul.f32 %v8929, %v9389
    %v9430 = vmul.f32 %v8932, %v9389
    %v9431 = vmul.f32 %v8937, %v9389
    %v9432 = vmul.f32 %v8940, %v9389
    %v9433 = vmul.f32 %v8945, %v9389
    %v9434 = vmul.f32 %v8948, %v9389
    %v9435 = vmul.f32 %v8953, %v9389
    %v9436 = vmul.f32 %v8956, %v9389
    %v9437 = vmul.f32 %v8961, %v9389
    %v9438 = vmul.f32 %v8964, %v9389
    %v9439 = vmul.f32 %v8969, %v9389
    %v9440 = vmul.f32 %v8972, %v9389
    %v9441 = vmul.f32 %v8977, %v9389
    %v9442 = vmul.f32 %v8980, %v9389
    %v9443 = vmul.f32 %v8985, %v9389
    %v9444 = vmul.f32 %v8988, %v9389
    %v9445 = vmul.f32 %v8993, %v9389
    %v9446 = vmul.f32 %v8996, %v9389
    %v9447 = vmul.f32 %v9001, %v9389
    %v9448 = vmul.f32 %v9004, %v9389
    %v9449 = vmul.f32 %v9009, %v9389
    %v9450 = vmul.f32 %v9012, %v9389
    %v9451 = vmul.f32 %v9017, %v9389
    %v9452 = vmul.f32 %v9020, %v9389
    %v9453 = vmul.f32 %v9025, %v9389
    %v9454 = vmul.f32 %v9028, %v9389
    %v9456 = vlaneseq
    %v9457 = vshrl.u32 %v9456, 7
    %v9458 = vsub.s32 0, %v9457
    %v9459 = vrot.slane %v9384, %v9458
    %v9461 = vadd.f32 %v9391, %v9459
    %v9462 = vadd.f32 %v9392, %v9459
    %v9463 = vadd.f32 %v9393, %v9459
    %v9464 = vadd.f32 %v9394, %v9459
    %v9465 = vadd.f32 %v9395, %v9459
    %v9466 = vadd.f32 %v9396, %v9459
    %v9467 = vadd.f32 %v9397, %v9459
    %v9468 = vadd.f32 %v9398, %v9459
    %v9469 = vadd.f32 %v9399, %v9459
    %v9470 = vadd.f32 %v9400, %v9459
    %v9471 = vadd.f32 %v9401, %v9459
    %v9472 = vadd.f32 %v9402, %v9459
    %v9473 = vadd.f32 %v9403, %v9459
    %v9474 = vadd.f32 %v9404, %v9459
    %v9475 = vadd.f32 %v9405, %v9459
    %v9476 = vadd.f32 %v9406, %v9459
    %v9477 = vadd.f32 %v9407, %v9459
    %v9478 = vadd.f32 %v9408, %v9459
    %v9479 = vadd.f32 %v9409, %v9459
    %v9480 = vadd.f32 %v9410, %v9459
    %v9481 = vadd.f32 %v9411, %v9459
    %v9482 = vadd.f32 %v9412, %v9459
    %v9483 = vadd.f32 %v9413, %v9459
    %v9484 = vadd.f32 %v9414, %v9459
    %v9485 = vadd.f32 %v9415, %v9459
    %v9486 = vadd.f32 %v9416, %v9459
    %v9487 = vadd.f32 %v9417, %v9459
    %v9488 = vadd.f32 %v9418, %v9459
    %v9489 = vadd.f32 %v9419, %v9459
    %v9490 = vadd.f32 %v9420, %v9459
    %v9491 = vadd.f32 %v9421, %v9459
    %v9492 = vadd.f32 %v9422, %v9459
    %v9493 = vadd.f32 %v9423, %v9459
    %v9494 = vadd.f32 %v9424, %v9459
    %v9495 = vadd.f32 %v9425, %v9459
    %v9496 = vadd.f32 %v9426, %v9459
    %v9497 = vadd.f32 %v9427, %v9459
    %v9498 = vadd.f32 %v9428, %v9459
    %v9499 = vadd.f32 %v9429, %v9459
    %v9500 = vadd.f32 %v9430, %v9459
    %v9501 = vadd.f32 %v9431, %v9459
    %v9502 = vadd.f32 %v9432, %v9459
    %v9503 = vadd.f32 %v9433, %v9459
    %v9504 = vadd.f32 %v9434, %v9459
    %v9505 = vadd.f32 %v9435, %v9459
    %v9506 = vadd.f32 %v9436, %v9459
    %v9507 = vadd.f32 %v9437, %v9459
    %v9508 = vadd.f32 %v9438, %v9459
    %v9509 = vadd.f32 %v9439, %v9459
    %v9510 = vadd.f32 %v9440, %v9459
    %v9511 = vadd.f32 %v9441, %v9459
    %v9512 = vadd.f32 %v9442, %v9459
    %v9513 = vadd.f32 %v9443, %v9459
    %v9514 = vadd.f32 %v9444, %v9459
    %v9515 = vadd.f32 %v9445, %v9459
    %v9516 = vadd.f32 %v9446, %v9459
    %v9517 = vadd.f32 %v9447, %v9459
    %v9518 = vadd.f32 %v9448, %v9459
    %v9519 = vadd.f32 %v9449, %v9459
    %v9520 = vadd.f32 %v9450, %v9459
    %v9521 = vadd.f32 %v9451, %v9459
    %v9522 = vadd.f32 %v9452, %v9459
    %v9523 = vadd.f32 %v9453, %v9459
    %v9524 = vadd.f32 %v9454, %v9459
    %v9525 = vld [vmem:[%s10] sm:$0xf]
    %v9526 = vld [vmem:[%s10 + $0x4] sm:$0xf]
    %v9529 = vunpack.c.l.b16 %v9525
    %v9530 = vunpack.c.l.b16 %v9526
    %v9531 = vpack.c.b16 %v9530, %v9529
    %9533 = vmatprep.subr.bf16.mxu0 0
    %9534 = vmatpush1.bf16.msra.mxu0 0
    %9535 = vmatprep.subr.bf16.mxu0 0
    %9536 = vmatpush1.bf16.msra.mxu0 0
    %9537 = vmatprep.subr.bf16.mxu0 0
    %9538 = vmatpush1.bf16.msra.mxu0 0
    %9539 = vmatprep.subr.bf16.mxu0 0
    %9540 = vmatpush1.bf16.msra.mxu0 0
    %9541 = vmatprep.subr.bf16.mxu0 0
    %9542 = vmatpush1.bf16.msra.mxu0 0
    %9543 = vmatprep.subr.bf16.mxu0 0
    %9544 = vmatpush1.bf16.msra.mxu0 0
    %9545 = vmatprep.subr.bf16.mxu0 0
    %9546 = vmatpush1.bf16.msra.mxu0 0
    %9547 = vmatprep.subr.bf16.mxu0 0
    %9548 = vmatpush1.bf16.msra.mxu0 %v9531
    %9549 = vmatprep.subr.bf16.mxu0 0
    %9550 = vmatpush2.bf16.msra.mxu0 0
    %9551 = vmatprep.subr.bf16.mxu0 0
    %9552 = vmatpush2.bf16.msra.mxu0 0
    %9553 = vmatprep.subr.bf16.mxu0 0
    %9554 = vmatpush2.bf16.msra.mxu0 0
    %9555 = vmatprep.subr.bf16.mxu0 0
    %9556 = vmatpush2.bf16.msra.mxu0 0
    %9557 = vmatprep.subr.bf16.mxu0 0
    %9558 = vmatpush2.bf16.msra.mxu0 0
    %9559 = vmatprep.subr.bf16.mxu0 0
    %9560 = vmatpush2.bf16.msra.mxu0 0
    %9561 = vmatprep.subr.bf16.mxu0 0
    %9562 = vmatpush2.bf16.msra.mxu0 0
    %9563 = vmatprep.subr.bf16.mxu0 0
    %9564 = vmatpush2.bf16.msra.mxu0 0
    %9565 = vmatprep.mubr.bf16.mxu0 0
    %9566 = vmatmul.mubr.bf16.gmra.mxu0 %v166
    %v9567 = vpop.f32.mrf.mxu0
    %v9568 = vadd.f32 0.0, %v9567
    %v9569 = vpop.f32.mrf.mxu0
    %v9570 = vpop.f32.mrf.mxu0
    %v9571 = vadd.f32 0.0, %v9570
    %v9572 = vpop.f32.mrf.mxu0
    %9573 = vmatprep.mubr.bf16.mxu0 0
    %9574 = vmatmul.mubr.bf16.gmra.mxu0 %v169
    %v9575 = vpop.f32.mrf.mxu0
    %v9576 = vadd.f32 0.0, %v9575
    %v9577 = vpop.f32.mrf.mxu0
    %v9578 = vpop.f32.mrf.mxu0
    %v9579 = vadd.f32 0.0, %v9578
    %v9580 = vpop.f32.mrf.mxu0
    %9581 = vmatprep.mubr.bf16.mxu0 0
    %9582 = vmatmul.mubr.bf16.gmra.mxu0 %v172
    %v9583 = vpop.f32.mrf.mxu0
    %v9584 = vadd.f32 0.0, %v9583
    %v9585 = vpop.f32.mrf.mxu0
    %v9586 = vpop.f32.mrf.mxu0
    %v9587 = vadd.f32 0.0, %v9586
    %v9588 = vpop.f32.mrf.mxu0
    %9589 = vmatprep.mubr.bf16.mxu0 0
    %9590 = vmatmul.mubr.bf16.gmra.mxu0 %v175
    %v9591 = vpop.f32.mrf.mxu0
    %v9592 = vadd.f32 0.0, %v9591
    %v9593 = vpop.f32.mrf.mxu0
    %v9594 = vpop.f32.mrf.mxu0
    %v9595 = vadd.f32 0.0, %v9594
    %v9596 = vpop.f32.mrf.mxu0
    %9597 = vmatprep.mubr.bf16.mxu0 0
    %9598 = vmatmul.mubr.bf16.gmra.mxu0 %v178
    %v9599 = vpop.f32.mrf.mxu0
    %v9600 = vadd.f32 0.0, %v9599
    %v9601 = vpop.f32.mrf.mxu0
    %v9602 = vpop.f32.mrf.mxu0
    %v9603 = vadd.f32 0.0, %v9602
    %v9604 = vpop.f32.mrf.mxu0
    %9605 = vmatprep.mubr.bf16.mxu0 0
    %9606 = vmatmul.mubr.bf16.gmra.mxu0 %v181
    %v9607 = vpop.f32.mrf.mxu0
    %v9608 = vadd.f32 0.0, %v9607
    %v9609 = vpop.f32.mrf.mxu0
    %v9610 = vpop.f32.mrf.mxu0
    %v9611 = vadd.f32 0.0, %v9610
    %v9612 = vpop.f32.mrf.mxu0
    %9613 = vmatprep.mubr.bf16.mxu0 0
    %9614 = vmatmul.mubr.bf16.gmra.mxu0 %v184
    %v9615 = vpop.f32.mrf.mxu0
    %v9616 = vadd.f32 0.0, %v9615
    %v9617 = vpop.f32.mrf.mxu0
    %v9618 = vpop.f32.mrf.mxu0
    %v9619 = vadd.f32 0.0, %v9618
    %v9620 = vpop.f32.mrf.mxu0
    %9621 = vmatprep.mubr.bf16.mxu0 0
    %9622 = vmatmul.mubr.bf16.gmra.mxu0 %v187
    %v9623 = vpop.f32.mrf.mxu0
    %v9624 = vadd.f32 0.0, %v9623
    %v9625 = vpop.f32.mrf.mxu0
    %v9626 = vpop.f32.mrf.mxu0
    %v9627 = vadd.f32 0.0, %v9626
    %v9628 = vpop.f32.mrf.mxu0
    %9629 = vmatprep.mubr.bf16.mxu0 0
    %9630 = vmatmul.mubr.bf16.gmra.mxu0 %v190
    %v9631 = vpop.f32.mrf.mxu0
    %v9632 = vadd.f32 0.0, %v9631
    %v9633 = vpop.f32.mrf.mxu0
    %v9634 = vpop.f32.mrf.mxu0
    %v9635 = vadd.f32 0.0, %v9634
    %v9636 = vpop.f32.mrf.mxu0
    %9637 = vmatprep.mubr.bf16.mxu0 0
    %9638 = vmatmul.mubr.bf16.gmra.mxu0 %v193
    %v9639 = vpop.f32.mrf.mxu0
    %v9640 = vadd.f32 0.0, %v9639
    %v9641 = vpop.f32.mrf.mxu0
    %v9642 = vpop.f32.mrf.mxu0
    %v9643 = vadd.f32 0.0, %v9642
    %v9644 = vpop.f32.mrf.mxu0
    %9645 = vmatprep.mubr.bf16.mxu0 0
    %9646 = vmatmul.mubr.bf16.gmra.mxu0 %v196
    %v9647 = vpop.f32.mrf.mxu0
    %v9648 = vadd.f32 0.0, %v9647
    %v9649 = vpop.f32.mrf.mxu0
    %v9650 = vpop.f32.mrf.mxu0
    %v9651 = vadd.f32 0.0, %v9650
    %v9652 = vpop.f32.mrf.mxu0
    %9653 = vmatprep.mubr.bf16.mxu0 0
    %9654 = vmatmul.mubr.bf16.gmra.mxu0 %v199
    %v9655 = vpop.f32.mrf.mxu0
    %v9656 = vadd.f32 0.0, %v9655
    %v9657 = vpop.f32.mrf.mxu0
    %v9658 = vpop.f32.mrf.mxu0
    %v9659 = vadd.f32 0.0, %v9658
    %v9660 = vpop.f32.mrf.mxu0
    %9661 = vmatprep.mubr.bf16.mxu0 0
    %9662 = vmatmul.mubr.bf16.gmra.mxu0 %v202
    %v9663 = vpop.f32.mrf.mxu0
    %v9664 = vadd.f32 0.0, %v9663
    %v9665 = vpop.f32.mrf.mxu0
    %v9666 = vpop.f32.mrf.mxu0
    %v9667 = vadd.f32 0.0, %v9666
    %v9668 = vpop.f32.mrf.mxu0
    %9669 = vmatprep.mubr.bf16.mxu0 0
    %9670 = vmatmul.mubr.bf16.gmra.mxu0 %v205
    %v9671 = vpop.f32.mrf.mxu0
    %v9672 = vadd.f32 0.0, %v9671
    %v9673 = vpop.f32.mrf.mxu0
    %v9674 = vpop.f32.mrf.mxu0
    %v9675 = vadd.f32 0.0, %v9674
    %v9676 = vpop.f32.mrf.mxu0
    %9677 = vmatprep.mubr.bf16.mxu0 0
    %9678 = vmatmul.mubr.bf16.gmra.mxu0 %v208
    %v9679 = vpop.f32.mrf.mxu0
    %v9680 = vadd.f32 0.0, %v9679
    %v9681 = vpop.f32.mrf.mxu0
    %v9682 = vpop.f32.mrf.mxu0
    %v9683 = vadd.f32 0.0, %v9682
    %v9684 = vpop.f32.mrf.mxu0
    %9685 = vmatprep.mubr.bf16.mxu0 0
    %9686 = vmatmul.mubr.bf16.gmra.mxu0 %v211
    %v9687 = vpop.f32.mrf.mxu0
    %v9688 = vadd.f32 0.0, %v9687
    %v9689 = vpop.f32.mrf.mxu0
    %v9690 = vpop.f32.mrf.mxu0
    %v9691 = vadd.f32 0.0, %v9690
    %v9692 = vpop.f32.mrf.mxu0
    %9693 = vmatprep.mubr.bf16.mxu0 0
    %9694 = vmatmul.mubr.bf16.gmra.mxu0 %v214
    %v9695 = vpop.f32.mrf.mxu0
    %v9696 = vadd.f32 0.0, %v9695
    %v9697 = vpop.f32.mrf.mxu0
    %v9698 = vpop.f32.mrf.mxu0
    %v9699 = vadd.f32 0.0, %v9698
    %v9700 = vpop.f32.mrf.mxu0
    %9701 = vmatprep.mubr.bf16.mxu0 0
    %9702 = vmatmul.mubr.bf16.gmra.mxu0 %v217
    %v9703 = vpop.f32.mrf.mxu0
    %v9704 = vadd.f32 0.0, %v9703
    %v9705 = vpop.f32.mrf.mxu0
    %v9706 = vpop.f32.mrf.mxu0
    %v9707 = vadd.f32 0.0, %v9706
    %v9708 = vpop.f32.mrf.mxu0
    %9709 = vmatprep.mubr.bf16.mxu0 0
    %9710 = vmatmul.mubr.bf16.gmra.mxu0 %v220
    %v9711 = vpop.f32.mrf.mxu0
    %v9712 = vadd.f32 0.0, %v9711
    %v9713 = vpop.f32.mrf.mxu0
    %v9714 = vpop.f32.mrf.mxu0
    %v9715 = vadd.f32 0.0, %v9714
    %v9716 = vpop.f32.mrf.mxu0
    %9717 = vmatprep.mubr.bf16.mxu0 0
    %9718 = vmatmul.mubr.bf16.gmra.mxu0 %v223
    %v9719 = vpop.f32.mrf.mxu0
    %v9720 = vadd.f32 0.0, %v9719
    %v9721 = vpop.f32.mrf.mxu0
    %v9722 = vpop.f32.mrf.mxu0
    %v9723 = vadd.f32 0.0, %v9722
    %v9724 = vpop.f32.mrf.mxu0
    %9725 = vmatprep.mubr.bf16.mxu0 0
    %9726 = vmatmul.mubr.bf16.gmra.mxu0 %v226
    %v9727 = vpop.f32.mrf.mxu0
    %v9728 = vadd.f32 0.0, %v9727
    %v9729 = vpop.f32.mrf.mxu0
    %v9730 = vpop.f32.mrf.mxu0
    %v9731 = vadd.f32 0.0, %v9730
    %v9732 = vpop.f32.mrf.mxu0
    %9733 = vmatprep.mubr.bf16.mxu0 0
    %9734 = vmatmul.mubr.bf16.gmra.mxu0 %v229
    %v9735 = vpop.f32.mrf.mxu0
    %v9736 = vadd.f32 0.0, %v9735
    %v9737 = vpop.f32.mrf.mxu0
    %v9738 = vpop.f32.mrf.mxu0
    %v9739 = vadd.f32 0.0, %v9738
    %v9740 = vpop.f32.mrf.mxu0
    %9741 = vmatprep.mubr.bf16.mxu0 0
    %9742 = vmatmul.mubr.bf16.gmra.mxu0 %v232
    %v9743 = vpop.f32.mrf.mxu0
    %v9744 = vadd.f32 0.0, %v9743
    %v9745 = vpop.f32.mrf.mxu0
    %v9746 = vpop.f32.mrf.mxu0
    %v9747 = vadd.f32 0.0, %v9746
    %v9748 = vpop.f32.mrf.mxu0
    %9749 = vmatprep.mubr.bf16.mxu0 0
    %9750 = vmatmul.mubr.bf16.gmra.mxu0 %v235
    %v9751 = vpop.f32.mrf.mxu0
    %v9752 = vadd.f32 0.0, %v9751
    %v9753 = vpop.f32.mrf.mxu0
    %v9754 = vpop.f32.mrf.mxu0
    %v9755 = vadd.f32 0.0, %v9754
    %v9756 = vpop.f32.mrf.mxu0
    %9757 = vmatprep.mubr.bf16.mxu0 0
    %9758 = vmatmul.mubr.bf16.gmra.mxu0 %v238
    %v9759 = vpop.f32.mrf.mxu0
    %v9760 = vadd.f32 0.0, %v9759
    %v9761 = vpop.f32.mrf.mxu0
    %v9762 = vpop.f32.mrf.mxu0
    %v9763 = vadd.f32 0.0, %v9762
    %v9764 = vpop.f32.mrf.mxu0
    %9765 = vmatprep.mubr.bf16.mxu0 0
    %9766 = vmatmul.mubr.bf16.gmra.mxu0 %v241
    %v9767 = vpop.f32.mrf.mxu0
    %v9768 = vadd.f32 0.0, %v9767
    %v9769 = vpop.f32.mrf.mxu0
    %v9770 = vpop.f32.mrf.mxu0
    %v9771 = vadd.f32 0.0, %v9770
    %v9772 = vpop.f32.mrf.mxu0
    %9773 = vmatprep.mubr.bf16.mxu0 0
    %9774 = vmatmul.mubr.bf16.gmra.mxu0 %v244
    %v9775 = vpop.f32.mrf.mxu0
    %v9776 = vadd.f32 0.0, %v9775
    %v9777 = vpop.f32.mrf.mxu0
    %v9778 = vpop.f32.mrf.mxu0
    %v9779 = vadd.f32 0.0, %v9778
    %v9780 = vpop.f32.mrf.mxu0
    %9781 = vmatprep.mubr.bf16.mxu0 0
    %9782 = vmatmul.mubr.bf16.gmra.mxu0 %v247
    %v9783 = vpop.f32.mrf.mxu0
    %v9784 = vadd.f32 0.0, %v9783
    %v9785 = vpop.f32.mrf.mxu0
    %v9786 = vpop.f32.mrf.mxu0
    %v9787 = vadd.f32 0.0, %v9786
    %v9788 = vpop.f32.mrf.mxu0
    %9789 = vmatprep.mubr.bf16.mxu0 0
    %9790 = vmatmul.mubr.bf16.gmra.mxu0 %v250
    %v9791 = vpop.f32.mrf.mxu0
    %v9792 = vadd.f32 0.0, %v9791
    %v9793 = vpop.f32.mrf.mxu0
    %v9794 = vpop.f32.mrf.mxu0
    %v9795 = vadd.f32 0.0, %v9794
    %v9796 = vpop.f32.mrf.mxu0
    %9797 = vmatprep.mubr.bf16.mxu0 0
    %9798 = vmatmul.mubr.bf16.gmra.mxu0 %v253
    %v9799 = vpop.f32.mrf.mxu0
    %v9800 = vadd.f32 0.0, %v9799
    %v9801 = vpop.f32.mrf.mxu0
    %v9802 = vpop.f32.mrf.mxu0
    %v9803 = vadd.f32 0.0, %v9802
    %v9804 = vpop.f32.mrf.mxu0
    %9805 = vmatprep.mubr.bf16.mxu0 0
    %9806 = vmatmul.mubr.bf16.gmra.mxu0 %v256
    %v9807 = vpop.f32.mrf.mxu0
    %v9808 = vadd.f32 0.0, %v9807
    %v9809 = vpop.f32.mrf.mxu0
    %v9810 = vpop.f32.mrf.mxu0
    %v9811 = vadd.f32 0.0, %v9810
    %v9812 = vpop.f32.mrf.mxu0
    %9813 = vmatprep.mubr.bf16.mxu0 0
    %9814 = vmatmul.mubr.bf16.gmra.mxu0 %v259
    %v9815 = vpop.f32.mrf.mxu0
    %v9816 = vadd.f32 0.0, %v9815
    %v9817 = vpop.f32.mrf.mxu0
    %v9818 = vpop.f32.mrf.mxu0
    %v9819 = vadd.f32 0.0, %v9818
    %v9820 = vpop.f32.mrf.mxu0
    %9821 = vdwg.mxu0
    %9822 = vmatprep.subr.mxu0 0.0
    %9823 = vmatpush1.msra.mxu0 %v9627
    %9824 = vmatprep.subr.mxu0 0.0
    %9825 = vmatpush1.msra.mxu0 %v9624
    %9826 = vmatprep.subr.mxu0 0.0
    %9827 = vmatpush1.msra.mxu0 %v9619
    %9828 = vmatprep.subr.mxu0 0.0
    %9829 = vmatpush1.msra.mxu0 %v9616
    %9830 = vmatprep.subr.mxu0 0.0
    %9831 = vmatpush1.msra.mxu0 %v9611
    %9832 = vmatprep.subr.mxu0 0.0
    %9833 = vmatpush1.msra.mxu0 %v9608
    %9834 = vmatprep.subr.mxu0 0.0
    %9835 = vmatpush1.msra.mxu0 %v9603
    %9836 = vmatprep.subr.mxu0 0.0
    %9837 = vmatpush1.msra.mxu0 %v9600
    %9838 = vmatprep.subr.mxu0 0.0
    %9839 = vmatpush1.msra.mxu0 %v9595
    %9840 = vmatprep.subr.mxu0 0.0
    %9841 = vmatpush1.msra.mxu0 %v9592
    %9842 = vmatprep.subr.mxu0 0.0
    %9843 = vmatpush1.msra.mxu0 %v9587
    %9844 = vmatprep.subr.mxu0 0.0
    %9845 = vmatpush1.msra.mxu0 %v9584
    %9846 = vmatprep.subr.mxu0 0.0
    %9847 = vmatpush1.msra.mxu0 %v9579
    %9848 = vmatprep.subr.mxu0 0.0
    %9849 = vmatpush1.msra.mxu0 %v9576
    %9850 = vmatprep.subr.mxu0 0.0
    %9851 = vmatpush1.msra.mxu0 %v9571
    %9852 = vmatprep.subr.mxu0 0.0
    %9853 = vmatpush1.msra.mxu0 %v9568
    %9854 = vmatprep.subr.mxu0 0.0
    %9855 = vmatpush2.msra.mxu0 %v9691
    %9856 = vmatprep.subr.mxu0 0.0
    %9857 = vmatpush2.msra.mxu0 %v9688
    %9858 = vmatprep.subr.mxu0 0.0
    %9859 = vmatpush2.msra.mxu0 %v9683
    %9860 = vmatprep.subr.mxu0 0.0
    %9861 = vmatpush2.msra.mxu0 %v9680
    %9862 = vmatprep.subr.mxu0 0.0
    %9863 = vmatpush2.msra.mxu0 %v9675
    %9864 = vmatprep.subr.mxu0 0.0
    %9865 = vmatpush2.msra.mxu0 %v9672
    %9866 = vmatprep.subr.mxu0 0.0
    %9867 = vmatpush2.msra.mxu0 %v9667
    %9868 = vmatprep.subr.mxu0 0.0
    %9869 = vmatpush2.msra.mxu0 %v9664
    %9870 = vmatprep.subr.mxu0 0.0
    %9871 = vmatpush2.msra.mxu0 %v9659
    %9872 = vmatprep.subr.mxu0 0.0
    %9873 = vmatpush2.msra.mxu0 %v9656
    %9874 = vmatprep.subr.mxu0 0.0
    %9875 = vmatpush2.msra.mxu0 %v9651
    %9876 = vmatprep.subr.mxu0 0.0
    %9877 = vmatpush2.msra.mxu0 %v9648
    %9878 = vmatprep.subr.mxu0 0.0
    %9879 = vmatpush2.msra.mxu0 %v9643
    %9880 = vmatprep.subr.mxu0 0.0
    %9881 = vmatpush2.msra.mxu0 %v9640
    %9882 = vmatprep.subr.mxu0 0.0
    %9883 = vmatpush2.msra.mxu0 %v9635
    %9884 = vmatprep.subr.mxu0 0.0
    %9885 = vmatpush2.msra.mxu0 %v9632
    %9886 = vmatprep.mubr.f32.mxu0 0.001953125
    %9887 = vmatmul.mubr.f32.gmra.mxu0 0.001953125
    %v9888 = vpop.f32.mrf.mxu0
    %v9889 = vadd.f32 0.0, %v9888
    %v9890 = vpop.f32.mrf.mxu0
    %9891 = vdwg.mxu0
    %9892 = vmatprep.subr.mxu0 0.0
    %9893 = vmatpush1.msra.mxu0 %v9755
    %9894 = vmatprep.subr.mxu0 0.0
    %9895 = vmatpush1.msra.mxu0 %v9752
    %9896 = vmatprep.subr.mxu0 0.0
    %9897 = vmatpush1.msra.mxu0 %v9747
    %9898 = vmatprep.subr.mxu0 0.0
    %9899 = vmatpush1.msra.mxu0 %v9744
    %9900 = vmatprep.subr.mxu0 0.0
    %9901 = vmatpush1.msra.mxu0 %v9739
    %9902 = vmatprep.subr.mxu0 0.0
    %9903 = vmatpush1.msra.mxu0 %v9736
    %9904 = vmatprep.subr.mxu0 0.0
    %9905 = vmatpush1.msra.mxu0 %v9731
    %9906 = vmatprep.subr.mxu0 0.0
    %9907 = vmatpush1.msra.mxu0 %v9728
    %9908 = vmatprep.subr.mxu0 0.0
    %9909 = vmatpush1.msra.mxu0 %v9723
    %9910 = vmatprep.subr.mxu0 0.0
    %9911 = vmatpush1.msra.mxu0 %v9720
    %9912 = vmatprep.subr.mxu0 0.0
    %9913 = vmatpush1.msra.mxu0 %v9715
    %9914 = vmatprep.subr.mxu0 0.0
    %9915 = vmatpush1.msra.mxu0 %v9712
    %9916 = vmatprep.subr.mxu0 0.0
    %9917 = vmatpush1.msra.mxu0 %v9707
    %9918 = vmatprep.subr.mxu0 0.0
    %9919 = vmatpush1.msra.mxu0 %v9704
    %9920 = vmatprep.subr.mxu0 0.0
    %9921 = vmatpush1.msra.mxu0 %v9699
    %9922 = vmatprep.subr.mxu0 0.0
    %9923 = vmatpush1.msra.mxu0 %v9696
    %9924 = vmatprep.subr.mxu0 0.0
    %9925 = vmatpush2.msra.mxu0 %v9819
    %9926 = vmatprep.subr.mxu0 0.0
    %9927 = vmatpush2.msra.mxu0 %v9816
    %9928 = vmatprep.subr.mxu0 0.0
    %9929 = vmatpush2.msra.mxu0 %v9811
    %9930 = vmatprep.subr.mxu0 0.0
    %9931 = vmatpush2.msra.mxu0 %v9808
    %9932 = vmatprep.subr.mxu0 0.0
    %9933 = vmatpush2.msra.mxu0 %v9803
    %9934 = vmatprep.subr.mxu0 0.0
    %9935 = vmatpush2.msra.mxu0 %v9800
    %9936 = vmatprep.subr.mxu0 0.0
    %9937 = vmatpush2.msra.mxu0 %v9795
    %9938 = vmatprep.subr.mxu0 0.0
    %9939 = vmatpush2.msra.mxu0 %v9792
    %9940 = vmatprep.subr.mxu0 0.0
    %9941 = vmatpush2.msra.mxu0 %v9787
    %9942 = vmatprep.subr.mxu0 0.0
    %9943 = vmatpush2.msra.mxu0 %v9784
    %9944 = vmatprep.subr.mxu0 0.0
    %9945 = vmatpush2.msra.mxu0 %v9779
    %9946 = vmatprep.subr.mxu0 0.0
    %9947 = vmatpush2.msra.mxu0 %v9776
    %9948 = vmatprep.subr.mxu0 0.0
    %9949 = vmatpush2.msra.mxu0 %v9771
    %9950 = vmatprep.subr.mxu0 0.0
    %9951 = vmatpush2.msra.mxu0 %v9768
    %9952 = vmatprep.subr.mxu0 0.0
    %9953 = vmatpush2.msra.mxu0 %v9763
    %9954 = vmatprep.subr.mxu0 0.0
    %9955 = vmatpush2.msra.mxu0 %v9760
    %9956 = vmatprep.mubr.f32.mxu0 0.001953125
    %9957 = vmatmul.mubr.f32.gmra.mxu0 0.001953125
    %v9958 = vpop.f32.mrf.mxu0
    %v9959 = vadd.f32 %v9889, %v9958
    %v9960 = vpop.f32.mrf.mxu0
    %9961 = vdwg.mxu0
    %v9962 = vmul.f32 %v9568, %v9568
    %v9963 = vmul.f32 %v9571, %v9571
    %v9964 = vmul.f32 %v9576, %v9576
    %v9965 = vmul.f32 %v9579, %v9579
    %v9966 = vmul.f32 %v9584, %v9584
    %v9967 = vmul.f32 %v9587, %v9587
    %v9968 = vmul.f32 %v9592, %v9592
    %v9969 = vmul.f32 %v9595, %v9595
    %v9970 = vmul.f32 %v9600, %v9600
    %v9971 = vmul.f32 %v9603, %v9603
    %v9972 = vmul.f32 %v9608, %v9608
    %v9973 = vmul.f32 %v9611, %v9611
    %v9974 = vmul.f32 %v9616, %v9616
    %v9975 = vmul.f32 %v9619, %v9619
    %v9976 = vmul.f32 %v9624, %v9624
    %v9977 = vmul.f32 %v9627, %v9627
    %v9978 = vmul.f32 %v9632, %v9632
    %v9979 = vmul.f32 %v9635, %v9635
    %v9980 = vmul.f32 %v9640, %v9640
    %v9981 = vmul.f32 %v9643, %v9643
    %v9982 = vmul.f32 %v9648, %v9648
    %v9983 = vmul.f32 %v9651, %v9651
    %v9984 = vmul.f32 %v9656, %v9656
    %v9985 = vmul.f32 %v9659, %v9659
    %v9986 = vmul.f32 %v9664, %v9664
    %v9987 = vmul.f32 %v9667, %v9667
    %v9988 = vmul.f32 %v9672, %v9672
    %v9989 = vmul.f32 %v9675, %v9675
    %v9990 = vmul.f32 %v9680, %v9680
    %v9991 = vmul.f32 %v9683, %v9683
    %v9992 = vmul.f32 %v9688, %v9688
    %v9993 = vmul.f32 %v9691, %v9691
    %v9994 = vmul.f32 %v9696, %v9696
    %v9995 = vmul.f32 %v9699, %v9699
    %v9996 = vmul.f32 %v9704, %v9704
    %v9997 = vmul.f32 %v9707, %v9707
    %v9998 = vmul.f32 %v9712, %v9712
    %v9999 = vmul.f32 %v9715, %v9715
    %v10000 = vmul.f32 %v9720, %v9720
    %v10001 = vmul.f32 %v9723, %v9723
    %v10002 = vmul.f32 %v9728, %v9728
    %v10003 = vmul.f32 %v9731, %v9731
    %v10004 = vmul.f32 %v9736, %v9736
    %v10005 = vmul.f32 %v9739, %v9739
    %v10006 = vmul.f32 %v9744, %v9744
    %v10007 = vmul.f32 %v9747, %v9747
    %v10008 = vmul.f32 %v9752, %v9752
    %v10009 = vmul.f32 %v9755, %v9755
    %v10010 = vmul.f32 %v9760, %v9760
    %v10011 = vmul.f32 %v9763, %v9763
    %v10012 = vmul.f32 %v9768, %v9768
    %v10013 = vmul.f32 %v9771, %v9771
    %v10014 = vmul.f32 %v9776, %v9776
    %v10015 = vmul.f32 %v9779, %v9779
    %v10016 = vmul.f32 %v9784, %v9784
    %v10017 = vmul.f32 %v9787, %v9787
    %v10018 = vmul.f32 %v9792, %v9792
    %v10019 = vmul.f32 %v9795, %v9795
    %v10020 = vmul.f32 %v9800, %v9800
    %v10021 = vmul.f32 %v9803, %v9803
    %v10022 = vmul.f32 %v9808, %v9808
    %v10023 = vmul.f32 %v9811, %v9811
    %v10024 = vmul.f32 %v9816, %v9816
    %v10025 = vmul.f32 %v9819, %v9819
    %10026 = vmatprep.subr.mxu0 0.0
    %10027 = vmatpush1.msra.mxu0 %v9977
    %10028 = vmatprep.subr.mxu0 0.0
    %10029 = vmatpush1.msra.mxu0 %v9976
    %10030 = vmatprep.subr.mxu0 0.0
    %10031 = vmatpush1.msra.mxu0 %v9975
    %10032 = vmatprep.subr.mxu0 0.0
    %10033 = vmatpush1.msra.mxu0 %v9974
    %10034 = vmatprep.subr.mxu0 0.0
    %10035 = vmatpush1.msra.mxu0 %v9973
    %10036 = vmatprep.subr.mxu0 0.0
    %10037 = vmatpush1.msra.mxu0 %v9972
    %10038 = vmatprep.subr.mxu0 0.0
    %10039 = vmatpush1.msra.mxu0 %v9971
    %10040 = vmatprep.subr.mxu0 0.0
    %10041 = vmatpush1.msra.mxu0 %v9970
    %10042 = vmatprep.subr.mxu0 0.0
    %10043 = vmatpush1.msra.mxu0 %v9969
    %10044 = vmatprep.subr.mxu0 0.0
    %10045 = vmatpush1.msra.mxu0 %v9968
    %10046 = vmatprep.subr.mxu0 0.0
    %10047 = vmatpush1.msra.mxu0 %v9967
    %10048 = vmatprep.subr.mxu0 0.0
    %10049 = vmatpush1.msra.mxu0 %v9966
    %10050 = vmatprep.subr.mxu0 0.0
    %10051 = vmatpush1.msra.mxu0 %v9965
    %10052 = vmatprep.subr.mxu0 0.0
    %10053 = vmatpush1.msra.mxu0 %v9964
    %10054 = vmatprep.subr.mxu0 0.0
    %10055 = vmatpush1.msra.mxu0 %v9963
    %10056 = vmatprep.subr.mxu0 0.0
    %10057 = vmatpush1.msra.mxu0 %v9962
    %10058 = vmatprep.subr.mxu0 0.0
    %10059 = vmatpush2.msra.mxu0 %v9993
    %10060 = vmatprep.subr.mxu0 0.0
    %10061 = vmatpush2.msra.mxu0 %v9992
    %10062 = vmatprep.subr.mxu0 0.0
    %10063 = vmatpush2.msra.mxu0 %v9991
    %10064 = vmatprep.subr.mxu0 0.0
    %10065 = vmatpush2.msra.mxu0 %v9990
    %10066 = vmatprep.subr.mxu0 0.0
    %10067 = vmatpush2.msra.mxu0 %v9989
    %10068 = vmatprep.subr.mxu0 0.0
    %10069 = vmatpush2.msra.mxu0 %v9988
    %10070 = vmatprep.subr.mxu0 0.0
    %10071 = vmatpush2.msra.mxu0 %v9987
    %10072 = vmatprep.subr.mxu0 0.0
    %10073 = vmatpush2.msra.mxu0 %v9986
    %10074 = vmatprep.subr.mxu0 0.0
    %10075 = vmatpush2.msra.mxu0 %v9985
    %10076 = vmatprep.subr.mxu0 0.0
    %10077 = vmatpush2.msra.mxu0 %v9984
    %10078 = vmatprep.subr.mxu0 0.0
    %10079 = vmatpush2.msra.mxu0 %v9983
    %10080 = vmatprep.subr.mxu0 0.0
    %10081 = vmatpush2.msra.mxu0 %v9982
    %10082 = vmatprep.subr.mxu0 0.0
    %10083 = vmatpush2.msra.mxu0 %v9981
    %10084 = vmatprep.subr.mxu0 0.0
    %10085 = vmatpush2.msra.mxu0 %v9980
    %10086 = vmatprep.subr.mxu0 0.0
    %10087 = vmatpush2.msra.mxu0 %v9979
    %10088 = vmatprep.subr.mxu0 0.0
    %10089 = vmatpush2.msra.mxu0 %v9978
    %10090 = vmatprep.mubr.f32.mxu0 0.001953125
    %10091 = vmatmul.mubr.f32.gmra.mxu0 0.001953125
    %v10092 = vpop.f32.mrf.mxu0
    %v10093 = vadd.f32 0.0, %v10092
    %v10094 = vpop.f32.mrf.mxu0
    %10095 = vdwg.mxu0
    %10096 = vmatprep.subr.mxu0 0.0
    %10097 = vmatpush1.msra.mxu0 %v10009
    %10098 = vmatprep.subr.mxu0 0.0
    %10099 = vmatpush1.msra.mxu0 %v10008
    %10100 = vmatprep.subr.mxu0 0.0
    %10101 = vmatpush1.msra.mxu0 %v10007
    %10102 = vmatprep.subr.mxu0 0.0
    %10103 = vmatpush1.msra.mxu0 %v10006
    %10104 = vmatprep.subr.mxu0 0.0
    %10105 = vmatpush1.msra.mxu0 %v10005
    %10106 = vmatprep.subr.mxu0 0.0
    %10107 = vmatpush1.msra.mxu0 %v10004
    %10108 = vmatprep.subr.mxu0 0.0
    %10109 = vmatpush1.msra.mxu0 %v10003
    %10110 = vmatprep.subr.mxu0 0.0
    %10111 = vmatpush1.msra.mxu0 %v10002
    %10112 = vmatprep.subr.mxu0 0.0
    %10113 = vmatpush1.msra.mxu0 %v10001
    %10114 = vmatprep.subr.mxu0 0.0
    %10115 = vmatpush1.msra.mxu0 %v10000
    %10116 = vmatprep.subr.mxu0 0.0
    %10117 = vmatpush1.msra.mxu0 %v9999
    %10118 = vmatprep.subr.mxu0 0.0
    %10119 = vmatpush1.msra.mxu0 %v9998
    %10120 = vmatprep.subr.mxu0 0.0
    %10121 = vmatpush1.msra.mxu0 %v9997
    %10122 = vmatprep.subr.mxu0 0.0
    %10123 = vmatpush1.msra.mxu0 %v9996
    %10124 = vmatprep.subr.mxu0 0.0
    %10125 = vmatpush1.msra.mxu0 %v9995
    %10126 = vmatprep.subr.mxu0 0.0
    %10127 = vmatpush1.msra.mxu0 %v9994
    %10128 = vmatprep.subr.mxu0 0.0
    %10129 = vmatpush2.msra.mxu0 %v10025
    %10130 = vmatprep.subr.mxu0 0.0
    %10131 = vmatpush2.msra.mxu0 %v10024
    %10132 = vmatprep.subr.mxu0 0.0
    %10133 = vmatpush2.msra.mxu0 %v10023
    %10134 = vmatprep.subr.mxu0 0.0
    %10135 = vmatpush2.msra.mxu0 %v10022
    %10136 = vmatprep.subr.mxu0 0.0
    %10137 = vmatpush2.msra.mxu0 %v10021
    %10138 = vmatprep.subr.mxu0 0.0
    %10139 = vmatpush2.msra.mxu0 %v10020
    %10140 = vmatprep.subr.mxu0 0.0
    %10141 = vmatpush2.msra.mxu0 %v10019
    %10142 = vmatprep.subr.mxu0 0.0
    %10143 = vmatpush2.msra.mxu0 %v10018
    %10144 = vmatprep.subr.mxu0 0.0
    %10145 = vmatpush2.msra.mxu0 %v10017
    %10146 = vmatprep.subr.mxu0 0.0
    %10147 = vmatpush2.msra.mxu0 %v10016
    %10148 = vmatprep.subr.mxu0 0.0
    %10149 = vmatpush2.msra.mxu0 %v10015
    %10150 = vmatprep.subr.mxu0 0.0
    %10151 = vmatpush2.msra.mxu0 %v10014
    %10152 = vmatprep.subr.mxu0 0.0
    %10153 = vmatpush2.msra.mxu0 %v10013
    %10154 = vmatprep.subr.mxu0 0.0
    %10155 = vmatpush2.msra.mxu0 %v10012
    %10156 = vmatprep.subr.mxu0 0.0
    %10157 = vmatpush2.msra.mxu0 %v10011
    %10158 = vmatprep.subr.mxu0 0.0
    %10159 = vmatpush2.msra.mxu0 %v10010
    %10160 = vmatprep.mubr.f32.mxu0 0.001953125
    %10161 = vmatmul.mubr.f32.gmra.mxu0 0.001953125
    %v10162 = vpop.f32.mrf.mxu0
    %v10163 = vadd.f32 %v10093, %v10162
    %v10164 = vpop.f32.mrf.mxu0
    %10165 = vdwg.mxu0
    %v10166 = vmul.f32 %v9959, %v9959
    %v10167 = vsub.f32 %v10163, %v10166
    %v10168 = vmax.f32 %v10167, 0.0
    %v10169 = vld [vmem:[%s11] sm:$0x1]
    %v10170 = vadd.f32 %v10168, 1e-05
    %v10171 = vrsqrt.pop %v10170
    %v10172 = vmul.f32 %v10169, %v10171
    %v10173 = vld [vmem:[%s12] sm:$0x1]
    %v10174 = vmul.f32 %v9959, %v10172
    %v10175 = vsub.f32 %v10173, %v10174
    %v10177 = vlaneseq
    %v10178 = vshrl.u32 %v10177, 7
    %v10179 = vsub.s32 0, %v10178
    %v10180 = vrot.slane %v10172, %v10179
    %v10182 = vmul.f32 %v9568, %v10180
    %v10183 = vmul.f32 %v9571, %v10180
    %v10184 = vmul.f32 %v9576, %v10180
    %v10185 = vmul.f32 %v9579, %v10180
    %v10186 = vmul.f32 %v9584, %v10180
    %v10187 = vmul.f32 %v9587, %v10180
    %v10188 = vmul.f32 %v9592, %v10180
    %v10189 = vmul.f32 %v9595, %v10180
    %v10190 = vmul.f32 %v9600, %v10180
    %v10191 = vmul.f32 %v9603, %v10180
    %v10192 = vmul.f32 %v9608, %v10180
    %v10193 = vmul.f32 %v9611, %v10180
    %v10194 = vmul.f32 %v9616, %v10180
    %v10195 = vmul.f32 %v9619, %v10180
    %v10196 = vmul.f32 %v9624, %v10180
    %v10197 = vmul.f32 %v9627, %v10180
    %v10198 = vmul.f32 %v9632, %v10180
    %v10199 = vmul.f32 %v9635, %v10180
    %v10200 = vmul.f32 %v9640, %v10180
    %v10201 = vmul.f32 %v9643, %v10180
    %v10202 = vmul.f32 %v9648, %v10180
    %v10203 = vmul.f32 %v9651, %v10180
    %v10204 = vmul.f32 %v9656, %v10180
    %v10205 = vmul.f32 %v9659, %v10180
    %v10206 = vmul.f32 %v9664, %v10180
    %v10207 = vmul.f32 %v9667, %v10180
    %v10208 = vmul.f32 %v9672, %v10180
    %v10209 = vmul.f32 %v9675, %v10180
    %v10210 = vmul.f32 %v9680, %v10180
    %v10211 = vmul.f32 %v9683, %v10180
    %v10212 = vmul.f32 %v9688, %v10180
    %v10213 = vmul.f32 %v9691, %v10180
    %v10214 = vmul.f32 %v9696, %v10180
    %v10215 = vmul.f32 %v9699, %v10180
    %v10216 = vmul.f32 %v9704, %v10180
    %v10217 = vmul.f32 %v9707, %v10180
    %v10218 = vmul.f32 %v9712, %v10180
    %v10219 = vmul.f32 %v9715, %v10180
    %v10220 = vmul.f32 %v9720, %v10180
    %v10221 = vmul.f32 %v9723, %v10180
    %v10222 = vmul.f32 %v9728, %v10180
    %v10223 = vmul.f32 %v9731, %v10180
    %v10224 = vmul.f32 %v9736, %v10180
    %v10225 = vmul.f32 %v9739, %v10180
    %v10226 = vmul.f32 %v9744, %v10180
    %v10227 = vmul.f32 %v9747, %v10180
    %v10228 = vmul.f32 %v9752, %v10180
    %v10229 = vmul.f32 %v9755, %v10180
    %v10230 = vmul.f32 %v9760, %v10180
    %v10231 = vmul.f32 %v9763, %v10180
    %v10232 = vmul.f32 %v9768, %v10180
    %v10233 = vmul.f32 %v9771, %v10180
    %v10234 = vmul.f32 %v9776, %v10180
    %v10235 = vmul.f32 %v9779, %v10180
    %v10236 = vmul.f32 %v9784, %v10180
    %v10237 = vmul.f32 %v9787, %v10180
    %v10238 = vmul.f32 %v9792, %v10180
    %v10239 = vmul.f32 %v9795, %v10180
    %v10240 = vmul.f32 %v9800, %v10180
    %v10241 = vmul.f32 %v9803, %v10180
    %v10242 = vmul.f32 %v9808, %v10180
    %v10243 = vmul.f32 %v9811, %v10180
    %v10244 = vmul.f32 %v9816, %v10180
    %v10245 = vmul.f32 %v9819, %v10180
    %v10247 = vlaneseq
    %v10248 = vshrl.u32 %v10247, 7
    %v10249 = vsub.s32 0, %v10248
    %v10250 = vrot.slane %v10175, %v10249
    %v10252 = vadd.f32 %v10182, %v10250
    %v10253 = vadd.f32 %v10183, %v10250
    %v10254 = vadd.f32 %v10184, %v10250
    %v10255 = vadd.f32 %v10185, %v10250
    %v10256 = vadd.f32 %v10186, %v10250
    %v10257 = vadd.f32 %v10187, %v10250
    %v10258 = vadd.f32 %v10188, %v10250
    %v10259 = vadd.f32 %v10189, %v10250
    %v10260 = vadd.f32 %v10190, %v10250
    %v10261 = vadd.f32 %v10191, %v10250
    %v10262 = vadd.f32 %v10192, %v10250
    %v10263 = vadd.f32 %v10193, %v10250
    %v10264 = vadd.f32 %v10194, %v10250
    %v10265 = vadd.f32 %v10195, %v10250
    %v10266 = vadd.f32 %v10196, %v10250
    %v10267 = vadd.f32 %v10197, %v10250
    %v10268 = vadd.f32 %v10198, %v10250
    %v10269 = vadd.f32 %v10199, %v10250
    %v10270 = vadd.f32 %v10200, %v10250
    %v10271 = vadd.f32 %v10201, %v10250
    %v10272 = vadd.f32 %v10202, %v10250
    %v10273 = vadd.f32 %v10203, %v10250
    %v10274 = vadd.f32 %v10204, %v10250
    %v10275 = vadd.f32 %v10205, %v10250
    %v10276 = vadd.f32 %v10206, %v10250
    %v10277 = vadd.f32 %v10207, %v10250
    %v10278 = vadd.f32 %v10208, %v10250
    %v10279 = vadd.f32 %v10209, %v10250
    %v10280 = vadd.f32 %v10210, %v10250
    %v10281 = vadd.f32 %v10211, %v10250
    %v10282 = vadd.f32 %v10212, %v10250
    %v10283 = vadd.f32 %v10213, %v10250
    %v10284 = vadd.f32 %v10214, %v10250
    %v10285 = vadd.f32 %v10215, %v10250
    %v10286 = vadd.f32 %v10216, %v10250
    %v10287 = vadd.f32 %v10217, %v10250
    %v10288 = vadd.f32 %v10218, %v10250
    %v10289 = vadd.f32 %v10219, %v10250
    %v10290 = vadd.f32 %v10220, %v10250
    %v10291 = vadd.f32 %v10221, %v10250
    %v10292 = vadd.f32 %v10222, %v10250
    %v10293 = vadd.f32 %v10223, %v10250
    %v10294 = vadd.f32 %v10224, %v10250
    %v10295 = vadd.f32 %v10225, %v10250
    %v10296 = vadd.f32 %v10226, %v10250
    %v10297 = vadd.f32 %v10227, %v10250
    %v10298 = vadd.f32 %v10228, %v10250
    %v10299 = vadd.f32 %v10229, %v10250
    %v10300 = vadd.f32 %v10230, %v10250
    %v10301 = vadd.f32 %v10231, %v10250
    %v10302 = vadd.f32 %v10232, %v10250
    %v10303 = vadd.f32 %v10233, %v10250
    %v10304 = vadd.f32 %v10234, %v10250
    %v10305 = vadd.f32 %v10235, %v10250
    %v10306 = vadd.f32 %v10236, %v10250
    %v10307 = vadd.f32 %v10237, %v10250
    %v10308 = vadd.f32 %v10238, %v10250
    %v10309 = vadd.f32 %v10239, %v10250
    %v10310 = vadd.f32 %v10240, %v10250
    %v10311 = vadd.f32 %v10241, %v10250
    %v10312 = vadd.f32 %v10242, %v10250
    %v10313 = vadd.f32 %v10243, %v10250
    %v10314 = vadd.f32 %v10244, %v10250
    %v10315 = vadd.f32 %v10245, %v10250
    %v10316 = vadd.f32 %v9461, %v10252
    %v10317 = vadd.f32 %v9462, %v10253
    %v10318 = vadd.f32 %v9463, %v10254
    %v10319 = vadd.f32 %v9464, %v10255
    %v10320 = vadd.f32 %v9465, %v10256
    %v10321 = vadd.f32 %v9466, %v10257
    %v10322 = vadd.f32 %v9467, %v10258
    %v10323 = vadd.f32 %v9468, %v10259
    %v10324 = vadd.f32 %v9469, %v10260
    %v10325 = vadd.f32 %v9470, %v10261
    %v10326 = vadd.f32 %v9471, %v10262
    %v10327 = vadd.f32 %v9472, %v10263
    %v10328 = vadd.f32 %v9473, %v10264
    %v10329 = vadd.f32 %v9474, %v10265
    %v10330 = vadd.f32 %v9475, %v10266
    %v10331 = vadd.f32 %v9476, %v10267
    %v10332 = vadd.f32 %v9477, %v10268
    %v10333 = vadd.f32 %v9478, %v10269
    %v10334 = vadd.f32 %v9479, %v10270
    %v10335 = vadd.f32 %v9480, %v10271
    %v10336 = vadd.f32 %v9481, %v10272
    %v10337 = vadd.f32 %v9482, %v10273
    %v10338 = vadd.f32 %v9483, %v10274
    %v10339 = vadd.f32 %v9484, %v10275
    %v10340 = vadd.f32 %v9485, %v10276
    %v10341 = vadd.f32 %v9486, %v10277
    %v10342 = vadd.f32 %v9487, %v10278
    %v10343 = vadd.f32 %v9488, %v10279
    %v10344 = vadd.f32 %v9489, %v10280
    %v10345 = vadd.f32 %v9490, %v10281
    %v10346 = vadd.f32 %v9491, %v10282
    %v10347 = vadd.f32 %v9492, %v10283
    %v10348 = vadd.f32 %v9493, %v10284
    %v10349 = vadd.f32 %v9494, %v10285
    %v10350 = vadd.f32 %v9495, %v10286
    %v10351 = vadd.f32 %v9496, %v10287
    %v10352 = vadd.f32 %v9497, %v10288
    %v10353 = vadd.f32 %v9498, %v10289
    %v10354 = vadd.f32 %v9499, %v10290
    %v10355 = vadd.f32 %v9500, %v10291
    %v10356 = vadd.f32 %v9501, %v10292
    %v10357 = vadd.f32 %v9502, %v10293
    %v10358 = vadd.f32 %v9503, %v10294
    %v10359 = vadd.f32 %v9504, %v10295
    %v10360 = vadd.f32 %v9505, %v10296
    %v10361 = vadd.f32 %v9506, %v10297
    %v10362 = vadd.f32 %v9507, %v10298
    %v10363 = vadd.f32 %v9508, %v10299
    %v10364 = vadd.f32 %v9509, %v10300
    %v10365 = vadd.f32 %v9510, %v10301
    %v10366 = vadd.f32 %v9511, %v10302
    %v10367 = vadd.f32 %v9512, %v10303
    %v10368 = vadd.f32 %v9513, %v10304
    %v10369 = vadd.f32 %v9514, %v10305
    %v10370 = vadd.f32 %v9515, %v10306
    %v10371 = vadd.f32 %v9516, %v10307
    %v10372 = vadd.f32 %v9517, %v10308
    %v10373 = vadd.f32 %v9518, %v10309
    %v10374 = vadd.f32 %v9519, %v10310
    %v10375 = vadd.f32 %v9520, %v10311
    %v10376 = vadd.f32 %v9521, %v10312
    %v10377 = vadd.f32 %v9522, %v10313
    %v10378 = vadd.f32 %v9523, %v10314
    %v10379 = vadd.f32 %v9524, %v10315
    %v10380 = vmax.f32 %v10316, 0.0
    %v10381 = vmax.f32 %v10317, 0.0
    %v10382 = vmax.f32 %v10318, 0.0
    %v10383 = vmax.f32 %v10319, 0.0
    %v10384 = vmax.f32 %v10320, 0.0
    %v10385 = vmax.f32 %v10321, 0.0
    %v10386 = vmax.f32 %v10322, 0.0
    %v10387 = vmax.f32 %v10323, 0.0
    %v10388 = vmax.f32 %v10324, 0.0
    %v10389 = vmax.f32 %v10325, 0.0
    %v10390 = vmax.f32 %v10326, 0.0
    %v10391 = vmax.f32 %v10327, 0.0
    %v10392 = vmax.f32 %v10328, 0.0
    %v10393 = vmax.f32 %v10329, 0.0
    %v10394 = vmax.f32 %v10330, 0.0
    %v10395 = vmax.f32 %v10331, 0.0
    %v10396 = vmax.f32 %v10332, 0.0
    %v10397 = vmax.f32 %v10333, 0.0
    %v10398 = vmax.f32 %v10334, 0.0
    %v10399 = vmax.f32 %v10335, 0.0
    %v10400 = vmax.f32 %v10336, 0.0
    %v10401 = vmax.f32 %v10337, 0.0
    %v10402 = vmax.f32 %v10338, 0.0
    %v10403 = vmax.f32 %v10339, 0.0
    %v10404 = vmax.f32 %v10340, 0.0
    %v10405 = vmax.f32 %v10341, 0.0
    %v10406 = vmax.f32 %v10342, 0.0
    %v10407 = vmax.f32 %v10343, 0.0
    %v10408 = vmax.f32 %v10344, 0.0
    %v10409 = vmax.f32 %v10345, 0.0
    %v10410 = vmax.f32 %v10346, 0.0
    %v10411 = vmax.f32 %v10347, 0.0
    %v10412 = vmax.f32 %v10348, 0.0
    %v10413 = vmax.f32 %v10349, 0.0
    %v10414 = vmax.f32 %v10350, 0.0
    %v10415 = vmax.f32 %v10351, 0.0
    %v10416 = vmax.f32 %v10352, 0.0
    %v10417 = vmax.f32 %v10353, 0.0
    %v10418 = vmax.f32 %v10354, 0.0
    %v10419 = vmax.f32 %v10355, 0.0
    %v10420 = vmax.f32 %v10356, 0.0
    %v10421 = vmax.f32 %v10357, 0.0
    %v10422 = vmax.f32 %v10358, 0.0
    %v10423 = vmax.f32 %v10359, 0.0
    %v10424 = vmax.f32 %v10360, 0.0
    %v10425 = vmax.f32 %v10361, 0.0
    %v10426 = vmax.f32 %v10362, 0.0
    %v10427 = vmax.f32 %v10363, 0.0
    %v10428 = vmax.f32 %v10364, 0.0
    %v10429 = vmax.f32 %v10365, 0.0
    %v10430 = vmax.f32 %v10366, 0.0
    %v10431 = vmax.f32 %v10367, 0.0
    %v10432 = vmax.f32 %v10368, 0.0
    %v10433 = vmax.f32 %v10369, 0.0
    %v10434 = vmax.f32 %v10370, 0.0
    %v10435 = vmax.f32 %v10371, 0.0
    %v10436 = vmax.f32 %v10372, 0.0
    %v10437 = vmax.f32 %v10373, 0.0
    %v10438 = vmax.f32 %v10374, 0.0
    %v10439 = vmax.f32 %v10375, 0.0
    %v10440 = vmax.f32 %v10376, 0.0
    %v10441 = vmax.f32 %v10377, 0.0
    %v10442 = vmax.f32 %v10378, 0.0
    %v10443 = vmax.f32 %v10379, 0.0
    %10444 = vst.msk [vmem:[#allocation6] sm:$0xff] %vm7333, %v10380
    %10445 = vst.msk [vmem:[#allocation6 + $0x8] sm:$0xff] %vm7333, %v10381
    %10446 = vst.msk [vmem:[#allocation6 + $0x10] sm:$0xff] %vm7333, %v10382
    %10447 = vst.msk [vmem:[#allocation6 + $0x18] sm:$0xff] %vm7333, %v10383
    %10448 = vst.msk [vmem:[#allocation6 + $0x20] sm:$0xff] %vm7333, %v10384
    %10449 = vst.msk [vmem:[#allocation6 + $0x28] sm:$0xff] %vm7333, %v10385
    %10450 = vst.msk [vmem:[#allocation6 + $0x30] sm:$0xff] %vm7333, %v10386
    %10451 = vst.msk [vmem:[#allocation6 + $0x38] sm:$0xff] %vm7333, %v10387
    %10452 = vst.msk [vmem:[#allocation6 + $0x40] sm:$0xff] %vm7333, %v10388
    %10453 = vst.msk [vmem:[#allocation6 + $0x48] sm:$0xff] %vm7333, %v10389
    %10454 = vst.msk [vmem:[#allocation6 + $0x50] sm:$0xff] %vm7333, %v10390
    %10455 = vst.msk [vmem:[#allocation6 + $0x58] sm:$0xff] %vm7333, %v10391
    %10456 = vst.msk [vmem:[#allocation6 + $0x60] sm:$0xff] %vm7333, %v10392
    %10457 = vst.msk [vmem:[#allocation6 + $0x68] sm:$0xff] %vm7333, %v10393
    %10458 = vst.msk [vmem:[#allocation6 + $0x70] sm:$0xff] %vm7333, %v10394
    %10459 = vst.msk [vmem:[#allocation6 + $0x78] sm:$0xff] %vm7333, %v10395
    %10460 = vst.msk [vmem:[#allocation6 + $0x80] sm:$0xff] %vm7333, %v10396
    %10461 = vst.msk [vmem:[#allocation6 + $0x88] sm:$0xff] %vm7333, %v10397
    %10462 = vst.msk [vmem:[#allocation6 + $0x90] sm:$0xff] %vm7333, %v10398
    %10463 = vst.msk [vmem:[#allocation6 + $0x98] sm:$0xff] %vm7333, %v10399
    %10464 = vst.msk [vmem:[#allocation6 + $0xa0] sm:$0xff] %vm7333, %v10400
    %10465 = vst.msk [vmem:[#allocation6 + $0xa8] sm:$0xff] %vm7333, %v10401
    %10466 = vst.msk [vmem:[#allocation6 + $0xb0] sm:$0xff] %vm7333, %v10402
    %10467 = vst.msk [vmem:[#allocation6 + $0xb8] sm:$0xff] %vm7333, %v10403
    %10468 = vst.msk [vmem:[#allocation6 + $0xc0] sm:$0xff] %vm7333, %v10404
    %10469 = vst.msk [vmem:[#allocation6 + $0xc8] sm:$0xff] %vm7333, %v10405
    %10470 = vst.msk [vmem:[#allocation6 + $0xd0] sm:$0xff] %vm7333, %v10406
    %10471 = vst.msk [vmem:[#allocation6 + $0xd8] sm:$0xff] %vm7333, %v10407
    %10472 = vst.msk [vmem:[#allocation6 + $0xe0] sm:$0xff] %vm7333, %v10408
    %10473 = vst.msk [vmem:[#allocation6 + $0xe8] sm:$0xff] %vm7333, %v10409
    %10474 = vst.msk [vmem:[#allocation6 + $0xf0] sm:$0xff] %vm7333, %v10410
    %10475 = vst.msk [vmem:[#allocation6 + $0xf8] sm:$0xff] %vm7333, %v10411
    %10476 = vst.msk [vmem:[#allocation6 + $0x100] sm:$0xff] %vm7333, %v10412
    %10477 = vst.msk [vmem:[#allocation6 + $0x108] sm:$0xff] %vm7333, %v10413
    %10478 = vst.msk [vmem:[#allocation6 + $0x110] sm:$0xff] %vm7333, %v10414
    %10479 = vst.msk [vmem:[#allocation6 + $0x118] sm:$0xff] %vm7333, %v10415
    %10480 = vst.msk [vmem:[#allocation6 + $0x120] sm:$0xff] %vm7333, %v10416
    %10481 = vst.msk [vmem:[#allocation6 + $0x128] sm:$0xff] %vm7333, %v10417
    %10482 = vst.msk [vmem:[#allocation6 + $0x130] sm:$0xff] %vm7333, %v10418
    %10483 = vst.msk [vmem:[#allocation6 + $0x138] sm:$0xff] %vm7333, %v10419
    %10484 = vst.msk [vmem:[#allocation6 + $0x140] sm:$0xff] %vm7333, %v10420
    %10485 = vst.msk [vmem:[#allocation6 + $0x148] sm:$0xff] %vm7333, %v10421
    %10486 = vst.msk [vmem:[#allocation6 + $0x150] sm:$0xff] %vm7333, %v10422
    %10487 = vst.msk [vmem:[#allocation6 + $0x158] sm:$0xff] %vm7333, %v10423
    %10488 = vst.msk [vmem:[#allocation6 + $0x160] sm:$0xff] %vm7333, %v10424
    %10489 = vst.msk [vmem:[#allocation6 + $0x168] sm:$0xff] %vm7333, %v10425
    %10490 = vst.msk [vmem:[#allocation6 + $0x170] sm:$0xff] %vm7333, %v10426
    %10491 = vst.msk [vmem:[#allocation6 + $0x178] sm:$0xff] %vm7333, %v10427
    %10492 = vst.msk [vmem:[#allocation6 + $0x180] sm:$0xff] %vm7333, %v10428
    %10493 = vst.msk [vmem:[#allocation6 + $0x188] sm:$0xff] %vm7333, %v10429
    %10494 = vst.msk [vmem:[#allocation6 + $0x190] sm:$0xff] %vm7333, %v10430
    %10495 = vst.msk [vmem:[#allocation6 + $0x198] sm:$0xff] %vm7333, %v10431
    %10496 = vst.msk [vmem:[#allocation6 + $0x1a0] sm:$0xff] %vm7333, %v10432
    %10497 = vst.msk [vmem:[#allocation6 + $0x1a8] sm:$0xff] %vm7333, %v10433
    %10498 = vst.msk [vmem:[#allocation6 + $0x1b0] sm:$0xff] %vm7333, %v10434
    %10499 = vst.msk [vmem:[#allocation6 + $0x1b8] sm:$0xff] %vm7333, %v10435
    %10500 = vst.msk [vmem:[#allocation6 + $0x1c0] sm:$0xff] %vm7333, %v10436
    %10501 = vst.msk [vmem:[#allocation6 + $0x1c8] sm:$0xff] %vm7333, %v10437
    %10502 = vst.msk [vmem:[#allocation6 + $0x1d0] sm:$0xff] %vm7333, %v10438
    %10503 = vst.msk [vmem:[#allocation6 + $0x1d8] sm:$0xff] %vm7333, %v10439
    %10504 = vst.msk [vmem:[#allocation6 + $0x1e0] sm:$0xff] %vm7333, %v10440
    %10505 = vst.msk [vmem:[#allocation6 + $0x1e8] sm:$0xff] %vm7333, %v10441
    %10506 = vst.msk [vmem:[#allocation6 + $0x1f0] sm:$0xff] %vm7333, %v10442
    %10507 = vst.msk [vmem:[#allocation6 + $0x1f8] sm:$0xff] %vm7333, %v10443
    // Predicated region
    $region58: #{tpu_custom_call.1} parent=1 // pred_check
      _
    $region59: #{tpu_custom_call.1} parent=1 // pred_check_branch
      %10509 = sbr.rel (0) target = $region61
    $region60: #{tpu_custom_call.1} parent=1 // pred_region
      %s10511 = ssub.s32 8192, 8192
      %10512 = vsyncadd [#allocation5], %s10511
      %s10513 = sshll.u32 [#allocation6], 4
      %s10514 = int_to_ptr.vmem [resolvable:$true] %s10513
      %10519 = dma.vmem_to_hbm [thread:$0]  %s10514, 8192, %s13, [#allocation5], 128, 128, 8
    $region61: #{tpu_custom_call.1} parent=1 // pred_fallthru
      _
    // Predicated region
    $region62: #{tpu_custom_call.1} parent=1 // pred_check
      _
    $region63: #{tpu_custom_call.1} parent=1 // pred_check_branch
      %10521 = sbr.rel (0) target = $region65
    $region64: #{tpu_custom_call.1} parent=1 // pred_region
      %10522 = dma.done [#allocation5], 8192
    $region65: #{tpu_custom_call.1} parent=1 // pred_fallthru
      _
    %10523 = vsyncpa [#allocation4], 1
    %10524 = vsyncpa [#allocation5], 1

</llo_original>
